<compile_context>
chip_gen: v6e
topology: v6e:2x2x1
jax: 0.10.0
libtpu: 0.0.40
codegen_flags: <defaults>
</compile_context>

<pallas_src>
import numpy as np
import jax
import jax.numpy as jnp
from jax.experimental import pallas as pl
from jax.experimental.pallas import tpu as pltpu

PLANE = 512          # resnet18 -> plane = 512
NUM_CLASSES = 200
BN_EPS = 1e-5        # nn.BatchNorm1d default
LANE = 128
SUB = 8


def head_kernel(feat_ref, w_top_ref, w_bot_ref, b_down_ref,
                w_metric_ref, b_metric_ref, out_ref):
    # feat tile: [TB, C, HW] f32, straight from the backbone's NCHW output.
    f = feat_ref[...]
    inv_hw = 1.0 / f.shape[-1]

    # AdaptiveConcatPool2d == cat([max over spatial, mean over spatial], dim=1).
    # Pooling is done in f32 over the HW (lane) axis -- no widened temp; the
    # only bf16 rounding left is on the small (TB, C) matmul inputs.
    mp = jnp.max(f, axis=-1)                      # [TB, C]
    ap = jnp.sum(f, axis=-1) * inv_hw             # [TB, C]

    # down Linear(2C -> C) with BatchNorm1d(eval) pre-folded into W/b;
    # concat avoided by splitting W into its max / avg halves.
    d = (jnp.dot(mp.astype(jnp.bfloat16), w_top_ref[...],
                 preferred_element_type=jnp.float32)
         + jnp.dot(ap.astype(jnp.bfloat16), w_bot_ref[...],
                   preferred_element_type=jnp.float32)
         + b_down_ref[...])
    d = jnp.maximum(d, 0.0)                       # Dropout(eval)=identity; ReLU

    # metric Linear(C -> padded num_classes); lane-dense (256-wide) store.
    out_ref[...] = (jnp.dot(d.astype(jnp.bfloat16), w_metric_ref[...],
                            preferred_element_type=jnp.float32)
                    + b_metric_ref[...])


def _round_up(x, m):
    return -(-x // m) * m


def _pick_batch_tile(B, C, HW):
    """Batch tile: multiple of 8 dividing the padded batch, VMEM-budgeted."""
    hw_pad = _round_up(HW, LANE)              # feat tile lane padding in VMEM
    c_pad = _round_up(C, SUB)
    bytes_per_row = c_pad * hw_pad * 4        # f32
    budget = 10 * 1024 * 1024                 # per pipeline buffer (x2 buffers)
    cap = max(SUB, min(256, (budget // bytes_per_row) // SUB * SUB))
    bp = _round_up(B, SUB)
    # Aim for >= 2 grid steps so the "parallel" axis can split across the two
    # v7x TensorCores (costs at most one extra ~0.35us step on v5e/v6e).
    target = min(cap, max(SUB, _round_up(bp // 2, SUB)))
    tb = SUB
    for cand in range(target, SUB - 1, -SUB):
        if bp % cand == 0:
            tb = cand
            break
    return tb, bp


def init_params(key, plane=PLANE, num_classes=NUM_CLASSES):
    """Deterministic init mirroring PyTorch nn.Linear / nn.BatchNorm1d defaults."""
    ks = jax.random.split(key, 4)

    def linear(kw, kb, fan_in, fan_out):
        bound = 1.0 / np.sqrt(fan_in)
        # stored already transposed to [in, out] for the in-kernel matmul
        w = jax.random.uniform(kw, (fan_in, fan_out), jnp.float32, -bound, bound)
        b = jax.random.uniform(kb, (1, fan_out), jnp.float32, -bound, bound)
        return w, b

    w_down, b_down = linear(ks[0], ks[1], 2 * plane, plane)
    w_metric, b_metric = linear(ks[2], ks[3], plane, num_classes)

    return dict(
        w_down=w_down, b_down=b_down,
        gamma=jnp.ones((1, plane), jnp.float32),
        beta=jnp.zeros((1, plane), jnp.float32),
        mean=jnp.zeros((1, plane), jnp.float32),
        var=jnp.ones((1, plane), jnp.float32),
        w_metric=w_metric, b_metric=b_metric,
    )


def base_model_head(feat_nchw, params):
    B, C, H, W = feat_nchw.shape
    HW = H * W

    # NCHW f32 -> (B, C, HW) is a free reshape; the feature map hits HBM once.
    # TODO(synk): a backbone emitting bf16 NHWC would halve feat HBM traffic
    # again and put channels on the lane axis.
    feat = feat_nchw.reshape(B, C, HW)

    # --- fold eval-mode BatchNorm1d into the down Linear (host side) ---
    scale = params['gamma'] * jax.lax.rsqrt(params['var'] + BN_EPS)      # [1, C]
    w_down_eff = params['w_down'] * scale                                 # [2C, C]
    b_down_eff = (params['b_down'] - params['mean']) * scale + params['beta']
    w_top = w_down_eff[:C].astype(jnp.bfloat16)    # multiplies the max-pool half
    w_bot = w_down_eff[C:].astype(jnp.bfloat16)    # multiplies the avg-pool half

    # --- pad metric head to a lane multiple (200 -> 256): lane-dense store ---
    n_cls = params['w_metric'].shape[1]
    n_pad = _round_up(n_cls, LANE)
    w_metric = jnp.zeros((C, n_pad), jnp.float32).at[:, :n_cls].set(params['w_metric'])
    w_metric = w_metric.astype(jnp.bfloat16)
    b_metric = jnp.zeros((1, n_pad), jnp.float32).at[:, :n_cls].set(params['b_metric'])

    # --- batch tiling ---
    TB, Bp = _pick_batch_tile(B, C, HW)
    if Bp != B:
        # <= 7 rows of zero padding; padded rows yield bias-only logits that
        # are sliced off below (must stay sliced if this wrapper is refactored).
        feat = jnp.pad(feat, ((0, Bp - B), (0, 0), (0, 0)))
    grid = (Bp // TB,)

    flops = 2 * Bp * (2 * C * C + C * n_pad)
    bytes_accessed = (Bp * HW * C * 4                      # feat (f32, read once)
                      + (2 * C * C + C * n_pad) * 2        # weights (bf16)
                      + (C + n_pad) * 4                    # biases (f32)
                      + Bp * n_pad * 4)                    # output (f32)

    out = pl.pallas_call(
        head_kernel,
        out_shape=jax.ShapeDtypeStruct((Bp, n_pad), jnp.float32),
        grid=grid,
        in_specs=[
            pl.BlockSpec((TB, C, HW), lambda i: (i, 0, 0)),   # feat: streamed per tile
            # The five operands below are grid-constant and stay resident.
            # TODO(synk): pipeline_mode=pl.Buffered(1) would reclaim their
            # second pipeline buffer (~1.3 MB); left at default for safety.
            pl.BlockSpec((C, C), lambda i: (0, 0)),           # w_top (max half)
            pl.BlockSpec((C, C), lambda i: (0, 0)),           # w_bot (avg half)
            pl.BlockSpec((1, C), lambda i: (0, 0)),           # folded down bias
            pl.BlockSpec((C, n_pad), lambda i: (0, 0)),       # w_metric (padded)
            pl.BlockSpec((1, n_pad), lambda i: (0, 0)),       # b_metric (padded)
        ],
        out_specs=pl.BlockSpec((TB, n_pad), lambda i: (i, 0)),
        compiler_params=pltpu.CompilerParams(
            dimension_semantics=("parallel",),
            vmem_limit_bytes=40 * 1024 * 1024),
        cost_estimate=pl.CostEstimate(
            flops=flops, transcendentals=0, bytes_accessed=bytes_accessed),
    )(feat, w_top, w_bot, b_down_eff, w_metric, b_metric)

    return out[:B, :n_cls]


def base_model_head_ref(feat_nchw, params):
    """Pure-JAX f32 reference of the same head (module semantics)."""
    B, C, H, W = feat_nchw.shape
    f = feat_nchw.reshape(B, C, H * W)
    pooled = jnp.concatenate([f.max(axis=2), f.mean(axis=2)], axis=1)     # [B, 2C]
    d = pooled @ params['w_down'] + params['b_down']
    d = params['gamma'] * (d - params['mean']) * jax.lax.rsqrt(
        params['var'] + BN_EPS) + params['beta']
    d = jnp.maximum(d, 0.0)
    return d @ params['w_metric'] + params['b_metric']


if __name__ == "__main__":
    key = jax.random.PRNGKey(0)
    k_feat, k_params = jax.random.split(key)

    # Small backbone feature map consistent with resnet18 (plane=512), B=2, 4x4 spatial.
    feat = jax.random.normal(k_feat, (2, PLANE, 4, 4), jnp.float32)
    params = init_params(k_params)

    out = jax.block_until_ready(base_model_head(feat, params))
    ref = jax.block_until_ready(base_model_head_ref(feat, params))

    # Pooling is exact f32; tolerance covers bf16 matmul inputs (f32 accumulation).
    np.testing.assert_allclose(np.asarray(out), np.asarray(ref),
                               rtol=2e-2, atol=2e-2)
    assert out.shape == (2, NUM_CLASSES)
    print("KERNEL_OK")
</pallas_src>

<mosaic_0001>
module attributes {stable_mosaic.version = 11 : i64} {
  func.func @head_kernel(%arg0: i32, %arg1: memref<8x512x16xf32, #tpu.memory_space<vmem>>, %arg2: memref<512x512xbf16, #tpu.memory_space<vmem>>, %arg3: memref<512x512xbf16, #tpu.memory_space<vmem>>, %arg4: memref<1x512xf32, #tpu.memory_space<vmem>>, %arg5: memref<512x256xbf16, #tpu.memory_space<vmem>>, %arg6: memref<1x256xf32, #tpu.memory_space<vmem>>, %arg7: memref<8x256xf32, #tpu.memory_space<vmem>>) attributes {dimension_semantics = [#tpu.dimension_semantics<parallel>], iteration_bounds = array<i64: 1>, scalar_prefetch = 0 : i64, scratch_operands = 0 : i64, tpu.core_type = #tpu.core_type<tc>, window_params = [{transform_indices = @transform_0, window_bounds = array<i64: 8, 512, 16>}, {pipeline_mode = #tpu.pipeline_mode<synchronous>, transform_indices = @transform_1, window_bounds = array<i64: 512, 512>}, {pipeline_mode = #tpu.pipeline_mode<synchronous>, transform_indices = @transform_2, window_bounds = array<i64: 512, 512>}, {pipeline_mode = #tpu.pipeline_mode<synchronous>, transform_indices = @transform_3, window_bounds = array<i64: 1, 512>}, {pipeline_mode = #tpu.pipeline_mode<synchronous>, transform_indices = @transform_4, window_bounds = array<i64: 512, 256>}, {pipeline_mode = #tpu.pipeline_mode<synchronous>, transform_indices = @transform_5, window_bounds = array<i64: 1, 256>}, {transform_indices = @transform_6, window_bounds = array<i64: 8, 256>}]} {
    %c0 = arith.constant 0 : index
    %c0_0 = arith.constant 0 : index
    %c0_1 = arith.constant 0 : index
    %0 = vector.load %arg1[%c0, %c0_0, %c0_1] : memref<8x512x16xf32, #tpu.memory_space<vmem>>, vector<8x512x16xf32>
    %cst = arith.constant dense<0xFF800000> : vector<8x512xf32>
    %1 = vector.multi_reduction <maximumf>, %0, %cst [2] : vector<8x512x16xf32> to vector<8x512xf32>
    %cst_2 = arith.constant dense<0.000000e+00> : vector<8x512xf32>
    %2 = vector.multi_reduction <add>, %0, %cst_2 [2] : vector<8x512x16xf32> to vector<8x512xf32>
    %cst_3 = arith.constant 6.250000e-02 : f32
    %3 = vector.broadcast %cst_3 : f32 to vector<8x512xf32>
    %4 = arith.mulf %2, %3 : vector<8x512xf32>
    %5 = arith.truncf %1 : vector<8x512xf32> to vector<8x512xbf16>
    %c0_4 = arith.constant 0 : index
    %c0_5 = arith.constant 0 : index
    %6 = vector.load %arg2[%c0_4, %c0_5] : memref<512x512xbf16, #tpu.memory_space<vmem>>, vector<512x512xbf16>
    %cst_6 = arith.constant dense<0.000000e+00> : vector<8x512xf32>
    %7 = tpu.matmul %5, %6, %cst_6 {dimension_numbers = #tpu.dot_dimension_numbers<[1], [0], [0], [1], [0, 0, 1, 1], [], []>} : vector<8x512xbf16>, vector<512x512xbf16>, vector<8x512xf32> -> vector<8x512xf32>
    %8 = arith.truncf %4 : vector<8x512xf32> to vector<8x512xbf16>
    %c0_7 = arith.constant 0 : index
    %c0_8 = arith.constant 0 : index
    %9 = vector.load %arg3[%c0_7, %c0_8] : memref<512x512xbf16, #tpu.memory_space<vmem>>, vector<512x512xbf16>
    %cst_9 = arith.constant dense<0.000000e+00> : vector<8x512xf32>
    %10 = tpu.matmul %8, %9, %cst_9 {dimension_numbers = #tpu.dot_dimension_numbers<[1], [0], [0], [1], [0, 0, 1, 1], [], []>} : vector<8x512xbf16>, vector<512x512xbf16>, vector<8x512xf32> -> vector<8x512xf32>
    %11 = arith.addf %7, %10 : vector<8x512xf32>
    %c0_10 = arith.constant 0 : index
    %c0_11 = arith.constant 0 : index
    %12 = vector.load %arg4[%c0_10, %c0_11] : memref<1x512xf32, #tpu.memory_space<vmem>>, vector<1x512xf32>
    %13 = vector.broadcast %12 : vector<1x512xf32> to vector<8x512xf32>
    %14 = arith.addf %11, %13 : vector<8x512xf32>
    %cst_12 = arith.constant 0.000000e+00 : f32
    %15 = vector.broadcast %cst_12 : f32 to vector<8x512xf32>
    %16 = arith.maximumf %14, %15 : vector<8x512xf32>
    %17 = arith.truncf %16 : vector<8x512xf32> to vector<8x512xbf16>
    %c0_13 = arith.constant 0 : index
    %c0_14 = arith.constant 0 : index
    %18 = vector.load %arg5[%c0_13, %c0_14] : memref<512x256xbf16, #tpu.memory_space<vmem>>, vector<512x256xbf16>
    %cst_15 = arith.constant dense<0.000000e+00> : vector<8x256xf32>
    %19 = tpu.matmul %17, %18, %cst_15 {dimension_numbers = #tpu.dot_dimension_numbers<[1], [0], [0], [1], [0, 0, 1, 1], [], []>} : vector<8x512xbf16>, vector<512x256xbf16>, vector<8x256xf32> -> vector<8x256xf32>
    %c0_16 = arith.constant 0 : index
    %c0_17 = arith.constant 0 : index
    %20 = vector.load %arg6[%c0_16, %c0_17] : memref<1x256xf32, #tpu.memory_space<vmem>>, vector<1x256xf32>
    %21 = vector.broadcast %20 : vector<1x256xf32> to vector<8x256xf32>
    %22 = arith.addf %19, %21 : vector<8x256xf32>
    %c0_18 = arith.constant 0 : index
    %c0_19 = arith.constant 0 : index
    %23 = vector.load %arg7[%c0_18, %c0_19] : memref<8x256xf32, #tpu.memory_space<vmem>>, vector<8x256xf32>
    tpu.vector_store %arg7[%c0_18, %c0_19], %22 {strides = array<i32>} : memref<8x256xf32, #tpu.memory_space<vmem>>, vector<8x256xf32>,
    return
  }
  func.func @transform_0(%arg0: i32) -> (i32, i32, i32) {
    %c0_i32 = arith.constant 0 : i32
    %c0_i32_0 = arith.constant 0 : i32
    %c0_i32_1 = arith.constant 0 : i32
    return %arg0, %c0_i32, %c0_i32_0 : i32, i32, i32
  }
  func.func @transform_1(%arg0: i32) -> (i32, i32) {
    %c0_i32 = arith.constant 0 : i32
    %c0_i32_0 = arith.constant 0 : i32
    %c0_i32_1 = arith.constant 0 : i32
    return %c0_i32, %c0_i32_0 : i32, i32
  }
  func.func @transform_2(%arg0: i32) -> (i32, i32) {
    %c0_i32 = arith.constant 0 : i32
    %c0_i32_0 = arith.constant 0 : i32
    %c0_i32_1 = arith.constant 0 : i32
    return %c0_i32, %c0_i32_0 : i32, i32
  }
  func.func @transform_3(%arg0: i32) -> (i32, i32) {
    %c0_i32 = arith.constant 0 : i32
    %c0_i32_0 = arith.constant 0 : i32
    %c0_i32_1 = arith.constant 0 : i32
    return %c0_i32, %c0_i32_0 : i32, i32
  }
  func.func @transform_4(%arg0: i32) -> (i32, i32) {
    %c0_i32 = arith.constant 0 : i32
    %c0_i32_0 = arith.constant 0 : i32
    %c0_i32_1 = arith.constant 0 : i32
    return %c0_i32, %c0_i32_0 : i32, i32
  }
  func.func @transform_5(%arg0: i32) -> (i32, i32) {
    %c0_i32 = arith.constant 0 : i32
    %c0_i32_0 = arith.constant 0 : i32
    %c0_i32_1 = arith.constant 0 : i32
    return %c0_i32, %c0_i32_0 : i32, i32
  }
  func.func @transform_6(%arg0: i32) -> (i32, i32) {
    %c0_i32 = arith.constant 0 : i32
    %c0_i32_0 = arith.constant 0 : i32
    return %arg0, %c0_i32 : i32, i32
  }
}

</mosaic_0001>

<llo_original>
// kernel: tpu_custom_call.1
$region0: #{tpu_custom_call.1}
  #allocation0 [shape = 'u32[]', space=smem, size = 0x4, offset = 0x4, fixed_abs, tag = 'smem constant byte address 0x4 - core index']
  #allocation1 [shape = 'u32[144,128]{1,0:T(1,128)}', space=vmem, size = 0x12000, scoped, tag = 'internal scratch']
  %s0 = inlined_call_operand.vmem [shape: f32[8,512,16], index: 0, kind: input, shape index: {}]
  %s1 = inlined_call_operand.vmem [shape: bf16[512,512], index: 1, kind: input, shape index: {}]
  %s2 = inlined_call_operand.vmem [shape: bf16[512,512], index: 2, kind: input, shape index: {}]
  %s3 = inlined_call_operand.vmem [shape: f32[1,512], index: 3, kind: input, shape index: {}]
  %s4 = inlined_call_operand.vmem [shape: bf16[512,256], index: 4, kind: input, shape index: {}]
  %s5 = inlined_call_operand.vmem [shape: f32[1,256], index: 5, kind: input, shape index: {}]
  %s6 = inlined_call_operand.hbm [shape: f32[8,256], index: 6, kind: output, shape index: {}]
  %s7 = sld [smem:[#allocation0]]
  $region34: #{tpu_custom_call.1} parent=0
    _
  %s9 = ssub.s32 1, %s7
  %s10 = scalar_select 0, %s9, %s7
  $region1: #{tpu_custom_call.1} parent=0
    #allocation2 [shape = 'u8[8192]{0}', space=vmem, size = 0x2000, scoped, tag = 'output window, operand 0, single buffered']
    #allocation3 [shape = 's32[1]{0}', space=sflag, size = 0x4, scoped, tag = 'scoped memory for tpu_custom_call.1']
    %11 = vsyncpa [#allocation3], 0
    // Predicated region
    $region2: #{tpu_custom_call.1} parent=1 // pred_check
      _
    $region3: #{tpu_custom_call.1} parent=1 // pred_check_branch
      %13 = sbr.rel (0) target = $region5
    $region4: #{tpu_custom_call.1} parent=1 // pred_region
      _
    $region5: #{tpu_custom_call.1} parent=1 // pred_fallthru
      _
    // Predicated region
    $region6: #{tpu_custom_call.1} parent=1 // pred_check
      _
    $region7: #{tpu_custom_call.1} parent=1 // pred_check_branch
      %15 = sbr.rel (0) target = $region9
    $region8: #{tpu_custom_call.1} parent=1 // pred_region
      _
    $region9: #{tpu_custom_call.1} parent=1 // pred_fallthru
      _
    // Predicated region
    $region10: #{tpu_custom_call.1} parent=1 // pred_check
      _
    $region11: #{tpu_custom_call.1} parent=1 // pred_check_branch
      %17 = sbr.rel (0) target = $region13
    $region12: #{tpu_custom_call.1} parent=1 // pred_region
      _
    $region13: #{tpu_custom_call.1} parent=1 // pred_fallthru
      _
    // Predicated region
    $region14: #{tpu_custom_call.1} parent=1 // pred_check
      _
    $region15: #{tpu_custom_call.1} parent=1 // pred_check_branch
      %19 = sbr.rel (0) target = $region17
    $region16: #{tpu_custom_call.1} parent=1 // pred_region
      _
    $region17: #{tpu_custom_call.1} parent=1 // pred_fallthru
      _
    // Predicated region
    $region18: #{tpu_custom_call.1} parent=1 // pred_check
      _
    $region19: #{tpu_custom_call.1} parent=1 // pred_check_branch
      %21 = sbr.rel (0) target = $region21
    $region20: #{tpu_custom_call.1} parent=1 // pred_region
      _
    $region21: #{tpu_custom_call.1} parent=1 // pred_fallthru
      _
    // Predicated region
    $region22: #{tpu_custom_call.1} parent=1 // pred_check
      _
    $region23: #{tpu_custom_call.1} parent=1 // pred_check_branch
      %23 = sbr.rel (0) target = $region25
    $region24: #{tpu_custom_call.1} parent=1 // pred_region
      _
    $region25: #{tpu_custom_call.1} parent=1 // pred_fallthru
      _
    %v24 = vld [vmem:[%s0] sm:$0xff]
    %v25 = vld [vmem:[%s0 + $0x8] sm:$0xff]
    %v26 = vld [vmem:[%s0 + $0x10] sm:$0xff]
    %v27 = vld [vmem:[%s0 + $0x18] sm:$0xff]
    %v28 = vld [vmem:[%s0 + $0x20] sm:$0xff]
    %v29 = vld [vmem:[%s0 + $0x28] sm:$0xff]
    %v30 = vld [vmem:[%s0 + $0x30] sm:$0xff]
    %v31 = vld [vmem:[%s0 + $0x38] sm:$0xff]
    %v32 = vld [vmem:[%s0 + $0x40] sm:$0xff]
    %v33 = vld [vmem:[%s0 + $0x48] sm:$0xff]
    %v34 = vld [vmem:[%s0 + $0x50] sm:$0xff]
    %v35 = vld [vmem:[%s0 + $0x58] sm:$0xff]
    %v36 = vld [vmem:[%s0 + $0x60] sm:$0xff]
    %v37 = vld [vmem:[%s0 + $0x68] sm:$0xff]
    %v38 = vld [vmem:[%s0 + $0x70] sm:$0xff]
    %v39 = vld [vmem:[%s0 + $0x78] sm:$0xff]
    %v40 = vld [vmem:[%s0 + $0x80] sm:$0xff]
    %v41 = vld [vmem:[%s0 + $0x88] sm:$0xff]
    %v42 = vld [vmem:[%s0 + $0x90] sm:$0xff]
    %v43 = vld [vmem:[%s0 + $0x98] sm:$0xff]
    %v44 = vld [vmem:[%s0 + $0xa0] sm:$0xff]
    %v45 = vld [vmem:[%s0 + $0xa8] sm:$0xff]
    %v46 = vld [vmem:[%s0 + $0xb0] sm:$0xff]
    %v47 = vld [vmem:[%s0 + $0xb8] sm:$0xff]
    %v48 = vld [vmem:[%s0 + $0xc0] sm:$0xff]
    %v49 = vld [vmem:[%s0 + $0xc8] sm:$0xff]
    %v50 = vld [vmem:[%s0 + $0xd0] sm:$0xff]
    %v51 = vld [vmem:[%s0 + $0xd8] sm:$0xff]
    %v52 = vld [vmem:[%s0 + $0xe0] sm:$0xff]
    %v53 = vld [vmem:[%s0 + $0xe8] sm:$0xff]
    %v54 = vld [vmem:[%s0 + $0xf0] sm:$0xff]
    %v55 = vld [vmem:[%s0 + $0xf8] sm:$0xff]
    %v56 = vld [vmem:[%s0 + $0x100] sm:$0xff]
    %v57 = vld [vmem:[%s0 + $0x108] sm:$0xff]
    %v58 = vld [vmem:[%s0 + $0x110] sm:$0xff]
    %v59 = vld [vmem:[%s0 + $0x118] sm:$0xff]
    %v60 = vld [vmem:[%s0 + $0x120] sm:$0xff]
    %v61 = vld [vmem:[%s0 + $0x128] sm:$0xff]
    %v62 = vld [vmem:[%s0 + $0x130] sm:$0xff]
    %v63 = vld [vmem:[%s0 + $0x138] sm:$0xff]
    %v64 = vld [vmem:[%s0 + $0x140] sm:$0xff]
    %v65 = vld [vmem:[%s0 + $0x148] sm:$0xff]
    %v66 = vld [vmem:[%s0 + $0x150] sm:$0xff]
    %v67 = vld [vmem:[%s0 + $0x158] sm:$0xff]
    %v68 = vld [vmem:[%s0 + $0x160] sm:$0xff]
    %v69 = vld [vmem:[%s0 + $0x168] sm:$0xff]
    %v70 = vld [vmem:[%s0 + $0x170] sm:$0xff]
    %v71 = vld [vmem:[%s0 + $0x178] sm:$0xff]
    %v72 = vld [vmem:[%s0 + $0x180] sm:$0xff]
    %v73 = vld [vmem:[%s0 + $0x188] sm:$0xff]
    %v74 = vld [vmem:[%s0 + $0x190] sm:$0xff]
    %v75 = vld [vmem:[%s0 + $0x198] sm:$0xff]
    %v76 = vld [vmem:[%s0 + $0x1a0] sm:$0xff]
    %v77 = vld [vmem:[%s0 + $0x1a8] sm:$0xff]
    %v78 = vld [vmem:[%s0 + $0x1b0] sm:$0xff]
    %v79 = vld [vmem:[%s0 + $0x1b8] sm:$0xff]
    %v80 = vld [vmem:[%s0 + $0x1c0] sm:$0xff]
    %v81 = vld [vmem:[%s0 + $0x1c8] sm:$0xff]
    %v82 = vld [vmem:[%s0 + $0x1d0] sm:$0xff]
    %v83 = vld [vmem:[%s0 + $0x1d8] sm:$0xff]
    %v84 = vld [vmem:[%s0 + $0x1e0] sm:$0xff]
    %v85 = vld [vmem:[%s0 + $0x1e8] sm:$0xff]
    %v86 = vld [vmem:[%s0 + $0x1f0] sm:$0xff]
    %v87 = vld [vmem:[%s0 + $0x1f8] sm:$0xff]
    %v88 = vld [vmem:[%s0 + $0x200] sm:$0xff]
    %v89 = vld [vmem:[%s0 + $0x208] sm:$0xff]
    %v90 = vld [vmem:[%s0 + $0x210] sm:$0xff]
    %v91 = vld [vmem:[%s0 + $0x218] sm:$0xff]
    %v92 = vld [vmem:[%s0 + $0x220] sm:$0xff]
    %v93 = vld [vmem:[%s0 + $0x228] sm:$0xff]
    %v94 = vld [vmem:[%s0 + $0x230] sm:$0xff]
    %v95 = vld [vmem:[%s0 + $0x238] sm:$0xff]
    %v96 = vld [vmem:[%s0 + $0x240] sm:$0xff]
    %v97 = vld [vmem:[%s0 + $0x248] sm:$0xff]
    %v98 = vld [vmem:[%s0 + $0x250] sm:$0xff]
    %v99 = vld [vmem:[%s0 + $0x258] sm:$0xff]
    %v100 = vld [vmem:[%s0 + $0x260] sm:$0xff]
    %v101 = vld [vmem:[%s0 + $0x268] sm:$0xff]
    %v102 = vld [vmem:[%s0 + $0x270] sm:$0xff]
    %v103 = vld [vmem:[%s0 + $0x278] sm:$0xff]
    %v104 = vld [vmem:[%s0 + $0x280] sm:$0xff]
    %v105 = vld [vmem:[%s0 + $0x288] sm:$0xff]
    %v106 = vld [vmem:[%s0 + $0x290] sm:$0xff]
    %v107 = vld [vmem:[%s0 + $0x298] sm:$0xff]
    %v108 = vld [vmem:[%s0 + $0x2a0] sm:$0xff]
    %v109 = vld [vmem:[%s0 + $0x2a8] sm:$0xff]
    %v110 = vld [vmem:[%s0 + $0x2b0] sm:$0xff]
    %v111 = vld [vmem:[%s0 + $0x2b8] sm:$0xff]
    %v112 = vld [vmem:[%s0 + $0x2c0] sm:$0xff]
    %v113 = vld [vmem:[%s0 + $0x2c8] sm:$0xff]
    %v114 = vld [vmem:[%s0 + $0x2d0] sm:$0xff]
    %v115 = vld [vmem:[%s0 + $0x2d8] sm:$0xff]
    %v116 = vld [vmem:[%s0 + $0x2e0] sm:$0xff]
    %v117 = vld [vmem:[%s0 + $0x2e8] sm:$0xff]
    %v118 = vld [vmem:[%s0 + $0x2f0] sm:$0xff]
    %v119 = vld [vmem:[%s0 + $0x2f8] sm:$0xff]
    %v120 = vld [vmem:[%s0 + $0x300] sm:$0xff]
    %v121 = vld [vmem:[%s0 + $0x308] sm:$0xff]
    %v122 = vld [vmem:[%s0 + $0x310] sm:$0xff]
    %v123 = vld [vmem:[%s0 + $0x318] sm:$0xff]
    %v124 = vld [vmem:[%s0 + $0x320] sm:$0xff]
    %v125 = vld [vmem:[%s0 + $0x328] sm:$0xff]
    %v126 = vld [vmem:[%s0 + $0x330] sm:$0xff]
    %v127 = vld [vmem:[%s0 + $0x338] sm:$0xff]
    %v128 = vld [vmem:[%s0 + $0x340] sm:$0xff]
    %v129 = vld [vmem:[%s0 + $0x348] sm:$0xff]
    %v130 = vld [vmem:[%s0 + $0x350] sm:$0xff]
    %v131 = vld [vmem:[%s0 + $0x358] sm:$0xff]
    %v132 = vld [vmem:[%s0 + $0x360] sm:$0xff]
    %v133 = vld [vmem:[%s0 + $0x368] sm:$0xff]
    %v134 = vld [vmem:[%s0 + $0x370] sm:$0xff]
    %v135 = vld [vmem:[%s0 + $0x378] sm:$0xff]
    %v136 = vld [vmem:[%s0 + $0x380] sm:$0xff]
    %v137 = vld [vmem:[%s0 + $0x388] sm:$0xff]
    %v138 = vld [vmem:[%s0 + $0x390] sm:$0xff]
    %v139 = vld [vmem:[%s0 + $0x398] sm:$0xff]
    %v140 = vld [vmem:[%s0 + $0x3a0] sm:$0xff]
    %v141 = vld [vmem:[%s0 + $0x3a8] sm:$0xff]
    %v142 = vld [vmem:[%s0 + $0x3b0] sm:$0xff]
    %v143 = vld [vmem:[%s0 + $0x3b8] sm:$0xff]
    %v144 = vld [vmem:[%s0 + $0x3c0] sm:$0xff]
    %v145 = vld [vmem:[%s0 + $0x3c8] sm:$0xff]
    %v146 = vld [vmem:[%s0 + $0x3d0] sm:$0xff]
    %v147 = vld [vmem:[%s0 + $0x3d8] sm:$0xff]
    %v148 = vld [vmem:[%s0 + $0x3e0] sm:$0xff]
    %v149 = vld [vmem:[%s0 + $0x3e8] sm:$0xff]
    %v150 = vld [vmem:[%s0 + $0x3f0] sm:$0xff]
    %v151 = vld [vmem:[%s0 + $0x3f8] sm:$0xff]
    %v152 = vld [vmem:[%s0 + $0x400] sm:$0xff]
    %v153 = vld [vmem:[%s0 + $0x408] sm:$0xff]
    %v154 = vld [vmem:[%s0 + $0x410] sm:$0xff]
    %v155 = vld [vmem:[%s0 + $0x418] sm:$0xff]
    %v156 = vld [vmem:[%s0 + $0x420] sm:$0xff]
    %v157 = vld [vmem:[%s0 + $0x428] sm:$0xff]
    %v158 = vld [vmem:[%s0 + $0x430] sm:$0xff]
    %v159 = vld [vmem:[%s0 + $0x438] sm:$0xff]
    %v160 = vld [vmem:[%s0 + $0x440] sm:$0xff]
    %v161 = vld [vmem:[%s0 + $0x448] sm:$0xff]
    %v162 = vld [vmem:[%s0 + $0x450] sm:$0xff]
    %v163 = vld [vmem:[%s0 + $0x458] sm:$0xff]
    %v164 = vld [vmem:[%s0 + $0x460] sm:$0xff]
    %v165 = vld [vmem:[%s0 + $0x468] sm:$0xff]
    %v166 = vld [vmem:[%s0 + $0x470] sm:$0xff]
    %v167 = vld [vmem:[%s0 + $0x478] sm:$0xff]
    %v168 = vld [vmem:[%s0 + $0x480] sm:$0xff]
    %v169 = vld [vmem:[%s0 + $0x488] sm:$0xff]
    %v170 = vld [vmem:[%s0 + $0x490] sm:$0xff]
    %v171 = vld [vmem:[%s0 + $0x498] sm:$0xff]
    %v172 = vld [vmem:[%s0 + $0x4a0] sm:$0xff]
    %v173 = vld [vmem:[%s0 + $0x4a8] sm:$0xff]
    %v174 = vld [vmem:[%s0 + $0x4b0] sm:$0xff]
    %v175 = vld [vmem:[%s0 + $0x4b8] sm:$0xff]
    %v176 = vld [vmem:[%s0 + $0x4c0] sm:$0xff]
    %v177 = vld [vmem:[%s0 + $0x4c8] sm:$0xff]
    %v178 = vld [vmem:[%s0 + $0x4d0] sm:$0xff]
    %v179 = vld [vmem:[%s0 + $0x4d8] sm:$0xff]
    %v180 = vld [vmem:[%s0 + $0x4e0] sm:$0xff]
    %v181 = vld [vmem:[%s0 + $0x4e8] sm:$0xff]
    %v182 = vld [vmem:[%s0 + $0x4f0] sm:$0xff]
    %v183 = vld [vmem:[%s0 + $0x4f8] sm:$0xff]
    %v184 = vld [vmem:[%s0 + $0x500] sm:$0xff]
    %v185 = vld [vmem:[%s0 + $0x508] sm:$0xff]
    %v186 = vld [vmem:[%s0 + $0x510] sm:$0xff]
    %v187 = vld [vmem:[%s0 + $0x518] sm:$0xff]
    %v188 = vld [vmem:[%s0 + $0x520] sm:$0xff]
    %v189 = vld [vmem:[%s0 + $0x528] sm:$0xff]
    %v190 = vld [vmem:[%s0 + $0x530] sm:$0xff]
    %v191 = vld [vmem:[%s0 + $0x538] sm:$0xff]
    %v192 = vld [vmem:[%s0 + $0x540] sm:$0xff]
    %v193 = vld [vmem:[%s0 + $0x548] sm:$0xff]
    %v194 = vld [vmem:[%s0 + $0x550] sm:$0xff]
    %v195 = vld [vmem:[%s0 + $0x558] sm:$0xff]
    %v196 = vld [vmem:[%s0 + $0x560] sm:$0xff]
    %v197 = vld [vmem:[%s0 + $0x568] sm:$0xff]
    %v198 = vld [vmem:[%s0 + $0x570] sm:$0xff]
    %v199 = vld [vmem:[%s0 + $0x578] sm:$0xff]
    %v200 = vld [vmem:[%s0 + $0x580] sm:$0xff]
    %v201 = vld [vmem:[%s0 + $0x588] sm:$0xff]
    %v202 = vld [vmem:[%s0 + $0x590] sm:$0xff]
    %v203 = vld [vmem:[%s0 + $0x598] sm:$0xff]
    %v204 = vld [vmem:[%s0 + $0x5a0] sm:$0xff]
    %v205 = vld [vmem:[%s0 + $0x5a8] sm:$0xff]
    %v206 = vld [vmem:[%s0 + $0x5b0] sm:$0xff]
    %v207 = vld [vmem:[%s0 + $0x5b8] sm:$0xff]
    %v208 = vld [vmem:[%s0 + $0x5c0] sm:$0xff]
    %v209 = vld [vmem:[%s0 + $0x5c8] sm:$0xff]
    %v210 = vld [vmem:[%s0 + $0x5d0] sm:$0xff]
    %v211 = vld [vmem:[%s0 + $0x5d8] sm:$0xff]
    %v212 = vld [vmem:[%s0 + $0x5e0] sm:$0xff]
    %v213 = vld [vmem:[%s0 + $0x5e8] sm:$0xff]
    %v214 = vld [vmem:[%s0 + $0x5f0] sm:$0xff]
    %v215 = vld [vmem:[%s0 + $0x5f8] sm:$0xff]
    %v216 = vld [vmem:[%s0 + $0x600] sm:$0xff]
    %v217 = vld [vmem:[%s0 + $0x608] sm:$0xff]
    %v218 = vld [vmem:[%s0 + $0x610] sm:$0xff]
    %v219 = vld [vmem:[%s0 + $0x618] sm:$0xff]
    %v220 = vld [vmem:[%s0 + $0x620] sm:$0xff]
    %v221 = vld [vmem:[%s0 + $0x628] sm:$0xff]
    %v222 = vld [vmem:[%s0 + $0x630] sm:$0xff]
    %v223 = vld [vmem:[%s0 + $0x638] sm:$0xff]
    %v224 = vld [vmem:[%s0 + $0x640] sm:$0xff]
    %v225 = vld [vmem:[%s0 + $0x648] sm:$0xff]
    %v226 = vld [vmem:[%s0 + $0x650] sm:$0xff]
    %v227 = vld [vmem:[%s0 + $0x658] sm:$0xff]
    %v228 = vld [vmem:[%s0 + $0x660] sm:$0xff]
    %v229 = vld [vmem:[%s0 + $0x668] sm:$0xff]
    %v230 = vld [vmem:[%s0 + $0x670] sm:$0xff]
    %v231 = vld [vmem:[%s0 + $0x678] sm:$0xff]
    %v232 = vld [vmem:[%s0 + $0x680] sm:$0xff]
    %v233 = vld [vmem:[%s0 + $0x688] sm:$0xff]
    %v234 = vld [vmem:[%s0 + $0x690] sm:$0xff]
    %v235 = vld [vmem:[%s0 + $0x698] sm:$0xff]
    %v236 = vld [vmem:[%s0 + $0x6a0] sm:$0xff]
    %v237 = vld [vmem:[%s0 + $0x6a8] sm:$0xff]
    %v238 = vld [vmem:[%s0 + $0x6b0] sm:$0xff]
    %v239 = vld [vmem:[%s0 + $0x6b8] sm:$0xff]
    %v240 = vld [vmem:[%s0 + $0x6c0] sm:$0xff]
    %v241 = vld [vmem:[%s0 + $0x6c8] sm:$0xff]
    %v242 = vld [vmem:[%s0 + $0x6d0] sm:$0xff]
    %v243 = vld [vmem:[%s0 + $0x6d8] sm:$0xff]
    %v244 = vld [vmem:[%s0 + $0x6e0] sm:$0xff]
    %v245 = vld [vmem:[%s0 + $0x6e8] sm:$0xff]
    %v246 = vld [vmem:[%s0 + $0x6f0] sm:$0xff]
    %v247 = vld [vmem:[%s0 + $0x6f8] sm:$0xff]
    %v248 = vld [vmem:[%s0 + $0x700] sm:$0xff]
    %v249 = vld [vmem:[%s0 + $0x708] sm:$0xff]
    %v250 = vld [vmem:[%s0 + $0x710] sm:$0xff]
    %v251 = vld [vmem:[%s0 + $0x718] sm:$0xff]
    %v252 = vld [vmem:[%s0 + $0x720] sm:$0xff]
    %v253 = vld [vmem:[%s0 + $0x728] sm:$0xff]
    %v254 = vld [vmem:[%s0 + $0x730] sm:$0xff]
    %v255 = vld [vmem:[%s0 + $0x738] sm:$0xff]
    %v256 = vld [vmem:[%s0 + $0x740] sm:$0xff]
    %v257 = vld [vmem:[%s0 + $0x748] sm:$0xff]
    %v258 = vld [vmem:[%s0 + $0x750] sm:$0xff]
    %v259 = vld [vmem:[%s0 + $0x758] sm:$0xff]
    %v260 = vld [vmem:[%s0 + $0x760] sm:$0xff]
    %v261 = vld [vmem:[%s0 + $0x768] sm:$0xff]
    %v262 = vld [vmem:[%s0 + $0x770] sm:$0xff]
    %v263 = vld [vmem:[%s0 + $0x778] sm:$0xff]
    %v264 = vld [vmem:[%s0 + $0x780] sm:$0xff]
    %v265 = vld [vmem:[%s0 + $0x788] sm:$0xff]
    %v266 = vld [vmem:[%s0 + $0x790] sm:$0xff]
    %v267 = vld [vmem:[%s0 + $0x798] sm:$0xff]
    %v268 = vld [vmem:[%s0 + $0x7a0] sm:$0xff]
    %v269 = vld [vmem:[%s0 + $0x7a8] sm:$0xff]
    %v270 = vld [vmem:[%s0 + $0x7b0] sm:$0xff]
    %v271 = vld [vmem:[%s0 + $0x7b8] sm:$0xff]
    %v272 = vld [vmem:[%s0 + $0x7c0] sm:$0xff]
    %v273 = vld [vmem:[%s0 + $0x7c8] sm:$0xff]
    %v274 = vld [vmem:[%s0 + $0x7d0] sm:$0xff]
    %v275 = vld [vmem:[%s0 + $0x7d8] sm:$0xff]
    %v276 = vld [vmem:[%s0 + $0x7e0] sm:$0xff]
    %v277 = vld [vmem:[%s0 + $0x7e8] sm:$0xff]
    %v278 = vld [vmem:[%s0 + $0x7f0] sm:$0xff]
    %v279 = vld [vmem:[%s0 + $0x7f8] sm:$0xff]
    %v280 = vld [vmem:[%s0 + $0x800] sm:$0xff]
    %v281 = vld [vmem:[%s0 + $0x808] sm:$0xff]
    %v282 = vld [vmem:[%s0 + $0x810] sm:$0xff]
    %v283 = vld [vmem:[%s0 + $0x818] sm:$0xff]
    %v284 = vld [vmem:[%s0 + $0x820] sm:$0xff]
    %v285 = vld [vmem:[%s0 + $0x828] sm:$0xff]
    %v286 = vld [vmem:[%s0 + $0x830] sm:$0xff]
    %v287 = vld [vmem:[%s0 + $0x838] sm:$0xff]
    %v288 = vld [vmem:[%s0 + $0x840] sm:$0xff]
    %v289 = vld [vmem:[%s0 + $0x848] sm:$0xff]
    %v290 = vld [vmem:[%s0 + $0x850] sm:$0xff]
    %v291 = vld [vmem:[%s0 + $0x858] sm:$0xff]
    %v292 = vld [vmem:[%s0 + $0x860] sm:$0xff]
    %v293 = vld [vmem:[%s0 + $0x868] sm:$0xff]
    %v294 = vld [vmem:[%s0 + $0x870] sm:$0xff]
    %v295 = vld [vmem:[%s0 + $0x878] sm:$0xff]
    %v296 = vld [vmem:[%s0 + $0x880] sm:$0xff]
    %v297 = vld [vmem:[%s0 + $0x888] sm:$0xff]
    %v298 = vld [vmem:[%s0 + $0x890] sm:$0xff]
    %v299 = vld [vmem:[%s0 + $0x898] sm:$0xff]
    %v300 = vld [vmem:[%s0 + $0x8a0] sm:$0xff]
    %v301 = vld [vmem:[%s0 + $0x8a8] sm:$0xff]
    %v302 = vld [vmem:[%s0 + $0x8b0] sm:$0xff]
    %v303 = vld [vmem:[%s0 + $0x8b8] sm:$0xff]
    %v304 = vld [vmem:[%s0 + $0x8c0] sm:$0xff]
    %v305 = vld [vmem:[%s0 + $0x8c8] sm:$0xff]
    %v306 = vld [vmem:[%s0 + $0x8d0] sm:$0xff]
    %v307 = vld [vmem:[%s0 + $0x8d8] sm:$0xff]
    %v308 = vld [vmem:[%s0 + $0x8e0] sm:$0xff]
    %v309 = vld [vmem:[%s0 + $0x8e8] sm:$0xff]
    %v310 = vld [vmem:[%s0 + $0x8f0] sm:$0xff]
    %v311 = vld [vmem:[%s0 + $0x8f8] sm:$0xff]
    %v312 = vld [vmem:[%s0 + $0x900] sm:$0xff]
    %v313 = vld [vmem:[%s0 + $0x908] sm:$0xff]
    %v314 = vld [vmem:[%s0 + $0x910] sm:$0xff]
    %v315 = vld [vmem:[%s0 + $0x918] sm:$0xff]
    %v316 = vld [vmem:[%s0 + $0x920] sm:$0xff]
    %v317 = vld [vmem:[%s0 + $0x928] sm:$0xff]
    %v318 = vld [vmem:[%s0 + $0x930] sm:$0xff]
    %v319 = vld [vmem:[%s0 + $0x938] sm:$0xff]
    %v320 = vld [vmem:[%s0 + $0x940] sm:$0xff]
    %v321 = vld [vmem:[%s0 + $0x948] sm:$0xff]
    %v322 = vld [vmem:[%s0 + $0x950] sm:$0xff]
    %v323 = vld [vmem:[%s0 + $0x958] sm:$0xff]
    %v324 = vld [vmem:[%s0 + $0x960] sm:$0xff]
    %v325 = vld [vmem:[%s0 + $0x968] sm:$0xff]
    %v326 = vld [vmem:[%s0 + $0x970] sm:$0xff]
    %v327 = vld [vmem:[%s0 + $0x978] sm:$0xff]
    %v328 = vld [vmem:[%s0 + $0x980] sm:$0xff]
    %v329 = vld [vmem:[%s0 + $0x988] sm:$0xff]
    %v330 = vld [vmem:[%s0 + $0x990] sm:$0xff]
    %v331 = vld [vmem:[%s0 + $0x998] sm:$0xff]
    %v332 = vld [vmem:[%s0 + $0x9a0] sm:$0xff]
    %v333 = vld [vmem:[%s0 + $0x9a8] sm:$0xff]
    %v334 = vld [vmem:[%s0 + $0x9b0] sm:$0xff]
    %v335 = vld [vmem:[%s0 + $0x9b8] sm:$0xff]
    %v336 = vld [vmem:[%s0 + $0x9c0] sm:$0xff]
    %v337 = vld [vmem:[%s0 + $0x9c8] sm:$0xff]
    %v338 = vld [vmem:[%s0 + $0x9d0] sm:$0xff]
    %v339 = vld [vmem:[%s0 + $0x9d8] sm:$0xff]
    %v340 = vld [vmem:[%s0 + $0x9e0] sm:$0xff]
    %v341 = vld [vmem:[%s0 + $0x9e8] sm:$0xff]
    %v342 = vld [vmem:[%s0 + $0x9f0] sm:$0xff]
    %v343 = vld [vmem:[%s0 + $0x9f8] sm:$0xff]
    %v344 = vld [vmem:[%s0 + $0xa00] sm:$0xff]
    %v345 = vld [vmem:[%s0 + $0xa08] sm:$0xff]
    %v346 = vld [vmem:[%s0 + $0xa10] sm:$0xff]
    %v347 = vld [vmem:[%s0 + $0xa18] sm:$0xff]
    %v348 = vld [vmem:[%s0 + $0xa20] sm:$0xff]
    %v349 = vld [vmem:[%s0 + $0xa28] sm:$0xff]
    %v350 = vld [vmem:[%s0 + $0xa30] sm:$0xff]
    %v351 = vld [vmem:[%s0 + $0xa38] sm:$0xff]
    %v352 = vld [vmem:[%s0 + $0xa40] sm:$0xff]
    %v353 = vld [vmem:[%s0 + $0xa48] sm:$0xff]
    %v354 = vld [vmem:[%s0 + $0xa50] sm:$0xff]
    %v355 = vld [vmem:[%s0 + $0xa58] sm:$0xff]
    %v356 = vld [vmem:[%s0 + $0xa60] sm:$0xff]
    %v357 = vld [vmem:[%s0 + $0xa68] sm:$0xff]
    %v358 = vld [vmem:[%s0 + $0xa70] sm:$0xff]
    %v359 = vld [vmem:[%s0 + $0xa78] sm:$0xff]
    %v360 = vld [vmem:[%s0 + $0xa80] sm:$0xff]
    %v361 = vld [vmem:[%s0 + $0xa88] sm:$0xff]
    %v362 = vld [vmem:[%s0 + $0xa90] sm:$0xff]
    %v363 = vld [vmem:[%s0 + $0xa98] sm:$0xff]
    %v364 = vld [vmem:[%s0 + $0xaa0] sm:$0xff]
    %v365 = vld [vmem:[%s0 + $0xaa8] sm:$0xff]
    %v366 = vld [vmem:[%s0 + $0xab0] sm:$0xff]
    %v367 = vld [vmem:[%s0 + $0xab8] sm:$0xff]
    %v368 = vld [vmem:[%s0 + $0xac0] sm:$0xff]
    %v369 = vld [vmem:[%s0 + $0xac8] sm:$0xff]
    %v370 = vld [vmem:[%s0 + $0xad0] sm:$0xff]
    %v371 = vld [vmem:[%s0 + $0xad8] sm:$0xff]
    %v372 = vld [vmem:[%s0 + $0xae0] sm:$0xff]
    %v373 = vld [vmem:[%s0 + $0xae8] sm:$0xff]
    %v374 = vld [vmem:[%s0 + $0xaf0] sm:$0xff]
    %v375 = vld [vmem:[%s0 + $0xaf8] sm:$0xff]
    %v376 = vld [vmem:[%s0 + $0xb00] sm:$0xff]
    %v377 = vld [vmem:[%s0 + $0xb08] sm:$0xff]
    %v378 = vld [vmem:[%s0 + $0xb10] sm:$0xff]
    %v379 = vld [vmem:[%s0 + $0xb18] sm:$0xff]
    %v380 = vld [vmem:[%s0 + $0xb20] sm:$0xff]
    %v381 = vld [vmem:[%s0 + $0xb28] sm:$0xff]
    %v382 = vld [vmem:[%s0 + $0xb30] sm:$0xff]
    %v383 = vld [vmem:[%s0 + $0xb38] sm:$0xff]
    %v384 = vld [vmem:[%s0 + $0xb40] sm:$0xff]
    %v385 = vld [vmem:[%s0 + $0xb48] sm:$0xff]
    %v386 = vld [vmem:[%s0 + $0xb50] sm:$0xff]
    %v387 = vld [vmem:[%s0 + $0xb58] sm:$0xff]
    %v388 = vld [vmem:[%s0 + $0xb60] sm:$0xff]
    %v389 = vld [vmem:[%s0 + $0xb68] sm:$0xff]
    %v390 = vld [vmem:[%s0 + $0xb70] sm:$0xff]
    %v391 = vld [vmem:[%s0 + $0xb78] sm:$0xff]
    %v392 = vld [vmem:[%s0 + $0xb80] sm:$0xff]
    %v393 = vld [vmem:[%s0 + $0xb88] sm:$0xff]
    %v394 = vld [vmem:[%s0 + $0xb90] sm:$0xff]
    %v395 = vld [vmem:[%s0 + $0xb98] sm:$0xff]
    %v396 = vld [vmem:[%s0 + $0xba0] sm:$0xff]
    %v397 = vld [vmem:[%s0 + $0xba8] sm:$0xff]
    %v398 = vld [vmem:[%s0 + $0xbb0] sm:$0xff]
    %v399 = vld [vmem:[%s0 + $0xbb8] sm:$0xff]
    %v400 = vld [vmem:[%s0 + $0xbc0] sm:$0xff]
    %v401 = vld [vmem:[%s0 + $0xbc8] sm:$0xff]
    %v402 = vld [vmem:[%s0 + $0xbd0] sm:$0xff]
    %v403 = vld [vmem:[%s0 + $0xbd8] sm:$0xff]
    %v404 = vld [vmem:[%s0 + $0xbe0] sm:$0xff]
    %v405 = vld [vmem:[%s0 + $0xbe8] sm:$0xff]
    %v406 = vld [vmem:[%s0 + $0xbf0] sm:$0xff]
    %v407 = vld [vmem:[%s0 + $0xbf8] sm:$0xff]
    %v408 = vld [vmem:[%s0 + $0xc00] sm:$0xff]
    %v409 = vld [vmem:[%s0 + $0xc08] sm:$0xff]
    %v410 = vld [vmem:[%s0 + $0xc10] sm:$0xff]
    %v411 = vld [vmem:[%s0 + $0xc18] sm:$0xff]
    %v412 = vld [vmem:[%s0 + $0xc20] sm:$0xff]
    %v413 = vld [vmem:[%s0 + $0xc28] sm:$0xff]
    %v414 = vld [vmem:[%s0 + $0xc30] sm:$0xff]
    %v415 = vld [vmem:[%s0 + $0xc38] sm:$0xff]
    %v416 = vld [vmem:[%s0 + $0xc40] sm:$0xff]
    %v417 = vld [vmem:[%s0 + $0xc48] sm:$0xff]
    %v418 = vld [vmem:[%s0 + $0xc50] sm:$0xff]
    %v419 = vld [vmem:[%s0 + $0xc58] sm:$0xff]
    %v420 = vld [vmem:[%s0 + $0xc60] sm:$0xff]
    %v421 = vld [vmem:[%s0 + $0xc68] sm:$0xff]
    %v422 = vld [vmem:[%s0 + $0xc70] sm:$0xff]
    %v423 = vld [vmem:[%s0 + $0xc78] sm:$0xff]
    %v424 = vld [vmem:[%s0 + $0xc80] sm:$0xff]
    %v425 = vld [vmem:[%s0 + $0xc88] sm:$0xff]
    %v426 = vld [vmem:[%s0 + $0xc90] sm:$0xff]
    %v427 = vld [vmem:[%s0 + $0xc98] sm:$0xff]
    %v428 = vld [vmem:[%s0 + $0xca0] sm:$0xff]
    %v429 = vld [vmem:[%s0 + $0xca8] sm:$0xff]
    %v430 = vld [vmem:[%s0 + $0xcb0] sm:$0xff]
    %v431 = vld [vmem:[%s0 + $0xcb8] sm:$0xff]
    %v432 = vld [vmem:[%s0 + $0xcc0] sm:$0xff]
    %v433 = vld [vmem:[%s0 + $0xcc8] sm:$0xff]
    %v434 = vld [vmem:[%s0 + $0xcd0] sm:$0xff]
    %v435 = vld [vmem:[%s0 + $0xcd8] sm:$0xff]
    %v436 = vld [vmem:[%s0 + $0xce0] sm:$0xff]
    %v437 = vld [vmem:[%s0 + $0xce8] sm:$0xff]
    %v438 = vld [vmem:[%s0 + $0xcf0] sm:$0xff]
    %v439 = vld [vmem:[%s0 + $0xcf8] sm:$0xff]
    %v440 = vld [vmem:[%s0 + $0xd00] sm:$0xff]
    %v441 = vld [vmem:[%s0 + $0xd08] sm:$0xff]
    %v442 = vld [vmem:[%s0 + $0xd10] sm:$0xff]
    %v443 = vld [vmem:[%s0 + $0xd18] sm:$0xff]
    %v444 = vld [vmem:[%s0 + $0xd20] sm:$0xff]
    %v445 = vld [vmem:[%s0 + $0xd28] sm:$0xff]
    %v446 = vld [vmem:[%s0 + $0xd30] sm:$0xff]
    %v447 = vld [vmem:[%s0 + $0xd38] sm:$0xff]
    %v448 = vld [vmem:[%s0 + $0xd40] sm:$0xff]
    %v449 = vld [vmem:[%s0 + $0xd48] sm:$0xff]
    %v450 = vld [vmem:[%s0 + $0xd50] sm:$0xff]
    %v451 = vld [vmem:[%s0 + $0xd58] sm:$0xff]
    %v452 = vld [vmem:[%s0 + $0xd60] sm:$0xff]
    %v453 = vld [vmem:[%s0 + $0xd68] sm:$0xff]
    %v454 = vld [vmem:[%s0 + $0xd70] sm:$0xff]
    %v455 = vld [vmem:[%s0 + $0xd78] sm:$0xff]
    %v456 = vld [vmem:[%s0 + $0xd80] sm:$0xff]
    %v457 = vld [vmem:[%s0 + $0xd88] sm:$0xff]
    %v458 = vld [vmem:[%s0 + $0xd90] sm:$0xff]
    %v459 = vld [vmem:[%s0 + $0xd98] sm:$0xff]
    %v460 = vld [vmem:[%s0 + $0xda0] sm:$0xff]
    %v461 = vld [vmem:[%s0 + $0xda8] sm:$0xff]
    %v462 = vld [vmem:[%s0 + $0xdb0] sm:$0xff]
    %v463 = vld [vmem:[%s0 + $0xdb8] sm:$0xff]
    %v464 = vld [vmem:[%s0 + $0xdc0] sm:$0xff]
    %v465 = vld [vmem:[%s0 + $0xdc8] sm:$0xff]
    %v466 = vld [vmem:[%s0 + $0xdd0] sm:$0xff]
    %v467 = vld [vmem:[%s0 + $0xdd8] sm:$0xff]
    %v468 = vld [vmem:[%s0 + $0xde0] sm:$0xff]
    %v469 = vld [vmem:[%s0 + $0xde8] sm:$0xff]
    %v470 = vld [vmem:[%s0 + $0xdf0] sm:$0xff]
    %v471 = vld [vmem:[%s0 + $0xdf8] sm:$0xff]
    %v472 = vld [vmem:[%s0 + $0xe00] sm:$0xff]
    %v473 = vld [vmem:[%s0 + $0xe08] sm:$0xff]
    %v474 = vld [vmem:[%s0 + $0xe10] sm:$0xff]
    %v475 = vld [vmem:[%s0 + $0xe18] sm:$0xff]
    %v476 = vld [vmem:[%s0 + $0xe20] sm:$0xff]
    %v477 = vld [vmem:[%s0 + $0xe28] sm:$0xff]
    %v478 = vld [vmem:[%s0 + $0xe30] sm:$0xff]
    %v479 = vld [vmem:[%s0 + $0xe38] sm:$0xff]
    %v480 = vld [vmem:[%s0 + $0xe40] sm:$0xff]
    %v481 = vld [vmem:[%s0 + $0xe48] sm:$0xff]
    %v482 = vld [vmem:[%s0 + $0xe50] sm:$0xff]
    %v483 = vld [vmem:[%s0 + $0xe58] sm:$0xff]
    %v484 = vld [vmem:[%s0 + $0xe60] sm:$0xff]
    %v485 = vld [vmem:[%s0 + $0xe68] sm:$0xff]
    %v486 = vld [vmem:[%s0 + $0xe70] sm:$0xff]
    %v487 = vld [vmem:[%s0 + $0xe78] sm:$0xff]
    %v488 = vld [vmem:[%s0 + $0xe80] sm:$0xff]
    %v489 = vld [vmem:[%s0 + $0xe88] sm:$0xff]
    %v490 = vld [vmem:[%s0 + $0xe90] sm:$0xff]
    %v491 = vld [vmem:[%s0 + $0xe98] sm:$0xff]
    %v492 = vld [vmem:[%s0 + $0xea0] sm:$0xff]
    %v493 = vld [vmem:[%s0 + $0xea8] sm:$0xff]
    %v494 = vld [vmem:[%s0 + $0xeb0] sm:$0xff]
    %v495 = vld [vmem:[%s0 + $0xeb8] sm:$0xff]
    %v496 = vld [vmem:[%s0 + $0xec0] sm:$0xff]
    %v497 = vld [vmem:[%s0 + $0xec8] sm:$0xff]
    %v498 = vld [vmem:[%s0 + $0xed0] sm:$0xff]
    %v499 = vld [vmem:[%s0 + $0xed8] sm:$0xff]
    %v500 = vld [vmem:[%s0 + $0xee0] sm:$0xff]
    %v501 = vld [vmem:[%s0 + $0xee8] sm:$0xff]
    %v502 = vld [vmem:[%s0 + $0xef0] sm:$0xff]
    %v503 = vld [vmem:[%s0 + $0xef8] sm:$0xff]
    %v504 = vld [vmem:[%s0 + $0xf00] sm:$0xff]
    %v505 = vld [vmem:[%s0 + $0xf08] sm:$0xff]
    %v506 = vld [vmem:[%s0 + $0xf10] sm:$0xff]
    %v507 = vld [vmem:[%s0 + $0xf18] sm:$0xff]
    %v508 = vld [vmem:[%s0 + $0xf20] sm:$0xff]
    %v509 = vld [vmem:[%s0 + $0xf28] sm:$0xff]
    %v510 = vld [vmem:[%s0 + $0xf30] sm:$0xff]
    %v511 = vld [vmem:[%s0 + $0xf38] sm:$0xff]
    %v512 = vld [vmem:[%s0 + $0xf40] sm:$0xff]
    %v513 = vld [vmem:[%s0 + $0xf48] sm:$0xff]
    %v514 = vld [vmem:[%s0 + $0xf50] sm:$0xff]
    %v515 = vld [vmem:[%s0 + $0xf58] sm:$0xff]
    %v516 = vld [vmem:[%s0 + $0xf60] sm:$0xff]
    %v517 = vld [vmem:[%s0 + $0xf68] sm:$0xff]
    %v518 = vld [vmem:[%s0 + $0xf70] sm:$0xff]
    %v519 = vld [vmem:[%s0 + $0xf78] sm:$0xff]
    %v520 = vld [vmem:[%s0 + $0xf80] sm:$0xff]
    %v521 = vld [vmem:[%s0 + $0xf88] sm:$0xff]
    %v522 = vld [vmem:[%s0 + $0xf90] sm:$0xff]
    %v523 = vld [vmem:[%s0 + $0xf98] sm:$0xff]
    %v524 = vld [vmem:[%s0 + $0xfa0] sm:$0xff]
    %v525 = vld [vmem:[%s0 + $0xfa8] sm:$0xff]
    %v526 = vld [vmem:[%s0 + $0xfb0] sm:$0xff]
    %v527 = vld [vmem:[%s0 + $0xfb8] sm:$0xff]
    %v528 = vld [vmem:[%s0 + $0xfc0] sm:$0xff]
    %v529 = vld [vmem:[%s0 + $0xfc8] sm:$0xff]
    %v530 = vld [vmem:[%s0 + $0xfd0] sm:$0xff]
    %v531 = vld [vmem:[%s0 + $0xfd8] sm:$0xff]
    %v532 = vld [vmem:[%s0 + $0xfe0] sm:$0xff]
    %v533 = vld [vmem:[%s0 + $0xfe8] sm:$0xff]
    %v534 = vld [vmem:[%s0 + $0xff0] sm:$0xff]
    %v535 = vld [vmem:[%s0 + $0xff8] sm:$0xff]
    %vm536 = vcmask 130048
    %v537 = vsel %vm536, %v24, -inf
    %538 = vmax.xlane.f32.xlu0 %v537
    %v539 = vpop.xlane.xlu0 %538
    %v540 = vsel %vm536, %v25, -inf
    %541 = vmax.xlane.f32.xlu0 %v540
    %v542 = vpop.xlane.xlu0 %541
    %v543 = vsel %vm536, %v26, -inf
    %544 = vmax.xlane.f32.xlu0 %v543
    %v545 = vpop.xlane.xlu0 %544
    %v546 = vsel %vm536, %v27, -inf
    %547 = vmax.xlane.f32.xlu0 %v546
    %v548 = vpop.xlane.xlu0 %547
    %v549 = vsel %vm536, %v28, -inf
    %550 = vmax.xlane.f32.xlu0 %v549
    %v551 = vpop.xlane.xlu0 %550
    %v552 = vsel %vm536, %v29, -inf
    %553 = vmax.xlane.f32.xlu0 %v552
    %v554 = vpop.xlane.xlu0 %553
    %v555 = vsel %vm536, %v30, -inf
    %556 = vmax.xlane.f32.xlu0 %v555
    %v557 = vpop.xlane.xlu0 %556
    %v558 = vsel %vm536, %v31, -inf
    %559 = vmax.xlane.f32.xlu0 %v558
    %v560 = vpop.xlane.xlu0 %559
    %v561 = vsel %vm536, %v32, -inf
    %562 = vmax.xlane.f32.xlu0 %v561
    %v563 = vpop.xlane.xlu0 %562
    %v564 = vsel %vm536, %v33, -inf
    %565 = vmax.xlane.f32.xlu0 %v564
    %v566 = vpop.xlane.xlu0 %565
    %v567 = vsel %vm536, %v34, -inf
    %568 = vmax.xlane.f32.xlu0 %v567
    %v569 = vpop.xlane.xlu0 %568
    %v570 = vsel %vm536, %v35, -inf
    %571 = vmax.xlane.f32.xlu0 %v570
    %v572 = vpop.xlane.xlu0 %571
    %v573 = vsel %vm536, %v36, -inf
    %574 = vmax.xlane.f32.xlu0 %v573
    %v575 = vpop.xlane.xlu0 %574
    %v576 = vsel %vm536, %v37, -inf
    %577 = vmax.xlane.f32.xlu0 %v576
    %v578 = vpop.xlane.xlu0 %577
    %v579 = vsel %vm536, %v38, -inf
    %580 = vmax.xlane.f32.xlu0 %v579
    %v581 = vpop.xlane.xlu0 %580
    %v582 = vsel %vm536, %v39, -inf
    %583 = vmax.xlane.f32.xlu0 %v582
    %v584 = vpop.xlane.xlu0 %583
    %v585 = vsel %vm536, %v40, -inf
    %586 = vmax.xlane.f32.xlu0 %v585
    %v587 = vpop.xlane.xlu0 %586
    %v588 = vsel %vm536, %v41, -inf
    %589 = vmax.xlane.f32.xlu0 %v588
    %v590 = vpop.xlane.xlu0 %589
    %v591 = vsel %vm536, %v42, -inf
    %592 = vmax.xlane.f32.xlu0 %v591
    %v593 = vpop.xlane.xlu0 %592
    %v594 = vsel %vm536, %v43, -inf
    %595 = vmax.xlane.f32.xlu0 %v594
    %v596 = vpop.xlane.xlu0 %595
    %v597 = vsel %vm536, %v44, -inf
    %598 = vmax.xlane.f32.xlu0 %v597
    %v599 = vpop.xlane.xlu0 %598
    %v600 = vsel %vm536, %v45, -inf
    %601 = vmax.xlane.f32.xlu0 %v600
    %v602 = vpop.xlane.xlu0 %601
    %v603 = vsel %vm536, %v46, -inf
    %604 = vmax.xlane.f32.xlu0 %v603
    %v605 = vpop.xlane.xlu0 %604
    %v606 = vsel %vm536, %v47, -inf
    %607 = vmax.xlane.f32.xlu0 %v606
    %v608 = vpop.xlane.xlu0 %607
    %v609 = vsel %vm536, %v48, -inf
    %610 = vmax.xlane.f32.xlu0 %v609
    %v611 = vpop.xlane.xlu0 %610
    %v612 = vsel %vm536, %v49, -inf
    %613 = vmax.xlane.f32.xlu0 %v612
    %v614 = vpop.xlane.xlu0 %613
    %v615 = vsel %vm536, %v50, -inf
    %616 = vmax.xlane.f32.xlu0 %v615
    %v617 = vpop.xlane.xlu0 %616
    %v618 = vsel %vm536, %v51, -inf
    %619 = vmax.xlane.f32.xlu0 %v618
    %v620 = vpop.xlane.xlu0 %619
    %v621 = vsel %vm536, %v52, -inf
    %622 = vmax.xlane.f32.xlu0 %v621
    %v623 = vpop.xlane.xlu0 %622
    %v624 = vsel %vm536, %v53, -inf
    %625 = vmax.xlane.f32.xlu0 %v624
    %v626 = vpop.xlane.xlu0 %625
    %v627 = vsel %vm536, %v54, -inf
    %628 = vmax.xlane.f32.xlu0 %v627
    %v629 = vpop.xlane.xlu0 %628
    %v630 = vsel %vm536, %v55, -inf
    %631 = vmax.xlane.f32.xlu0 %v630
    %v632 = vpop.xlane.xlu0 %631
    %v633 = vsel %vm536, %v56, -inf
    %634 = vmax.xlane.f32.xlu0 %v633
    %v635 = vpop.xlane.xlu0 %634
    %v636 = vsel %vm536, %v57, -inf
    %637 = vmax.xlane.f32.xlu0 %v636
    %v638 = vpop.xlane.xlu0 %637
    %v639 = vsel %vm536, %v58, -inf
    %640 = vmax.xlane.f32.xlu0 %v639
    %v641 = vpop.xlane.xlu0 %640
    %v642 = vsel %vm536, %v59, -inf
    %643 = vmax.xlane.f32.xlu0 %v642
    %v644 = vpop.xlane.xlu0 %643
    %v645 = vsel %vm536, %v60, -inf
    %646 = vmax.xlane.f32.xlu0 %v645
    %v647 = vpop.xlane.xlu0 %646
    %v648 = vsel %vm536, %v61, -inf
    %649 = vmax.xlane.f32.xlu0 %v648
    %v650 = vpop.xlane.xlu0 %649
    %v651 = vsel %vm536, %v62, -inf
    %652 = vmax.xlane.f32.xlu0 %v651
    %v653 = vpop.xlane.xlu0 %652
    %v654 = vsel %vm536, %v63, -inf
    %655 = vmax.xlane.f32.xlu0 %v654
    %v656 = vpop.xlane.xlu0 %655
    %v657 = vsel %vm536, %v64, -inf
    %658 = vmax.xlane.f32.xlu0 %v657
    %v659 = vpop.xlane.xlu0 %658
    %v660 = vsel %vm536, %v65, -inf
    %661 = vmax.xlane.f32.xlu0 %v660
    %v662 = vpop.xlane.xlu0 %661
    %v663 = vsel %vm536, %v66, -inf
    %664 = vmax.xlane.f32.xlu0 %v663
    %v665 = vpop.xlane.xlu0 %664
    %v666 = vsel %vm536, %v67, -inf
    %667 = vmax.xlane.f32.xlu0 %v666
    %v668 = vpop.xlane.xlu0 %667
    %v669 = vsel %vm536, %v68, -inf
    %670 = vmax.xlane.f32.xlu0 %v669
    %v671 = vpop.xlane.xlu0 %670
    %v672 = vsel %vm536, %v69, -inf
    %673 = vmax.xlane.f32.xlu0 %v672
    %v674 = vpop.xlane.xlu0 %673
    %v675 = vsel %vm536, %v70, -inf
    %676 = vmax.xlane.f32.xlu0 %v675
    %v677 = vpop.xlane.xlu0 %676
    %v678 = vsel %vm536, %v71, -inf
    %679 = vmax.xlane.f32.xlu0 %v678
    %v680 = vpop.xlane.xlu0 %679
    %v681 = vsel %vm536, %v72, -inf
    %682 = vmax.xlane.f32.xlu0 %v681
    %v683 = vpop.xlane.xlu0 %682
    %v684 = vsel %vm536, %v73, -inf
    %685 = vmax.xlane.f32.xlu0 %v684
    %v686 = vpop.xlane.xlu0 %685
    %v687 = vsel %vm536, %v74, -inf
    %688 = vmax.xlane.f32.xlu0 %v687
    %v689 = vpop.xlane.xlu0 %688
    %v690 = vsel %vm536, %v75, -inf
    %691 = vmax.xlane.f32.xlu0 %v690
    %v692 = vpop.xlane.xlu0 %691
    %v693 = vsel %vm536, %v76, -inf
    %694 = vmax.xlane.f32.xlu0 %v693
    %v695 = vpop.xlane.xlu0 %694
    %v696 = vsel %vm536, %v77, -inf
    %697 = vmax.xlane.f32.xlu0 %v696
    %v698 = vpop.xlane.xlu0 %697
    %v699 = vsel %vm536, %v78, -inf
    %700 = vmax.xlane.f32.xlu0 %v699
    %v701 = vpop.xlane.xlu0 %700
    %v702 = vsel %vm536, %v79, -inf
    %703 = vmax.xlane.f32.xlu0 %v702
    %v704 = vpop.xlane.xlu0 %703
    %v705 = vsel %vm536, %v80, -inf
    %706 = vmax.xlane.f32.xlu0 %v705
    %v707 = vpop.xlane.xlu0 %706
    %v708 = vsel %vm536, %v81, -inf
    %709 = vmax.xlane.f32.xlu0 %v708
    %v710 = vpop.xlane.xlu0 %709
    %v711 = vsel %vm536, %v82, -inf
    %712 = vmax.xlane.f32.xlu0 %v711
    %v713 = vpop.xlane.xlu0 %712
    %v714 = vsel %vm536, %v83, -inf
    %715 = vmax.xlane.f32.xlu0 %v714
    %v716 = vpop.xlane.xlu0 %715
    %v717 = vsel %vm536, %v84, -inf
    %718 = vmax.xlane.f32.xlu0 %v717
    %v719 = vpop.xlane.xlu0 %718
    %v720 = vsel %vm536, %v85, -inf
    %721 = vmax.xlane.f32.xlu0 %v720
    %v722 = vpop.xlane.xlu0 %721
    %v723 = vsel %vm536, %v86, -inf
    %724 = vmax.xlane.f32.xlu0 %v723
    %v725 = vpop.xlane.xlu0 %724
    %v726 = vsel %vm536, %v87, -inf
    %727 = vmax.xlane.f32.xlu0 %v726
    %v728 = vpop.xlane.xlu0 %727
    %v729 = vsel %vm536, %v88, -inf
    %730 = vmax.xlane.f32.xlu0 %v729
    %v731 = vpop.xlane.xlu0 %730
    %v732 = vsel %vm536, %v89, -inf
    %733 = vmax.xlane.f32.xlu0 %v732
    %v734 = vpop.xlane.xlu0 %733
    %v735 = vsel %vm536, %v90, -inf
    %736 = vmax.xlane.f32.xlu0 %v735
    %v737 = vpop.xlane.xlu0 %736
    %v738 = vsel %vm536, %v91, -inf
    %739 = vmax.xlane.f32.xlu0 %v738
    %v740 = vpop.xlane.xlu0 %739
    %v741 = vsel %vm536, %v92, -inf
    %742 = vmax.xlane.f32.xlu0 %v741
    %v743 = vpop.xlane.xlu0 %742
    %v744 = vsel %vm536, %v93, -inf
    %745 = vmax.xlane.f32.xlu0 %v744
    %v746 = vpop.xlane.xlu0 %745
    %v747 = vsel %vm536, %v94, -inf
    %748 = vmax.xlane.f32.xlu0 %v747
    %v749 = vpop.xlane.xlu0 %748
    %v750 = vsel %vm536, %v95, -inf
    %751 = vmax.xlane.f32.xlu0 %v750
    %v752 = vpop.xlane.xlu0 %751
    %v753 = vsel %vm536, %v96, -inf
    %754 = vmax.xlane.f32.xlu0 %v753
    %v755 = vpop.xlane.xlu0 %754
    %v756 = vsel %vm536, %v97, -inf
    %757 = vmax.xlane.f32.xlu0 %v756
    %v758 = vpop.xlane.xlu0 %757
    %v759 = vsel %vm536, %v98, -inf
    %760 = vmax.xlane.f32.xlu0 %v759
    %v761 = vpop.xlane.xlu0 %760
    %v762 = vsel %vm536, %v99, -inf
    %763 = vmax.xlane.f32.xlu0 %v762
    %v764 = vpop.xlane.xlu0 %763
    %v765 = vsel %vm536, %v100, -inf
    %766 = vmax.xlane.f32.xlu0 %v765
    %v767 = vpop.xlane.xlu0 %766
    %v768 = vsel %vm536, %v101, -inf
    %769 = vmax.xlane.f32.xlu0 %v768
    %v770 = vpop.xlane.xlu0 %769
    %v771 = vsel %vm536, %v102, -inf
    %772 = vmax.xlane.f32.xlu0 %v771
    %v773 = vpop.xlane.xlu0 %772
    %v774 = vsel %vm536, %v103, -inf
    %775 = vmax.xlane.f32.xlu0 %v774
    %v776 = vpop.xlane.xlu0 %775
    %v777 = vsel %vm536, %v104, -inf
    %778 = vmax.xlane.f32.xlu0 %v777
    %v779 = vpop.xlane.xlu0 %778
    %v780 = vsel %vm536, %v105, -inf
    %781 = vmax.xlane.f32.xlu0 %v780
    %v782 = vpop.xlane.xlu0 %781
    %v783 = vsel %vm536, %v106, -inf
    %784 = vmax.xlane.f32.xlu0 %v783
    %v785 = vpop.xlane.xlu0 %784
    %v786 = vsel %vm536, %v107, -inf
    %787 = vmax.xlane.f32.xlu0 %v786
    %v788 = vpop.xlane.xlu0 %787
    %v789 = vsel %vm536, %v108, -inf
    %790 = vmax.xlane.f32.xlu0 %v789
    %v791 = vpop.xlane.xlu0 %790
    %v792 = vsel %vm536, %v109, -inf
    %793 = vmax.xlane.f32.xlu0 %v792
    %v794 = vpop.xlane.xlu0 %793
    %v795 = vsel %vm536, %v110, -inf
    %796 = vmax.xlane.f32.xlu0 %v795
    %v797 = vpop.xlane.xlu0 %796
    %v798 = vsel %vm536, %v111, -inf
    %799 = vmax.xlane.f32.xlu0 %v798
    %v800 = vpop.xlane.xlu0 %799
    %v801 = vsel %vm536, %v112, -inf
    %802 = vmax.xlane.f32.xlu0 %v801
    %v803 = vpop.xlane.xlu0 %802
    %v804 = vsel %vm536, %v113, -inf
    %805 = vmax.xlane.f32.xlu0 %v804
    %v806 = vpop.xlane.xlu0 %805
    %v807 = vsel %vm536, %v114, -inf
    %808 = vmax.xlane.f32.xlu0 %v807
    %v809 = vpop.xlane.xlu0 %808
    %v810 = vsel %vm536, %v115, -inf
    %811 = vmax.xlane.f32.xlu0 %v810
    %v812 = vpop.xlane.xlu0 %811
    %v813 = vsel %vm536, %v116, -inf
    %814 = vmax.xlane.f32.xlu0 %v813
    %v815 = vpop.xlane.xlu0 %814
    %v816 = vsel %vm536, %v117, -inf
    %817 = vmax.xlane.f32.xlu0 %v816
    %v818 = vpop.xlane.xlu0 %817
    %v819 = vsel %vm536, %v118, -inf
    %820 = vmax.xlane.f32.xlu0 %v819
    %v821 = vpop.xlane.xlu0 %820
    %v822 = vsel %vm536, %v119, -inf
    %823 = vmax.xlane.f32.xlu0 %v822
    %v824 = vpop.xlane.xlu0 %823
    %v825 = vsel %vm536, %v120, -inf
    %826 = vmax.xlane.f32.xlu0 %v825
    %v827 = vpop.xlane.xlu0 %826
    %v828 = vsel %vm536, %v121, -inf
    %829 = vmax.xlane.f32.xlu0 %v828
    %v830 = vpop.xlane.xlu0 %829
    %v831 = vsel %vm536, %v122, -inf
    %832 = vmax.xlane.f32.xlu0 %v831
    %v833 = vpop.xlane.xlu0 %832
    %v834 = vsel %vm536, %v123, -inf
    %835 = vmax.xlane.f32.xlu0 %v834
    %v836 = vpop.xlane.xlu0 %835
    %v837 = vsel %vm536, %v124, -inf
    %838 = vmax.xlane.f32.xlu0 %v837
    %v839 = vpop.xlane.xlu0 %838
    %v840 = vsel %vm536, %v125, -inf
    %841 = vmax.xlane.f32.xlu0 %v840
    %v842 = vpop.xlane.xlu0 %841
    %v843 = vsel %vm536, %v126, -inf
    %844 = vmax.xlane.f32.xlu0 %v843
    %v845 = vpop.xlane.xlu0 %844
    %v846 = vsel %vm536, %v127, -inf
    %847 = vmax.xlane.f32.xlu0 %v846
    %v848 = vpop.xlane.xlu0 %847
    %v849 = vsel %vm536, %v128, -inf
    %850 = vmax.xlane.f32.xlu0 %v849
    %v851 = vpop.xlane.xlu0 %850
    %v852 = vsel %vm536, %v129, -inf
    %853 = vmax.xlane.f32.xlu0 %v852
    %v854 = vpop.xlane.xlu0 %853
    %v855 = vsel %vm536, %v130, -inf
    %856 = vmax.xlane.f32.xlu0 %v855
    %v857 = vpop.xlane.xlu0 %856
    %v858 = vsel %vm536, %v131, -inf
    %859 = vmax.xlane.f32.xlu0 %v858
    %v860 = vpop.xlane.xlu0 %859
    %v861 = vsel %vm536, %v132, -inf
    %862 = vmax.xlane.f32.xlu0 %v861
    %v863 = vpop.xlane.xlu0 %862
    %v864 = vsel %vm536, %v133, -inf
    %865 = vmax.xlane.f32.xlu0 %v864
    %v866 = vpop.xlane.xlu0 %865
    %v867 = vsel %vm536, %v134, -inf
    %868 = vmax.xlane.f32.xlu0 %v867
    %v869 = vpop.xlane.xlu0 %868
    %v870 = vsel %vm536, %v135, -inf
    %871 = vmax.xlane.f32.xlu0 %v870
    %v872 = vpop.xlane.xlu0 %871
    %v873 = vsel %vm536, %v136, -inf
    %874 = vmax.xlane.f32.xlu0 %v873
    %v875 = vpop.xlane.xlu0 %874
    %v876 = vsel %vm536, %v137, -inf
    %877 = vmax.xlane.f32.xlu0 %v876
    %v878 = vpop.xlane.xlu0 %877
    %v879 = vsel %vm536, %v138, -inf
    %880 = vmax.xlane.f32.xlu0 %v879
    %v881 = vpop.xlane.xlu0 %880
    %v882 = vsel %vm536, %v139, -inf
    %883 = vmax.xlane.f32.xlu0 %v882
    %v884 = vpop.xlane.xlu0 %883
    %v885 = vsel %vm536, %v140, -inf
    %886 = vmax.xlane.f32.xlu0 %v885
    %v887 = vpop.xlane.xlu0 %886
    %v888 = vsel %vm536, %v141, -inf
    %889 = vmax.xlane.f32.xlu0 %v888
    %v890 = vpop.xlane.xlu0 %889
    %v891 = vsel %vm536, %v142, -inf
    %892 = vmax.xlane.f32.xlu0 %v891
    %v893 = vpop.xlane.xlu0 %892
    %v894 = vsel %vm536, %v143, -inf
    %895 = vmax.xlane.f32.xlu0 %v894
    %v896 = vpop.xlane.xlu0 %895
    %v897 = vsel %vm536, %v144, -inf
    %898 = vmax.xlane.f32.xlu0 %v897
    %v899 = vpop.xlane.xlu0 %898
    %v900 = vsel %vm536, %v145, -inf
    %901 = vmax.xlane.f32.xlu0 %v900
    %v902 = vpop.xlane.xlu0 %901
    %v903 = vsel %vm536, %v146, -inf
    %904 = vmax.xlane.f32.xlu0 %v903
    %v905 = vpop.xlane.xlu0 %904
    %v906 = vsel %vm536, %v147, -inf
    %907 = vmax.xlane.f32.xlu0 %v906
    %v908 = vpop.xlane.xlu0 %907
    %v909 = vsel %vm536, %v148, -inf
    %910 = vmax.xlane.f32.xlu0 %v909
    %v911 = vpop.xlane.xlu0 %910
    %v912 = vsel %vm536, %v149, -inf
    %913 = vmax.xlane.f32.xlu0 %v912
    %v914 = vpop.xlane.xlu0 %913
    %v915 = vsel %vm536, %v150, -inf
    %916 = vmax.xlane.f32.xlu0 %v915
    %v917 = vpop.xlane.xlu0 %916
    %v918 = vsel %vm536, %v151, -inf
    %919 = vmax.xlane.f32.xlu0 %v918
    %v920 = vpop.xlane.xlu0 %919
    %v921 = vsel %vm536, %v152, -inf
    %922 = vmax.xlane.f32.xlu0 %v921
    %v923 = vpop.xlane.xlu0 %922
    %v924 = vsel %vm536, %v153, -inf
    %925 = vmax.xlane.f32.xlu0 %v924
    %v926 = vpop.xlane.xlu0 %925
    %v927 = vsel %vm536, %v154, -inf
    %928 = vmax.xlane.f32.xlu0 %v927
    %v929 = vpop.xlane.xlu0 %928
    %v930 = vsel %vm536, %v155, -inf
    %931 = vmax.xlane.f32.xlu0 %v930
    %v932 = vpop.xlane.xlu0 %931
    %v933 = vsel %vm536, %v156, -inf
    %934 = vmax.xlane.f32.xlu0 %v933
    %v935 = vpop.xlane.xlu0 %934
    %v936 = vsel %vm536, %v157, -inf
    %937 = vmax.xlane.f32.xlu0 %v936
    %v938 = vpop.xlane.xlu0 %937
    %v939 = vsel %vm536, %v158, -inf
    %940 = vmax.xlane.f32.xlu0 %v939
    %v941 = vpop.xlane.xlu0 %940
    %v942 = vsel %vm536, %v159, -inf
    %943 = vmax.xlane.f32.xlu0 %v942
    %v944 = vpop.xlane.xlu0 %943
    %v945 = vsel %vm536, %v160, -inf
    %946 = vmax.xlane.f32.xlu0 %v945
    %v947 = vpop.xlane.xlu0 %946
    %v948 = vsel %vm536, %v161, -inf
    %949 = vmax.xlane.f32.xlu0 %v948
    %v950 = vpop.xlane.xlu0 %949
    %v951 = vsel %vm536, %v162, -inf
    %952 = vmax.xlane.f32.xlu0 %v951
    %v953 = vpop.xlane.xlu0 %952
    %v954 = vsel %vm536, %v163, -inf
    %955 = vmax.xlane.f32.xlu0 %v954
    %v956 = vpop.xlane.xlu0 %955
    %v957 = vsel %vm536, %v164, -inf
    %958 = vmax.xlane.f32.xlu0 %v957
    %v959 = vpop.xlane.xlu0 %958
    %v960 = vsel %vm536, %v165, -inf
    %961 = vmax.xlane.f32.xlu0 %v960
    %v962 = vpop.xlane.xlu0 %961
    %v963 = vsel %vm536, %v166, -inf
    %964 = vmax.xlane.f32.xlu0 %v963
    %v965 = vpop.xlane.xlu0 %964
    %v966 = vsel %vm536, %v167, -inf
    %967 = vmax.xlane.f32.xlu0 %v966
    %v968 = vpop.xlane.xlu0 %967
    %v969 = vsel %vm536, %v168, -inf
    %970 = vmax.xlane.f32.xlu0 %v969
    %v971 = vpop.xlane.xlu0 %970
    %v972 = vsel %vm536, %v169, -inf
    %973 = vmax.xlane.f32.xlu0 %v972
    %v974 = vpop.xlane.xlu0 %973
    %v975 = vsel %vm536, %v170, -inf
    %976 = vmax.xlane.f32.xlu0 %v975
    %v977 = vpop.xlane.xlu0 %976
    %v978 = vsel %vm536, %v171, -inf
    %979 = vmax.xlane.f32.xlu0 %v978
    %v980 = vpop.xlane.xlu0 %979
    %v981 = vsel %vm536, %v172, -inf
    %982 = vmax.xlane.f32.xlu0 %v981
    %v983 = vpop.xlane.xlu0 %982
    %v984 = vsel %vm536, %v173, -inf
    %985 = vmax.xlane.f32.xlu0 %v984
    %v986 = vpop.xlane.xlu0 %985
    %v987 = vsel %vm536, %v174, -inf
    %988 = vmax.xlane.f32.xlu0 %v987
    %v989 = vpop.xlane.xlu0 %988
    %v990 = vsel %vm536, %v175, -inf
    %991 = vmax.xlane.f32.xlu0 %v990
    %v992 = vpop.xlane.xlu0 %991
    %v993 = vsel %vm536, %v176, -inf
    %994 = vmax.xlane.f32.xlu0 %v993
    %v995 = vpop.xlane.xlu0 %994
    %v996 = vsel %vm536, %v177, -inf
    %997 = vmax.xlane.f32.xlu0 %v996
    %v998 = vpop.xlane.xlu0 %997
    %v999 = vsel %vm536, %v178, -inf
    %1000 = vmax.xlane.f32.xlu0 %v999
    %v1001 = vpop.xlane.xlu0 %1000
    %v1002 = vsel %vm536, %v179, -inf
    %1003 = vmax.xlane.f32.xlu0 %v1002
    %v1004 = vpop.xlane.xlu0 %1003
    %v1005 = vsel %vm536, %v180, -inf
    %1006 = vmax.xlane.f32.xlu0 %v1005
    %v1007 = vpop.xlane.xlu0 %1006
    %v1008 = vsel %vm536, %v181, -inf
    %1009 = vmax.xlane.f32.xlu0 %v1008
    %v1010 = vpop.xlane.xlu0 %1009
    %v1011 = vsel %vm536, %v182, -inf
    %1012 = vmax.xlane.f32.xlu0 %v1011
    %v1013 = vpop.xlane.xlu0 %1012
    %v1014 = vsel %vm536, %v183, -inf
    %1015 = vmax.xlane.f32.xlu0 %v1014
    %v1016 = vpop.xlane.xlu0 %1015
    %v1017 = vsel %vm536, %v184, -inf
    %1018 = vmax.xlane.f32.xlu0 %v1017
    %v1019 = vpop.xlane.xlu0 %1018
    %v1020 = vsel %vm536, %v185, -inf
    %1021 = vmax.xlane.f32.xlu0 %v1020
    %v1022 = vpop.xlane.xlu0 %1021
    %v1023 = vsel %vm536, %v186, -inf
    %1024 = vmax.xlane.f32.xlu0 %v1023
    %v1025 = vpop.xlane.xlu0 %1024
    %v1026 = vsel %vm536, %v187, -inf
    %1027 = vmax.xlane.f32.xlu0 %v1026
    %v1028 = vpop.xlane.xlu0 %1027
    %v1029 = vsel %vm536, %v188, -inf
    %1030 = vmax.xlane.f32.xlu0 %v1029
    %v1031 = vpop.xlane.xlu0 %1030
    %v1032 = vsel %vm536, %v189, -inf
    %1033 = vmax.xlane.f32.xlu0 %v1032
    %v1034 = vpop.xlane.xlu0 %1033
    %v1035 = vsel %vm536, %v190, -inf
    %1036 = vmax.xlane.f32.xlu0 %v1035
    %v1037 = vpop.xlane.xlu0 %1036
    %v1038 = vsel %vm536, %v191, -inf
    %1039 = vmax.xlane.f32.xlu0 %v1038
    %v1040 = vpop.xlane.xlu0 %1039
    %v1041 = vsel %vm536, %v192, -inf
    %1042 = vmax.xlane.f32.xlu0 %v1041
    %v1043 = vpop.xlane.xlu0 %1042
    %v1044 = vsel %vm536, %v193, -inf
    %1045 = vmax.xlane.f32.xlu0 %v1044
    %v1046 = vpop.xlane.xlu0 %1045
    %v1047 = vsel %vm536, %v194, -inf
    %1048 = vmax.xlane.f32.xlu0 %v1047
    %v1049 = vpop.xlane.xlu0 %1048
    %v1050 = vsel %vm536, %v195, -inf
    %1051 = vmax.xlane.f32.xlu0 %v1050
    %v1052 = vpop.xlane.xlu0 %1051
    %v1053 = vsel %vm536, %v196, -inf
    %1054 = vmax.xlane.f32.xlu0 %v1053
    %v1055 = vpop.xlane.xlu0 %1054
    %v1056 = vsel %vm536, %v197, -inf
    %1057 = vmax.xlane.f32.xlu0 %v1056
    %v1058 = vpop.xlane.xlu0 %1057
    %v1059 = vsel %vm536, %v198, -inf
    %1060 = vmax.xlane.f32.xlu0 %v1059
    %v1061 = vpop.xlane.xlu0 %1060
    %v1062 = vsel %vm536, %v199, -inf
    %1063 = vmax.xlane.f32.xlu0 %v1062
    %v1064 = vpop.xlane.xlu0 %1063
    %v1065 = vsel %vm536, %v200, -inf
    %1066 = vmax.xlane.f32.xlu0 %v1065
    %v1067 = vpop.xlane.xlu0 %1066
    %v1068 = vsel %vm536, %v201, -inf
    %1069 = vmax.xlane.f32.xlu0 %v1068
    %v1070 = vpop.xlane.xlu0 %1069
    %v1071 = vsel %vm536, %v202, -inf
    %1072 = vmax.xlane.f32.xlu0 %v1071
    %v1073 = vpop.xlane.xlu0 %1072
    %v1074 = vsel %vm536, %v203, -inf
    %1075 = vmax.xlane.f32.xlu0 %v1074
    %v1076 = vpop.xlane.xlu0 %1075
    %v1077 = vsel %vm536, %v204, -inf
    %1078 = vmax.xlane.f32.xlu0 %v1077
    %v1079 = vpop.xlane.xlu0 %1078
    %v1080 = vsel %vm536, %v205, -inf
    %1081 = vmax.xlane.f32.xlu0 %v1080
    %v1082 = vpop.xlane.xlu0 %1081
    %v1083 = vsel %vm536, %v206, -inf
    %1084 = vmax.xlane.f32.xlu0 %v1083
    %v1085 = vpop.xlane.xlu0 %1084
    %v1086 = vsel %vm536, %v207, -inf
    %1087 = vmax.xlane.f32.xlu0 %v1086
    %v1088 = vpop.xlane.xlu0 %1087
    %v1089 = vsel %vm536, %v208, -inf
    %1090 = vmax.xlane.f32.xlu0 %v1089
    %v1091 = vpop.xlane.xlu0 %1090
    %v1092 = vsel %vm536, %v209, -inf
    %1093 = vmax.xlane.f32.xlu0 %v1092
    %v1094 = vpop.xlane.xlu0 %1093
    %v1095 = vsel %vm536, %v210, -inf
    %1096 = vmax.xlane.f32.xlu0 %v1095
    %v1097 = vpop.xlane.xlu0 %1096
    %v1098 = vsel %vm536, %v211, -inf
    %1099 = vmax.xlane.f32.xlu0 %v1098
    %v1100 = vpop.xlane.xlu0 %1099
    %v1101 = vsel %vm536, %v212, -inf
    %1102 = vmax.xlane.f32.xlu0 %v1101
    %v1103 = vpop.xlane.xlu0 %1102
    %v1104 = vsel %vm536, %v213, -inf
    %1105 = vmax.xlane.f32.xlu0 %v1104
    %v1106 = vpop.xlane.xlu0 %1105
    %v1107 = vsel %vm536, %v214, -inf
    %1108 = vmax.xlane.f32.xlu0 %v1107
    %v1109 = vpop.xlane.xlu0 %1108
    %v1110 = vsel %vm536, %v215, -inf
    %1111 = vmax.xlane.f32.xlu0 %v1110
    %v1112 = vpop.xlane.xlu0 %1111
    %v1113 = vsel %vm536, %v216, -inf
    %1114 = vmax.xlane.f32.xlu0 %v1113
    %v1115 = vpop.xlane.xlu0 %1114
    %v1116 = vsel %vm536, %v217, -inf
    %1117 = vmax.xlane.f32.xlu0 %v1116
    %v1118 = vpop.xlane.xlu0 %1117
    %v1119 = vsel %vm536, %v218, -inf
    %1120 = vmax.xlane.f32.xlu0 %v1119
    %v1121 = vpop.xlane.xlu0 %1120
    %v1122 = vsel %vm536, %v219, -inf
    %1123 = vmax.xlane.f32.xlu0 %v1122
    %v1124 = vpop.xlane.xlu0 %1123
    %v1125 = vsel %vm536, %v220, -inf
    %1126 = vmax.xlane.f32.xlu0 %v1125
    %v1127 = vpop.xlane.xlu0 %1126
    %v1128 = vsel %vm536, %v221, -inf
    %1129 = vmax.xlane.f32.xlu0 %v1128
    %v1130 = vpop.xlane.xlu0 %1129
    %v1131 = vsel %vm536, %v222, -inf
    %1132 = vmax.xlane.f32.xlu0 %v1131
    %v1133 = vpop.xlane.xlu0 %1132
    %v1134 = vsel %vm536, %v223, -inf
    %1135 = vmax.xlane.f32.xlu0 %v1134
    %v1136 = vpop.xlane.xlu0 %1135
    %v1137 = vsel %vm536, %v224, -inf
    %1138 = vmax.xlane.f32.xlu0 %v1137
    %v1139 = vpop.xlane.xlu0 %1138
    %v1140 = vsel %vm536, %v225, -inf
    %1141 = vmax.xlane.f32.xlu0 %v1140
    %v1142 = vpop.xlane.xlu0 %1141
    %v1143 = vsel %vm536, %v226, -inf
    %1144 = vmax.xlane.f32.xlu0 %v1143
    %v1145 = vpop.xlane.xlu0 %1144
    %v1146 = vsel %vm536, %v227, -inf
    %1147 = vmax.xlane.f32.xlu0 %v1146
    %v1148 = vpop.xlane.xlu0 %1147
    %v1149 = vsel %vm536, %v228, -inf
    %1150 = vmax.xlane.f32.xlu0 %v1149
    %v1151 = vpop.xlane.xlu0 %1150
    %v1152 = vsel %vm536, %v229, -inf
    %1153 = vmax.xlane.f32.xlu0 %v1152
    %v1154 = vpop.xlane.xlu0 %1153
    %v1155 = vsel %vm536, %v230, -inf
    %1156 = vmax.xlane.f32.xlu0 %v1155
    %v1157 = vpop.xlane.xlu0 %1156
    %v1158 = vsel %vm536, %v231, -inf
    %1159 = vmax.xlane.f32.xlu0 %v1158
    %v1160 = vpop.xlane.xlu0 %1159
    %v1161 = vsel %vm536, %v232, -inf
    %1162 = vmax.xlane.f32.xlu0 %v1161
    %v1163 = vpop.xlane.xlu0 %1162
    %v1164 = vsel %vm536, %v233, -inf
    %1165 = vmax.xlane.f32.xlu0 %v1164
    %v1166 = vpop.xlane.xlu0 %1165
    %v1167 = vsel %vm536, %v234, -inf
    %1168 = vmax.xlane.f32.xlu0 %v1167
    %v1169 = vpop.xlane.xlu0 %1168
    %v1170 = vsel %vm536, %v235, -inf
    %1171 = vmax.xlane.f32.xlu0 %v1170
    %v1172 = vpop.xlane.xlu0 %1171
    %v1173 = vsel %vm536, %v236, -inf
    %1174 = vmax.xlane.f32.xlu0 %v1173
    %v1175 = vpop.xlane.xlu0 %1174
    %v1176 = vsel %vm536, %v237, -inf
    %1177 = vmax.xlane.f32.xlu0 %v1176
    %v1178 = vpop.xlane.xlu0 %1177
    %v1179 = vsel %vm536, %v238, -inf
    %1180 = vmax.xlane.f32.xlu0 %v1179
    %v1181 = vpop.xlane.xlu0 %1180
    %v1182 = vsel %vm536, %v239, -inf
    %1183 = vmax.xlane.f32.xlu0 %v1182
    %v1184 = vpop.xlane.xlu0 %1183
    %v1185 = vsel %vm536, %v240, -inf
    %1186 = vmax.xlane.f32.xlu0 %v1185
    %v1187 = vpop.xlane.xlu0 %1186
    %v1188 = vsel %vm536, %v241, -inf
    %1189 = vmax.xlane.f32.xlu0 %v1188
    %v1190 = vpop.xlane.xlu0 %1189
    %v1191 = vsel %vm536, %v242, -inf
    %1192 = vmax.xlane.f32.xlu0 %v1191
    %v1193 = vpop.xlane.xlu0 %1192
    %v1194 = vsel %vm536, %v243, -inf
    %1195 = vmax.xlane.f32.xlu0 %v1194
    %v1196 = vpop.xlane.xlu0 %1195
    %v1197 = vsel %vm536, %v244, -inf
    %1198 = vmax.xlane.f32.xlu0 %v1197
    %v1199 = vpop.xlane.xlu0 %1198
    %v1200 = vsel %vm536, %v245, -inf
    %1201 = vmax.xlane.f32.xlu0 %v1200
    %v1202 = vpop.xlane.xlu0 %1201
    %v1203 = vsel %vm536, %v246, -inf
    %1204 = vmax.xlane.f32.xlu0 %v1203
    %v1205 = vpop.xlane.xlu0 %1204
    %v1206 = vsel %vm536, %v247, -inf
    %1207 = vmax.xlane.f32.xlu0 %v1206
    %v1208 = vpop.xlane.xlu0 %1207
    %v1209 = vsel %vm536, %v248, -inf
    %1210 = vmax.xlane.f32.xlu0 %v1209
    %v1211 = vpop.xlane.xlu0 %1210
    %v1212 = vsel %vm536, %v249, -inf
    %1213 = vmax.xlane.f32.xlu0 %v1212
    %v1214 = vpop.xlane.xlu0 %1213
    %v1215 = vsel %vm536, %v250, -inf
    %1216 = vmax.xlane.f32.xlu0 %v1215
    %v1217 = vpop.xlane.xlu0 %1216
    %v1218 = vsel %vm536, %v251, -inf
    %1219 = vmax.xlane.f32.xlu0 %v1218
    %v1220 = vpop.xlane.xlu0 %1219
    %v1221 = vsel %vm536, %v252, -inf
    %1222 = vmax.xlane.f32.xlu0 %v1221
    %v1223 = vpop.xlane.xlu0 %1222
    %v1224 = vsel %vm536, %v253, -inf
    %1225 = vmax.xlane.f32.xlu0 %v1224
    %v1226 = vpop.xlane.xlu0 %1225
    %v1227 = vsel %vm536, %v254, -inf
    %1228 = vmax.xlane.f32.xlu0 %v1227
    %v1229 = vpop.xlane.xlu0 %1228
    %v1230 = vsel %vm536, %v255, -inf
    %1231 = vmax.xlane.f32.xlu0 %v1230
    %v1232 = vpop.xlane.xlu0 %1231
    %v1233 = vsel %vm536, %v256, -inf
    %1234 = vmax.xlane.f32.xlu0 %v1233
    %v1235 = vpop.xlane.xlu0 %1234
    %v1236 = vsel %vm536, %v257, -inf
    %1237 = vmax.xlane.f32.xlu0 %v1236
    %v1238 = vpop.xlane.xlu0 %1237
    %v1239 = vsel %vm536, %v258, -inf
    %1240 = vmax.xlane.f32.xlu0 %v1239
    %v1241 = vpop.xlane.xlu0 %1240
    %v1242 = vsel %vm536, %v259, -inf
    %1243 = vmax.xlane.f32.xlu0 %v1242
    %v1244 = vpop.xlane.xlu0 %1243
    %v1245 = vsel %vm536, %v260, -inf
    %1246 = vmax.xlane.f32.xlu0 %v1245
    %v1247 = vpop.xlane.xlu0 %1246
    %v1248 = vsel %vm536, %v261, -inf
    %1249 = vmax.xlane.f32.xlu0 %v1248
    %v1250 = vpop.xlane.xlu0 %1249
    %v1251 = vsel %vm536, %v262, -inf
    %1252 = vmax.xlane.f32.xlu0 %v1251
    %v1253 = vpop.xlane.xlu0 %1252
    %v1254 = vsel %vm536, %v263, -inf
    %1255 = vmax.xlane.f32.xlu0 %v1254
    %v1256 = vpop.xlane.xlu0 %1255
    %v1257 = vsel %vm536, %v264, -inf
    %1258 = vmax.xlane.f32.xlu0 %v1257
    %v1259 = vpop.xlane.xlu0 %1258
    %v1260 = vsel %vm536, %v265, -inf
    %1261 = vmax.xlane.f32.xlu0 %v1260
    %v1262 = vpop.xlane.xlu0 %1261
    %v1263 = vsel %vm536, %v266, -inf
    %1264 = vmax.xlane.f32.xlu0 %v1263
    %v1265 = vpop.xlane.xlu0 %1264
    %v1266 = vsel %vm536, %v267, -inf
    %1267 = vmax.xlane.f32.xlu0 %v1266
    %v1268 = vpop.xlane.xlu0 %1267
    %v1269 = vsel %vm536, %v268, -inf
    %1270 = vmax.xlane.f32.xlu0 %v1269
    %v1271 = vpop.xlane.xlu0 %1270
    %v1272 = vsel %vm536, %v269, -inf
    %1273 = vmax.xlane.f32.xlu0 %v1272
    %v1274 = vpop.xlane.xlu0 %1273
    %v1275 = vsel %vm536, %v270, -inf
    %1276 = vmax.xlane.f32.xlu0 %v1275
    %v1277 = vpop.xlane.xlu0 %1276
    %v1278 = vsel %vm536, %v271, -inf
    %1279 = vmax.xlane.f32.xlu0 %v1278
    %v1280 = vpop.xlane.xlu0 %1279
    %v1281 = vsel %vm536, %v272, -inf
    %1282 = vmax.xlane.f32.xlu0 %v1281
    %v1283 = vpop.xlane.xlu0 %1282
    %v1284 = vsel %vm536, %v273, -inf
    %1285 = vmax.xlane.f32.xlu0 %v1284
    %v1286 = vpop.xlane.xlu0 %1285
    %v1287 = vsel %vm536, %v274, -inf
    %1288 = vmax.xlane.f32.xlu0 %v1287
    %v1289 = vpop.xlane.xlu0 %1288
    %v1290 = vsel %vm536, %v275, -inf
    %1291 = vmax.xlane.f32.xlu0 %v1290
    %v1292 = vpop.xlane.xlu0 %1291
    %v1293 = vsel %vm536, %v276, -inf
    %1294 = vmax.xlane.f32.xlu0 %v1293
    %v1295 = vpop.xlane.xlu0 %1294
    %v1296 = vsel %vm536, %v277, -inf
    %1297 = vmax.xlane.f32.xlu0 %v1296
    %v1298 = vpop.xlane.xlu0 %1297
    %v1299 = vsel %vm536, %v278, -inf
    %1300 = vmax.xlane.f32.xlu0 %v1299
    %v1301 = vpop.xlane.xlu0 %1300
    %v1302 = vsel %vm536, %v279, -inf
    %1303 = vmax.xlane.f32.xlu0 %v1302
    %v1304 = vpop.xlane.xlu0 %1303
    %v1305 = vsel %vm536, %v280, -inf
    %1306 = vmax.xlane.f32.xlu0 %v1305
    %v1307 = vpop.xlane.xlu0 %1306
    %v1308 = vsel %vm536, %v281, -inf
    %1309 = vmax.xlane.f32.xlu0 %v1308
    %v1310 = vpop.xlane.xlu0 %1309
    %v1311 = vsel %vm536, %v282, -inf
    %1312 = vmax.xlane.f32.xlu0 %v1311
    %v1313 = vpop.xlane.xlu0 %1312
    %v1314 = vsel %vm536, %v283, -inf
    %1315 = vmax.xlane.f32.xlu0 %v1314
    %v1316 = vpop.xlane.xlu0 %1315
    %v1317 = vsel %vm536, %v284, -inf
    %1318 = vmax.xlane.f32.xlu0 %v1317
    %v1319 = vpop.xlane.xlu0 %1318
    %v1320 = vsel %vm536, %v285, -inf
    %1321 = vmax.xlane.f32.xlu0 %v1320
    %v1322 = vpop.xlane.xlu0 %1321
    %v1323 = vsel %vm536, %v286, -inf
    %1324 = vmax.xlane.f32.xlu0 %v1323
    %v1325 = vpop.xlane.xlu0 %1324
    %v1326 = vsel %vm536, %v287, -inf
    %1327 = vmax.xlane.f32.xlu0 %v1326
    %v1328 = vpop.xlane.xlu0 %1327
    %v1329 = vsel %vm536, %v288, -inf
    %1330 = vmax.xlane.f32.xlu0 %v1329
    %v1331 = vpop.xlane.xlu0 %1330
    %v1332 = vsel %vm536, %v289, -inf
    %1333 = vmax.xlane.f32.xlu0 %v1332
    %v1334 = vpop.xlane.xlu0 %1333
    %v1335 = vsel %vm536, %v290, -inf
    %1336 = vmax.xlane.f32.xlu0 %v1335
    %v1337 = vpop.xlane.xlu0 %1336
    %v1338 = vsel %vm536, %v291, -inf
    %1339 = vmax.xlane.f32.xlu0 %v1338
    %v1340 = vpop.xlane.xlu0 %1339
    %v1341 = vsel %vm536, %v292, -inf
    %1342 = vmax.xlane.f32.xlu0 %v1341
    %v1343 = vpop.xlane.xlu0 %1342
    %v1344 = vsel %vm536, %v293, -inf
    %1345 = vmax.xlane.f32.xlu0 %v1344
    %v1346 = vpop.xlane.xlu0 %1345
    %v1347 = vsel %vm536, %v294, -inf
    %1348 = vmax.xlane.f32.xlu0 %v1347
    %v1349 = vpop.xlane.xlu0 %1348
    %v1350 = vsel %vm536, %v295, -inf
    %1351 = vmax.xlane.f32.xlu0 %v1350
    %v1352 = vpop.xlane.xlu0 %1351
    %v1353 = vsel %vm536, %v296, -inf
    %1354 = vmax.xlane.f32.xlu0 %v1353
    %v1355 = vpop.xlane.xlu0 %1354
    %v1356 = vsel %vm536, %v297, -inf
    %1357 = vmax.xlane.f32.xlu0 %v1356
    %v1358 = vpop.xlane.xlu0 %1357
    %v1359 = vsel %vm536, %v298, -inf
    %1360 = vmax.xlane.f32.xlu0 %v1359
    %v1361 = vpop.xlane.xlu0 %1360
    %v1362 = vsel %vm536, %v299, -inf
    %1363 = vmax.xlane.f32.xlu0 %v1362
    %v1364 = vpop.xlane.xlu0 %1363
    %v1365 = vsel %vm536, %v300, -inf
    %1366 = vmax.xlane.f32.xlu0 %v1365
    %v1367 = vpop.xlane.xlu0 %1366
    %v1368 = vsel %vm536, %v301, -inf
    %1369 = vmax.xlane.f32.xlu0 %v1368
    %v1370 = vpop.xlane.xlu0 %1369
    %v1371 = vsel %vm536, %v302, -inf
    %1372 = vmax.xlane.f32.xlu0 %v1371
    %v1373 = vpop.xlane.xlu0 %1372
    %v1374 = vsel %vm536, %v303, -inf
    %1375 = vmax.xlane.f32.xlu0 %v1374
    %v1376 = vpop.xlane.xlu0 %1375
    %v1377 = vsel %vm536, %v304, -inf
    %1378 = vmax.xlane.f32.xlu0 %v1377
    %v1379 = vpop.xlane.xlu0 %1378
    %v1380 = vsel %vm536, %v305, -inf
    %1381 = vmax.xlane.f32.xlu0 %v1380
    %v1382 = vpop.xlane.xlu0 %1381
    %v1383 = vsel %vm536, %v306, -inf
    %1384 = vmax.xlane.f32.xlu0 %v1383
    %v1385 = vpop.xlane.xlu0 %1384
    %v1386 = vsel %vm536, %v307, -inf
    %1387 = vmax.xlane.f32.xlu0 %v1386
    %v1388 = vpop.xlane.xlu0 %1387
    %v1389 = vsel %vm536, %v308, -inf
    %1390 = vmax.xlane.f32.xlu0 %v1389
    %v1391 = vpop.xlane.xlu0 %1390
    %v1392 = vsel %vm536, %v309, -inf
    %1393 = vmax.xlane.f32.xlu0 %v1392
    %v1394 = vpop.xlane.xlu0 %1393
    %v1395 = vsel %vm536, %v310, -inf
    %1396 = vmax.xlane.f32.xlu0 %v1395
    %v1397 = vpop.xlane.xlu0 %1396
    %v1398 = vsel %vm536, %v311, -inf
    %1399 = vmax.xlane.f32.xlu0 %v1398
    %v1400 = vpop.xlane.xlu0 %1399
    %v1401 = vsel %vm536, %v312, -inf
    %1402 = vmax.xlane.f32.xlu0 %v1401
    %v1403 = vpop.xlane.xlu0 %1402
    %v1404 = vsel %vm536, %v313, -inf
    %1405 = vmax.xlane.f32.xlu0 %v1404
    %v1406 = vpop.xlane.xlu0 %1405
    %v1407 = vsel %vm536, %v314, -inf
    %1408 = vmax.xlane.f32.xlu0 %v1407
    %v1409 = vpop.xlane.xlu0 %1408
    %v1410 = vsel %vm536, %v315, -inf
    %1411 = vmax.xlane.f32.xlu0 %v1410
    %v1412 = vpop.xlane.xlu0 %1411
    %v1413 = vsel %vm536, %v316, -inf
    %1414 = vmax.xlane.f32.xlu0 %v1413
    %v1415 = vpop.xlane.xlu0 %1414
    %v1416 = vsel %vm536, %v317, -inf
    %1417 = vmax.xlane.f32.xlu0 %v1416
    %v1418 = vpop.xlane.xlu0 %1417
    %v1419 = vsel %vm536, %v318, -inf
    %1420 = vmax.xlane.f32.xlu0 %v1419
    %v1421 = vpop.xlane.xlu0 %1420
    %v1422 = vsel %vm536, %v319, -inf
    %1423 = vmax.xlane.f32.xlu0 %v1422
    %v1424 = vpop.xlane.xlu0 %1423
    %v1425 = vsel %vm536, %v320, -inf
    %1426 = vmax.xlane.f32.xlu0 %v1425
    %v1427 = vpop.xlane.xlu0 %1426
    %v1428 = vsel %vm536, %v321, -inf
    %1429 = vmax.xlane.f32.xlu0 %v1428
    %v1430 = vpop.xlane.xlu0 %1429
    %v1431 = vsel %vm536, %v322, -inf
    %1432 = vmax.xlane.f32.xlu0 %v1431
    %v1433 = vpop.xlane.xlu0 %1432
    %v1434 = vsel %vm536, %v323, -inf
    %1435 = vmax.xlane.f32.xlu0 %v1434
    %v1436 = vpop.xlane.xlu0 %1435
    %v1437 = vsel %vm536, %v324, -inf
    %1438 = vmax.xlane.f32.xlu0 %v1437
    %v1439 = vpop.xlane.xlu0 %1438
    %v1440 = vsel %vm536, %v325, -inf
    %1441 = vmax.xlane.f32.xlu0 %v1440
    %v1442 = vpop.xlane.xlu0 %1441
    %v1443 = vsel %vm536, %v326, -inf
    %1444 = vmax.xlane.f32.xlu0 %v1443
    %v1445 = vpop.xlane.xlu0 %1444
    %v1446 = vsel %vm536, %v327, -inf
    %1447 = vmax.xlane.f32.xlu0 %v1446
    %v1448 = vpop.xlane.xlu0 %1447
    %v1449 = vsel %vm536, %v328, -inf
    %1450 = vmax.xlane.f32.xlu0 %v1449
    %v1451 = vpop.xlane.xlu0 %1450
    %v1452 = vsel %vm536, %v329, -inf
    %1453 = vmax.xlane.f32.xlu0 %v1452
    %v1454 = vpop.xlane.xlu0 %1453
    %v1455 = vsel %vm536, %v330, -inf
    %1456 = vmax.xlane.f32.xlu0 %v1455
    %v1457 = vpop.xlane.xlu0 %1456
    %v1458 = vsel %vm536, %v331, -inf
    %1459 = vmax.xlane.f32.xlu0 %v1458
    %v1460 = vpop.xlane.xlu0 %1459
    %v1461 = vsel %vm536, %v332, -inf
    %1462 = vmax.xlane.f32.xlu0 %v1461
    %v1463 = vpop.xlane.xlu0 %1462
    %v1464 = vsel %vm536, %v333, -inf
    %1465 = vmax.xlane.f32.xlu0 %v1464
    %v1466 = vpop.xlane.xlu0 %1465
    %v1467 = vsel %vm536, %v334, -inf
    %1468 = vmax.xlane.f32.xlu0 %v1467
    %v1469 = vpop.xlane.xlu0 %1468
    %v1470 = vsel %vm536, %v335, -inf
    %1471 = vmax.xlane.f32.xlu0 %v1470
    %v1472 = vpop.xlane.xlu0 %1471
    %v1473 = vsel %vm536, %v336, -inf
    %1474 = vmax.xlane.f32.xlu0 %v1473
    %v1475 = vpop.xlane.xlu0 %1474
    %v1476 = vsel %vm536, %v337, -inf
    %1477 = vmax.xlane.f32.xlu0 %v1476
    %v1478 = vpop.xlane.xlu0 %1477
    %v1479 = vsel %vm536, %v338, -inf
    %1480 = vmax.xlane.f32.xlu0 %v1479
    %v1481 = vpop.xlane.xlu0 %1480
    %v1482 = vsel %vm536, %v339, -inf
    %1483 = vmax.xlane.f32.xlu0 %v1482
    %v1484 = vpop.xlane.xlu0 %1483
    %v1485 = vsel %vm536, %v340, -inf
    %1486 = vmax.xlane.f32.xlu0 %v1485
    %v1487 = vpop.xlane.xlu0 %1486
    %v1488 = vsel %vm536, %v341, -inf
    %1489 = vmax.xlane.f32.xlu0 %v1488
    %v1490 = vpop.xlane.xlu0 %1489
    %v1491 = vsel %vm536, %v342, -inf
    %1492 = vmax.xlane.f32.xlu0 %v1491
    %v1493 = vpop.xlane.xlu0 %1492
    %v1494 = vsel %vm536, %v343, -inf
    %1495 = vmax.xlane.f32.xlu0 %v1494
    %v1496 = vpop.xlane.xlu0 %1495
    %v1497 = vsel %vm536, %v344, -inf
    %1498 = vmax.xlane.f32.xlu0 %v1497
    %v1499 = vpop.xlane.xlu0 %1498
    %v1500 = vsel %vm536, %v345, -inf
    %1501 = vmax.xlane.f32.xlu0 %v1500
    %v1502 = vpop.xlane.xlu0 %1501
    %v1503 = vsel %vm536, %v346, -inf
    %1504 = vmax.xlane.f32.xlu0 %v1503
    %v1505 = vpop.xlane.xlu0 %1504
    %v1506 = vsel %vm536, %v347, -inf
    %1507 = vmax.xlane.f32.xlu0 %v1506
    %v1508 = vpop.xlane.xlu0 %1507
    %v1509 = vsel %vm536, %v348, -inf
    %1510 = vmax.xlane.f32.xlu0 %v1509
    %v1511 = vpop.xlane.xlu0 %1510
    %v1512 = vsel %vm536, %v349, -inf
    %1513 = vmax.xlane.f32.xlu0 %v1512
    %v1514 = vpop.xlane.xlu0 %1513
    %v1515 = vsel %vm536, %v350, -inf
    %1516 = vmax.xlane.f32.xlu0 %v1515
    %v1517 = vpop.xlane.xlu0 %1516
    %v1518 = vsel %vm536, %v351, -inf
    %1519 = vmax.xlane.f32.xlu0 %v1518
    %v1520 = vpop.xlane.xlu0 %1519
    %v1521 = vsel %vm536, %v352, -inf
    %1522 = vmax.xlane.f32.xlu0 %v1521
    %v1523 = vpop.xlane.xlu0 %1522
    %v1524 = vsel %vm536, %v353, -inf
    %1525 = vmax.xlane.f32.xlu0 %v1524
    %v1526 = vpop.xlane.xlu0 %1525
    %v1527 = vsel %vm536, %v354, -inf
    %1528 = vmax.xlane.f32.xlu0 %v1527
    %v1529 = vpop.xlane.xlu0 %1528
    %v1530 = vsel %vm536, %v355, -inf
    %1531 = vmax.xlane.f32.xlu0 %v1530
    %v1532 = vpop.xlane.xlu0 %1531
    %v1533 = vsel %vm536, %v356, -inf
    %1534 = vmax.xlane.f32.xlu0 %v1533
    %v1535 = vpop.xlane.xlu0 %1534
    %v1536 = vsel %vm536, %v357, -inf
    %1537 = vmax.xlane.f32.xlu0 %v1536
    %v1538 = vpop.xlane.xlu0 %1537
    %v1539 = vsel %vm536, %v358, -inf
    %1540 = vmax.xlane.f32.xlu0 %v1539
    %v1541 = vpop.xlane.xlu0 %1540
    %v1542 = vsel %vm536, %v359, -inf
    %1543 = vmax.xlane.f32.xlu0 %v1542
    %v1544 = vpop.xlane.xlu0 %1543
    %v1545 = vsel %vm536, %v360, -inf
    %1546 = vmax.xlane.f32.xlu0 %v1545
    %v1547 = vpop.xlane.xlu0 %1546
    %v1548 = vsel %vm536, %v361, -inf
    %1549 = vmax.xlane.f32.xlu0 %v1548
    %v1550 = vpop.xlane.xlu0 %1549
    %v1551 = vsel %vm536, %v362, -inf
    %1552 = vmax.xlane.f32.xlu0 %v1551
    %v1553 = vpop.xlane.xlu0 %1552
    %v1554 = vsel %vm536, %v363, -inf
    %1555 = vmax.xlane.f32.xlu0 %v1554
    %v1556 = vpop.xlane.xlu0 %1555
    %v1557 = vsel %vm536, %v364, -inf
    %1558 = vmax.xlane.f32.xlu0 %v1557
    %v1559 = vpop.xlane.xlu0 %1558
    %v1560 = vsel %vm536, %v365, -inf
    %1561 = vmax.xlane.f32.xlu0 %v1560
    %v1562 = vpop.xlane.xlu0 %1561
    %v1563 = vsel %vm536, %v366, -inf
    %1564 = vmax.xlane.f32.xlu0 %v1563
    %v1565 = vpop.xlane.xlu0 %1564
    %v1566 = vsel %vm536, %v367, -inf
    %1567 = vmax.xlane.f32.xlu0 %v1566
    %v1568 = vpop.xlane.xlu0 %1567
    %v1569 = vsel %vm536, %v368, -inf
    %1570 = vmax.xlane.f32.xlu0 %v1569
    %v1571 = vpop.xlane.xlu0 %1570
    %v1572 = vsel %vm536, %v369, -inf
    %1573 = vmax.xlane.f32.xlu0 %v1572
    %v1574 = vpop.xlane.xlu0 %1573
    %v1575 = vsel %vm536, %v370, -inf
    %1576 = vmax.xlane.f32.xlu0 %v1575
    %v1577 = vpop.xlane.xlu0 %1576
    %v1578 = vsel %vm536, %v371, -inf
    %1579 = vmax.xlane.f32.xlu0 %v1578
    %v1580 = vpop.xlane.xlu0 %1579
    %v1581 = vsel %vm536, %v372, -inf
    %1582 = vmax.xlane.f32.xlu0 %v1581
    %v1583 = vpop.xlane.xlu0 %1582
    %v1584 = vsel %vm536, %v373, -inf
    %1585 = vmax.xlane.f32.xlu0 %v1584
    %v1586 = vpop.xlane.xlu0 %1585
    %v1587 = vsel %vm536, %v374, -inf
    %1588 = vmax.xlane.f32.xlu0 %v1587
    %v1589 = vpop.xlane.xlu0 %1588
    %v1590 = vsel %vm536, %v375, -inf
    %1591 = vmax.xlane.f32.xlu0 %v1590
    %v1592 = vpop.xlane.xlu0 %1591
    %v1593 = vsel %vm536, %v376, -inf
    %1594 = vmax.xlane.f32.xlu0 %v1593
    %v1595 = vpop.xlane.xlu0 %1594
    %v1596 = vsel %vm536, %v377, -inf
    %1597 = vmax.xlane.f32.xlu0 %v1596
    %v1598 = vpop.xlane.xlu0 %1597
    %v1599 = vsel %vm536, %v378, -inf
    %1600 = vmax.xlane.f32.xlu0 %v1599
    %v1601 = vpop.xlane.xlu0 %1600
    %v1602 = vsel %vm536, %v379, -inf
    %1603 = vmax.xlane.f32.xlu0 %v1602
    %v1604 = vpop.xlane.xlu0 %1603
    %v1605 = vsel %vm536, %v380, -inf
    %1606 = vmax.xlane.f32.xlu0 %v1605
    %v1607 = vpop.xlane.xlu0 %1606
    %v1608 = vsel %vm536, %v381, -inf
    %1609 = vmax.xlane.f32.xlu0 %v1608
    %v1610 = vpop.xlane.xlu0 %1609
    %v1611 = vsel %vm536, %v382, -inf
    %1612 = vmax.xlane.f32.xlu0 %v1611
    %v1613 = vpop.xlane.xlu0 %1612
    %v1614 = vsel %vm536, %v383, -inf
    %1615 = vmax.xlane.f32.xlu0 %v1614
    %v1616 = vpop.xlane.xlu0 %1615
    %v1617 = vsel %vm536, %v384, -inf
    %1618 = vmax.xlane.f32.xlu0 %v1617
    %v1619 = vpop.xlane.xlu0 %1618
    %v1620 = vsel %vm536, %v385, -inf
    %1621 = vmax.xlane.f32.xlu0 %v1620
    %v1622 = vpop.xlane.xlu0 %1621
    %v1623 = vsel %vm536, %v386, -inf
    %1624 = vmax.xlane.f32.xlu0 %v1623
    %v1625 = vpop.xlane.xlu0 %1624
    %v1626 = vsel %vm536, %v387, -inf
    %1627 = vmax.xlane.f32.xlu0 %v1626
    %v1628 = vpop.xlane.xlu0 %1627
    %v1629 = vsel %vm536, %v388, -inf
    %1630 = vmax.xlane.f32.xlu0 %v1629
    %v1631 = vpop.xlane.xlu0 %1630
    %v1632 = vsel %vm536, %v389, -inf
    %1633 = vmax.xlane.f32.xlu0 %v1632
    %v1634 = vpop.xlane.xlu0 %1633
    %v1635 = vsel %vm536, %v390, -inf
    %1636 = vmax.xlane.f32.xlu0 %v1635
    %v1637 = vpop.xlane.xlu0 %1636
    %v1638 = vsel %vm536, %v391, -inf
    %1639 = vmax.xlane.f32.xlu0 %v1638
    %v1640 = vpop.xlane.xlu0 %1639
    %v1641 = vsel %vm536, %v392, -inf
    %1642 = vmax.xlane.f32.xlu0 %v1641
    %v1643 = vpop.xlane.xlu0 %1642
    %v1644 = vsel %vm536, %v393, -inf
    %1645 = vmax.xlane.f32.xlu0 %v1644
    %v1646 = vpop.xlane.xlu0 %1645
    %v1647 = vsel %vm536, %v394, -inf
    %1648 = vmax.xlane.f32.xlu0 %v1647
    %v1649 = vpop.xlane.xlu0 %1648
    %v1650 = vsel %vm536, %v395, -inf
    %1651 = vmax.xlane.f32.xlu0 %v1650
    %v1652 = vpop.xlane.xlu0 %1651
    %v1653 = vsel %vm536, %v396, -inf
    %1654 = vmax.xlane.f32.xlu0 %v1653
    %v1655 = vpop.xlane.xlu0 %1654
    %v1656 = vsel %vm536, %v397, -inf
    %1657 = vmax.xlane.f32.xlu0 %v1656
    %v1658 = vpop.xlane.xlu0 %1657
    %v1659 = vsel %vm536, %v398, -inf
    %1660 = vmax.xlane.f32.xlu0 %v1659
    %v1661 = vpop.xlane.xlu0 %1660
    %v1662 = vsel %vm536, %v399, -inf
    %1663 = vmax.xlane.f32.xlu0 %v1662
    %v1664 = vpop.xlane.xlu0 %1663
    %v1665 = vsel %vm536, %v400, -inf
    %1666 = vmax.xlane.f32.xlu0 %v1665
    %v1667 = vpop.xlane.xlu0 %1666
    %v1668 = vsel %vm536, %v401, -inf
    %1669 = vmax.xlane.f32.xlu0 %v1668
    %v1670 = vpop.xlane.xlu0 %1669
    %v1671 = vsel %vm536, %v402, -inf
    %1672 = vmax.xlane.f32.xlu0 %v1671
    %v1673 = vpop.xlane.xlu0 %1672
    %v1674 = vsel %vm536, %v403, -inf
    %1675 = vmax.xlane.f32.xlu0 %v1674
    %v1676 = vpop.xlane.xlu0 %1675
    %v1677 = vsel %vm536, %v404, -inf
    %1678 = vmax.xlane.f32.xlu0 %v1677
    %v1679 = vpop.xlane.xlu0 %1678
    %v1680 = vsel %vm536, %v405, -inf
    %1681 = vmax.xlane.f32.xlu0 %v1680
    %v1682 = vpop.xlane.xlu0 %1681
    %v1683 = vsel %vm536, %v406, -inf
    %1684 = vmax.xlane.f32.xlu0 %v1683
    %v1685 = vpop.xlane.xlu0 %1684
    %v1686 = vsel %vm536, %v407, -inf
    %1687 = vmax.xlane.f32.xlu0 %v1686
    %v1688 = vpop.xlane.xlu0 %1687
    %v1689 = vsel %vm536, %v408, -inf
    %1690 = vmax.xlane.f32.xlu0 %v1689
    %v1691 = vpop.xlane.xlu0 %1690
    %v1692 = vsel %vm536, %v409, -inf
    %1693 = vmax.xlane.f32.xlu0 %v1692
    %v1694 = vpop.xlane.xlu0 %1693
    %v1695 = vsel %vm536, %v410, -inf
    %1696 = vmax.xlane.f32.xlu0 %v1695
    %v1697 = vpop.xlane.xlu0 %1696
    %v1698 = vsel %vm536, %v411, -inf
    %1699 = vmax.xlane.f32.xlu0 %v1698
    %v1700 = vpop.xlane.xlu0 %1699
    %v1701 = vsel %vm536, %v412, -inf
    %1702 = vmax.xlane.f32.xlu0 %v1701
    %v1703 = vpop.xlane.xlu0 %1702
    %v1704 = vsel %vm536, %v413, -inf
    %1705 = vmax.xlane.f32.xlu0 %v1704
    %v1706 = vpop.xlane.xlu0 %1705
    %v1707 = vsel %vm536, %v414, -inf
    %1708 = vmax.xlane.f32.xlu0 %v1707
    %v1709 = vpop.xlane.xlu0 %1708
    %v1710 = vsel %vm536, %v415, -inf
    %1711 = vmax.xlane.f32.xlu0 %v1710
    %v1712 = vpop.xlane.xlu0 %1711
    %v1713 = vsel %vm536, %v416, -inf
    %1714 = vmax.xlane.f32.xlu0 %v1713
    %v1715 = vpop.xlane.xlu0 %1714
    %v1716 = vsel %vm536, %v417, -inf
    %1717 = vmax.xlane.f32.xlu0 %v1716
    %v1718 = vpop.xlane.xlu0 %1717
    %v1719 = vsel %vm536, %v418, -inf
    %1720 = vmax.xlane.f32.xlu0 %v1719
    %v1721 = vpop.xlane.xlu0 %1720
    %v1722 = vsel %vm536, %v419, -inf
    %1723 = vmax.xlane.f32.xlu0 %v1722
    %v1724 = vpop.xlane.xlu0 %1723
    %v1725 = vsel %vm536, %v420, -inf
    %1726 = vmax.xlane.f32.xlu0 %v1725
    %v1727 = vpop.xlane.xlu0 %1726
    %v1728 = vsel %vm536, %v421, -inf
    %1729 = vmax.xlane.f32.xlu0 %v1728
    %v1730 = vpop.xlane.xlu0 %1729
    %v1731 = vsel %vm536, %v422, -inf
    %1732 = vmax.xlane.f32.xlu0 %v1731
    %v1733 = vpop.xlane.xlu0 %1732
    %v1734 = vsel %vm536, %v423, -inf
    %1735 = vmax.xlane.f32.xlu0 %v1734
    %v1736 = vpop.xlane.xlu0 %1735
    %v1737 = vsel %vm536, %v424, -inf
    %1738 = vmax.xlane.f32.xlu0 %v1737
    %v1739 = vpop.xlane.xlu0 %1738
    %v1740 = vsel %vm536, %v425, -inf
    %1741 = vmax.xlane.f32.xlu0 %v1740
    %v1742 = vpop.xlane.xlu0 %1741
    %v1743 = vsel %vm536, %v426, -inf
    %1744 = vmax.xlane.f32.xlu0 %v1743
    %v1745 = vpop.xlane.xlu0 %1744
    %v1746 = vsel %vm536, %v427, -inf
    %1747 = vmax.xlane.f32.xlu0 %v1746
    %v1748 = vpop.xlane.xlu0 %1747
    %v1749 = vsel %vm536, %v428, -inf
    %1750 = vmax.xlane.f32.xlu0 %v1749
    %v1751 = vpop.xlane.xlu0 %1750
    %v1752 = vsel %vm536, %v429, -inf
    %1753 = vmax.xlane.f32.xlu0 %v1752
    %v1754 = vpop.xlane.xlu0 %1753
    %v1755 = vsel %vm536, %v430, -inf
    %1756 = vmax.xlane.f32.xlu0 %v1755
    %v1757 = vpop.xlane.xlu0 %1756
    %v1758 = vsel %vm536, %v431, -inf
    %1759 = vmax.xlane.f32.xlu0 %v1758
    %v1760 = vpop.xlane.xlu0 %1759
    %v1761 = vsel %vm536, %v432, -inf
    %1762 = vmax.xlane.f32.xlu0 %v1761
    %v1763 = vpop.xlane.xlu0 %1762
    %v1764 = vsel %vm536, %v433, -inf
    %1765 = vmax.xlane.f32.xlu0 %v1764
    %v1766 = vpop.xlane.xlu0 %1765
    %v1767 = vsel %vm536, %v434, -inf
    %1768 = vmax.xlane.f32.xlu0 %v1767
    %v1769 = vpop.xlane.xlu0 %1768
    %v1770 = vsel %vm536, %v435, -inf
    %1771 = vmax.xlane.f32.xlu0 %v1770
    %v1772 = vpop.xlane.xlu0 %1771
    %v1773 = vsel %vm536, %v436, -inf
    %1774 = vmax.xlane.f32.xlu0 %v1773
    %v1775 = vpop.xlane.xlu0 %1774
    %v1776 = vsel %vm536, %v437, -inf
    %1777 = vmax.xlane.f32.xlu0 %v1776
    %v1778 = vpop.xlane.xlu0 %1777
    %v1779 = vsel %vm536, %v438, -inf
    %1780 = vmax.xlane.f32.xlu0 %v1779
    %v1781 = vpop.xlane.xlu0 %1780
    %v1782 = vsel %vm536, %v439, -inf
    %1783 = vmax.xlane.f32.xlu0 %v1782
    %v1784 = vpop.xlane.xlu0 %1783
    %v1785 = vsel %vm536, %v440, -inf
    %1786 = vmax.xlane.f32.xlu0 %v1785
    %v1787 = vpop.xlane.xlu0 %1786
    %v1788 = vsel %vm536, %v441, -inf
    %1789 = vmax.xlane.f32.xlu0 %v1788
    %v1790 = vpop.xlane.xlu0 %1789
    %v1791 = vsel %vm536, %v442, -inf
    %1792 = vmax.xlane.f32.xlu0 %v1791
    %v1793 = vpop.xlane.xlu0 %1792
    %v1794 = vsel %vm536, %v443, -inf
    %1795 = vmax.xlane.f32.xlu0 %v1794
    %v1796 = vpop.xlane.xlu0 %1795
    %v1797 = vsel %vm536, %v444, -inf
    %1798 = vmax.xlane.f32.xlu0 %v1797
    %v1799 = vpop.xlane.xlu0 %1798
    %v1800 = vsel %vm536, %v445, -inf
    %1801 = vmax.xlane.f32.xlu0 %v1800
    %v1802 = vpop.xlane.xlu0 %1801
    %v1803 = vsel %vm536, %v446, -inf
    %1804 = vmax.xlane.f32.xlu0 %v1803
    %v1805 = vpop.xlane.xlu0 %1804
    %v1806 = vsel %vm536, %v447, -inf
    %1807 = vmax.xlane.f32.xlu0 %v1806
    %v1808 = vpop.xlane.xlu0 %1807
    %v1809 = vsel %vm536, %v448, -inf
    %1810 = vmax.xlane.f32.xlu0 %v1809
    %v1811 = vpop.xlane.xlu0 %1810
    %v1812 = vsel %vm536, %v449, -inf
    %1813 = vmax.xlane.f32.xlu0 %v1812
    %v1814 = vpop.xlane.xlu0 %1813
    %v1815 = vsel %vm536, %v450, -inf
    %1816 = vmax.xlane.f32.xlu0 %v1815
    %v1817 = vpop.xlane.xlu0 %1816
    %v1818 = vsel %vm536, %v451, -inf
    %1819 = vmax.xlane.f32.xlu0 %v1818
    %v1820 = vpop.xlane.xlu0 %1819
    %v1821 = vsel %vm536, %v452, -inf
    %1822 = vmax.xlane.f32.xlu0 %v1821
    %v1823 = vpop.xlane.xlu0 %1822
    %v1824 = vsel %vm536, %v453, -inf
    %1825 = vmax.xlane.f32.xlu0 %v1824
    %v1826 = vpop.xlane.xlu0 %1825
    %v1827 = vsel %vm536, %v454, -inf
    %1828 = vmax.xlane.f32.xlu0 %v1827
    %v1829 = vpop.xlane.xlu0 %1828
    %v1830 = vsel %vm536, %v455, -inf
    %1831 = vmax.xlane.f32.xlu0 %v1830
    %v1832 = vpop.xlane.xlu0 %1831
    %v1833 = vsel %vm536, %v456, -inf
    %1834 = vmax.xlane.f32.xlu0 %v1833
    %v1835 = vpop.xlane.xlu0 %1834
    %v1836 = vsel %vm536, %v457, -inf
    %1837 = vmax.xlane.f32.xlu0 %v1836
    %v1838 = vpop.xlane.xlu0 %1837
    %v1839 = vsel %vm536, %v458, -inf
    %1840 = vmax.xlane.f32.xlu0 %v1839
    %v1841 = vpop.xlane.xlu0 %1840
    %v1842 = vsel %vm536, %v459, -inf
    %1843 = vmax.xlane.f32.xlu0 %v1842
    %v1844 = vpop.xlane.xlu0 %1843
    %v1845 = vsel %vm536, %v460, -inf
    %1846 = vmax.xlane.f32.xlu0 %v1845
    %v1847 = vpop.xlane.xlu0 %1846
    %v1848 = vsel %vm536, %v461, -inf
    %1849 = vmax.xlane.f32.xlu0 %v1848
    %v1850 = vpop.xlane.xlu0 %1849
    %v1851 = vsel %vm536, %v462, -inf
    %1852 = vmax.xlane.f32.xlu0 %v1851
    %v1853 = vpop.xlane.xlu0 %1852
    %v1854 = vsel %vm536, %v463, -inf
    %1855 = vmax.xlane.f32.xlu0 %v1854
    %v1856 = vpop.xlane.xlu0 %1855
    %v1857 = vsel %vm536, %v464, -inf
    %1858 = vmax.xlane.f32.xlu0 %v1857
    %v1859 = vpop.xlane.xlu0 %1858
    %v1860 = vsel %vm536, %v465, -inf
    %1861 = vmax.xlane.f32.xlu0 %v1860
    %v1862 = vpop.xlane.xlu0 %1861
    %v1863 = vsel %vm536, %v466, -inf
    %1864 = vmax.xlane.f32.xlu0 %v1863
    %v1865 = vpop.xlane.xlu0 %1864
    %v1866 = vsel %vm536, %v467, -inf
    %1867 = vmax.xlane.f32.xlu0 %v1866
    %v1868 = vpop.xlane.xlu0 %1867
    %v1869 = vsel %vm536, %v468, -inf
    %1870 = vmax.xlane.f32.xlu0 %v1869
    %v1871 = vpop.xlane.xlu0 %1870
    %v1872 = vsel %vm536, %v469, -inf
    %1873 = vmax.xlane.f32.xlu0 %v1872
    %v1874 = vpop.xlane.xlu0 %1873
    %v1875 = vsel %vm536, %v470, -inf
    %1876 = vmax.xlane.f32.xlu0 %v1875
    %v1877 = vpop.xlane.xlu0 %1876
    %v1878 = vsel %vm536, %v471, -inf
    %1879 = vmax.xlane.f32.xlu0 %v1878
    %v1880 = vpop.xlane.xlu0 %1879
    %v1881 = vsel %vm536, %v472, -inf
    %1882 = vmax.xlane.f32.xlu0 %v1881
    %v1883 = vpop.xlane.xlu0 %1882
    %v1884 = vsel %vm536, %v473, -inf
    %1885 = vmax.xlane.f32.xlu0 %v1884
    %v1886 = vpop.xlane.xlu0 %1885
    %v1887 = vsel %vm536, %v474, -inf
    %1888 = vmax.xlane.f32.xlu0 %v1887
    %v1889 = vpop.xlane.xlu0 %1888
    %v1890 = vsel %vm536, %v475, -inf
    %1891 = vmax.xlane.f32.xlu0 %v1890
    %v1892 = vpop.xlane.xlu0 %1891
    %v1893 = vsel %vm536, %v476, -inf
    %1894 = vmax.xlane.f32.xlu0 %v1893
    %v1895 = vpop.xlane.xlu0 %1894
    %v1896 = vsel %vm536, %v477, -inf
    %1897 = vmax.xlane.f32.xlu0 %v1896
    %v1898 = vpop.xlane.xlu0 %1897
    %v1899 = vsel %vm536, %v478, -inf
    %1900 = vmax.xlane.f32.xlu0 %v1899
    %v1901 = vpop.xlane.xlu0 %1900
    %v1902 = vsel %vm536, %v479, -inf
    %1903 = vmax.xlane.f32.xlu0 %v1902
    %v1904 = vpop.xlane.xlu0 %1903
    %v1905 = vsel %vm536, %v480, -inf
    %1906 = vmax.xlane.f32.xlu0 %v1905
    %v1907 = vpop.xlane.xlu0 %1906
    %v1908 = vsel %vm536, %v481, -inf
    %1909 = vmax.xlane.f32.xlu0 %v1908
    %v1910 = vpop.xlane.xlu0 %1909
    %v1911 = vsel %vm536, %v482, -inf
    %1912 = vmax.xlane.f32.xlu0 %v1911
    %v1913 = vpop.xlane.xlu0 %1912
    %v1914 = vsel %vm536, %v483, -inf
    %1915 = vmax.xlane.f32.xlu0 %v1914
    %v1916 = vpop.xlane.xlu0 %1915
    %v1917 = vsel %vm536, %v484, -inf
    %1918 = vmax.xlane.f32.xlu0 %v1917
    %v1919 = vpop.xlane.xlu0 %1918
    %v1920 = vsel %vm536, %v485, -inf
    %1921 = vmax.xlane.f32.xlu0 %v1920
    %v1922 = vpop.xlane.xlu0 %1921
    %v1923 = vsel %vm536, %v486, -inf
    %1924 = vmax.xlane.f32.xlu0 %v1923
    %v1925 = vpop.xlane.xlu0 %1924
    %v1926 = vsel %vm536, %v487, -inf
    %1927 = vmax.xlane.f32.xlu0 %v1926
    %v1928 = vpop.xlane.xlu0 %1927
    %v1929 = vsel %vm536, %v488, -inf
    %1930 = vmax.xlane.f32.xlu0 %v1929
    %v1931 = vpop.xlane.xlu0 %1930
    %v1932 = vsel %vm536, %v489, -inf
    %1933 = vmax.xlane.f32.xlu0 %v1932
    %v1934 = vpop.xlane.xlu0 %1933
    %v1935 = vsel %vm536, %v490, -inf
    %1936 = vmax.xlane.f32.xlu0 %v1935
    %v1937 = vpop.xlane.xlu0 %1936
    %v1938 = vsel %vm536, %v491, -inf
    %1939 = vmax.xlane.f32.xlu0 %v1938
    %v1940 = vpop.xlane.xlu0 %1939
    %v1941 = vsel %vm536, %v492, -inf
    %1942 = vmax.xlane.f32.xlu0 %v1941
    %v1943 = vpop.xlane.xlu0 %1942
    %v1944 = vsel %vm536, %v493, -inf
    %1945 = vmax.xlane.f32.xlu0 %v1944
    %v1946 = vpop.xlane.xlu0 %1945
    %v1947 = vsel %vm536, %v494, -inf
    %1948 = vmax.xlane.f32.xlu0 %v1947
    %v1949 = vpop.xlane.xlu0 %1948
    %v1950 = vsel %vm536, %v495, -inf
    %1951 = vmax.xlane.f32.xlu0 %v1950
    %v1952 = vpop.xlane.xlu0 %1951
    %v1953 = vsel %vm536, %v496, -inf
    %1954 = vmax.xlane.f32.xlu0 %v1953
    %v1955 = vpop.xlane.xlu0 %1954
    %v1956 = vsel %vm536, %v497, -inf
    %1957 = vmax.xlane.f32.xlu0 %v1956
    %v1958 = vpop.xlane.xlu0 %1957
    %v1959 = vsel %vm536, %v498, -inf
    %1960 = vmax.xlane.f32.xlu0 %v1959
    %v1961 = vpop.xlane.xlu0 %1960
    %v1962 = vsel %vm536, %v499, -inf
    %1963 = vmax.xlane.f32.xlu0 %v1962
    %v1964 = vpop.xlane.xlu0 %1963
    %v1965 = vsel %vm536, %v500, -inf
    %1966 = vmax.xlane.f32.xlu0 %v1965
    %v1967 = vpop.xlane.xlu0 %1966
    %v1968 = vsel %vm536, %v501, -inf
    %1969 = vmax.xlane.f32.xlu0 %v1968
    %v1970 = vpop.xlane.xlu0 %1969
    %v1971 = vsel %vm536, %v502, -inf
    %1972 = vmax.xlane.f32.xlu0 %v1971
    %v1973 = vpop.xlane.xlu0 %1972
    %v1974 = vsel %vm536, %v503, -inf
    %1975 = vmax.xlane.f32.xlu0 %v1974
    %v1976 = vpop.xlane.xlu0 %1975
    %v1977 = vsel %vm536, %v504, -inf
    %1978 = vmax.xlane.f32.xlu0 %v1977
    %v1979 = vpop.xlane.xlu0 %1978
    %v1980 = vsel %vm536, %v505, -inf
    %1981 = vmax.xlane.f32.xlu0 %v1980
    %v1982 = vpop.xlane.xlu0 %1981
    %v1983 = vsel %vm536, %v506, -inf
    %1984 = vmax.xlane.f32.xlu0 %v1983
    %v1985 = vpop.xlane.xlu0 %1984
    %v1986 = vsel %vm536, %v507, -inf
    %1987 = vmax.xlane.f32.xlu0 %v1986
    %v1988 = vpop.xlane.xlu0 %1987
    %v1989 = vsel %vm536, %v508, -inf
    %1990 = vmax.xlane.f32.xlu0 %v1989
    %v1991 = vpop.xlane.xlu0 %1990
    %v1992 = vsel %vm536, %v509, -inf
    %1993 = vmax.xlane.f32.xlu0 %v1992
    %v1994 = vpop.xlane.xlu0 %1993
    %v1995 = vsel %vm536, %v510, -inf
    %1996 = vmax.xlane.f32.xlu0 %v1995
    %v1997 = vpop.xlane.xlu0 %1996
    %v1998 = vsel %vm536, %v511, -inf
    %1999 = vmax.xlane.f32.xlu0 %v1998
    %v2000 = vpop.xlane.xlu0 %1999
    %v2001 = vsel %vm536, %v512, -inf
    %2002 = vmax.xlane.f32.xlu0 %v2001
    %v2003 = vpop.xlane.xlu0 %2002
    %v2004 = vsel %vm536, %v513, -inf
    %2005 = vmax.xlane.f32.xlu0 %v2004
    %v2006 = vpop.xlane.xlu0 %2005
    %v2007 = vsel %vm536, %v514, -inf
    %2008 = vmax.xlane.f32.xlu0 %v2007
    %v2009 = vpop.xlane.xlu0 %2008
    %v2010 = vsel %vm536, %v515, -inf
    %2011 = vmax.xlane.f32.xlu0 %v2010
    %v2012 = vpop.xlane.xlu0 %2011
    %v2013 = vsel %vm536, %v516, -inf
    %2014 = vmax.xlane.f32.xlu0 %v2013
    %v2015 = vpop.xlane.xlu0 %2014
    %v2016 = vsel %vm536, %v517, -inf
    %2017 = vmax.xlane.f32.xlu0 %v2016
    %v2018 = vpop.xlane.xlu0 %2017
    %v2019 = vsel %vm536, %v518, -inf
    %2020 = vmax.xlane.f32.xlu0 %v2019
    %v2021 = vpop.xlane.xlu0 %2020
    %v2022 = vsel %vm536, %v519, -inf
    %2023 = vmax.xlane.f32.xlu0 %v2022
    %v2024 = vpop.xlane.xlu0 %2023
    %v2025 = vsel %vm536, %v520, -inf
    %2026 = vmax.xlane.f32.xlu0 %v2025
    %v2027 = vpop.xlane.xlu0 %2026
    %v2028 = vsel %vm536, %v521, -inf
    %2029 = vmax.xlane.f32.xlu0 %v2028
    %v2030 = vpop.xlane.xlu0 %2029
    %v2031 = vsel %vm536, %v522, -inf
    %2032 = vmax.xlane.f32.xlu0 %v2031
    %v2033 = vpop.xlane.xlu0 %2032
    %v2034 = vsel %vm536, %v523, -inf
    %2035 = vmax.xlane.f32.xlu0 %v2034
    %v2036 = vpop.xlane.xlu0 %2035
    %v2037 = vsel %vm536, %v524, -inf
    %2038 = vmax.xlane.f32.xlu0 %v2037
    %v2039 = vpop.xlane.xlu0 %2038
    %v2040 = vsel %vm536, %v525, -inf
    %2041 = vmax.xlane.f32.xlu0 %v2040
    %v2042 = vpop.xlane.xlu0 %2041
    %v2043 = vsel %vm536, %v526, -inf
    %2044 = vmax.xlane.f32.xlu0 %v2043
    %v2045 = vpop.xlane.xlu0 %2044
    %v2046 = vsel %vm536, %v527, -inf
    %2047 = vmax.xlane.f32.xlu0 %v2046
    %v2048 = vpop.xlane.xlu0 %2047
    %v2049 = vsel %vm536, %v528, -inf
    %2050 = vmax.xlane.f32.xlu0 %v2049
    %v2051 = vpop.xlane.xlu0 %2050
    %v2052 = vsel %vm536, %v529, -inf
    %2053 = vmax.xlane.f32.xlu0 %v2052
    %v2054 = vpop.xlane.xlu0 %2053
    %v2055 = vsel %vm536, %v530, -inf
    %2056 = vmax.xlane.f32.xlu0 %v2055
    %v2057 = vpop.xlane.xlu0 %2056
    %v2058 = vsel %vm536, %v531, -inf
    %2059 = vmax.xlane.f32.xlu0 %v2058
    %v2060 = vpop.xlane.xlu0 %2059
    %v2061 = vsel %vm536, %v532, -inf
    %2062 = vmax.xlane.f32.xlu0 %v2061
    %v2063 = vpop.xlane.xlu0 %2062
    %v2064 = vsel %vm536, %v533, -inf
    %2065 = vmax.xlane.f32.xlu0 %v2064
    %v2066 = vpop.xlane.xlu0 %2065
    %v2067 = vsel %vm536, %v534, -inf
    %2068 = vmax.xlane.f32.xlu0 %v2067
    %v2069 = vpop.xlane.xlu0 %2068
    %v2070 = vsel %vm536, %v535, -inf
    %2071 = vmax.xlane.f32.xlu0 %v2070
    %v2072 = vpop.xlane.xlu0 %2071
    %v2073 = vsel %vm536, %v24, 0.0
    %2074 = vadd.xlane.f32.xlu0 %v2073
    %v2075 = vpop.xlane.xlu0 %2074
    %v2076 = vsel %vm536, %v25, 0.0
    %2077 = vadd.xlane.f32.xlu0 %v2076
    %v2078 = vpop.xlane.xlu0 %2077
    %v2079 = vsel %vm536, %v26, 0.0
    %2080 = vadd.xlane.f32.xlu0 %v2079
    %v2081 = vpop.xlane.xlu0 %2080
    %v2082 = vsel %vm536, %v27, 0.0
    %2083 = vadd.xlane.f32.xlu0 %v2082
    %v2084 = vpop.xlane.xlu0 %2083
    %v2085 = vsel %vm536, %v28, 0.0
    %2086 = vadd.xlane.f32.xlu0 %v2085
    %v2087 = vpop.xlane.xlu0 %2086
    %v2088 = vsel %vm536, %v29, 0.0
    %2089 = vadd.xlane.f32.xlu0 %v2088
    %v2090 = vpop.xlane.xlu0 %2089
    %v2091 = vsel %vm536, %v30, 0.0
    %2092 = vadd.xlane.f32.xlu0 %v2091
    %v2093 = vpop.xlane.xlu0 %2092
    %v2094 = vsel %vm536, %v31, 0.0
    %2095 = vadd.xlane.f32.xlu0 %v2094
    %v2096 = vpop.xlane.xlu0 %2095
    %v2097 = vsel %vm536, %v32, 0.0
    %2098 = vadd.xlane.f32.xlu0 %v2097
    %v2099 = vpop.xlane.xlu0 %2098
    %v2100 = vsel %vm536, %v33, 0.0
    %2101 = vadd.xlane.f32.xlu0 %v2100
    %v2102 = vpop.xlane.xlu0 %2101
    %v2103 = vsel %vm536, %v34, 0.0
    %2104 = vadd.xlane.f32.xlu0 %v2103
    %v2105 = vpop.xlane.xlu0 %2104
    %v2106 = vsel %vm536, %v35, 0.0
    %2107 = vadd.xlane.f32.xlu0 %v2106
    %v2108 = vpop.xlane.xlu0 %2107
    %v2109 = vsel %vm536, %v36, 0.0
    %2110 = vadd.xlane.f32.xlu0 %v2109
    %v2111 = vpop.xlane.xlu0 %2110
    %v2112 = vsel %vm536, %v37, 0.0
    %2113 = vadd.xlane.f32.xlu0 %v2112
    %v2114 = vpop.xlane.xlu0 %2113
    %v2115 = vsel %vm536, %v38, 0.0
    %2116 = vadd.xlane.f32.xlu0 %v2115
    %v2117 = vpop.xlane.xlu0 %2116
    %v2118 = vsel %vm536, %v39, 0.0
    %2119 = vadd.xlane.f32.xlu0 %v2118
    %v2120 = vpop.xlane.xlu0 %2119
    %v2121 = vsel %vm536, %v40, 0.0
    %2122 = vadd.xlane.f32.xlu0 %v2121
    %v2123 = vpop.xlane.xlu0 %2122
    %v2124 = vsel %vm536, %v41, 0.0
    %2125 = vadd.xlane.f32.xlu0 %v2124
    %v2126 = vpop.xlane.xlu0 %2125
    %v2127 = vsel %vm536, %v42, 0.0
    %2128 = vadd.xlane.f32.xlu0 %v2127
    %v2129 = vpop.xlane.xlu0 %2128
    %v2130 = vsel %vm536, %v43, 0.0
    %2131 = vadd.xlane.f32.xlu0 %v2130
    %v2132 = vpop.xlane.xlu0 %2131
    %v2133 = vsel %vm536, %v44, 0.0
    %2134 = vadd.xlane.f32.xlu0 %v2133
    %v2135 = vpop.xlane.xlu0 %2134
    %v2136 = vsel %vm536, %v45, 0.0
    %2137 = vadd.xlane.f32.xlu0 %v2136
    %v2138 = vpop.xlane.xlu0 %2137
    %v2139 = vsel %vm536, %v46, 0.0
    %2140 = vadd.xlane.f32.xlu0 %v2139
    %v2141 = vpop.xlane.xlu0 %2140
    %v2142 = vsel %vm536, %v47, 0.0
    %2143 = vadd.xlane.f32.xlu0 %v2142
    %v2144 = vpop.xlane.xlu0 %2143
    %v2145 = vsel %vm536, %v48, 0.0
    %2146 = vadd.xlane.f32.xlu0 %v2145
    %v2147 = vpop.xlane.xlu0 %2146
    %v2148 = vsel %vm536, %v49, 0.0
    %2149 = vadd.xlane.f32.xlu0 %v2148
    %v2150 = vpop.xlane.xlu0 %2149
    %v2151 = vsel %vm536, %v50, 0.0
    %2152 = vadd.xlane.f32.xlu0 %v2151
    %v2153 = vpop.xlane.xlu0 %2152
    %v2154 = vsel %vm536, %v51, 0.0
    %2155 = vadd.xlane.f32.xlu0 %v2154
    %v2156 = vpop.xlane.xlu0 %2155
    %v2157 = vsel %vm536, %v52, 0.0
    %2158 = vadd.xlane.f32.xlu0 %v2157
    %v2159 = vpop.xlane.xlu0 %2158
    %v2160 = vsel %vm536, %v53, 0.0
    %2161 = vadd.xlane.f32.xlu0 %v2160
    %v2162 = vpop.xlane.xlu0 %2161
    %v2163 = vsel %vm536, %v54, 0.0
    %2164 = vadd.xlane.f32.xlu0 %v2163
    %v2165 = vpop.xlane.xlu0 %2164
    %v2166 = vsel %vm536, %v55, 0.0
    %2167 = vadd.xlane.f32.xlu0 %v2166
    %v2168 = vpop.xlane.xlu0 %2167
    %v2169 = vsel %vm536, %v56, 0.0
    %2170 = vadd.xlane.f32.xlu0 %v2169
    %v2171 = vpop.xlane.xlu0 %2170
    %v2172 = vsel %vm536, %v57, 0.0
    %2173 = vadd.xlane.f32.xlu0 %v2172
    %v2174 = vpop.xlane.xlu0 %2173
    %v2175 = vsel %vm536, %v58, 0.0
    %2176 = vadd.xlane.f32.xlu0 %v2175
    %v2177 = vpop.xlane.xlu0 %2176
    %v2178 = vsel %vm536, %v59, 0.0
    %2179 = vadd.xlane.f32.xlu0 %v2178
    %v2180 = vpop.xlane.xlu0 %2179
    %v2181 = vsel %vm536, %v60, 0.0
    %2182 = vadd.xlane.f32.xlu0 %v2181
    %v2183 = vpop.xlane.xlu0 %2182
    %v2184 = vsel %vm536, %v61, 0.0
    %2185 = vadd.xlane.f32.xlu0 %v2184
    %v2186 = vpop.xlane.xlu0 %2185
    %v2187 = vsel %vm536, %v62, 0.0
    %2188 = vadd.xlane.f32.xlu0 %v2187
    %v2189 = vpop.xlane.xlu0 %2188
    %v2190 = vsel %vm536, %v63, 0.0
    %2191 = vadd.xlane.f32.xlu0 %v2190
    %v2192 = vpop.xlane.xlu0 %2191
    %v2193 = vsel %vm536, %v64, 0.0
    %2194 = vadd.xlane.f32.xlu0 %v2193
    %v2195 = vpop.xlane.xlu0 %2194
    %v2196 = vsel %vm536, %v65, 0.0
    %2197 = vadd.xlane.f32.xlu0 %v2196
    %v2198 = vpop.xlane.xlu0 %2197
    %v2199 = vsel %vm536, %v66, 0.0
    %2200 = vadd.xlane.f32.xlu0 %v2199
    %v2201 = vpop.xlane.xlu0 %2200
    %v2202 = vsel %vm536, %v67, 0.0
    %2203 = vadd.xlane.f32.xlu0 %v2202
    %v2204 = vpop.xlane.xlu0 %2203
    %v2205 = vsel %vm536, %v68, 0.0
    %2206 = vadd.xlane.f32.xlu0 %v2205
    %v2207 = vpop.xlane.xlu0 %2206
    %v2208 = vsel %vm536, %v69, 0.0
    %2209 = vadd.xlane.f32.xlu0 %v2208
    %v2210 = vpop.xlane.xlu0 %2209
    %v2211 = vsel %vm536, %v70, 0.0
    %2212 = vadd.xlane.f32.xlu0 %v2211
    %v2213 = vpop.xlane.xlu0 %2212
    %v2214 = vsel %vm536, %v71, 0.0
    %2215 = vadd.xlane.f32.xlu0 %v2214
    %v2216 = vpop.xlane.xlu0 %2215
    %v2217 = vsel %vm536, %v72, 0.0
    %2218 = vadd.xlane.f32.xlu0 %v2217
    %v2219 = vpop.xlane.xlu0 %2218
    %v2220 = vsel %vm536, %v73, 0.0
    %2221 = vadd.xlane.f32.xlu0 %v2220
    %v2222 = vpop.xlane.xlu0 %2221
    %v2223 = vsel %vm536, %v74, 0.0
    %2224 = vadd.xlane.f32.xlu0 %v2223
    %v2225 = vpop.xlane.xlu0 %2224
    %v2226 = vsel %vm536, %v75, 0.0
    %2227 = vadd.xlane.f32.xlu0 %v2226
    %v2228 = vpop.xlane.xlu0 %2227
    %v2229 = vsel %vm536, %v76, 0.0
    %2230 = vadd.xlane.f32.xlu0 %v2229
    %v2231 = vpop.xlane.xlu0 %2230
    %v2232 = vsel %vm536, %v77, 0.0
    %2233 = vadd.xlane.f32.xlu0 %v2232
    %v2234 = vpop.xlane.xlu0 %2233
    %v2235 = vsel %vm536, %v78, 0.0
    %2236 = vadd.xlane.f32.xlu0 %v2235
    %v2237 = vpop.xlane.xlu0 %2236
    %v2238 = vsel %vm536, %v79, 0.0
    %2239 = vadd.xlane.f32.xlu0 %v2238
    %v2240 = vpop.xlane.xlu0 %2239
    %v2241 = vsel %vm536, %v80, 0.0
    %2242 = vadd.xlane.f32.xlu0 %v2241
    %v2243 = vpop.xlane.xlu0 %2242
    %v2244 = vsel %vm536, %v81, 0.0
    %2245 = vadd.xlane.f32.xlu0 %v2244
    %v2246 = vpop.xlane.xlu0 %2245
    %v2247 = vsel %vm536, %v82, 0.0
    %2248 = vadd.xlane.f32.xlu0 %v2247
    %v2249 = vpop.xlane.xlu0 %2248
    %v2250 = vsel %vm536, %v83, 0.0
    %2251 = vadd.xlane.f32.xlu0 %v2250
    %v2252 = vpop.xlane.xlu0 %2251
    %v2253 = vsel %vm536, %v84, 0.0
    %2254 = vadd.xlane.f32.xlu0 %v2253
    %v2255 = vpop.xlane.xlu0 %2254
    %v2256 = vsel %vm536, %v85, 0.0
    %2257 = vadd.xlane.f32.xlu0 %v2256
    %v2258 = vpop.xlane.xlu0 %2257
    %v2259 = vsel %vm536, %v86, 0.0
    %2260 = vadd.xlane.f32.xlu0 %v2259
    %v2261 = vpop.xlane.xlu0 %2260
    %v2262 = vsel %vm536, %v87, 0.0
    %2263 = vadd.xlane.f32.xlu0 %v2262
    %v2264 = vpop.xlane.xlu0 %2263
    %v2265 = vsel %vm536, %v88, 0.0
    %2266 = vadd.xlane.f32.xlu0 %v2265
    %v2267 = vpop.xlane.xlu0 %2266
    %v2268 = vsel %vm536, %v89, 0.0
    %2269 = vadd.xlane.f32.xlu0 %v2268
    %v2270 = vpop.xlane.xlu0 %2269
    %v2271 = vsel %vm536, %v90, 0.0
    %2272 = vadd.xlane.f32.xlu0 %v2271
    %v2273 = vpop.xlane.xlu0 %2272
    %v2274 = vsel %vm536, %v91, 0.0
    %2275 = vadd.xlane.f32.xlu0 %v2274
    %v2276 = vpop.xlane.xlu0 %2275
    %v2277 = vsel %vm536, %v92, 0.0
    %2278 = vadd.xlane.f32.xlu0 %v2277
    %v2279 = vpop.xlane.xlu0 %2278
    %v2280 = vsel %vm536, %v93, 0.0
    %2281 = vadd.xlane.f32.xlu0 %v2280
    %v2282 = vpop.xlane.xlu0 %2281
    %v2283 = vsel %vm536, %v94, 0.0
    %2284 = vadd.xlane.f32.xlu0 %v2283
    %v2285 = vpop.xlane.xlu0 %2284
    %v2286 = vsel %vm536, %v95, 0.0
    %2287 = vadd.xlane.f32.xlu0 %v2286
    %v2288 = vpop.xlane.xlu0 %2287
    %v2289 = vsel %vm536, %v96, 0.0
    %2290 = vadd.xlane.f32.xlu0 %v2289
    %v2291 = vpop.xlane.xlu0 %2290
    %v2292 = vsel %vm536, %v97, 0.0
    %2293 = vadd.xlane.f32.xlu0 %v2292
    %v2294 = vpop.xlane.xlu0 %2293
    %v2295 = vsel %vm536, %v98, 0.0
    %2296 = vadd.xlane.f32.xlu0 %v2295
    %v2297 = vpop.xlane.xlu0 %2296
    %v2298 = vsel %vm536, %v99, 0.0
    %2299 = vadd.xlane.f32.xlu0 %v2298
    %v2300 = vpop.xlane.xlu0 %2299
    %v2301 = vsel %vm536, %v100, 0.0
    %2302 = vadd.xlane.f32.xlu0 %v2301
    %v2303 = vpop.xlane.xlu0 %2302
    %v2304 = vsel %vm536, %v101, 0.0
    %2305 = vadd.xlane.f32.xlu0 %v2304
    %v2306 = vpop.xlane.xlu0 %2305
    %v2307 = vsel %vm536, %v102, 0.0
    %2308 = vadd.xlane.f32.xlu0 %v2307
    %v2309 = vpop.xlane.xlu0 %2308
    %v2310 = vsel %vm536, %v103, 0.0
    %2311 = vadd.xlane.f32.xlu0 %v2310
    %v2312 = vpop.xlane.xlu0 %2311
    %v2313 = vsel %vm536, %v104, 0.0
    %2314 = vadd.xlane.f32.xlu0 %v2313
    %v2315 = vpop.xlane.xlu0 %2314
    %v2316 = vsel %vm536, %v105, 0.0
    %2317 = vadd.xlane.f32.xlu0 %v2316
    %v2318 = vpop.xlane.xlu0 %2317
    %v2319 = vsel %vm536, %v106, 0.0
    %2320 = vadd.xlane.f32.xlu0 %v2319
    %v2321 = vpop.xlane.xlu0 %2320
    %v2322 = vsel %vm536, %v107, 0.0
    %2323 = vadd.xlane.f32.xlu0 %v2322
    %v2324 = vpop.xlane.xlu0 %2323
    %v2325 = vsel %vm536, %v108, 0.0
    %2326 = vadd.xlane.f32.xlu0 %v2325
    %v2327 = vpop.xlane.xlu0 %2326
    %v2328 = vsel %vm536, %v109, 0.0
    %2329 = vadd.xlane.f32.xlu0 %v2328
    %v2330 = vpop.xlane.xlu0 %2329
    %v2331 = vsel %vm536, %v110, 0.0
    %2332 = vadd.xlane.f32.xlu0 %v2331
    %v2333 = vpop.xlane.xlu0 %2332
    %v2334 = vsel %vm536, %v111, 0.0
    %2335 = vadd.xlane.f32.xlu0 %v2334
    %v2336 = vpop.xlane.xlu0 %2335
    %v2337 = vsel %vm536, %v112, 0.0
    %2338 = vadd.xlane.f32.xlu0 %v2337
    %v2339 = vpop.xlane.xlu0 %2338
    %v2340 = vsel %vm536, %v113, 0.0
    %2341 = vadd.xlane.f32.xlu0 %v2340
    %v2342 = vpop.xlane.xlu0 %2341
    %v2343 = vsel %vm536, %v114, 0.0
    %2344 = vadd.xlane.f32.xlu0 %v2343
    %v2345 = vpop.xlane.xlu0 %2344
    %v2346 = vsel %vm536, %v115, 0.0
    %2347 = vadd.xlane.f32.xlu0 %v2346
    %v2348 = vpop.xlane.xlu0 %2347
    %v2349 = vsel %vm536, %v116, 0.0
    %2350 = vadd.xlane.f32.xlu0 %v2349
    %v2351 = vpop.xlane.xlu0 %2350
    %v2352 = vsel %vm536, %v117, 0.0
    %2353 = vadd.xlane.f32.xlu0 %v2352
    %v2354 = vpop.xlane.xlu0 %2353
    %v2355 = vsel %vm536, %v118, 0.0
    %2356 = vadd.xlane.f32.xlu0 %v2355
    %v2357 = vpop.xlane.xlu0 %2356
    %v2358 = vsel %vm536, %v119, 0.0
    %2359 = vadd.xlane.f32.xlu0 %v2358
    %v2360 = vpop.xlane.xlu0 %2359
    %v2361 = vsel %vm536, %v120, 0.0
    %2362 = vadd.xlane.f32.xlu0 %v2361
    %v2363 = vpop.xlane.xlu0 %2362
    %v2364 = vsel %vm536, %v121, 0.0
    %2365 = vadd.xlane.f32.xlu0 %v2364
    %v2366 = vpop.xlane.xlu0 %2365
    %v2367 = vsel %vm536, %v122, 0.0
    %2368 = vadd.xlane.f32.xlu0 %v2367
    %v2369 = vpop.xlane.xlu0 %2368
    %v2370 = vsel %vm536, %v123, 0.0
    %2371 = vadd.xlane.f32.xlu0 %v2370
    %v2372 = vpop.xlane.xlu0 %2371
    %v2373 = vsel %vm536, %v124, 0.0
    %2374 = vadd.xlane.f32.xlu0 %v2373
    %v2375 = vpop.xlane.xlu0 %2374
    %v2376 = vsel %vm536, %v125, 0.0
    %2377 = vadd.xlane.f32.xlu0 %v2376
    %v2378 = vpop.xlane.xlu0 %2377
    %v2379 = vsel %vm536, %v126, 0.0
    %2380 = vadd.xlane.f32.xlu0 %v2379
    %v2381 = vpop.xlane.xlu0 %2380
    %v2382 = vsel %vm536, %v127, 0.0
    %2383 = vadd.xlane.f32.xlu0 %v2382
    %v2384 = vpop.xlane.xlu0 %2383
    %v2385 = vsel %vm536, %v128, 0.0
    %2386 = vadd.xlane.f32.xlu0 %v2385
    %v2387 = vpop.xlane.xlu0 %2386
    %v2388 = vsel %vm536, %v129, 0.0
    %2389 = vadd.xlane.f32.xlu0 %v2388
    %v2390 = vpop.xlane.xlu0 %2389
    %v2391 = vsel %vm536, %v130, 0.0
    %2392 = vadd.xlane.f32.xlu0 %v2391
    %v2393 = vpop.xlane.xlu0 %2392
    %v2394 = vsel %vm536, %v131, 0.0
    %2395 = vadd.xlane.f32.xlu0 %v2394
    %v2396 = vpop.xlane.xlu0 %2395
    %v2397 = vsel %vm536, %v132, 0.0
    %2398 = vadd.xlane.f32.xlu0 %v2397
    %v2399 = vpop.xlane.xlu0 %2398
    %v2400 = vsel %vm536, %v133, 0.0
    %2401 = vadd.xlane.f32.xlu0 %v2400
    %v2402 = vpop.xlane.xlu0 %2401
    %v2403 = vsel %vm536, %v134, 0.0
    %2404 = vadd.xlane.f32.xlu0 %v2403
    %v2405 = vpop.xlane.xlu0 %2404
    %v2406 = vsel %vm536, %v135, 0.0
    %2407 = vadd.xlane.f32.xlu0 %v2406
    %v2408 = vpop.xlane.xlu0 %2407
    %v2409 = vsel %vm536, %v136, 0.0
    %2410 = vadd.xlane.f32.xlu0 %v2409
    %v2411 = vpop.xlane.xlu0 %2410
    %v2412 = vsel %vm536, %v137, 0.0
    %2413 = vadd.xlane.f32.xlu0 %v2412
    %v2414 = vpop.xlane.xlu0 %2413
    %v2415 = vsel %vm536, %v138, 0.0
    %2416 = vadd.xlane.f32.xlu0 %v2415
    %v2417 = vpop.xlane.xlu0 %2416
    %v2418 = vsel %vm536, %v139, 0.0
    %2419 = vadd.xlane.f32.xlu0 %v2418
    %v2420 = vpop.xlane.xlu0 %2419
    %v2421 = vsel %vm536, %v140, 0.0
    %2422 = vadd.xlane.f32.xlu0 %v2421
    %v2423 = vpop.xlane.xlu0 %2422
    %v2424 = vsel %vm536, %v141, 0.0
    %2425 = vadd.xlane.f32.xlu0 %v2424
    %v2426 = vpop.xlane.xlu0 %2425
    %v2427 = vsel %vm536, %v142, 0.0
    %2428 = vadd.xlane.f32.xlu0 %v2427
    %v2429 = vpop.xlane.xlu0 %2428
    %v2430 = vsel %vm536, %v143, 0.0
    %2431 = vadd.xlane.f32.xlu0 %v2430
    %v2432 = vpop.xlane.xlu0 %2431
    %v2433 = vsel %vm536, %v144, 0.0
    %2434 = vadd.xlane.f32.xlu0 %v2433
    %v2435 = vpop.xlane.xlu0 %2434
    %v2436 = vsel %vm536, %v145, 0.0
    %2437 = vadd.xlane.f32.xlu0 %v2436
    %v2438 = vpop.xlane.xlu0 %2437
    %v2439 = vsel %vm536, %v146, 0.0
    %2440 = vadd.xlane.f32.xlu0 %v2439
    %v2441 = vpop.xlane.xlu0 %2440
    %v2442 = vsel %vm536, %v147, 0.0
    %2443 = vadd.xlane.f32.xlu0 %v2442
    %v2444 = vpop.xlane.xlu0 %2443
    %v2445 = vsel %vm536, %v148, 0.0
    %2446 = vadd.xlane.f32.xlu0 %v2445
    %v2447 = vpop.xlane.xlu0 %2446
    %v2448 = vsel %vm536, %v149, 0.0
    %2449 = vadd.xlane.f32.xlu0 %v2448
    %v2450 = vpop.xlane.xlu0 %2449
    %v2451 = vsel %vm536, %v150, 0.0
    %2452 = vadd.xlane.f32.xlu0 %v2451
    %v2453 = vpop.xlane.xlu0 %2452
    %v2454 = vsel %vm536, %v151, 0.0
    %2455 = vadd.xlane.f32.xlu0 %v2454
    %v2456 = vpop.xlane.xlu0 %2455
    %v2457 = vsel %vm536, %v152, 0.0
    %2458 = vadd.xlane.f32.xlu0 %v2457
    %v2459 = vpop.xlane.xlu0 %2458
    %v2460 = vsel %vm536, %v153, 0.0
    %2461 = vadd.xlane.f32.xlu0 %v2460
    %v2462 = vpop.xlane.xlu0 %2461
    %v2463 = vsel %vm536, %v154, 0.0
    %2464 = vadd.xlane.f32.xlu0 %v2463
    %v2465 = vpop.xlane.xlu0 %2464
    %v2466 = vsel %vm536, %v155, 0.0
    %2467 = vadd.xlane.f32.xlu0 %v2466
    %v2468 = vpop.xlane.xlu0 %2467
    %v2469 = vsel %vm536, %v156, 0.0
    %2470 = vadd.xlane.f32.xlu0 %v2469
    %v2471 = vpop.xlane.xlu0 %2470
    %v2472 = vsel %vm536, %v157, 0.0
    %2473 = vadd.xlane.f32.xlu0 %v2472
    %v2474 = vpop.xlane.xlu0 %2473
    %v2475 = vsel %vm536, %v158, 0.0
    %2476 = vadd.xlane.f32.xlu0 %v2475
    %v2477 = vpop.xlane.xlu0 %2476
    %v2478 = vsel %vm536, %v159, 0.0
    %2479 = vadd.xlane.f32.xlu0 %v2478
    %v2480 = vpop.xlane.xlu0 %2479
    %v2481 = vsel %vm536, %v160, 0.0
    %2482 = vadd.xlane.f32.xlu0 %v2481
    %v2483 = vpop.xlane.xlu0 %2482
    %v2484 = vsel %vm536, %v161, 0.0
    %2485 = vadd.xlane.f32.xlu0 %v2484
    %v2486 = vpop.xlane.xlu0 %2485
    %v2487 = vsel %vm536, %v162, 0.0
    %2488 = vadd.xlane.f32.xlu0 %v2487
    %v2489 = vpop.xlane.xlu0 %2488
    %v2490 = vsel %vm536, %v163, 0.0
    %2491 = vadd.xlane.f32.xlu0 %v2490
    %v2492 = vpop.xlane.xlu0 %2491
    %v2493 = vsel %vm536, %v164, 0.0
    %2494 = vadd.xlane.f32.xlu0 %v2493
    %v2495 = vpop.xlane.xlu0 %2494
    %v2496 = vsel %vm536, %v165, 0.0
    %2497 = vadd.xlane.f32.xlu0 %v2496
    %v2498 = vpop.xlane.xlu0 %2497
    %v2499 = vsel %vm536, %v166, 0.0
    %2500 = vadd.xlane.f32.xlu0 %v2499
    %v2501 = vpop.xlane.xlu0 %2500
    %v2502 = vsel %vm536, %v167, 0.0
    %2503 = vadd.xlane.f32.xlu0 %v2502
    %v2504 = vpop.xlane.xlu0 %2503
    %v2505 = vsel %vm536, %v168, 0.0
    %2506 = vadd.xlane.f32.xlu0 %v2505
    %v2507 = vpop.xlane.xlu0 %2506
    %v2508 = vsel %vm536, %v169, 0.0
    %2509 = vadd.xlane.f32.xlu0 %v2508
    %v2510 = vpop.xlane.xlu0 %2509
    %v2511 = vsel %vm536, %v170, 0.0
    %2512 = vadd.xlane.f32.xlu0 %v2511
    %v2513 = vpop.xlane.xlu0 %2512
    %v2514 = vsel %vm536, %v171, 0.0
    %2515 = vadd.xlane.f32.xlu0 %v2514
    %v2516 = vpop.xlane.xlu0 %2515
    %v2517 = vsel %vm536, %v172, 0.0
    %2518 = vadd.xlane.f32.xlu0 %v2517
    %v2519 = vpop.xlane.xlu0 %2518
    %v2520 = vsel %vm536, %v173, 0.0
    %2521 = vadd.xlane.f32.xlu0 %v2520
    %v2522 = vpop.xlane.xlu0 %2521
    %v2523 = vsel %vm536, %v174, 0.0
    %2524 = vadd.xlane.f32.xlu0 %v2523
    %v2525 = vpop.xlane.xlu0 %2524
    %v2526 = vsel %vm536, %v175, 0.0
    %2527 = vadd.xlane.f32.xlu0 %v2526
    %v2528 = vpop.xlane.xlu0 %2527
    %v2529 = vsel %vm536, %v176, 0.0
    %2530 = vadd.xlane.f32.xlu0 %v2529
    %v2531 = vpop.xlane.xlu0 %2530
    %v2532 = vsel %vm536, %v177, 0.0
    %2533 = vadd.xlane.f32.xlu0 %v2532
    %v2534 = vpop.xlane.xlu0 %2533
    %v2535 = vsel %vm536, %v178, 0.0
    %2536 = vadd.xlane.f32.xlu0 %v2535
    %v2537 = vpop.xlane.xlu0 %2536
    %v2538 = vsel %vm536, %v179, 0.0
    %2539 = vadd.xlane.f32.xlu0 %v2538
    %v2540 = vpop.xlane.xlu0 %2539
    %v2541 = vsel %vm536, %v180, 0.0
    %2542 = vadd.xlane.f32.xlu0 %v2541
    %v2543 = vpop.xlane.xlu0 %2542
    %v2544 = vsel %vm536, %v181, 0.0
    %2545 = vadd.xlane.f32.xlu0 %v2544
    %v2546 = vpop.xlane.xlu0 %2545
    %v2547 = vsel %vm536, %v182, 0.0
    %2548 = vadd.xlane.f32.xlu0 %v2547
    %v2549 = vpop.xlane.xlu0 %2548
    %v2550 = vsel %vm536, %v183, 0.0
    %2551 = vadd.xlane.f32.xlu0 %v2550
    %v2552 = vpop.xlane.xlu0 %2551
    %v2553 = vsel %vm536, %v184, 0.0
    %2554 = vadd.xlane.f32.xlu0 %v2553
    %v2555 = vpop.xlane.xlu0 %2554
    %v2556 = vsel %vm536, %v185, 0.0
    %2557 = vadd.xlane.f32.xlu0 %v2556
    %v2558 = vpop.xlane.xlu0 %2557
    %v2559 = vsel %vm536, %v186, 0.0
    %2560 = vadd.xlane.f32.xlu0 %v2559
    %v2561 = vpop.xlane.xlu0 %2560
    %v2562 = vsel %vm536, %v187, 0.0
    %2563 = vadd.xlane.f32.xlu0 %v2562
    %v2564 = vpop.xlane.xlu0 %2563
    %v2565 = vsel %vm536, %v188, 0.0
    %2566 = vadd.xlane.f32.xlu0 %v2565
    %v2567 = vpop.xlane.xlu0 %2566
    %v2568 = vsel %vm536, %v189, 0.0
    %2569 = vadd.xlane.f32.xlu0 %v2568
    %v2570 = vpop.xlane.xlu0 %2569
    %v2571 = vsel %vm536, %v190, 0.0
    %2572 = vadd.xlane.f32.xlu0 %v2571
    %v2573 = vpop.xlane.xlu0 %2572
    %v2574 = vsel %vm536, %v191, 0.0
    %2575 = vadd.xlane.f32.xlu0 %v2574
    %v2576 = vpop.xlane.xlu0 %2575
    %v2577 = vsel %vm536, %v192, 0.0
    %2578 = vadd.xlane.f32.xlu0 %v2577
    %v2579 = vpop.xlane.xlu0 %2578
    %v2580 = vsel %vm536, %v193, 0.0
    %2581 = vadd.xlane.f32.xlu0 %v2580
    %v2582 = vpop.xlane.xlu0 %2581
    %v2583 = vsel %vm536, %v194, 0.0
    %2584 = vadd.xlane.f32.xlu0 %v2583
    %v2585 = vpop.xlane.xlu0 %2584
    %v2586 = vsel %vm536, %v195, 0.0
    %2587 = vadd.xlane.f32.xlu0 %v2586
    %v2588 = vpop.xlane.xlu0 %2587
    %v2589 = vsel %vm536, %v196, 0.0
    %2590 = vadd.xlane.f32.xlu0 %v2589
    %v2591 = vpop.xlane.xlu0 %2590
    %v2592 = vsel %vm536, %v197, 0.0
    %2593 = vadd.xlane.f32.xlu0 %v2592
    %v2594 = vpop.xlane.xlu0 %2593
    %v2595 = vsel %vm536, %v198, 0.0
    %2596 = vadd.xlane.f32.xlu0 %v2595
    %v2597 = vpop.xlane.xlu0 %2596
    %v2598 = vsel %vm536, %v199, 0.0
    %2599 = vadd.xlane.f32.xlu0 %v2598
    %v2600 = vpop.xlane.xlu0 %2599
    %v2601 = vsel %vm536, %v200, 0.0
    %2602 = vadd.xlane.f32.xlu0 %v2601
    %v2603 = vpop.xlane.xlu0 %2602
    %v2604 = vsel %vm536, %v201, 0.0
    %2605 = vadd.xlane.f32.xlu0 %v2604
    %v2606 = vpop.xlane.xlu0 %2605
    %v2607 = vsel %vm536, %v202, 0.0
    %2608 = vadd.xlane.f32.xlu0 %v2607
    %v2609 = vpop.xlane.xlu0 %2608
    %v2610 = vsel %vm536, %v203, 0.0
    %2611 = vadd.xlane.f32.xlu0 %v2610
    %v2612 = vpop.xlane.xlu0 %2611
    %v2613 = vsel %vm536, %v204, 0.0
    %2614 = vadd.xlane.f32.xlu0 %v2613
    %v2615 = vpop.xlane.xlu0 %2614
    %v2616 = vsel %vm536, %v205, 0.0
    %2617 = vadd.xlane.f32.xlu0 %v2616
    %v2618 = vpop.xlane.xlu0 %2617
    %v2619 = vsel %vm536, %v206, 0.0
    %2620 = vadd.xlane.f32.xlu0 %v2619
    %v2621 = vpop.xlane.xlu0 %2620
    %v2622 = vsel %vm536, %v207, 0.0
    %2623 = vadd.xlane.f32.xlu0 %v2622
    %v2624 = vpop.xlane.xlu0 %2623
    %v2625 = vsel %vm536, %v208, 0.0
    %2626 = vadd.xlane.f32.xlu0 %v2625
    %v2627 = vpop.xlane.xlu0 %2626
    %v2628 = vsel %vm536, %v209, 0.0
    %2629 = vadd.xlane.f32.xlu0 %v2628
    %v2630 = vpop.xlane.xlu0 %2629
    %v2631 = vsel %vm536, %v210, 0.0
    %2632 = vadd.xlane.f32.xlu0 %v2631
    %v2633 = vpop.xlane.xlu0 %2632
    %v2634 = vsel %vm536, %v211, 0.0
    %2635 = vadd.xlane.f32.xlu0 %v2634
    %v2636 = vpop.xlane.xlu0 %2635
    %v2637 = vsel %vm536, %v212, 0.0
    %2638 = vadd.xlane.f32.xlu0 %v2637
    %v2639 = vpop.xlane.xlu0 %2638
    %v2640 = vsel %vm536, %v213, 0.0
    %2641 = vadd.xlane.f32.xlu0 %v2640
    %v2642 = vpop.xlane.xlu0 %2641
    %v2643 = vsel %vm536, %v214, 0.0
    %2644 = vadd.xlane.f32.xlu0 %v2643
    %v2645 = vpop.xlane.xlu0 %2644
    %v2646 = vsel %vm536, %v215, 0.0
    %2647 = vadd.xlane.f32.xlu0 %v2646
    %v2648 = vpop.xlane.xlu0 %2647
    %v2649 = vsel %vm536, %v216, 0.0
    %2650 = vadd.xlane.f32.xlu0 %v2649
    %v2651 = vpop.xlane.xlu0 %2650
    %v2652 = vsel %vm536, %v217, 0.0
    %2653 = vadd.xlane.f32.xlu0 %v2652
    %v2654 = vpop.xlane.xlu0 %2653
    %v2655 = vsel %vm536, %v218, 0.0
    %2656 = vadd.xlane.f32.xlu0 %v2655
    %v2657 = vpop.xlane.xlu0 %2656
    %v2658 = vsel %vm536, %v219, 0.0
    %2659 = vadd.xlane.f32.xlu0 %v2658
    %v2660 = vpop.xlane.xlu0 %2659
    %v2661 = vsel %vm536, %v220, 0.0
    %2662 = vadd.xlane.f32.xlu0 %v2661
    %v2663 = vpop.xlane.xlu0 %2662
    %v2664 = vsel %vm536, %v221, 0.0
    %2665 = vadd.xlane.f32.xlu0 %v2664
    %v2666 = vpop.xlane.xlu0 %2665
    %v2667 = vsel %vm536, %v222, 0.0
    %2668 = vadd.xlane.f32.xlu0 %v2667
    %v2669 = vpop.xlane.xlu0 %2668
    %v2670 = vsel %vm536, %v223, 0.0
    %2671 = vadd.xlane.f32.xlu0 %v2670
    %v2672 = vpop.xlane.xlu0 %2671
    %v2673 = vsel %vm536, %v224, 0.0
    %2674 = vadd.xlane.f32.xlu0 %v2673
    %v2675 = vpop.xlane.xlu0 %2674
    %v2676 = vsel %vm536, %v225, 0.0
    %2677 = vadd.xlane.f32.xlu0 %v2676
    %v2678 = vpop.xlane.xlu0 %2677
    %v2679 = vsel %vm536, %v226, 0.0
    %2680 = vadd.xlane.f32.xlu0 %v2679
    %v2681 = vpop.xlane.xlu0 %2680
    %v2682 = vsel %vm536, %v227, 0.0
    %2683 = vadd.xlane.f32.xlu0 %v2682
    %v2684 = vpop.xlane.xlu0 %2683
    %v2685 = vsel %vm536, %v228, 0.0
    %2686 = vadd.xlane.f32.xlu0 %v2685
    %v2687 = vpop.xlane.xlu0 %2686
    %v2688 = vsel %vm536, %v229, 0.0
    %2689 = vadd.xlane.f32.xlu0 %v2688
    %v2690 = vpop.xlane.xlu0 %2689
    %v2691 = vsel %vm536, %v230, 0.0
    %2692 = vadd.xlane.f32.xlu0 %v2691
    %v2693 = vpop.xlane.xlu0 %2692
    %v2694 = vsel %vm536, %v231, 0.0
    %2695 = vadd.xlane.f32.xlu0 %v2694
    %v2696 = vpop.xlane.xlu0 %2695
    %v2697 = vsel %vm536, %v232, 0.0
    %2698 = vadd.xlane.f32.xlu0 %v2697
    %v2699 = vpop.xlane.xlu0 %2698
    %v2700 = vsel %vm536, %v233, 0.0
    %2701 = vadd.xlane.f32.xlu0 %v2700
    %v2702 = vpop.xlane.xlu0 %2701
    %v2703 = vsel %vm536, %v234, 0.0
    %2704 = vadd.xlane.f32.xlu0 %v2703
    %v2705 = vpop.xlane.xlu0 %2704
    %v2706 = vsel %vm536, %v235, 0.0
    %2707 = vadd.xlane.f32.xlu0 %v2706
    %v2708 = vpop.xlane.xlu0 %2707
    %v2709 = vsel %vm536, %v236, 0.0
    %2710 = vadd.xlane.f32.xlu0 %v2709
    %v2711 = vpop.xlane.xlu0 %2710
    %v2712 = vsel %vm536, %v237, 0.0
    %2713 = vadd.xlane.f32.xlu0 %v2712
    %v2714 = vpop.xlane.xlu0 %2713
    %v2715 = vsel %vm536, %v238, 0.0
    %2716 = vadd.xlane.f32.xlu0 %v2715
    %v2717 = vpop.xlane.xlu0 %2716
    %v2718 = vsel %vm536, %v239, 0.0
    %2719 = vadd.xlane.f32.xlu0 %v2718
    %v2720 = vpop.xlane.xlu0 %2719
    %v2721 = vsel %vm536, %v240, 0.0
    %2722 = vadd.xlane.f32.xlu0 %v2721
    %v2723 = vpop.xlane.xlu0 %2722
    %v2724 = vsel %vm536, %v241, 0.0
    %2725 = vadd.xlane.f32.xlu0 %v2724
    %v2726 = vpop.xlane.xlu0 %2725
    %v2727 = vsel %vm536, %v242, 0.0
    %2728 = vadd.xlane.f32.xlu0 %v2727
    %v2729 = vpop.xlane.xlu0 %2728
    %v2730 = vsel %vm536, %v243, 0.0
    %2731 = vadd.xlane.f32.xlu0 %v2730
    %v2732 = vpop.xlane.xlu0 %2731
    %v2733 = vsel %vm536, %v244, 0.0
    %2734 = vadd.xlane.f32.xlu0 %v2733
    %v2735 = vpop.xlane.xlu0 %2734
    %v2736 = vsel %vm536, %v245, 0.0
    %2737 = vadd.xlane.f32.xlu0 %v2736
    %v2738 = vpop.xlane.xlu0 %2737
    %v2739 = vsel %vm536, %v246, 0.0
    %2740 = vadd.xlane.f32.xlu0 %v2739
    %v2741 = vpop.xlane.xlu0 %2740
    %v2742 = vsel %vm536, %v247, 0.0
    %2743 = vadd.xlane.f32.xlu0 %v2742
    %v2744 = vpop.xlane.xlu0 %2743
    %v2745 = vsel %vm536, %v248, 0.0
    %2746 = vadd.xlane.f32.xlu0 %v2745
    %v2747 = vpop.xlane.xlu0 %2746
    %v2748 = vsel %vm536, %v249, 0.0
    %2749 = vadd.xlane.f32.xlu0 %v2748
    %v2750 = vpop.xlane.xlu0 %2749
    %v2751 = vsel %vm536, %v250, 0.0
    %2752 = vadd.xlane.f32.xlu0 %v2751
    %v2753 = vpop.xlane.xlu0 %2752
    %v2754 = vsel %vm536, %v251, 0.0
    %2755 = vadd.xlane.f32.xlu0 %v2754
    %v2756 = vpop.xlane.xlu0 %2755
    %v2757 = vsel %vm536, %v252, 0.0
    %2758 = vadd.xlane.f32.xlu0 %v2757
    %v2759 = vpop.xlane.xlu0 %2758
    %v2760 = vsel %vm536, %v253, 0.0
    %2761 = vadd.xlane.f32.xlu0 %v2760
    %v2762 = vpop.xlane.xlu0 %2761
    %v2763 = vsel %vm536, %v254, 0.0
    %2764 = vadd.xlane.f32.xlu0 %v2763
    %v2765 = vpop.xlane.xlu0 %2764
    %v2766 = vsel %vm536, %v255, 0.0
    %2767 = vadd.xlane.f32.xlu0 %v2766
    %v2768 = vpop.xlane.xlu0 %2767
    %v2769 = vsel %vm536, %v256, 0.0
    %2770 = vadd.xlane.f32.xlu0 %v2769
    %v2771 = vpop.xlane.xlu0 %2770
    %v2772 = vsel %vm536, %v257, 0.0
    %2773 = vadd.xlane.f32.xlu0 %v2772
    %v2774 = vpop.xlane.xlu0 %2773
    %v2775 = vsel %vm536, %v258, 0.0
    %2776 = vadd.xlane.f32.xlu0 %v2775
    %v2777 = vpop.xlane.xlu0 %2776
    %v2778 = vsel %vm536, %v259, 0.0
    %2779 = vadd.xlane.f32.xlu0 %v2778
    %v2780 = vpop.xlane.xlu0 %2779
    %v2781 = vsel %vm536, %v260, 0.0
    %2782 = vadd.xlane.f32.xlu0 %v2781
    %v2783 = vpop.xlane.xlu0 %2782
    %v2784 = vsel %vm536, %v261, 0.0
    %2785 = vadd.xlane.f32.xlu0 %v2784
    %v2786 = vpop.xlane.xlu0 %2785
    %v2787 = vsel %vm536, %v262, 0.0
    %2788 = vadd.xlane.f32.xlu0 %v2787
    %v2789 = vpop.xlane.xlu0 %2788
    %v2790 = vsel %vm536, %v263, 0.0
    %2791 = vadd.xlane.f32.xlu0 %v2790
    %v2792 = vpop.xlane.xlu0 %2791
    %v2793 = vsel %vm536, %v264, 0.0
    %2794 = vadd.xlane.f32.xlu0 %v2793
    %v2795 = vpop.xlane.xlu0 %2794
    %v2796 = vsel %vm536, %v265, 0.0
    %2797 = vadd.xlane.f32.xlu0 %v2796
    %v2798 = vpop.xlane.xlu0 %2797
    %v2799 = vsel %vm536, %v266, 0.0
    %2800 = vadd.xlane.f32.xlu0 %v2799
    %v2801 = vpop.xlane.xlu0 %2800
    %v2802 = vsel %vm536, %v267, 0.0
    %2803 = vadd.xlane.f32.xlu0 %v2802
    %v2804 = vpop.xlane.xlu0 %2803
    %v2805 = vsel %vm536, %v268, 0.0
    %2806 = vadd.xlane.f32.xlu0 %v2805
    %v2807 = vpop.xlane.xlu0 %2806
    %v2808 = vsel %vm536, %v269, 0.0
    %2809 = vadd.xlane.f32.xlu0 %v2808
    %v2810 = vpop.xlane.xlu0 %2809
    %v2811 = vsel %vm536, %v270, 0.0
    %2812 = vadd.xlane.f32.xlu0 %v2811
    %v2813 = vpop.xlane.xlu0 %2812
    %v2814 = vsel %vm536, %v271, 0.0
    %2815 = vadd.xlane.f32.xlu0 %v2814
    %v2816 = vpop.xlane.xlu0 %2815
    %v2817 = vsel %vm536, %v272, 0.0
    %2818 = vadd.xlane.f32.xlu0 %v2817
    %v2819 = vpop.xlane.xlu0 %2818
    %v2820 = vsel %vm536, %v273, 0.0
    %2821 = vadd.xlane.f32.xlu0 %v2820
    %v2822 = vpop.xlane.xlu0 %2821
    %v2823 = vsel %vm536, %v274, 0.0
    %2824 = vadd.xlane.f32.xlu0 %v2823
    %v2825 = vpop.xlane.xlu0 %2824
    %v2826 = vsel %vm536, %v275, 0.0
    %2827 = vadd.xlane.f32.xlu0 %v2826
    %v2828 = vpop.xlane.xlu0 %2827
    %v2829 = vsel %vm536, %v276, 0.0
    %2830 = vadd.xlane.f32.xlu0 %v2829
    %v2831 = vpop.xlane.xlu0 %2830
    %v2832 = vsel %vm536, %v277, 0.0
    %2833 = vadd.xlane.f32.xlu0 %v2832
    %v2834 = vpop.xlane.xlu0 %2833
    %v2835 = vsel %vm536, %v278, 0.0
    %2836 = vadd.xlane.f32.xlu0 %v2835
    %v2837 = vpop.xlane.xlu0 %2836
    %v2838 = vsel %vm536, %v279, 0.0
    %2839 = vadd.xlane.f32.xlu0 %v2838
    %v2840 = vpop.xlane.xlu0 %2839
    %v2841 = vsel %vm536, %v280, 0.0
    %2842 = vadd.xlane.f32.xlu0 %v2841
    %v2843 = vpop.xlane.xlu0 %2842
    %v2844 = vsel %vm536, %v281, 0.0
    %2845 = vadd.xlane.f32.xlu0 %v2844
    %v2846 = vpop.xlane.xlu0 %2845
    %v2847 = vsel %vm536, %v282, 0.0
    %2848 = vadd.xlane.f32.xlu0 %v2847
    %v2849 = vpop.xlane.xlu0 %2848
    %v2850 = vsel %vm536, %v283, 0.0
    %2851 = vadd.xlane.f32.xlu0 %v2850
    %v2852 = vpop.xlane.xlu0 %2851
    %v2853 = vsel %vm536, %v284, 0.0
    %2854 = vadd.xlane.f32.xlu0 %v2853
    %v2855 = vpop.xlane.xlu0 %2854
    %v2856 = vsel %vm536, %v285, 0.0
    %2857 = vadd.xlane.f32.xlu0 %v2856
    %v2858 = vpop.xlane.xlu0 %2857
    %v2859 = vsel %vm536, %v286, 0.0
    %2860 = vadd.xlane.f32.xlu0 %v2859
    %v2861 = vpop.xlane.xlu0 %2860
    %v2862 = vsel %vm536, %v287, 0.0
    %2863 = vadd.xlane.f32.xlu0 %v2862
    %v2864 = vpop.xlane.xlu0 %2863
    %v2865 = vsel %vm536, %v288, 0.0
    %2866 = vadd.xlane.f32.xlu0 %v2865
    %v2867 = vpop.xlane.xlu0 %2866
    %v2868 = vsel %vm536, %v289, 0.0
    %2869 = vadd.xlane.f32.xlu0 %v2868
    %v2870 = vpop.xlane.xlu0 %2869
    %v2871 = vsel %vm536, %v290, 0.0
    %2872 = vadd.xlane.f32.xlu0 %v2871
    %v2873 = vpop.xlane.xlu0 %2872
    %v2874 = vsel %vm536, %v291, 0.0
    %2875 = vadd.xlane.f32.xlu0 %v2874
    %v2876 = vpop.xlane.xlu0 %2875
    %v2877 = vsel %vm536, %v292, 0.0
    %2878 = vadd.xlane.f32.xlu0 %v2877
    %v2879 = vpop.xlane.xlu0 %2878
    %v2880 = vsel %vm536, %v293, 0.0
    %2881 = vadd.xlane.f32.xlu0 %v2880
    %v2882 = vpop.xlane.xlu0 %2881
    %v2883 = vsel %vm536, %v294, 0.0
    %2884 = vadd.xlane.f32.xlu0 %v2883
    %v2885 = vpop.xlane.xlu0 %2884
    %v2886 = vsel %vm536, %v295, 0.0
    %2887 = vadd.xlane.f32.xlu0 %v2886
    %v2888 = vpop.xlane.xlu0 %2887
    %v2889 = vsel %vm536, %v296, 0.0
    %2890 = vadd.xlane.f32.xlu0 %v2889
    %v2891 = vpop.xlane.xlu0 %2890
    %v2892 = vsel %vm536, %v297, 0.0
    %2893 = vadd.xlane.f32.xlu0 %v2892
    %v2894 = vpop.xlane.xlu0 %2893
    %v2895 = vsel %vm536, %v298, 0.0
    %2896 = vadd.xlane.f32.xlu0 %v2895
    %v2897 = vpop.xlane.xlu0 %2896
    %v2898 = vsel %vm536, %v299, 0.0
    %2899 = vadd.xlane.f32.xlu0 %v2898
    %v2900 = vpop.xlane.xlu0 %2899
    %v2901 = vsel %vm536, %v300, 0.0
    %2902 = vadd.xlane.f32.xlu0 %v2901
    %v2903 = vpop.xlane.xlu0 %2902
    %v2904 = vsel %vm536, %v301, 0.0
    %2905 = vadd.xlane.f32.xlu0 %v2904
    %v2906 = vpop.xlane.xlu0 %2905
    %v2907 = vsel %vm536, %v302, 0.0
    %2908 = vadd.xlane.f32.xlu0 %v2907
    %v2909 = vpop.xlane.xlu0 %2908
    %v2910 = vsel %vm536, %v303, 0.0
    %2911 = vadd.xlane.f32.xlu0 %v2910
    %v2912 = vpop.xlane.xlu0 %2911
    %v2913 = vsel %vm536, %v304, 0.0
    %2914 = vadd.xlane.f32.xlu0 %v2913
    %v2915 = vpop.xlane.xlu0 %2914
    %v2916 = vsel %vm536, %v305, 0.0
    %2917 = vadd.xlane.f32.xlu0 %v2916
    %v2918 = vpop.xlane.xlu0 %2917
    %v2919 = vsel %vm536, %v306, 0.0
    %2920 = vadd.xlane.f32.xlu0 %v2919
    %v2921 = vpop.xlane.xlu0 %2920
    %v2922 = vsel %vm536, %v307, 0.0
    %2923 = vadd.xlane.f32.xlu0 %v2922
    %v2924 = vpop.xlane.xlu0 %2923
    %v2925 = vsel %vm536, %v308, 0.0
    %2926 = vadd.xlane.f32.xlu0 %v2925
    %v2927 = vpop.xlane.xlu0 %2926
    %v2928 = vsel %vm536, %v309, 0.0
    %2929 = vadd.xlane.f32.xlu0 %v2928
    %v2930 = vpop.xlane.xlu0 %2929
    %v2931 = vsel %vm536, %v310, 0.0
    %2932 = vadd.xlane.f32.xlu0 %v2931
    %v2933 = vpop.xlane.xlu0 %2932
    %v2934 = vsel %vm536, %v311, 0.0
    %2935 = vadd.xlane.f32.xlu0 %v2934
    %v2936 = vpop.xlane.xlu0 %2935
    %v2937 = vsel %vm536, %v312, 0.0
    %2938 = vadd.xlane.f32.xlu0 %v2937
    %v2939 = vpop.xlane.xlu0 %2938
    %v2940 = vsel %vm536, %v313, 0.0
    %2941 = vadd.xlane.f32.xlu0 %v2940
    %v2942 = vpop.xlane.xlu0 %2941
    %v2943 = vsel %vm536, %v314, 0.0
    %2944 = vadd.xlane.f32.xlu0 %v2943
    %v2945 = vpop.xlane.xlu0 %2944
    %v2946 = vsel %vm536, %v315, 0.0
    %2947 = vadd.xlane.f32.xlu0 %v2946
    %v2948 = vpop.xlane.xlu0 %2947
    %v2949 = vsel %vm536, %v316, 0.0
    %2950 = vadd.xlane.f32.xlu0 %v2949
    %v2951 = vpop.xlane.xlu0 %2950
    %v2952 = vsel %vm536, %v317, 0.0
    %2953 = vadd.xlane.f32.xlu0 %v2952
    %v2954 = vpop.xlane.xlu0 %2953
    %v2955 = vsel %vm536, %v318, 0.0
    %2956 = vadd.xlane.f32.xlu0 %v2955
    %v2957 = vpop.xlane.xlu0 %2956
    %v2958 = vsel %vm536, %v319, 0.0
    %2959 = vadd.xlane.f32.xlu0 %v2958
    %v2960 = vpop.xlane.xlu0 %2959
    %v2961 = vsel %vm536, %v320, 0.0
    %2962 = vadd.xlane.f32.xlu0 %v2961
    %v2963 = vpop.xlane.xlu0 %2962
    %v2964 = vsel %vm536, %v321, 0.0
    %2965 = vadd.xlane.f32.xlu0 %v2964
    %v2966 = vpop.xlane.xlu0 %2965
    %v2967 = vsel %vm536, %v322, 0.0
    %2968 = vadd.xlane.f32.xlu0 %v2967
    %v2969 = vpop.xlane.xlu0 %2968
    %v2970 = vsel %vm536, %v323, 0.0
    %2971 = vadd.xlane.f32.xlu0 %v2970
    %v2972 = vpop.xlane.xlu0 %2971
    %v2973 = vsel %vm536, %v324, 0.0
    %2974 = vadd.xlane.f32.xlu0 %v2973
    %v2975 = vpop.xlane.xlu0 %2974
    %v2976 = vsel %vm536, %v325, 0.0
    %2977 = vadd.xlane.f32.xlu0 %v2976
    %v2978 = vpop.xlane.xlu0 %2977
    %v2979 = vsel %vm536, %v326, 0.0
    %2980 = vadd.xlane.f32.xlu0 %v2979
    %v2981 = vpop.xlane.xlu0 %2980
    %v2982 = vsel %vm536, %v327, 0.0
    %2983 = vadd.xlane.f32.xlu0 %v2982
    %v2984 = vpop.xlane.xlu0 %2983
    %v2985 = vsel %vm536, %v328, 0.0
    %2986 = vadd.xlane.f32.xlu0 %v2985
    %v2987 = vpop.xlane.xlu0 %2986
    %v2988 = vsel %vm536, %v329, 0.0
    %2989 = vadd.xlane.f32.xlu0 %v2988
    %v2990 = vpop.xlane.xlu0 %2989
    %v2991 = vsel %vm536, %v330, 0.0
    %2992 = vadd.xlane.f32.xlu0 %v2991
    %v2993 = vpop.xlane.xlu0 %2992
    %v2994 = vsel %vm536, %v331, 0.0
    %2995 = vadd.xlane.f32.xlu0 %v2994
    %v2996 = vpop.xlane.xlu0 %2995
    %v2997 = vsel %vm536, %v332, 0.0
    %2998 = vadd.xlane.f32.xlu0 %v2997
    %v2999 = vpop.xlane.xlu0 %2998
    %v3000 = vsel %vm536, %v333, 0.0
    %3001 = vadd.xlane.f32.xlu0 %v3000
    %v3002 = vpop.xlane.xlu0 %3001
    %v3003 = vsel %vm536, %v334, 0.0
    %3004 = vadd.xlane.f32.xlu0 %v3003
    %v3005 = vpop.xlane.xlu0 %3004
    %v3006 = vsel %vm536, %v335, 0.0
    %3007 = vadd.xlane.f32.xlu0 %v3006
    %v3008 = vpop.xlane.xlu0 %3007
    %v3009 = vsel %vm536, %v336, 0.0
    %3010 = vadd.xlane.f32.xlu0 %v3009
    %v3011 = vpop.xlane.xlu0 %3010
    %v3012 = vsel %vm536, %v337, 0.0
    %3013 = vadd.xlane.f32.xlu0 %v3012
    %v3014 = vpop.xlane.xlu0 %3013
    %v3015 = vsel %vm536, %v338, 0.0
    %3016 = vadd.xlane.f32.xlu0 %v3015
    %v3017 = vpop.xlane.xlu0 %3016
    %v3018 = vsel %vm536, %v339, 0.0
    %3019 = vadd.xlane.f32.xlu0 %v3018
    %v3020 = vpop.xlane.xlu0 %3019
    %v3021 = vsel %vm536, %v340, 0.0
    %3022 = vadd.xlane.f32.xlu0 %v3021
    %v3023 = vpop.xlane.xlu0 %3022
    %v3024 = vsel %vm536, %v341, 0.0
    %3025 = vadd.xlane.f32.xlu0 %v3024
    %v3026 = vpop.xlane.xlu0 %3025
    %v3027 = vsel %vm536, %v342, 0.0
    %3028 = vadd.xlane.f32.xlu0 %v3027
    %v3029 = vpop.xlane.xlu0 %3028
    %v3030 = vsel %vm536, %v343, 0.0
    %3031 = vadd.xlane.f32.xlu0 %v3030
    %v3032 = vpop.xlane.xlu0 %3031
    %v3033 = vsel %vm536, %v344, 0.0
    %3034 = vadd.xlane.f32.xlu0 %v3033
    %v3035 = vpop.xlane.xlu0 %3034
    %v3036 = vsel %vm536, %v345, 0.0
    %3037 = vadd.xlane.f32.xlu0 %v3036
    %v3038 = vpop.xlane.xlu0 %3037
    %v3039 = vsel %vm536, %v346, 0.0
    %3040 = vadd.xlane.f32.xlu0 %v3039
    %v3041 = vpop.xlane.xlu0 %3040
    %v3042 = vsel %vm536, %v347, 0.0
    %3043 = vadd.xlane.f32.xlu0 %v3042
    %v3044 = vpop.xlane.xlu0 %3043
    %v3045 = vsel %vm536, %v348, 0.0
    %3046 = vadd.xlane.f32.xlu0 %v3045
    %v3047 = vpop.xlane.xlu0 %3046
    %v3048 = vsel %vm536, %v349, 0.0
    %3049 = vadd.xlane.f32.xlu0 %v3048
    %v3050 = vpop.xlane.xlu0 %3049
    %v3051 = vsel %vm536, %v350, 0.0
    %3052 = vadd.xlane.f32.xlu0 %v3051
    %v3053 = vpop.xlane.xlu0 %3052
    %v3054 = vsel %vm536, %v351, 0.0
    %3055 = vadd.xlane.f32.xlu0 %v3054
    %v3056 = vpop.xlane.xlu0 %3055
    %v3057 = vsel %vm536, %v352, 0.0
    %3058 = vadd.xlane.f32.xlu0 %v3057
    %v3059 = vpop.xlane.xlu0 %3058
    %v3060 = vsel %vm536, %v353, 0.0
    %3061 = vadd.xlane.f32.xlu0 %v3060
    %v3062 = vpop.xlane.xlu0 %3061
    %v3063 = vsel %vm536, %v354, 0.0
    %3064 = vadd.xlane.f32.xlu0 %v3063
    %v3065 = vpop.xlane.xlu0 %3064
    %v3066 = vsel %vm536, %v355, 0.0
    %3067 = vadd.xlane.f32.xlu0 %v3066
    %v3068 = vpop.xlane.xlu0 %3067
    %v3069 = vsel %vm536, %v356, 0.0
    %3070 = vadd.xlane.f32.xlu0 %v3069
    %v3071 = vpop.xlane.xlu0 %3070
    %v3072 = vsel %vm536, %v357, 0.0
    %3073 = vadd.xlane.f32.xlu0 %v3072
    %v3074 = vpop.xlane.xlu0 %3073
    %v3075 = vsel %vm536, %v358, 0.0
    %3076 = vadd.xlane.f32.xlu0 %v3075
    %v3077 = vpop.xlane.xlu0 %3076
    %v3078 = vsel %vm536, %v359, 0.0
    %3079 = vadd.xlane.f32.xlu0 %v3078
    %v3080 = vpop.xlane.xlu0 %3079
    %v3081 = vsel %vm536, %v360, 0.0
    %3082 = vadd.xlane.f32.xlu0 %v3081
    %v3083 = vpop.xlane.xlu0 %3082
    %v3084 = vsel %vm536, %v361, 0.0
    %3085 = vadd.xlane.f32.xlu0 %v3084
    %v3086 = vpop.xlane.xlu0 %3085
    %v3087 = vsel %vm536, %v362, 0.0
    %3088 = vadd.xlane.f32.xlu0 %v3087
    %v3089 = vpop.xlane.xlu0 %3088
    %v3090 = vsel %vm536, %v363, 0.0
    %3091 = vadd.xlane.f32.xlu0 %v3090
    %v3092 = vpop.xlane.xlu0 %3091
    %v3093 = vsel %vm536, %v364, 0.0
    %3094 = vadd.xlane.f32.xlu0 %v3093
    %v3095 = vpop.xlane.xlu0 %3094
    %v3096 = vsel %vm536, %v365, 0.0
    %3097 = vadd.xlane.f32.xlu0 %v3096
    %v3098 = vpop.xlane.xlu0 %3097
    %v3099 = vsel %vm536, %v366, 0.0
    %3100 = vadd.xlane.f32.xlu0 %v3099
    %v3101 = vpop.xlane.xlu0 %3100
    %v3102 = vsel %vm536, %v367, 0.0
    %3103 = vadd.xlane.f32.xlu0 %v3102
    %v3104 = vpop.xlane.xlu0 %3103
    %v3105 = vsel %vm536, %v368, 0.0
    %3106 = vadd.xlane.f32.xlu0 %v3105
    %v3107 = vpop.xlane.xlu0 %3106
    %v3108 = vsel %vm536, %v369, 0.0
    %3109 = vadd.xlane.f32.xlu0 %v3108
    %v3110 = vpop.xlane.xlu0 %3109
    %v3111 = vsel %vm536, %v370, 0.0
    %3112 = vadd.xlane.f32.xlu0 %v3111
    %v3113 = vpop.xlane.xlu0 %3112
    %v3114 = vsel %vm536, %v371, 0.0
    %3115 = vadd.xlane.f32.xlu0 %v3114
    %v3116 = vpop.xlane.xlu0 %3115
    %v3117 = vsel %vm536, %v372, 0.0
    %3118 = vadd.xlane.f32.xlu0 %v3117
    %v3119 = vpop.xlane.xlu0 %3118
    %v3120 = vsel %vm536, %v373, 0.0
    %3121 = vadd.xlane.f32.xlu0 %v3120
    %v3122 = vpop.xlane.xlu0 %3121
    %v3123 = vsel %vm536, %v374, 0.0
    %3124 = vadd.xlane.f32.xlu0 %v3123
    %v3125 = vpop.xlane.xlu0 %3124
    %v3126 = vsel %vm536, %v375, 0.0
    %3127 = vadd.xlane.f32.xlu0 %v3126
    %v3128 = vpop.xlane.xlu0 %3127
    %v3129 = vsel %vm536, %v376, 0.0
    %3130 = vadd.xlane.f32.xlu0 %v3129
    %v3131 = vpop.xlane.xlu0 %3130
    %v3132 = vsel %vm536, %v377, 0.0
    %3133 = vadd.xlane.f32.xlu0 %v3132
    %v3134 = vpop.xlane.xlu0 %3133
    %v3135 = vsel %vm536, %v378, 0.0
    %3136 = vadd.xlane.f32.xlu0 %v3135
    %v3137 = vpop.xlane.xlu0 %3136
    %v3138 = vsel %vm536, %v379, 0.0
    %3139 = vadd.xlane.f32.xlu0 %v3138
    %v3140 = vpop.xlane.xlu0 %3139
    %v3141 = vsel %vm536, %v380, 0.0
    %3142 = vadd.xlane.f32.xlu0 %v3141
    %v3143 = vpop.xlane.xlu0 %3142
    %v3144 = vsel %vm536, %v381, 0.0
    %3145 = vadd.xlane.f32.xlu0 %v3144
    %v3146 = vpop.xlane.xlu0 %3145
    %v3147 = vsel %vm536, %v382, 0.0
    %3148 = vadd.xlane.f32.xlu0 %v3147
    %v3149 = vpop.xlane.xlu0 %3148
    %v3150 = vsel %vm536, %v383, 0.0
    %3151 = vadd.xlane.f32.xlu0 %v3150
    %v3152 = vpop.xlane.xlu0 %3151
    %v3153 = vsel %vm536, %v384, 0.0
    %3154 = vadd.xlane.f32.xlu0 %v3153
    %v3155 = vpop.xlane.xlu0 %3154
    %v3156 = vsel %vm536, %v385, 0.0
    %3157 = vadd.xlane.f32.xlu0 %v3156
    %v3158 = vpop.xlane.xlu0 %3157
    %v3159 = vsel %vm536, %v386, 0.0
    %3160 = vadd.xlane.f32.xlu0 %v3159
    %v3161 = vpop.xlane.xlu0 %3160
    %v3162 = vsel %vm536, %v387, 0.0
    %3163 = vadd.xlane.f32.xlu0 %v3162
    %v3164 = vpop.xlane.xlu0 %3163
    %v3165 = vsel %vm536, %v388, 0.0
    %3166 = vadd.xlane.f32.xlu0 %v3165
    %v3167 = vpop.xlane.xlu0 %3166
    %v3168 = vsel %vm536, %v389, 0.0
    %3169 = vadd.xlane.f32.xlu0 %v3168
    %v3170 = vpop.xlane.xlu0 %3169
    %v3171 = vsel %vm536, %v390, 0.0
    %3172 = vadd.xlane.f32.xlu0 %v3171
    %v3173 = vpop.xlane.xlu0 %3172
    %v3174 = vsel %vm536, %v391, 0.0
    %3175 = vadd.xlane.f32.xlu0 %v3174
    %v3176 = vpop.xlane.xlu0 %3175
    %v3177 = vsel %vm536, %v392, 0.0
    %3178 = vadd.xlane.f32.xlu0 %v3177
    %v3179 = vpop.xlane.xlu0 %3178
    %v3180 = vsel %vm536, %v393, 0.0
    %3181 = vadd.xlane.f32.xlu0 %v3180
    %v3182 = vpop.xlane.xlu0 %3181
    %v3183 = vsel %vm536, %v394, 0.0
    %3184 = vadd.xlane.f32.xlu0 %v3183
    %v3185 = vpop.xlane.xlu0 %3184
    %v3186 = vsel %vm536, %v395, 0.0
    %3187 = vadd.xlane.f32.xlu0 %v3186
    %v3188 = vpop.xlane.xlu0 %3187
    %v3189 = vsel %vm536, %v396, 0.0
    %3190 = vadd.xlane.f32.xlu0 %v3189
    %v3191 = vpop.xlane.xlu0 %3190
    %v3192 = vsel %vm536, %v397, 0.0
    %3193 = vadd.xlane.f32.xlu0 %v3192
    %v3194 = vpop.xlane.xlu0 %3193
    %v3195 = vsel %vm536, %v398, 0.0
    %3196 = vadd.xlane.f32.xlu0 %v3195
    %v3197 = vpop.xlane.xlu0 %3196
    %v3198 = vsel %vm536, %v399, 0.0
    %3199 = vadd.xlane.f32.xlu0 %v3198
    %v3200 = vpop.xlane.xlu0 %3199
    %v3201 = vsel %vm536, %v400, 0.0
    %3202 = vadd.xlane.f32.xlu0 %v3201
    %v3203 = vpop.xlane.xlu0 %3202
    %v3204 = vsel %vm536, %v401, 0.0
    %3205 = vadd.xlane.f32.xlu0 %v3204
    %v3206 = vpop.xlane.xlu0 %3205
    %v3207 = vsel %vm536, %v402, 0.0
    %3208 = vadd.xlane.f32.xlu0 %v3207
    %v3209 = vpop.xlane.xlu0 %3208
    %v3210 = vsel %vm536, %v403, 0.0
    %3211 = vadd.xlane.f32.xlu0 %v3210
    %v3212 = vpop.xlane.xlu0 %3211
    %v3213 = vsel %vm536, %v404, 0.0
    %3214 = vadd.xlane.f32.xlu0 %v3213
    %v3215 = vpop.xlane.xlu0 %3214
    %v3216 = vsel %vm536, %v405, 0.0
    %3217 = vadd.xlane.f32.xlu0 %v3216
    %v3218 = vpop.xlane.xlu0 %3217
    %v3219 = vsel %vm536, %v406, 0.0
    %3220 = vadd.xlane.f32.xlu0 %v3219
    %v3221 = vpop.xlane.xlu0 %3220
    %v3222 = vsel %vm536, %v407, 0.0
    %3223 = vadd.xlane.f32.xlu0 %v3222
    %v3224 = vpop.xlane.xlu0 %3223
    %v3225 = vsel %vm536, %v408, 0.0
    %3226 = vadd.xlane.f32.xlu0 %v3225
    %v3227 = vpop.xlane.xlu0 %3226
    %v3228 = vsel %vm536, %v409, 0.0
    %3229 = vadd.xlane.f32.xlu0 %v3228
    %v3230 = vpop.xlane.xlu0 %3229
    %v3231 = vsel %vm536, %v410, 0.0
    %3232 = vadd.xlane.f32.xlu0 %v3231
    %v3233 = vpop.xlane.xlu0 %3232
    %v3234 = vsel %vm536, %v411, 0.0
    %3235 = vadd.xlane.f32.xlu0 %v3234
    %v3236 = vpop.xlane.xlu0 %3235
    %v3237 = vsel %vm536, %v412, 0.0
    %3238 = vadd.xlane.f32.xlu0 %v3237
    %v3239 = vpop.xlane.xlu0 %3238
    %v3240 = vsel %vm536, %v413, 0.0
    %3241 = vadd.xlane.f32.xlu0 %v3240
    %v3242 = vpop.xlane.xlu0 %3241
    %v3243 = vsel %vm536, %v414, 0.0
    %3244 = vadd.xlane.f32.xlu0 %v3243
    %v3245 = vpop.xlane.xlu0 %3244
    %v3246 = vsel %vm536, %v415, 0.0
    %3247 = vadd.xlane.f32.xlu0 %v3246
    %v3248 = vpop.xlane.xlu0 %3247
    %v3249 = vsel %vm536, %v416, 0.0
    %3250 = vadd.xlane.f32.xlu0 %v3249
    %v3251 = vpop.xlane.xlu0 %3250
    %v3252 = vsel %vm536, %v417, 0.0
    %3253 = vadd.xlane.f32.xlu0 %v3252
    %v3254 = vpop.xlane.xlu0 %3253
    %v3255 = vsel %vm536, %v418, 0.0
    %3256 = vadd.xlane.f32.xlu0 %v3255
    %v3257 = vpop.xlane.xlu0 %3256
    %v3258 = vsel %vm536, %v419, 0.0
    %3259 = vadd.xlane.f32.xlu0 %v3258
    %v3260 = vpop.xlane.xlu0 %3259
    %v3261 = vsel %vm536, %v420, 0.0
    %3262 = vadd.xlane.f32.xlu0 %v3261
    %v3263 = vpop.xlane.xlu0 %3262
    %v3264 = vsel %vm536, %v421, 0.0
    %3265 = vadd.xlane.f32.xlu0 %v3264
    %v3266 = vpop.xlane.xlu0 %3265
    %v3267 = vsel %vm536, %v422, 0.0
    %3268 = vadd.xlane.f32.xlu0 %v3267
    %v3269 = vpop.xlane.xlu0 %3268
    %v3270 = vsel %vm536, %v423, 0.0
    %3271 = vadd.xlane.f32.xlu0 %v3270
    %v3272 = vpop.xlane.xlu0 %3271
    %v3273 = vsel %vm536, %v424, 0.0
    %3274 = vadd.xlane.f32.xlu0 %v3273
    %v3275 = vpop.xlane.xlu0 %3274
    %v3276 = vsel %vm536, %v425, 0.0
    %3277 = vadd.xlane.f32.xlu0 %v3276
    %v3278 = vpop.xlane.xlu0 %3277
    %v3279 = vsel %vm536, %v426, 0.0
    %3280 = vadd.xlane.f32.xlu0 %v3279
    %v3281 = vpop.xlane.xlu0 %3280
    %v3282 = vsel %vm536, %v427, 0.0
    %3283 = vadd.xlane.f32.xlu0 %v3282
    %v3284 = vpop.xlane.xlu0 %3283
    %v3285 = vsel %vm536, %v428, 0.0
    %3286 = vadd.xlane.f32.xlu0 %v3285
    %v3287 = vpop.xlane.xlu0 %3286
    %v3288 = vsel %vm536, %v429, 0.0
    %3289 = vadd.xlane.f32.xlu0 %v3288
    %v3290 = vpop.xlane.xlu0 %3289
    %v3291 = vsel %vm536, %v430, 0.0
    %3292 = vadd.xlane.f32.xlu0 %v3291
    %v3293 = vpop.xlane.xlu0 %3292
    %v3294 = vsel %vm536, %v431, 0.0
    %3295 = vadd.xlane.f32.xlu0 %v3294
    %v3296 = vpop.xlane.xlu0 %3295
    %v3297 = vsel %vm536, %v432, 0.0
    %3298 = vadd.xlane.f32.xlu0 %v3297
    %v3299 = vpop.xlane.xlu0 %3298
    %v3300 = vsel %vm536, %v433, 0.0
    %3301 = vadd.xlane.f32.xlu0 %v3300
    %v3302 = vpop.xlane.xlu0 %3301
    %v3303 = vsel %vm536, %v434, 0.0
    %3304 = vadd.xlane.f32.xlu0 %v3303
    %v3305 = vpop.xlane.xlu0 %3304
    %v3306 = vsel %vm536, %v435, 0.0
    %3307 = vadd.xlane.f32.xlu0 %v3306
    %v3308 = vpop.xlane.xlu0 %3307
    %v3309 = vsel %vm536, %v436, 0.0
    %3310 = vadd.xlane.f32.xlu0 %v3309
    %v3311 = vpop.xlane.xlu0 %3310
    %v3312 = vsel %vm536, %v437, 0.0
    %3313 = vadd.xlane.f32.xlu0 %v3312
    %v3314 = vpop.xlane.xlu0 %3313
    %v3315 = vsel %vm536, %v438, 0.0
    %3316 = vadd.xlane.f32.xlu0 %v3315
    %v3317 = vpop.xlane.xlu0 %3316
    %v3318 = vsel %vm536, %v439, 0.0
    %3319 = vadd.xlane.f32.xlu0 %v3318
    %v3320 = vpop.xlane.xlu0 %3319
    %v3321 = vsel %vm536, %v440, 0.0
    %3322 = vadd.xlane.f32.xlu0 %v3321
    %v3323 = vpop.xlane.xlu0 %3322
    %v3324 = vsel %vm536, %v441, 0.0
    %3325 = vadd.xlane.f32.xlu0 %v3324
    %v3326 = vpop.xlane.xlu0 %3325
    %v3327 = vsel %vm536, %v442, 0.0
    %3328 = vadd.xlane.f32.xlu0 %v3327
    %v3329 = vpop.xlane.xlu0 %3328
    %v3330 = vsel %vm536, %v443, 0.0
    %3331 = vadd.xlane.f32.xlu0 %v3330
    %v3332 = vpop.xlane.xlu0 %3331
    %v3333 = vsel %vm536, %v444, 0.0
    %3334 = vadd.xlane.f32.xlu0 %v3333
    %v3335 = vpop.xlane.xlu0 %3334
    %v3336 = vsel %vm536, %v445, 0.0
    %3337 = vadd.xlane.f32.xlu0 %v3336
    %v3338 = vpop.xlane.xlu0 %3337
    %v3339 = vsel %vm536, %v446, 0.0
    %3340 = vadd.xlane.f32.xlu0 %v3339
    %v3341 = vpop.xlane.xlu0 %3340
    %v3342 = vsel %vm536, %v447, 0.0
    %3343 = vadd.xlane.f32.xlu0 %v3342
    %v3344 = vpop.xlane.xlu0 %3343
    %v3345 = vsel %vm536, %v448, 0.0
    %3346 = vadd.xlane.f32.xlu0 %v3345
    %v3347 = vpop.xlane.xlu0 %3346
    %v3348 = vsel %vm536, %v449, 0.0
    %3349 = vadd.xlane.f32.xlu0 %v3348
    %v3350 = vpop.xlane.xlu0 %3349
    %v3351 = vsel %vm536, %v450, 0.0
    %3352 = vadd.xlane.f32.xlu0 %v3351
    %v3353 = vpop.xlane.xlu0 %3352
    %v3354 = vsel %vm536, %v451, 0.0
    %3355 = vadd.xlane.f32.xlu0 %v3354
    %v3356 = vpop.xlane.xlu0 %3355
    %v3357 = vsel %vm536, %v452, 0.0
    %3358 = vadd.xlane.f32.xlu0 %v3357
    %v3359 = vpop.xlane.xlu0 %3358
    %v3360 = vsel %vm536, %v453, 0.0
    %3361 = vadd.xlane.f32.xlu0 %v3360
    %v3362 = vpop.xlane.xlu0 %3361
    %v3363 = vsel %vm536, %v454, 0.0
    %3364 = vadd.xlane.f32.xlu0 %v3363
    %v3365 = vpop.xlane.xlu0 %3364
    %v3366 = vsel %vm536, %v455, 0.0
    %3367 = vadd.xlane.f32.xlu0 %v3366
    %v3368 = vpop.xlane.xlu0 %3367
    %v3369 = vsel %vm536, %v456, 0.0
    %3370 = vadd.xlane.f32.xlu0 %v3369
    %v3371 = vpop.xlane.xlu0 %3370
    %v3372 = vsel %vm536, %v457, 0.0
    %3373 = vadd.xlane.f32.xlu0 %v3372
    %v3374 = vpop.xlane.xlu0 %3373
    %v3375 = vsel %vm536, %v458, 0.0
    %3376 = vadd.xlane.f32.xlu0 %v3375
    %v3377 = vpop.xlane.xlu0 %3376
    %v3378 = vsel %vm536, %v459, 0.0
    %3379 = vadd.xlane.f32.xlu0 %v3378
    %v3380 = vpop.xlane.xlu0 %3379
    %v3381 = vsel %vm536, %v460, 0.0
    %3382 = vadd.xlane.f32.xlu0 %v3381
    %v3383 = vpop.xlane.xlu0 %3382
    %v3384 = vsel %vm536, %v461, 0.0
    %3385 = vadd.xlane.f32.xlu0 %v3384
    %v3386 = vpop.xlane.xlu0 %3385
    %v3387 = vsel %vm536, %v462, 0.0
    %3388 = vadd.xlane.f32.xlu0 %v3387
    %v3389 = vpop.xlane.xlu0 %3388
    %v3390 = vsel %vm536, %v463, 0.0
    %3391 = vadd.xlane.f32.xlu0 %v3390
    %v3392 = vpop.xlane.xlu0 %3391
    %v3393 = vsel %vm536, %v464, 0.0
    %3394 = vadd.xlane.f32.xlu0 %v3393
    %v3395 = vpop.xlane.xlu0 %3394
    %v3396 = vsel %vm536, %v465, 0.0
    %3397 = vadd.xlane.f32.xlu0 %v3396
    %v3398 = vpop.xlane.xlu0 %3397
    %v3399 = vsel %vm536, %v466, 0.0
    %3400 = vadd.xlane.f32.xlu0 %v3399
    %v3401 = vpop.xlane.xlu0 %3400
    %v3402 = vsel %vm536, %v467, 0.0
    %3403 = vadd.xlane.f32.xlu0 %v3402
    %v3404 = vpop.xlane.xlu0 %3403
    %v3405 = vsel %vm536, %v468, 0.0
    %3406 = vadd.xlane.f32.xlu0 %v3405
    %v3407 = vpop.xlane.xlu0 %3406
    %v3408 = vsel %vm536, %v469, 0.0
    %3409 = vadd.xlane.f32.xlu0 %v3408
    %v3410 = vpop.xlane.xlu0 %3409
    %v3411 = vsel %vm536, %v470, 0.0
    %3412 = vadd.xlane.f32.xlu0 %v3411
    %v3413 = vpop.xlane.xlu0 %3412
    %v3414 = vsel %vm536, %v471, 0.0
    %3415 = vadd.xlane.f32.xlu0 %v3414
    %v3416 = vpop.xlane.xlu0 %3415
    %v3417 = vsel %vm536, %v472, 0.0
    %3418 = vadd.xlane.f32.xlu0 %v3417
    %v3419 = vpop.xlane.xlu0 %3418
    %v3420 = vsel %vm536, %v473, 0.0
    %3421 = vadd.xlane.f32.xlu0 %v3420
    %v3422 = vpop.xlane.xlu0 %3421
    %v3423 = vsel %vm536, %v474, 0.0
    %3424 = vadd.xlane.f32.xlu0 %v3423
    %v3425 = vpop.xlane.xlu0 %3424
    %v3426 = vsel %vm536, %v475, 0.0
    %3427 = vadd.xlane.f32.xlu0 %v3426
    %v3428 = vpop.xlane.xlu0 %3427
    %v3429 = vsel %vm536, %v476, 0.0
    %3430 = vadd.xlane.f32.xlu0 %v3429
    %v3431 = vpop.xlane.xlu0 %3430
    %v3432 = vsel %vm536, %v477, 0.0
    %3433 = vadd.xlane.f32.xlu0 %v3432
    %v3434 = vpop.xlane.xlu0 %3433
    %v3435 = vsel %vm536, %v478, 0.0
    %3436 = vadd.xlane.f32.xlu0 %v3435
    %v3437 = vpop.xlane.xlu0 %3436
    %v3438 = vsel %vm536, %v479, 0.0
    %3439 = vadd.xlane.f32.xlu0 %v3438
    %v3440 = vpop.xlane.xlu0 %3439
    %v3441 = vsel %vm536, %v480, 0.0
    %3442 = vadd.xlane.f32.xlu0 %v3441
    %v3443 = vpop.xlane.xlu0 %3442
    %v3444 = vsel %vm536, %v481, 0.0
    %3445 = vadd.xlane.f32.xlu0 %v3444
    %v3446 = vpop.xlane.xlu0 %3445
    %v3447 = vsel %vm536, %v482, 0.0
    %3448 = vadd.xlane.f32.xlu0 %v3447
    %v3449 = vpop.xlane.xlu0 %3448
    %v3450 = vsel %vm536, %v483, 0.0
    %3451 = vadd.xlane.f32.xlu0 %v3450
    %v3452 = vpop.xlane.xlu0 %3451
    %v3453 = vsel %vm536, %v484, 0.0
    %3454 = vadd.xlane.f32.xlu0 %v3453
    %v3455 = vpop.xlane.xlu0 %3454
    %v3456 = vsel %vm536, %v485, 0.0
    %3457 = vadd.xlane.f32.xlu0 %v3456
    %v3458 = vpop.xlane.xlu0 %3457
    %v3459 = vsel %vm536, %v486, 0.0
    %3460 = vadd.xlane.f32.xlu0 %v3459
    %v3461 = vpop.xlane.xlu0 %3460
    %v3462 = vsel %vm536, %v487, 0.0
    %3463 = vadd.xlane.f32.xlu0 %v3462
    %v3464 = vpop.xlane.xlu0 %3463
    %v3465 = vsel %vm536, %v488, 0.0
    %3466 = vadd.xlane.f32.xlu0 %v3465
    %v3467 = vpop.xlane.xlu0 %3466
    %v3468 = vsel %vm536, %v489, 0.0
    %3469 = vadd.xlane.f32.xlu0 %v3468
    %v3470 = vpop.xlane.xlu0 %3469
    %v3471 = vsel %vm536, %v490, 0.0
    %3472 = vadd.xlane.f32.xlu0 %v3471
    %v3473 = vpop.xlane.xlu0 %3472
    %v3474 = vsel %vm536, %v491, 0.0
    %3475 = vadd.xlane.f32.xlu0 %v3474
    %v3476 = vpop.xlane.xlu0 %3475
    %v3477 = vsel %vm536, %v492, 0.0
    %3478 = vadd.xlane.f32.xlu0 %v3477
    %v3479 = vpop.xlane.xlu0 %3478
    %v3480 = vsel %vm536, %v493, 0.0
    %3481 = vadd.xlane.f32.xlu0 %v3480
    %v3482 = vpop.xlane.xlu0 %3481
    %v3483 = vsel %vm536, %v494, 0.0
    %3484 = vadd.xlane.f32.xlu0 %v3483
    %v3485 = vpop.xlane.xlu0 %3484
    %v3486 = vsel %vm536, %v495, 0.0
    %3487 = vadd.xlane.f32.xlu0 %v3486
    %v3488 = vpop.xlane.xlu0 %3487
    %v3489 = vsel %vm536, %v496, 0.0
    %3490 = vadd.xlane.f32.xlu0 %v3489
    %v3491 = vpop.xlane.xlu0 %3490
    %v3492 = vsel %vm536, %v497, 0.0
    %3493 = vadd.xlane.f32.xlu0 %v3492
    %v3494 = vpop.xlane.xlu0 %3493
    %v3495 = vsel %vm536, %v498, 0.0
    %3496 = vadd.xlane.f32.xlu0 %v3495
    %v3497 = vpop.xlane.xlu0 %3496
    %v3498 = vsel %vm536, %v499, 0.0
    %3499 = vadd.xlane.f32.xlu0 %v3498
    %v3500 = vpop.xlane.xlu0 %3499
    %v3501 = vsel %vm536, %v500, 0.0
    %3502 = vadd.xlane.f32.xlu0 %v3501
    %v3503 = vpop.xlane.xlu0 %3502
    %v3504 = vsel %vm536, %v501, 0.0
    %3505 = vadd.xlane.f32.xlu0 %v3504
    %v3506 = vpop.xlane.xlu0 %3505
    %v3507 = vsel %vm536, %v502, 0.0
    %3508 = vadd.xlane.f32.xlu0 %v3507
    %v3509 = vpop.xlane.xlu0 %3508
    %v3510 = vsel %vm536, %v503, 0.0
    %3511 = vadd.xlane.f32.xlu0 %v3510
    %v3512 = vpop.xlane.xlu0 %3511
    %v3513 = vsel %vm536, %v504, 0.0
    %3514 = vadd.xlane.f32.xlu0 %v3513
    %v3515 = vpop.xlane.xlu0 %3514
    %v3516 = vsel %vm536, %v505, 0.0
    %3517 = vadd.xlane.f32.xlu0 %v3516
    %v3518 = vpop.xlane.xlu0 %3517
    %v3519 = vsel %vm536, %v506, 0.0
    %3520 = vadd.xlane.f32.xlu0 %v3519
    %v3521 = vpop.xlane.xlu0 %3520
    %v3522 = vsel %vm536, %v507, 0.0
    %3523 = vadd.xlane.f32.xlu0 %v3522
    %v3524 = vpop.xlane.xlu0 %3523
    %v3525 = vsel %vm536, %v508, 0.0
    %3526 = vadd.xlane.f32.xlu0 %v3525
    %v3527 = vpop.xlane.xlu0 %3526
    %v3528 = vsel %vm536, %v509, 0.0
    %3529 = vadd.xlane.f32.xlu0 %v3528
    %v3530 = vpop.xlane.xlu0 %3529
    %v3531 = vsel %vm536, %v510, 0.0
    %3532 = vadd.xlane.f32.xlu0 %v3531
    %v3533 = vpop.xlane.xlu0 %3532
    %v3534 = vsel %vm536, %v511, 0.0
    %3535 = vadd.xlane.f32.xlu0 %v3534
    %v3536 = vpop.xlane.xlu0 %3535
    %v3537 = vsel %vm536, %v512, 0.0
    %3538 = vadd.xlane.f32.xlu0 %v3537
    %v3539 = vpop.xlane.xlu0 %3538
    %v3540 = vsel %vm536, %v513, 0.0
    %3541 = vadd.xlane.f32.xlu0 %v3540
    %v3542 = vpop.xlane.xlu0 %3541
    %v3543 = vsel %vm536, %v514, 0.0
    %3544 = vadd.xlane.f32.xlu0 %v3543
    %v3545 = vpop.xlane.xlu0 %3544
    %v3546 = vsel %vm536, %v515, 0.0
    %3547 = vadd.xlane.f32.xlu0 %v3546
    %v3548 = vpop.xlane.xlu0 %3547
    %v3549 = vsel %vm536, %v516, 0.0
    %3550 = vadd.xlane.f32.xlu0 %v3549
    %v3551 = vpop.xlane.xlu0 %3550
    %v3552 = vsel %vm536, %v517, 0.0
    %3553 = vadd.xlane.f32.xlu0 %v3552
    %v3554 = vpop.xlane.xlu0 %3553
    %v3555 = vsel %vm536, %v518, 0.0
    %3556 = vadd.xlane.f32.xlu0 %v3555
    %v3557 = vpop.xlane.xlu0 %3556
    %v3558 = vsel %vm536, %v519, 0.0
    %3559 = vadd.xlane.f32.xlu0 %v3558
    %v3560 = vpop.xlane.xlu0 %3559
    %v3561 = vsel %vm536, %v520, 0.0
    %3562 = vadd.xlane.f32.xlu0 %v3561
    %v3563 = vpop.xlane.xlu0 %3562
    %v3564 = vsel %vm536, %v521, 0.0
    %3565 = vadd.xlane.f32.xlu0 %v3564
    %v3566 = vpop.xlane.xlu0 %3565
    %v3567 = vsel %vm536, %v522, 0.0
    %3568 = vadd.xlane.f32.xlu0 %v3567
    %v3569 = vpop.xlane.xlu0 %3568
    %v3570 = vsel %vm536, %v523, 0.0
    %3571 = vadd.xlane.f32.xlu0 %v3570
    %v3572 = vpop.xlane.xlu0 %3571
    %v3573 = vsel %vm536, %v524, 0.0
    %3574 = vadd.xlane.f32.xlu0 %v3573
    %v3575 = vpop.xlane.xlu0 %3574
    %v3576 = vsel %vm536, %v525, 0.0
    %3577 = vadd.xlane.f32.xlu0 %v3576
    %v3578 = vpop.xlane.xlu0 %3577
    %v3579 = vsel %vm536, %v526, 0.0
    %3580 = vadd.xlane.f32.xlu0 %v3579
    %v3581 = vpop.xlane.xlu0 %3580
    %v3582 = vsel %vm536, %v527, 0.0
    %3583 = vadd.xlane.f32.xlu0 %v3582
    %v3584 = vpop.xlane.xlu0 %3583
    %v3585 = vsel %vm536, %v528, 0.0
    %3586 = vadd.xlane.f32.xlu0 %v3585
    %v3587 = vpop.xlane.xlu0 %3586
    %v3588 = vsel %vm536, %v529, 0.0
    %3589 = vadd.xlane.f32.xlu0 %v3588
    %v3590 = vpop.xlane.xlu0 %3589
    %v3591 = vsel %vm536, %v530, 0.0
    %3592 = vadd.xlane.f32.xlu0 %v3591
    %v3593 = vpop.xlane.xlu0 %3592
    %v3594 = vsel %vm536, %v531, 0.0
    %3595 = vadd.xlane.f32.xlu0 %v3594
    %v3596 = vpop.xlane.xlu0 %3595
    %v3597 = vsel %vm536, %v532, 0.0
    %3598 = vadd.xlane.f32.xlu0 %v3597
    %v3599 = vpop.xlane.xlu0 %3598
    %v3600 = vsel %vm536, %v533, 0.0
    %3601 = vadd.xlane.f32.xlu0 %v3600
    %v3602 = vpop.xlane.xlu0 %3601
    %v3603 = vsel %vm536, %v534, 0.0
    %3604 = vadd.xlane.f32.xlu0 %v3603
    %v3605 = vpop.xlane.xlu0 %3604
    %v3606 = vsel %vm536, %v535, 0.0
    %3607 = vadd.xlane.f32.xlu0 %v3606
    %v3608 = vpop.xlane.xlu0 %3607
    %v3609 = vmul.f32 %v2075, 0.0625
    %v3610 = vmul.f32 %v2078, 0.0625
    %v3611 = vmul.f32 %v2081, 0.0625
    %v3612 = vmul.f32 %v2084, 0.0625
    %v3613 = vmul.f32 %v2087, 0.0625
    %v3614 = vmul.f32 %v2090, 0.0625
    %v3615 = vmul.f32 %v2093, 0.0625
    %v3616 = vmul.f32 %v2096, 0.0625
    %v3617 = vmul.f32 %v2099, 0.0625
    %v3618 = vmul.f32 %v2102, 0.0625
    %v3619 = vmul.f32 %v2105, 0.0625
    %v3620 = vmul.f32 %v2108, 0.0625
    %v3621 = vmul.f32 %v2111, 0.0625
    %v3622 = vmul.f32 %v2114, 0.0625
    %v3623 = vmul.f32 %v2117, 0.0625
    %v3624 = vmul.f32 %v2120, 0.0625
    %v3625 = vmul.f32 %v2123, 0.0625
    %v3626 = vmul.f32 %v2126, 0.0625
    %v3627 = vmul.f32 %v2129, 0.0625
    %v3628 = vmul.f32 %v2132, 0.0625
    %v3629 = vmul.f32 %v2135, 0.0625
    %v3630 = vmul.f32 %v2138, 0.0625
    %v3631 = vmul.f32 %v2141, 0.0625
    %v3632 = vmul.f32 %v2144, 0.0625
    %v3633 = vmul.f32 %v2147, 0.0625
    %v3634 = vmul.f32 %v2150, 0.0625
    %v3635 = vmul.f32 %v2153, 0.0625
    %v3636 = vmul.f32 %v2156, 0.0625
    %v3637 = vmul.f32 %v2159, 0.0625
    %v3638 = vmul.f32 %v2162, 0.0625
    %v3639 = vmul.f32 %v2165, 0.0625
    %v3640 = vmul.f32 %v2168, 0.0625
    %v3641 = vmul.f32 %v2171, 0.0625
    %v3642 = vmul.f32 %v2174, 0.0625
    %v3643 = vmul.f32 %v2177, 0.0625
    %v3644 = vmul.f32 %v2180, 0.0625
    %v3645 = vmul.f32 %v2183, 0.0625
    %v3646 = vmul.f32 %v2186, 0.0625
    %v3647 = vmul.f32 %v2189, 0.0625
    %v3648 = vmul.f32 %v2192, 0.0625
    %v3649 = vmul.f32 %v2195, 0.0625
    %v3650 = vmul.f32 %v2198, 0.0625
    %v3651 = vmul.f32 %v2201, 0.0625
    %v3652 = vmul.f32 %v2204, 0.0625
    %v3653 = vmul.f32 %v2207, 0.0625
    %v3654 = vmul.f32 %v2210, 0.0625
    %v3655 = vmul.f32 %v2213, 0.0625
    %v3656 = vmul.f32 %v2216, 0.0625
    %v3657 = vmul.f32 %v2219, 0.0625
    %v3658 = vmul.f32 %v2222, 0.0625
    %v3659 = vmul.f32 %v2225, 0.0625
    %v3660 = vmul.f32 %v2228, 0.0625
    %v3661 = vmul.f32 %v2231, 0.0625
    %v3662 = vmul.f32 %v2234, 0.0625
    %v3663 = vmul.f32 %v2237, 0.0625
    %v3664 = vmul.f32 %v2240, 0.0625
    %v3665 = vmul.f32 %v2243, 0.0625
    %v3666 = vmul.f32 %v2246, 0.0625
    %v3667 = vmul.f32 %v2249, 0.0625
    %v3668 = vmul.f32 %v2252, 0.0625
    %v3669 = vmul.f32 %v2255, 0.0625
    %v3670 = vmul.f32 %v2258, 0.0625
    %v3671 = vmul.f32 %v2261, 0.0625
    %v3672 = vmul.f32 %v2264, 0.0625
    %v3673 = vmul.f32 %v2267, 0.0625
    %v3674 = vmul.f32 %v2270, 0.0625
    %v3675 = vmul.f32 %v2273, 0.0625
    %v3676 = vmul.f32 %v2276, 0.0625
    %v3677 = vmul.f32 %v2279, 0.0625
    %v3678 = vmul.f32 %v2282, 0.0625
    %v3679 = vmul.f32 %v2285, 0.0625
    %v3680 = vmul.f32 %v2288, 0.0625
    %v3681 = vmul.f32 %v2291, 0.0625
    %v3682 = vmul.f32 %v2294, 0.0625
    %v3683 = vmul.f32 %v2297, 0.0625
    %v3684 = vmul.f32 %v2300, 0.0625
    %v3685 = vmul.f32 %v2303, 0.0625
    %v3686 = vmul.f32 %v2306, 0.0625
    %v3687 = vmul.f32 %v2309, 0.0625
    %v3688 = vmul.f32 %v2312, 0.0625
    %v3689 = vmul.f32 %v2315, 0.0625
    %v3690 = vmul.f32 %v2318, 0.0625
    %v3691 = vmul.f32 %v2321, 0.0625
    %v3692 = vmul.f32 %v2324, 0.0625
    %v3693 = vmul.f32 %v2327, 0.0625
    %v3694 = vmul.f32 %v2330, 0.0625
    %v3695 = vmul.f32 %v2333, 0.0625
    %v3696 = vmul.f32 %v2336, 0.0625
    %v3697 = vmul.f32 %v2339, 0.0625
    %v3698 = vmul.f32 %v2342, 0.0625
    %v3699 = vmul.f32 %v2345, 0.0625
    %v3700 = vmul.f32 %v2348, 0.0625
    %v3701 = vmul.f32 %v2351, 0.0625
    %v3702 = vmul.f32 %v2354, 0.0625
    %v3703 = vmul.f32 %v2357, 0.0625
    %v3704 = vmul.f32 %v2360, 0.0625
    %v3705 = vmul.f32 %v2363, 0.0625
    %v3706 = vmul.f32 %v2366, 0.0625
    %v3707 = vmul.f32 %v2369, 0.0625
    %v3708 = vmul.f32 %v2372, 0.0625
    %v3709 = vmul.f32 %v2375, 0.0625
    %v3710 = vmul.f32 %v2378, 0.0625
    %v3711 = vmul.f32 %v2381, 0.0625
    %v3712 = vmul.f32 %v2384, 0.0625
    %v3713 = vmul.f32 %v2387, 0.0625
    %v3714 = vmul.f32 %v2390, 0.0625
    %v3715 = vmul.f32 %v2393, 0.0625
    %v3716 = vmul.f32 %v2396, 0.0625
    %v3717 = vmul.f32 %v2399, 0.0625
    %v3718 = vmul.f32 %v2402, 0.0625
    %v3719 = vmul.f32 %v2405, 0.0625
    %v3720 = vmul.f32 %v2408, 0.0625
    %v3721 = vmul.f32 %v2411, 0.0625
    %v3722 = vmul.f32 %v2414, 0.0625
    %v3723 = vmul.f32 %v2417, 0.0625
    %v3724 = vmul.f32 %v2420, 0.0625
    %v3725 = vmul.f32 %v2423, 0.0625
    %v3726 = vmul.f32 %v2426, 0.0625
    %v3727 = vmul.f32 %v2429, 0.0625
    %v3728 = vmul.f32 %v2432, 0.0625
    %v3729 = vmul.f32 %v2435, 0.0625
    %v3730 = vmul.f32 %v2438, 0.0625
    %v3731 = vmul.f32 %v2441, 0.0625
    %v3732 = vmul.f32 %v2444, 0.0625
    %v3733 = vmul.f32 %v2447, 0.0625
    %v3734 = vmul.f32 %v2450, 0.0625
    %v3735 = vmul.f32 %v2453, 0.0625
    %v3736 = vmul.f32 %v2456, 0.0625
    %v3737 = vmul.f32 %v2459, 0.0625
    %v3738 = vmul.f32 %v2462, 0.0625
    %v3739 = vmul.f32 %v2465, 0.0625
    %v3740 = vmul.f32 %v2468, 0.0625
    %v3741 = vmul.f32 %v2471, 0.0625
    %v3742 = vmul.f32 %v2474, 0.0625
    %v3743 = vmul.f32 %v2477, 0.0625
    %v3744 = vmul.f32 %v2480, 0.0625
    %v3745 = vmul.f32 %v2483, 0.0625
    %v3746 = vmul.f32 %v2486, 0.0625
    %v3747 = vmul.f32 %v2489, 0.0625
    %v3748 = vmul.f32 %v2492, 0.0625
    %v3749 = vmul.f32 %v2495, 0.0625
    %v3750 = vmul.f32 %v2498, 0.0625
    %v3751 = vmul.f32 %v2501, 0.0625
    %v3752 = vmul.f32 %v2504, 0.0625
    %v3753 = vmul.f32 %v2507, 0.0625
    %v3754 = vmul.f32 %v2510, 0.0625
    %v3755 = vmul.f32 %v2513, 0.0625
    %v3756 = vmul.f32 %v2516, 0.0625
    %v3757 = vmul.f32 %v2519, 0.0625
    %v3758 = vmul.f32 %v2522, 0.0625
    %v3759 = vmul.f32 %v2525, 0.0625
    %v3760 = vmul.f32 %v2528, 0.0625
    %v3761 = vmul.f32 %v2531, 0.0625
    %v3762 = vmul.f32 %v2534, 0.0625
    %v3763 = vmul.f32 %v2537, 0.0625
    %v3764 = vmul.f32 %v2540, 0.0625
    %v3765 = vmul.f32 %v2543, 0.0625
    %v3766 = vmul.f32 %v2546, 0.0625
    %v3767 = vmul.f32 %v2549, 0.0625
    %v3768 = vmul.f32 %v2552, 0.0625
    %v3769 = vmul.f32 %v2555, 0.0625
    %v3770 = vmul.f32 %v2558, 0.0625
    %v3771 = vmul.f32 %v2561, 0.0625
    %v3772 = vmul.f32 %v2564, 0.0625
    %v3773 = vmul.f32 %v2567, 0.0625
    %v3774 = vmul.f32 %v2570, 0.0625
    %v3775 = vmul.f32 %v2573, 0.0625
    %v3776 = vmul.f32 %v2576, 0.0625
    %v3777 = vmul.f32 %v2579, 0.0625
    %v3778 = vmul.f32 %v2582, 0.0625
    %v3779 = vmul.f32 %v2585, 0.0625
    %v3780 = vmul.f32 %v2588, 0.0625
    %v3781 = vmul.f32 %v2591, 0.0625
    %v3782 = vmul.f32 %v2594, 0.0625
    %v3783 = vmul.f32 %v2597, 0.0625
    %v3784 = vmul.f32 %v2600, 0.0625
    %v3785 = vmul.f32 %v2603, 0.0625
    %v3786 = vmul.f32 %v2606, 0.0625
    %v3787 = vmul.f32 %v2609, 0.0625
    %v3788 = vmul.f32 %v2612, 0.0625
    %v3789 = vmul.f32 %v2615, 0.0625
    %v3790 = vmul.f32 %v2618, 0.0625
    %v3791 = vmul.f32 %v2621, 0.0625
    %v3792 = vmul.f32 %v2624, 0.0625
    %v3793 = vmul.f32 %v2627, 0.0625
    %v3794 = vmul.f32 %v2630, 0.0625
    %v3795 = vmul.f32 %v2633, 0.0625
    %v3796 = vmul.f32 %v2636, 0.0625
    %v3797 = vmul.f32 %v2639, 0.0625
    %v3798 = vmul.f32 %v2642, 0.0625
    %v3799 = vmul.f32 %v2645, 0.0625
    %v3800 = vmul.f32 %v2648, 0.0625
    %v3801 = vmul.f32 %v2651, 0.0625
    %v3802 = vmul.f32 %v2654, 0.0625
    %v3803 = vmul.f32 %v2657, 0.0625
    %v3804 = vmul.f32 %v2660, 0.0625
    %v3805 = vmul.f32 %v2663, 0.0625
    %v3806 = vmul.f32 %v2666, 0.0625
    %v3807 = vmul.f32 %v2669, 0.0625
    %v3808 = vmul.f32 %v2672, 0.0625
    %v3809 = vmul.f32 %v2675, 0.0625
    %v3810 = vmul.f32 %v2678, 0.0625
    %v3811 = vmul.f32 %v2681, 0.0625
    %v3812 = vmul.f32 %v2684, 0.0625
    %v3813 = vmul.f32 %v2687, 0.0625
    %v3814 = vmul.f32 %v2690, 0.0625
    %v3815 = vmul.f32 %v2693, 0.0625
    %v3816 = vmul.f32 %v2696, 0.0625
    %v3817 = vmul.f32 %v2699, 0.0625
    %v3818 = vmul.f32 %v2702, 0.0625
    %v3819 = vmul.f32 %v2705, 0.0625
    %v3820 = vmul.f32 %v2708, 0.0625
    %v3821 = vmul.f32 %v2711, 0.0625
    %v3822 = vmul.f32 %v2714, 0.0625
    %v3823 = vmul.f32 %v2717, 0.0625
    %v3824 = vmul.f32 %v2720, 0.0625
    %v3825 = vmul.f32 %v2723, 0.0625
    %v3826 = vmul.f32 %v2726, 0.0625
    %v3827 = vmul.f32 %v2729, 0.0625
    %v3828 = vmul.f32 %v2732, 0.0625
    %v3829 = vmul.f32 %v2735, 0.0625
    %v3830 = vmul.f32 %v2738, 0.0625
    %v3831 = vmul.f32 %v2741, 0.0625
    %v3832 = vmul.f32 %v2744, 0.0625
    %v3833 = vmul.f32 %v2747, 0.0625
    %v3834 = vmul.f32 %v2750, 0.0625
    %v3835 = vmul.f32 %v2753, 0.0625
    %v3836 = vmul.f32 %v2756, 0.0625
    %v3837 = vmul.f32 %v2759, 0.0625
    %v3838 = vmul.f32 %v2762, 0.0625
    %v3839 = vmul.f32 %v2765, 0.0625
    %v3840 = vmul.f32 %v2768, 0.0625
    %v3841 = vmul.f32 %v2771, 0.0625
    %v3842 = vmul.f32 %v2774, 0.0625
    %v3843 = vmul.f32 %v2777, 0.0625
    %v3844 = vmul.f32 %v2780, 0.0625
    %v3845 = vmul.f32 %v2783, 0.0625
    %v3846 = vmul.f32 %v2786, 0.0625
    %v3847 = vmul.f32 %v2789, 0.0625
    %v3848 = vmul.f32 %v2792, 0.0625
    %v3849 = vmul.f32 %v2795, 0.0625
    %v3850 = vmul.f32 %v2798, 0.0625
    %v3851 = vmul.f32 %v2801, 0.0625
    %v3852 = vmul.f32 %v2804, 0.0625
    %v3853 = vmul.f32 %v2807, 0.0625
    %v3854 = vmul.f32 %v2810, 0.0625
    %v3855 = vmul.f32 %v2813, 0.0625
    %v3856 = vmul.f32 %v2816, 0.0625
    %v3857 = vmul.f32 %v2819, 0.0625
    %v3858 = vmul.f32 %v2822, 0.0625
    %v3859 = vmul.f32 %v2825, 0.0625
    %v3860 = vmul.f32 %v2828, 0.0625
    %v3861 = vmul.f32 %v2831, 0.0625
    %v3862 = vmul.f32 %v2834, 0.0625
    %v3863 = vmul.f32 %v2837, 0.0625
    %v3864 = vmul.f32 %v2840, 0.0625
    %v3865 = vmul.f32 %v2843, 0.0625
    %v3866 = vmul.f32 %v2846, 0.0625
    %v3867 = vmul.f32 %v2849, 0.0625
    %v3868 = vmul.f32 %v2852, 0.0625
    %v3869 = vmul.f32 %v2855, 0.0625
    %v3870 = vmul.f32 %v2858, 0.0625
    %v3871 = vmul.f32 %v2861, 0.0625
    %v3872 = vmul.f32 %v2864, 0.0625
    %v3873 = vmul.f32 %v2867, 0.0625
    %v3874 = vmul.f32 %v2870, 0.0625
    %v3875 = vmul.f32 %v2873, 0.0625
    %v3876 = vmul.f32 %v2876, 0.0625
    %v3877 = vmul.f32 %v2879, 0.0625
    %v3878 = vmul.f32 %v2882, 0.0625
    %v3879 = vmul.f32 %v2885, 0.0625
    %v3880 = vmul.f32 %v2888, 0.0625
    %v3881 = vmul.f32 %v2891, 0.0625
    %v3882 = vmul.f32 %v2894, 0.0625
    %v3883 = vmul.f32 %v2897, 0.0625
    %v3884 = vmul.f32 %v2900, 0.0625
    %v3885 = vmul.f32 %v2903, 0.0625
    %v3886 = vmul.f32 %v2906, 0.0625
    %v3887 = vmul.f32 %v2909, 0.0625
    %v3888 = vmul.f32 %v2912, 0.0625
    %v3889 = vmul.f32 %v2915, 0.0625
    %v3890 = vmul.f32 %v2918, 0.0625
    %v3891 = vmul.f32 %v2921, 0.0625
    %v3892 = vmul.f32 %v2924, 0.0625
    %v3893 = vmul.f32 %v2927, 0.0625
    %v3894 = vmul.f32 %v2930, 0.0625
    %v3895 = vmul.f32 %v2933, 0.0625
    %v3896 = vmul.f32 %v2936, 0.0625
    %v3897 = vmul.f32 %v2939, 0.0625
    %v3898 = vmul.f32 %v2942, 0.0625
    %v3899 = vmul.f32 %v2945, 0.0625
    %v3900 = vmul.f32 %v2948, 0.0625
    %v3901 = vmul.f32 %v2951, 0.0625
    %v3902 = vmul.f32 %v2954, 0.0625
    %v3903 = vmul.f32 %v2957, 0.0625
    %v3904 = vmul.f32 %v2960, 0.0625
    %v3905 = vmul.f32 %v2963, 0.0625
    %v3906 = vmul.f32 %v2966, 0.0625
    %v3907 = vmul.f32 %v2969, 0.0625
    %v3908 = vmul.f32 %v2972, 0.0625
    %v3909 = vmul.f32 %v2975, 0.0625
    %v3910 = vmul.f32 %v2978, 0.0625
    %v3911 = vmul.f32 %v2981, 0.0625
    %v3912 = vmul.f32 %v2984, 0.0625
    %v3913 = vmul.f32 %v2987, 0.0625
    %v3914 = vmul.f32 %v2990, 0.0625
    %v3915 = vmul.f32 %v2993, 0.0625
    %v3916 = vmul.f32 %v2996, 0.0625
    %v3917 = vmul.f32 %v2999, 0.0625
    %v3918 = vmul.f32 %v3002, 0.0625
    %v3919 = vmul.f32 %v3005, 0.0625
    %v3920 = vmul.f32 %v3008, 0.0625
    %v3921 = vmul.f32 %v3011, 0.0625
    %v3922 = vmul.f32 %v3014, 0.0625
    %v3923 = vmul.f32 %v3017, 0.0625
    %v3924 = vmul.f32 %v3020, 0.0625
    %v3925 = vmul.f32 %v3023, 0.0625
    %v3926 = vmul.f32 %v3026, 0.0625
    %v3927 = vmul.f32 %v3029, 0.0625
    %v3928 = vmul.f32 %v3032, 0.0625
    %v3929 = vmul.f32 %v3035, 0.0625
    %v3930 = vmul.f32 %v3038, 0.0625
    %v3931 = vmul.f32 %v3041, 0.0625
    %v3932 = vmul.f32 %v3044, 0.0625
    %v3933 = vmul.f32 %v3047, 0.0625
    %v3934 = vmul.f32 %v3050, 0.0625
    %v3935 = vmul.f32 %v3053, 0.0625
    %v3936 = vmul.f32 %v3056, 0.0625
    %v3937 = vmul.f32 %v3059, 0.0625
    %v3938 = vmul.f32 %v3062, 0.0625
    %v3939 = vmul.f32 %v3065, 0.0625
    %v3940 = vmul.f32 %v3068, 0.0625
    %v3941 = vmul.f32 %v3071, 0.0625
    %v3942 = vmul.f32 %v3074, 0.0625
    %v3943 = vmul.f32 %v3077, 0.0625
    %v3944 = vmul.f32 %v3080, 0.0625
    %v3945 = vmul.f32 %v3083, 0.0625
    %v3946 = vmul.f32 %v3086, 0.0625
    %v3947 = vmul.f32 %v3089, 0.0625
    %v3948 = vmul.f32 %v3092, 0.0625
    %v3949 = vmul.f32 %v3095, 0.0625
    %v3950 = vmul.f32 %v3098, 0.0625
    %v3951 = vmul.f32 %v3101, 0.0625
    %v3952 = vmul.f32 %v3104, 0.0625
    %v3953 = vmul.f32 %v3107, 0.0625
    %v3954 = vmul.f32 %v3110, 0.0625
    %v3955 = vmul.f32 %v3113, 0.0625
    %v3956 = vmul.f32 %v3116, 0.0625
    %v3957 = vmul.f32 %v3119, 0.0625
    %v3958 = vmul.f32 %v3122, 0.0625
    %v3959 = vmul.f32 %v3125, 0.0625
    %v3960 = vmul.f32 %v3128, 0.0625
    %v3961 = vmul.f32 %v3131, 0.0625
    %v3962 = vmul.f32 %v3134, 0.0625
    %v3963 = vmul.f32 %v3137, 0.0625
    %v3964 = vmul.f32 %v3140, 0.0625
    %v3965 = vmul.f32 %v3143, 0.0625
    %v3966 = vmul.f32 %v3146, 0.0625
    %v3967 = vmul.f32 %v3149, 0.0625
    %v3968 = vmul.f32 %v3152, 0.0625
    %v3969 = vmul.f32 %v3155, 0.0625
    %v3970 = vmul.f32 %v3158, 0.0625
    %v3971 = vmul.f32 %v3161, 0.0625
    %v3972 = vmul.f32 %v3164, 0.0625
    %v3973 = vmul.f32 %v3167, 0.0625
    %v3974 = vmul.f32 %v3170, 0.0625
    %v3975 = vmul.f32 %v3173, 0.0625
    %v3976 = vmul.f32 %v3176, 0.0625
    %v3977 = vmul.f32 %v3179, 0.0625
    %v3978 = vmul.f32 %v3182, 0.0625
    %v3979 = vmul.f32 %v3185, 0.0625
    %v3980 = vmul.f32 %v3188, 0.0625
    %v3981 = vmul.f32 %v3191, 0.0625
    %v3982 = vmul.f32 %v3194, 0.0625
    %v3983 = vmul.f32 %v3197, 0.0625
    %v3984 = vmul.f32 %v3200, 0.0625
    %v3985 = vmul.f32 %v3203, 0.0625
    %v3986 = vmul.f32 %v3206, 0.0625
    %v3987 = vmul.f32 %v3209, 0.0625
    %v3988 = vmul.f32 %v3212, 0.0625
    %v3989 = vmul.f32 %v3215, 0.0625
    %v3990 = vmul.f32 %v3218, 0.0625
    %v3991 = vmul.f32 %v3221, 0.0625
    %v3992 = vmul.f32 %v3224, 0.0625
    %v3993 = vmul.f32 %v3227, 0.0625
    %v3994 = vmul.f32 %v3230, 0.0625
    %v3995 = vmul.f32 %v3233, 0.0625
    %v3996 = vmul.f32 %v3236, 0.0625
    %v3997 = vmul.f32 %v3239, 0.0625
    %v3998 = vmul.f32 %v3242, 0.0625
    %v3999 = vmul.f32 %v3245, 0.0625
    %v4000 = vmul.f32 %v3248, 0.0625
    %v4001 = vmul.f32 %v3251, 0.0625
    %v4002 = vmul.f32 %v3254, 0.0625
    %v4003 = vmul.f32 %v3257, 0.0625
    %v4004 = vmul.f32 %v3260, 0.0625
    %v4005 = vmul.f32 %v3263, 0.0625
    %v4006 = vmul.f32 %v3266, 0.0625
    %v4007 = vmul.f32 %v3269, 0.0625
    %v4008 = vmul.f32 %v3272, 0.0625
    %v4009 = vmul.f32 %v3275, 0.0625
    %v4010 = vmul.f32 %v3278, 0.0625
    %v4011 = vmul.f32 %v3281, 0.0625
    %v4012 = vmul.f32 %v3284, 0.0625
    %v4013 = vmul.f32 %v3287, 0.0625
    %v4014 = vmul.f32 %v3290, 0.0625
    %v4015 = vmul.f32 %v3293, 0.0625
    %v4016 = vmul.f32 %v3296, 0.0625
    %v4017 = vmul.f32 %v3299, 0.0625
    %v4018 = vmul.f32 %v3302, 0.0625
    %v4019 = vmul.f32 %v3305, 0.0625
    %v4020 = vmul.f32 %v3308, 0.0625
    %v4021 = vmul.f32 %v3311, 0.0625
    %v4022 = vmul.f32 %v3314, 0.0625
    %v4023 = vmul.f32 %v3317, 0.0625
    %v4024 = vmul.f32 %v3320, 0.0625
    %v4025 = vmul.f32 %v3323, 0.0625
    %v4026 = vmul.f32 %v3326, 0.0625
    %v4027 = vmul.f32 %v3329, 0.0625
    %v4028 = vmul.f32 %v3332, 0.0625
    %v4029 = vmul.f32 %v3335, 0.0625
    %v4030 = vmul.f32 %v3338, 0.0625
    %v4031 = vmul.f32 %v3341, 0.0625
    %v4032 = vmul.f32 %v3344, 0.0625
    %v4033 = vmul.f32 %v3347, 0.0625
    %v4034 = vmul.f32 %v3350, 0.0625
    %v4035 = vmul.f32 %v3353, 0.0625
    %v4036 = vmul.f32 %v3356, 0.0625
    %v4037 = vmul.f32 %v3359, 0.0625
    %v4038 = vmul.f32 %v3362, 0.0625
    %v4039 = vmul.f32 %v3365, 0.0625
    %v4040 = vmul.f32 %v3368, 0.0625
    %v4041 = vmul.f32 %v3371, 0.0625
    %v4042 = vmul.f32 %v3374, 0.0625
    %v4043 = vmul.f32 %v3377, 0.0625
    %v4044 = vmul.f32 %v3380, 0.0625
    %v4045 = vmul.f32 %v3383, 0.0625
    %v4046 = vmul.f32 %v3386, 0.0625
    %v4047 = vmul.f32 %v3389, 0.0625
    %v4048 = vmul.f32 %v3392, 0.0625
    %v4049 = vmul.f32 %v3395, 0.0625
    %v4050 = vmul.f32 %v3398, 0.0625
    %v4051 = vmul.f32 %v3401, 0.0625
    %v4052 = vmul.f32 %v3404, 0.0625
    %v4053 = vmul.f32 %v3407, 0.0625
    %v4054 = vmul.f32 %v3410, 0.0625
    %v4055 = vmul.f32 %v3413, 0.0625
    %v4056 = vmul.f32 %v3416, 0.0625
    %v4057 = vmul.f32 %v3419, 0.0625
    %v4058 = vmul.f32 %v3422, 0.0625
    %v4059 = vmul.f32 %v3425, 0.0625
    %v4060 = vmul.f32 %v3428, 0.0625
    %v4061 = vmul.f32 %v3431, 0.0625
    %v4062 = vmul.f32 %v3434, 0.0625
    %v4063 = vmul.f32 %v3437, 0.0625
    %v4064 = vmul.f32 %v3440, 0.0625
    %v4065 = vmul.f32 %v3443, 0.0625
    %v4066 = vmul.f32 %v3446, 0.0625
    %v4067 = vmul.f32 %v3449, 0.0625
    %v4068 = vmul.f32 %v3452, 0.0625
    %v4069 = vmul.f32 %v3455, 0.0625
    %v4070 = vmul.f32 %v3458, 0.0625
    %v4071 = vmul.f32 %v3461, 0.0625
    %v4072 = vmul.f32 %v3464, 0.0625
    %v4073 = vmul.f32 %v3467, 0.0625
    %v4074 = vmul.f32 %v3470, 0.0625
    %v4075 = vmul.f32 %v3473, 0.0625
    %v4076 = vmul.f32 %v3476, 0.0625
    %v4077 = vmul.f32 %v3479, 0.0625
    %v4078 = vmul.f32 %v3482, 0.0625
    %v4079 = vmul.f32 %v3485, 0.0625
    %v4080 = vmul.f32 %v3488, 0.0625
    %v4081 = vmul.f32 %v3491, 0.0625
    %v4082 = vmul.f32 %v3494, 0.0625
    %v4083 = vmul.f32 %v3497, 0.0625
    %v4084 = vmul.f32 %v3500, 0.0625
    %v4085 = vmul.f32 %v3503, 0.0625
    %v4086 = vmul.f32 %v3506, 0.0625
    %v4087 = vmul.f32 %v3509, 0.0625
    %v4088 = vmul.f32 %v3512, 0.0625
    %v4089 = vmul.f32 %v3515, 0.0625
    %v4090 = vmul.f32 %v3518, 0.0625
    %v4091 = vmul.f32 %v3521, 0.0625
    %v4092 = vmul.f32 %v3524, 0.0625
    %v4093 = vmul.f32 %v3527, 0.0625
    %v4094 = vmul.f32 %v3530, 0.0625
    %v4095 = vmul.f32 %v3533, 0.0625
    %v4096 = vmul.f32 %v3536, 0.0625
    %v4097 = vmul.f32 %v3539, 0.0625
    %v4098 = vmul.f32 %v3542, 0.0625
    %v4099 = vmul.f32 %v3545, 0.0625
    %v4100 = vmul.f32 %v3548, 0.0625
    %v4101 = vmul.f32 %v3551, 0.0625
    %v4102 = vmul.f32 %v3554, 0.0625
    %v4103 = vmul.f32 %v3557, 0.0625
    %v4104 = vmul.f32 %v3560, 0.0625
    %v4105 = vmul.f32 %v3563, 0.0625
    %v4106 = vmul.f32 %v3566, 0.0625
    %v4107 = vmul.f32 %v3569, 0.0625
    %v4108 = vmul.f32 %v3572, 0.0625
    %v4109 = vmul.f32 %v3575, 0.0625
    %v4110 = vmul.f32 %v3578, 0.0625
    %v4111 = vmul.f32 %v3581, 0.0625
    %v4112 = vmul.f32 %v3584, 0.0625
    %v4113 = vmul.f32 %v3587, 0.0625
    %v4114 = vmul.f32 %v3590, 0.0625
    %v4115 = vmul.f32 %v3593, 0.0625
    %v4116 = vmul.f32 %v3596, 0.0625
    %v4117 = vmul.f32 %v3599, 0.0625
    %v4118 = vmul.f32 %v3602, 0.0625
    %v4119 = vmul.f32 %v3605, 0.0625
    %v4120 = vmul.f32 %v3608, 0.0625
    %v4121 = vpack.c.bf16 %v542, %v539
    %v4122 = vpack.c.bf16 %v548, %v545
    %v4123 = vpack.c.bf16 %v554, %v551
    %v4124 = vpack.c.bf16 %v560, %v557
    %v4125 = vpack.c.bf16 %v566, %v563
    %v4126 = vpack.c.bf16 %v572, %v569
    %v4127 = vpack.c.bf16 %v578, %v575
    %v4128 = vpack.c.bf16 %v584, %v581
    %v4129 = vpack.c.bf16 %v590, %v587
    %v4130 = vpack.c.bf16 %v596, %v593
    %v4131 = vpack.c.bf16 %v602, %v599
    %v4132 = vpack.c.bf16 %v608, %v605
    %v4133 = vpack.c.bf16 %v614, %v611
    %v4134 = vpack.c.bf16 %v620, %v617
    %v4135 = vpack.c.bf16 %v626, %v623
    %v4136 = vpack.c.bf16 %v632, %v629
    %v4137 = vpack.c.bf16 %v638, %v635
    %v4138 = vpack.c.bf16 %v644, %v641
    %v4139 = vpack.c.bf16 %v650, %v647
    %v4140 = vpack.c.bf16 %v656, %v653
    %v4141 = vpack.c.bf16 %v662, %v659
    %v4142 = vpack.c.bf16 %v668, %v665
    %v4143 = vpack.c.bf16 %v674, %v671
    %v4144 = vpack.c.bf16 %v680, %v677
    %v4145 = vpack.c.bf16 %v686, %v683
    %v4146 = vpack.c.bf16 %v692, %v689
    %v4147 = vpack.c.bf16 %v698, %v695
    %v4148 = vpack.c.bf16 %v704, %v701
    %v4149 = vpack.c.bf16 %v710, %v707
    %v4150 = vpack.c.bf16 %v716, %v713
    %v4151 = vpack.c.bf16 %v722, %v719
    %v4152 = vpack.c.bf16 %v728, %v725
    %v4153 = vpack.c.bf16 %v734, %v731
    %v4154 = vpack.c.bf16 %v740, %v737
    %v4155 = vpack.c.bf16 %v746, %v743
    %v4156 = vpack.c.bf16 %v752, %v749
    %v4157 = vpack.c.bf16 %v758, %v755
    %v4158 = vpack.c.bf16 %v764, %v761
    %v4159 = vpack.c.bf16 %v770, %v767
    %v4160 = vpack.c.bf16 %v776, %v773
    %v4161 = vpack.c.bf16 %v782, %v779
    %v4162 = vpack.c.bf16 %v788, %v785
    %v4163 = vpack.c.bf16 %v794, %v791
    %v4164 = vpack.c.bf16 %v800, %v797
    %v4165 = vpack.c.bf16 %v806, %v803
    %v4166 = vpack.c.bf16 %v812, %v809
    %v4167 = vpack.c.bf16 %v818, %v815
    %v4168 = vpack.c.bf16 %v824, %v821
    %v4169 = vpack.c.bf16 %v830, %v827
    %v4170 = vpack.c.bf16 %v836, %v833
    %v4171 = vpack.c.bf16 %v842, %v839
    %v4172 = vpack.c.bf16 %v848, %v845
    %v4173 = vpack.c.bf16 %v854, %v851
    %v4174 = vpack.c.bf16 %v860, %v857
    %v4175 = vpack.c.bf16 %v866, %v863
    %v4176 = vpack.c.bf16 %v872, %v869
    %v4177 = vpack.c.bf16 %v878, %v875
    %v4178 = vpack.c.bf16 %v884, %v881
    %v4179 = vpack.c.bf16 %v890, %v887
    %v4180 = vpack.c.bf16 %v896, %v893
    %v4181 = vpack.c.bf16 %v902, %v899
    %v4182 = vpack.c.bf16 %v908, %v905
    %v4183 = vpack.c.bf16 %v914, %v911
    %v4184 = vpack.c.bf16 %v920, %v917
    %v4185 = vpack.c.bf16 %v926, %v923
    %v4186 = vpack.c.bf16 %v932, %v929
    %v4187 = vpack.c.bf16 %v938, %v935
    %v4188 = vpack.c.bf16 %v944, %v941
    %v4189 = vpack.c.bf16 %v950, %v947
    %v4190 = vpack.c.bf16 %v956, %v953
    %v4191 = vpack.c.bf16 %v962, %v959
    %v4192 = vpack.c.bf16 %v968, %v965
    %v4193 = vpack.c.bf16 %v974, %v971
    %v4194 = vpack.c.bf16 %v980, %v977
    %v4195 = vpack.c.bf16 %v986, %v983
    %v4196 = vpack.c.bf16 %v992, %v989
    %v4197 = vpack.c.bf16 %v998, %v995
    %v4198 = vpack.c.bf16 %v1004, %v1001
    %v4199 = vpack.c.bf16 %v1010, %v1007
    %v4200 = vpack.c.bf16 %v1016, %v1013
    %v4201 = vpack.c.bf16 %v1022, %v1019
    %v4202 = vpack.c.bf16 %v1028, %v1025
    %v4203 = vpack.c.bf16 %v1034, %v1031
    %v4204 = vpack.c.bf16 %v1040, %v1037
    %v4205 = vpack.c.bf16 %v1046, %v1043
    %v4206 = vpack.c.bf16 %v1052, %v1049
    %v4207 = vpack.c.bf16 %v1058, %v1055
    %v4208 = vpack.c.bf16 %v1064, %v1061
    %v4209 = vpack.c.bf16 %v1070, %v1067
    %v4210 = vpack.c.bf16 %v1076, %v1073
    %v4211 = vpack.c.bf16 %v1082, %v1079
    %v4212 = vpack.c.bf16 %v1088, %v1085
    %v4213 = vpack.c.bf16 %v1094, %v1091
    %v4214 = vpack.c.bf16 %v1100, %v1097
    %v4215 = vpack.c.bf16 %v1106, %v1103
    %v4216 = vpack.c.bf16 %v1112, %v1109
    %v4217 = vpack.c.bf16 %v1118, %v1115
    %v4218 = vpack.c.bf16 %v1124, %v1121
    %v4219 = vpack.c.bf16 %v1130, %v1127
    %v4220 = vpack.c.bf16 %v1136, %v1133
    %v4221 = vpack.c.bf16 %v1142, %v1139
    %v4222 = vpack.c.bf16 %v1148, %v1145
    %v4223 = vpack.c.bf16 %v1154, %v1151
    %v4224 = vpack.c.bf16 %v1160, %v1157
    %v4225 = vpack.c.bf16 %v1166, %v1163
    %v4226 = vpack.c.bf16 %v1172, %v1169
    %v4227 = vpack.c.bf16 %v1178, %v1175
    %v4228 = vpack.c.bf16 %v1184, %v1181
    %v4229 = vpack.c.bf16 %v1190, %v1187
    %v4230 = vpack.c.bf16 %v1196, %v1193
    %v4231 = vpack.c.bf16 %v1202, %v1199
    %v4232 = vpack.c.bf16 %v1208, %v1205
    %v4233 = vpack.c.bf16 %v1214, %v1211
    %v4234 = vpack.c.bf16 %v1220, %v1217
    %v4235 = vpack.c.bf16 %v1226, %v1223
    %v4236 = vpack.c.bf16 %v1232, %v1229
    %v4237 = vpack.c.bf16 %v1238, %v1235
    %v4238 = vpack.c.bf16 %v1244, %v1241
    %v4239 = vpack.c.bf16 %v1250, %v1247
    %v4240 = vpack.c.bf16 %v1256, %v1253
    %v4241 = vpack.c.bf16 %v1262, %v1259
    %v4242 = vpack.c.bf16 %v1268, %v1265
    %v4243 = vpack.c.bf16 %v1274, %v1271
    %v4244 = vpack.c.bf16 %v1280, %v1277
    %v4245 = vpack.c.bf16 %v1286, %v1283
    %v4246 = vpack.c.bf16 %v1292, %v1289
    %v4247 = vpack.c.bf16 %v1298, %v1295
    %v4248 = vpack.c.bf16 %v1304, %v1301
    %v4249 = vpack.c.bf16 %v1310, %v1307
    %v4250 = vpack.c.bf16 %v1316, %v1313
    %v4251 = vpack.c.bf16 %v1322, %v1319
    %v4252 = vpack.c.bf16 %v1328, %v1325
    %v4253 = vpack.c.bf16 %v1334, %v1331
    %v4254 = vpack.c.bf16 %v1340, %v1337
    %v4255 = vpack.c.bf16 %v1346, %v1343
    %v4256 = vpack.c.bf16 %v1352, %v1349
    %v4257 = vpack.c.bf16 %v1358, %v1355
    %v4258 = vpack.c.bf16 %v1364, %v1361
    %v4259 = vpack.c.bf16 %v1370, %v1367
    %v4260 = vpack.c.bf16 %v1376, %v1373
    %v4261 = vpack.c.bf16 %v1382, %v1379
    %v4262 = vpack.c.bf16 %v1388, %v1385
    %v4263 = vpack.c.bf16 %v1394, %v1391
    %v4264 = vpack.c.bf16 %v1400, %v1397
    %v4265 = vpack.c.bf16 %v1406, %v1403
    %v4266 = vpack.c.bf16 %v1412, %v1409
    %v4267 = vpack.c.bf16 %v1418, %v1415
    %v4268 = vpack.c.bf16 %v1424, %v1421
    %v4269 = vpack.c.bf16 %v1430, %v1427
    %v4270 = vpack.c.bf16 %v1436, %v1433
    %v4271 = vpack.c.bf16 %v1442, %v1439
    %v4272 = vpack.c.bf16 %v1448, %v1445
    %v4273 = vpack.c.bf16 %v1454, %v1451
    %v4274 = vpack.c.bf16 %v1460, %v1457
    %v4275 = vpack.c.bf16 %v1466, %v1463
    %v4276 = vpack.c.bf16 %v1472, %v1469
    %v4277 = vpack.c.bf16 %v1478, %v1475
    %v4278 = vpack.c.bf16 %v1484, %v1481
    %v4279 = vpack.c.bf16 %v1490, %v1487
    %v4280 = vpack.c.bf16 %v1496, %v1493
    %v4281 = vpack.c.bf16 %v1502, %v1499
    %v4282 = vpack.c.bf16 %v1508, %v1505
    %v4283 = vpack.c.bf16 %v1514, %v1511
    %v4284 = vpack.c.bf16 %v1520, %v1517
    %v4285 = vpack.c.bf16 %v1526, %v1523
    %v4286 = vpack.c.bf16 %v1532, %v1529
    %v4287 = vpack.c.bf16 %v1538, %v1535
    %v4288 = vpack.c.bf16 %v1544, %v1541
    %v4289 = vpack.c.bf16 %v1550, %v1547
    %v4290 = vpack.c.bf16 %v1556, %v1553
    %v4291 = vpack.c.bf16 %v1562, %v1559
    %v4292 = vpack.c.bf16 %v1568, %v1565
    %v4293 = vpack.c.bf16 %v1574, %v1571
    %v4294 = vpack.c.bf16 %v1580, %v1577
    %v4295 = vpack.c.bf16 %v1586, %v1583
    %v4296 = vpack.c.bf16 %v1592, %v1589
    %v4297 = vpack.c.bf16 %v1598, %v1595
    %v4298 = vpack.c.bf16 %v1604, %v1601
    %v4299 = vpack.c.bf16 %v1610, %v1607
    %v4300 = vpack.c.bf16 %v1616, %v1613
    %v4301 = vpack.c.bf16 %v1622, %v1619
    %v4302 = vpack.c.bf16 %v1628, %v1625
    %v4303 = vpack.c.bf16 %v1634, %v1631
    %v4304 = vpack.c.bf16 %v1640, %v1637
    %v4305 = vpack.c.bf16 %v1646, %v1643
    %v4306 = vpack.c.bf16 %v1652, %v1649
    %v4307 = vpack.c.bf16 %v1658, %v1655
    %v4308 = vpack.c.bf16 %v1664, %v1661
    %v4309 = vpack.c.bf16 %v1670, %v1667
    %v4310 = vpack.c.bf16 %v1676, %v1673
    %v4311 = vpack.c.bf16 %v1682, %v1679
    %v4312 = vpack.c.bf16 %v1688, %v1685
    %v4313 = vpack.c.bf16 %v1694, %v1691
    %v4314 = vpack.c.bf16 %v1700, %v1697
    %v4315 = vpack.c.bf16 %v1706, %v1703
    %v4316 = vpack.c.bf16 %v1712, %v1709
    %v4317 = vpack.c.bf16 %v1718, %v1715
    %v4318 = vpack.c.bf16 %v1724, %v1721
    %v4319 = vpack.c.bf16 %v1730, %v1727
    %v4320 = vpack.c.bf16 %v1736, %v1733
    %v4321 = vpack.c.bf16 %v1742, %v1739
    %v4322 = vpack.c.bf16 %v1748, %v1745
    %v4323 = vpack.c.bf16 %v1754, %v1751
    %v4324 = vpack.c.bf16 %v1760, %v1757
    %v4325 = vpack.c.bf16 %v1766, %v1763
    %v4326 = vpack.c.bf16 %v1772, %v1769
    %v4327 = vpack.c.bf16 %v1778, %v1775
    %v4328 = vpack.c.bf16 %v1784, %v1781
    %v4329 = vpack.c.bf16 %v1790, %v1787
    %v4330 = vpack.c.bf16 %v1796, %v1793
    %v4331 = vpack.c.bf16 %v1802, %v1799
    %v4332 = vpack.c.bf16 %v1808, %v1805
    %v4333 = vpack.c.bf16 %v1814, %v1811
    %v4334 = vpack.c.bf16 %v1820, %v1817
    %v4335 = vpack.c.bf16 %v1826, %v1823
    %v4336 = vpack.c.bf16 %v1832, %v1829
    %v4337 = vpack.c.bf16 %v1838, %v1835
    %v4338 = vpack.c.bf16 %v1844, %v1841
    %v4339 = vpack.c.bf16 %v1850, %v1847
    %v4340 = vpack.c.bf16 %v1856, %v1853
    %v4341 = vpack.c.bf16 %v1862, %v1859
    %v4342 = vpack.c.bf16 %v1868, %v1865
    %v4343 = vpack.c.bf16 %v1874, %v1871
    %v4344 = vpack.c.bf16 %v1880, %v1877
    %v4345 = vpack.c.bf16 %v1886, %v1883
    %v4346 = vpack.c.bf16 %v1892, %v1889
    %v4347 = vpack.c.bf16 %v1898, %v1895
    %v4348 = vpack.c.bf16 %v1904, %v1901
    %v4349 = vpack.c.bf16 %v1910, %v1907
    %v4350 = vpack.c.bf16 %v1916, %v1913
    %v4351 = vpack.c.bf16 %v1922, %v1919
    %v4352 = vpack.c.bf16 %v1928, %v1925
    %v4353 = vpack.c.bf16 %v1934, %v1931
    %v4354 = vpack.c.bf16 %v1940, %v1937
    %v4355 = vpack.c.bf16 %v1946, %v1943
    %v4356 = vpack.c.bf16 %v1952, %v1949
    %v4357 = vpack.c.bf16 %v1958, %v1955
    %v4358 = vpack.c.bf16 %v1964, %v1961
    %v4359 = vpack.c.bf16 %v1970, %v1967
    %v4360 = vpack.c.bf16 %v1976, %v1973
    %v4361 = vpack.c.bf16 %v1982, %v1979
    %v4362 = vpack.c.bf16 %v1988, %v1985
    %v4363 = vpack.c.bf16 %v1994, %v1991
    %v4364 = vpack.c.bf16 %v2000, %v1997
    %v4365 = vpack.c.bf16 %v2006, %v2003
    %v4366 = vpack.c.bf16 %v2012, %v2009
    %v4367 = vpack.c.bf16 %v2018, %v2015
    %v4368 = vpack.c.bf16 %v2024, %v2021
    %v4369 = vpack.c.bf16 %v2030, %v2027
    %v4370 = vpack.c.bf16 %v2036, %v2033
    %v4371 = vpack.c.bf16 %v2042, %v2039
    %v4372 = vpack.c.bf16 %v2048, %v2045
    %v4373 = vpack.c.bf16 %v2054, %v2051
    %v4374 = vpack.c.bf16 %v2060, %v2057
    %v4375 = vpack.c.bf16 %v2066, %v2063
    %v4376 = vpack.c.bf16 %v2072, %v2069
    %v4377 = vld [vmem:[%s1] sm:$0xff]
    %v4378 = vld [vmem:[%s1 + $0x8] sm:$0xff]
    %v4379 = vld [vmem:[%s1 + $0x10] sm:$0xff]
    %v4380 = vld [vmem:[%s1 + $0x18] sm:$0xff]
    %v4381 = vld [vmem:[%s1 + $0x20] sm:$0xff]
    %v4382 = vld [vmem:[%s1 + $0x28] sm:$0xff]
    %v4383 = vld [vmem:[%s1 + $0x30] sm:$0xff]
    %v4384 = vld [vmem:[%s1 + $0x38] sm:$0xff]
    %v4385 = vld [vmem:[%s1 + $0x40] sm:$0xff]
    %v4386 = vld [vmem:[%s1 + $0x48] sm:$0xff]
    %v4387 = vld [vmem:[%s1 + $0x50] sm:$0xff]
    %v4388 = vld [vmem:[%s1 + $0x58] sm:$0xff]
    %v4389 = vld [vmem:[%s1 + $0x60] sm:$0xff]
    %v4390 = vld [vmem:[%s1 + $0x68] sm:$0xff]
    %v4391 = vld [vmem:[%s1 + $0x70] sm:$0xff]
    %v4392 = vld [vmem:[%s1 + $0x78] sm:$0xff]
    %v4393 = vld [vmem:[%s1 + $0x80] sm:$0xff]
    %v4394 = vld [vmem:[%s1 + $0x88] sm:$0xff]
    %v4395 = vld [vmem:[%s1 + $0x90] sm:$0xff]
    %v4396 = vld [vmem:[%s1 + $0x98] sm:$0xff]
    %v4397 = vld [vmem:[%s1 + $0xa0] sm:$0xff]
    %v4398 = vld [vmem:[%s1 + $0xa8] sm:$0xff]
    %v4399 = vld [vmem:[%s1 + $0xb0] sm:$0xff]
    %v4400 = vld [vmem:[%s1 + $0xb8] sm:$0xff]
    %v4401 = vld [vmem:[%s1 + $0xc0] sm:$0xff]
    %v4402 = vld [vmem:[%s1 + $0xc8] sm:$0xff]
    %v4403 = vld [vmem:[%s1 + $0xd0] sm:$0xff]
    %v4404 = vld [vmem:[%s1 + $0xd8] sm:$0xff]
    %v4405 = vld [vmem:[%s1 + $0xe0] sm:$0xff]
    %v4406 = vld [vmem:[%s1 + $0xe8] sm:$0xff]
    %v4407 = vld [vmem:[%s1 + $0xf0] sm:$0xff]
    %v4408 = vld [vmem:[%s1 + $0xf8] sm:$0xff]
    %v4409 = vld [vmem:[%s1 + $0x100] sm:$0xff]
    %v4410 = vld [vmem:[%s1 + $0x108] sm:$0xff]
    %v4411 = vld [vmem:[%s1 + $0x110] sm:$0xff]
    %v4412 = vld [vmem:[%s1 + $0x118] sm:$0xff]
    %v4413 = vld [vmem:[%s1 + $0x120] sm:$0xff]
    %v4414 = vld [vmem:[%s1 + $0x128] sm:$0xff]
    %v4415 = vld [vmem:[%s1 + $0x130] sm:$0xff]
    %v4416 = vld [vmem:[%s1 + $0x138] sm:$0xff]
    %v4417 = vld [vmem:[%s1 + $0x140] sm:$0xff]
    %v4418 = vld [vmem:[%s1 + $0x148] sm:$0xff]
    %v4419 = vld [vmem:[%s1 + $0x150] sm:$0xff]
    %v4420 = vld [vmem:[%s1 + $0x158] sm:$0xff]
    %v4421 = vld [vmem:[%s1 + $0x160] sm:$0xff]
    %v4422 = vld [vmem:[%s1 + $0x168] sm:$0xff]
    %v4423 = vld [vmem:[%s1 + $0x170] sm:$0xff]
    %v4424 = vld [vmem:[%s1 + $0x178] sm:$0xff]
    %v4425 = vld [vmem:[%s1 + $0x180] sm:$0xff]
    %v4426 = vld [vmem:[%s1 + $0x188] sm:$0xff]
    %v4427 = vld [vmem:[%s1 + $0x190] sm:$0xff]
    %v4428 = vld [vmem:[%s1 + $0x198] sm:$0xff]
    %v4429 = vld [vmem:[%s1 + $0x1a0] sm:$0xff]
    %v4430 = vld [vmem:[%s1 + $0x1a8] sm:$0xff]
    %v4431 = vld [vmem:[%s1 + $0x1b0] sm:$0xff]
    %v4432 = vld [vmem:[%s1 + $0x1b8] sm:$0xff]
    %v4433 = vld [vmem:[%s1 + $0x1c0] sm:$0xff]
    %v4434 = vld [vmem:[%s1 + $0x1c8] sm:$0xff]
    %v4435 = vld [vmem:[%s1 + $0x1d0] sm:$0xff]
    %v4436 = vld [vmem:[%s1 + $0x1d8] sm:$0xff]
    %v4437 = vld [vmem:[%s1 + $0x1e0] sm:$0xff]
    %v4438 = vld [vmem:[%s1 + $0x1e8] sm:$0xff]
    %v4439 = vld [vmem:[%s1 + $0x1f0] sm:$0xff]
    %v4440 = vld [vmem:[%s1 + $0x1f8] sm:$0xff]
    %v4441 = vld [vmem:[%s1 + $0x200] sm:$0xff]
    %v4442 = vld [vmem:[%s1 + $0x208] sm:$0xff]
    %v4443 = vld [vmem:[%s1 + $0x210] sm:$0xff]
    %v4444 = vld [vmem:[%s1 + $0x218] sm:$0xff]
    %v4445 = vld [vmem:[%s1 + $0x220] sm:$0xff]
    %v4446 = vld [vmem:[%s1 + $0x228] sm:$0xff]
    %v4447 = vld [vmem:[%s1 + $0x230] sm:$0xff]
    %v4448 = vld [vmem:[%s1 + $0x238] sm:$0xff]
    %v4449 = vld [vmem:[%s1 + $0x240] sm:$0xff]
    %v4450 = vld [vmem:[%s1 + $0x248] sm:$0xff]
    %v4451 = vld [vmem:[%s1 + $0x250] sm:$0xff]
    %v4452 = vld [vmem:[%s1 + $0x258] sm:$0xff]
    %v4453 = vld [vmem:[%s1 + $0x260] sm:$0xff]
    %v4454 = vld [vmem:[%s1 + $0x268] sm:$0xff]
    %v4455 = vld [vmem:[%s1 + $0x270] sm:$0xff]
    %v4456 = vld [vmem:[%s1 + $0x278] sm:$0xff]
    %v4457 = vld [vmem:[%s1 + $0x280] sm:$0xff]
    %v4458 = vld [vmem:[%s1 + $0x288] sm:$0xff]
    %v4459 = vld [vmem:[%s1 + $0x290] sm:$0xff]
    %v4460 = vld [vmem:[%s1 + $0x298] sm:$0xff]
    %v4461 = vld [vmem:[%s1 + $0x2a0] sm:$0xff]
    %v4462 = vld [vmem:[%s1 + $0x2a8] sm:$0xff]
    %v4463 = vld [vmem:[%s1 + $0x2b0] sm:$0xff]
    %v4464 = vld [vmem:[%s1 + $0x2b8] sm:$0xff]
    %v4465 = vld [vmem:[%s1 + $0x2c0] sm:$0xff]
    %v4466 = vld [vmem:[%s1 + $0x2c8] sm:$0xff]
    %v4467 = vld [vmem:[%s1 + $0x2d0] sm:$0xff]
    %v4468 = vld [vmem:[%s1 + $0x2d8] sm:$0xff]
    %v4469 = vld [vmem:[%s1 + $0x2e0] sm:$0xff]
    %v4470 = vld [vmem:[%s1 + $0x2e8] sm:$0xff]
    %v4471 = vld [vmem:[%s1 + $0x2f0] sm:$0xff]
    %v4472 = vld [vmem:[%s1 + $0x2f8] sm:$0xff]
    %v4473 = vld [vmem:[%s1 + $0x300] sm:$0xff]
    %v4474 = vld [vmem:[%s1 + $0x308] sm:$0xff]
    %v4475 = vld [vmem:[%s1 + $0x310] sm:$0xff]
    %v4476 = vld [vmem:[%s1 + $0x318] sm:$0xff]
    %v4477 = vld [vmem:[%s1 + $0x320] sm:$0xff]
    %v4478 = vld [vmem:[%s1 + $0x328] sm:$0xff]
    %v4479 = vld [vmem:[%s1 + $0x330] sm:$0xff]
    %v4480 = vld [vmem:[%s1 + $0x338] sm:$0xff]
    %v4481 = vld [vmem:[%s1 + $0x340] sm:$0xff]
    %v4482 = vld [vmem:[%s1 + $0x348] sm:$0xff]
    %v4483 = vld [vmem:[%s1 + $0x350] sm:$0xff]
    %v4484 = vld [vmem:[%s1 + $0x358] sm:$0xff]
    %v4485 = vld [vmem:[%s1 + $0x360] sm:$0xff]
    %v4486 = vld [vmem:[%s1 + $0x368] sm:$0xff]
    %v4487 = vld [vmem:[%s1 + $0x370] sm:$0xff]
    %v4488 = vld [vmem:[%s1 + $0x378] sm:$0xff]
    %v4489 = vld [vmem:[%s1 + $0x380] sm:$0xff]
    %v4490 = vld [vmem:[%s1 + $0x388] sm:$0xff]
    %v4491 = vld [vmem:[%s1 + $0x390] sm:$0xff]
    %v4492 = vld [vmem:[%s1 + $0x398] sm:$0xff]
    %v4493 = vld [vmem:[%s1 + $0x3a0] sm:$0xff]
    %v4494 = vld [vmem:[%s1 + $0x3a8] sm:$0xff]
    %v4495 = vld [vmem:[%s1 + $0x3b0] sm:$0xff]
    %v4496 = vld [vmem:[%s1 + $0x3b8] sm:$0xff]
    %v4497 = vld [vmem:[%s1 + $0x3c0] sm:$0xff]
    %v4498 = vld [vmem:[%s1 + $0x3c8] sm:$0xff]
    %v4499 = vld [vmem:[%s1 + $0x3d0] sm:$0xff]
    %v4500 = vld [vmem:[%s1 + $0x3d8] sm:$0xff]
    %v4501 = vld [vmem:[%s1 + $0x3e0] sm:$0xff]
    %v4502 = vld [vmem:[%s1 + $0x3e8] sm:$0xff]
    %v4503 = vld [vmem:[%s1 + $0x3f0] sm:$0xff]
    %v4504 = vld [vmem:[%s1 + $0x3f8] sm:$0xff]
    %v4505 = vpack.c.bf16 %v3610, %v3609
    %v4506 = vpack.c.bf16 %v3612, %v3611
    %v4507 = vpack.c.bf16 %v3614, %v3613
    %v4508 = vpack.c.bf16 %v3616, %v3615
    %v4509 = vpack.c.bf16 %v3618, %v3617
    %v4510 = vpack.c.bf16 %v3620, %v3619
    %v4511 = vpack.c.bf16 %v3622, %v3621
    %v4512 = vpack.c.bf16 %v3624, %v3623
    %v4513 = vpack.c.bf16 %v3626, %v3625
    %v4514 = vpack.c.bf16 %v3628, %v3627
    %v4515 = vpack.c.bf16 %v3630, %v3629
    %v4516 = vpack.c.bf16 %v3632, %v3631
    %v4517 = vpack.c.bf16 %v3634, %v3633
    %v4518 = vpack.c.bf16 %v3636, %v3635
    %v4519 = vpack.c.bf16 %v3638, %v3637
    %v4520 = vpack.c.bf16 %v3640, %v3639
    %v4521 = vpack.c.bf16 %v3642, %v3641
    %v4522 = vpack.c.bf16 %v3644, %v3643
    %v4523 = vpack.c.bf16 %v3646, %v3645
    %v4524 = vpack.c.bf16 %v3648, %v3647
    %v4525 = vpack.c.bf16 %v3650, %v3649
    %v4526 = vpack.c.bf16 %v3652, %v3651
    %v4527 = vpack.c.bf16 %v3654, %v3653
    %v4528 = vpack.c.bf16 %v3656, %v3655
    %v4529 = vpack.c.bf16 %v3658, %v3657
    %v4530 = vpack.c.bf16 %v3660, %v3659
    %v4531 = vpack.c.bf16 %v3662, %v3661
    %v4532 = vpack.c.bf16 %v3664, %v3663
    %v4533 = vpack.c.bf16 %v3666, %v3665
    %v4534 = vpack.c.bf16 %v3668, %v3667
    %v4535 = vpack.c.bf16 %v3670, %v3669
    %v4536 = vpack.c.bf16 %v3672, %v3671
    %v4537 = vpack.c.bf16 %v3674, %v3673
    %v4538 = vpack.c.bf16 %v3676, %v3675
    %v4539 = vpack.c.bf16 %v3678, %v3677
    %v4540 = vpack.c.bf16 %v3680, %v3679
    %v4541 = vpack.c.bf16 %v3682, %v3681
    %v4542 = vpack.c.bf16 %v3684, %v3683
    %v4543 = vpack.c.bf16 %v3686, %v3685
    %v4544 = vpack.c.bf16 %v3688, %v3687
    %v4545 = vpack.c.bf16 %v3690, %v3689
    %v4546 = vpack.c.bf16 %v3692, %v3691
    %v4547 = vpack.c.bf16 %v3694, %v3693
    %v4548 = vpack.c.bf16 %v3696, %v3695
    %v4549 = vpack.c.bf16 %v3698, %v3697
    %v4550 = vpack.c.bf16 %v3700, %v3699
    %v4551 = vpack.c.bf16 %v3702, %v3701
    %v4552 = vpack.c.bf16 %v3704, %v3703
    %v4553 = vpack.c.bf16 %v3706, %v3705
    %v4554 = vpack.c.bf16 %v3708, %v3707
    %v4555 = vpack.c.bf16 %v3710, %v3709
    %v4556 = vpack.c.bf16 %v3712, %v3711
    %v4557 = vpack.c.bf16 %v3714, %v3713
    %v4558 = vpack.c.bf16 %v3716, %v3715
    %v4559 = vpack.c.bf16 %v3718, %v3717
    %v4560 = vpack.c.bf16 %v3720, %v3719
    %v4561 = vpack.c.bf16 %v3722, %v3721
    %v4562 = vpack.c.bf16 %v3724, %v3723
    %v4563 = vpack.c.bf16 %v3726, %v3725
    %v4564 = vpack.c.bf16 %v3728, %v3727
    %v4565 = vpack.c.bf16 %v3730, %v3729
    %v4566 = vpack.c.bf16 %v3732, %v3731
    %v4567 = vpack.c.bf16 %v3734, %v3733
    %v4568 = vpack.c.bf16 %v3736, %v3735
    %v4569 = vpack.c.bf16 %v3738, %v3737
    %v4570 = vpack.c.bf16 %v3740, %v3739
    %v4571 = vpack.c.bf16 %v3742, %v3741
    %v4572 = vpack.c.bf16 %v3744, %v3743
    %v4573 = vpack.c.bf16 %v3746, %v3745
    %v4574 = vpack.c.bf16 %v3748, %v3747
    %v4575 = vpack.c.bf16 %v3750, %v3749
    %v4576 = vpack.c.bf16 %v3752, %v3751
    %v4577 = vpack.c.bf16 %v3754, %v3753
    %v4578 = vpack.c.bf16 %v3756, %v3755
    %v4579 = vpack.c.bf16 %v3758, %v3757
    %v4580 = vpack.c.bf16 %v3760, %v3759
    %v4581 = vpack.c.bf16 %v3762, %v3761
    %v4582 = vpack.c.bf16 %v3764, %v3763
    %v4583 = vpack.c.bf16 %v3766, %v3765
    %v4584 = vpack.c.bf16 %v3768, %v3767
    %v4585 = vpack.c.bf16 %v3770, %v3769
    %v4586 = vpack.c.bf16 %v3772, %v3771
    %v4587 = vpack.c.bf16 %v3774, %v3773
    %v4588 = vpack.c.bf16 %v3776, %v3775
    %v4589 = vpack.c.bf16 %v3778, %v3777
    %v4590 = vpack.c.bf16 %v3780, %v3779
    %v4591 = vpack.c.bf16 %v3782, %v3781
    %v4592 = vpack.c.bf16 %v3784, %v3783
    %v4593 = vpack.c.bf16 %v3786, %v3785
    %v4594 = vpack.c.bf16 %v3788, %v3787
    %v4595 = vpack.c.bf16 %v3790, %v3789
    %v4596 = vpack.c.bf16 %v3792, %v3791
    %v4597 = vpack.c.bf16 %v3794, %v3793
    %v4598 = vpack.c.bf16 %v3796, %v3795
    %v4599 = vpack.c.bf16 %v3798, %v3797
    %v4600 = vpack.c.bf16 %v3800, %v3799
    %v4601 = vpack.c.bf16 %v3802, %v3801
    %v4602 = vpack.c.bf16 %v3804, %v3803
    %v4603 = vpack.c.bf16 %v3806, %v3805
    %v4604 = vpack.c.bf16 %v3808, %v3807
    %v4605 = vpack.c.bf16 %v3810, %v3809
    %v4606 = vpack.c.bf16 %v3812, %v3811
    %v4607 = vpack.c.bf16 %v3814, %v3813
    %v4608 = vpack.c.bf16 %v3816, %v3815
    %v4609 = vpack.c.bf16 %v3818, %v3817
    %v4610 = vpack.c.bf16 %v3820, %v3819
    %v4611 = vpack.c.bf16 %v3822, %v3821
    %v4612 = vpack.c.bf16 %v3824, %v3823
    %v4613 = vpack.c.bf16 %v3826, %v3825
    %v4614 = vpack.c.bf16 %v3828, %v3827
    %v4615 = vpack.c.bf16 %v3830, %v3829
    %v4616 = vpack.c.bf16 %v3832, %v3831
    %v4617 = vpack.c.bf16 %v3834, %v3833
    %v4618 = vpack.c.bf16 %v3836, %v3835
    %v4619 = vpack.c.bf16 %v3838, %v3837
    %v4620 = vpack.c.bf16 %v3840, %v3839
    %v4621 = vpack.c.bf16 %v3842, %v3841
    %v4622 = vpack.c.bf16 %v3844, %v3843
    %v4623 = vpack.c.bf16 %v3846, %v3845
    %v4624 = vpack.c.bf16 %v3848, %v3847
    %v4625 = vpack.c.bf16 %v3850, %v3849
    %v4626 = vpack.c.bf16 %v3852, %v3851
    %v4627 = vpack.c.bf16 %v3854, %v3853
    %v4628 = vpack.c.bf16 %v3856, %v3855
    %v4629 = vpack.c.bf16 %v3858, %v3857
    %v4630 = vpack.c.bf16 %v3860, %v3859
    %v4631 = vpack.c.bf16 %v3862, %v3861
    %v4632 = vpack.c.bf16 %v3864, %v3863
    %v4633 = vpack.c.bf16 %v3866, %v3865
    %v4634 = vpack.c.bf16 %v3868, %v3867
    %v4635 = vpack.c.bf16 %v3870, %v3869
    %v4636 = vpack.c.bf16 %v3872, %v3871
    %v4637 = vpack.c.bf16 %v3874, %v3873
    %v4638 = vpack.c.bf16 %v3876, %v3875
    %v4639 = vpack.c.bf16 %v3878, %v3877
    %v4640 = vpack.c.bf16 %v3880, %v3879
    %v4641 = vpack.c.bf16 %v3882, %v3881
    %v4642 = vpack.c.bf16 %v3884, %v3883
    %v4643 = vpack.c.bf16 %v3886, %v3885
    %v4644 = vpack.c.bf16 %v3888, %v3887
    %v4645 = vpack.c.bf16 %v3890, %v3889
    %v4646 = vpack.c.bf16 %v3892, %v3891
    %v4647 = vpack.c.bf16 %v3894, %v3893
    %v4648 = vpack.c.bf16 %v3896, %v3895
    %v4649 = vpack.c.bf16 %v3898, %v3897
    %v4650 = vpack.c.bf16 %v3900, %v3899
    %v4651 = vpack.c.bf16 %v3902, %v3901
    %v4652 = vpack.c.bf16 %v3904, %v3903
    %v4653 = vpack.c.bf16 %v3906, %v3905
    %v4654 = vpack.c.bf16 %v3908, %v3907
    %v4655 = vpack.c.bf16 %v3910, %v3909
    %v4656 = vpack.c.bf16 %v3912, %v3911
    %v4657 = vpack.c.bf16 %v3914, %v3913
    %v4658 = vpack.c.bf16 %v3916, %v3915
    %v4659 = vpack.c.bf16 %v3918, %v3917
    %v4660 = vpack.c.bf16 %v3920, %v3919
    %v4661 = vpack.c.bf16 %v3922, %v3921
    %v4662 = vpack.c.bf16 %v3924, %v3923
    %v4663 = vpack.c.bf16 %v3926, %v3925
    %v4664 = vpack.c.bf16 %v3928, %v3927
    %v4665 = vpack.c.bf16 %v3930, %v3929
    %v4666 = vpack.c.bf16 %v3932, %v3931
    %v4667 = vpack.c.bf16 %v3934, %v3933
    %v4668 = vpack.c.bf16 %v3936, %v3935
    %v4669 = vpack.c.bf16 %v3938, %v3937
    %v4670 = vpack.c.bf16 %v3940, %v3939
    %v4671 = vpack.c.bf16 %v3942, %v3941
    %v4672 = vpack.c.bf16 %v3944, %v3943
    %v4673 = vpack.c.bf16 %v3946, %v3945
    %v4674 = vpack.c.bf16 %v3948, %v3947
    %v4675 = vpack.c.bf16 %v3950, %v3949
    %v4676 = vpack.c.bf16 %v3952, %v3951
    %v4677 = vpack.c.bf16 %v3954, %v3953
    %v4678 = vpack.c.bf16 %v3956, %v3955
    %v4679 = vpack.c.bf16 %v3958, %v3957
    %v4680 = vpack.c.bf16 %v3960, %v3959
    %v4681 = vpack.c.bf16 %v3962, %v3961
    %v4682 = vpack.c.bf16 %v3964, %v3963
    %v4683 = vpack.c.bf16 %v3966, %v3965
    %v4684 = vpack.c.bf16 %v3968, %v3967
    %v4685 = vpack.c.bf16 %v3970, %v3969
    %v4686 = vpack.c.bf16 %v3972, %v3971
    %v4687 = vpack.c.bf16 %v3974, %v3973
    %v4688 = vpack.c.bf16 %v3976, %v3975
    %v4689 = vpack.c.bf16 %v3978, %v3977
    %v4690 = vpack.c.bf16 %v3980, %v3979
    %v4691 = vpack.c.bf16 %v3982, %v3981
    %v4692 = vpack.c.bf16 %v3984, %v3983
    %v4693 = vpack.c.bf16 %v3986, %v3985
    %v4694 = vpack.c.bf16 %v3988, %v3987
    %v4695 = vpack.c.bf16 %v3990, %v3989
    %v4696 = vpack.c.bf16 %v3992, %v3991
    %v4697 = vpack.c.bf16 %v3994, %v3993
    %v4698 = vpack.c.bf16 %v3996, %v3995
    %v4699 = vpack.c.bf16 %v3998, %v3997
    %v4700 = vpack.c.bf16 %v4000, %v3999
    %v4701 = vpack.c.bf16 %v4002, %v4001
    %v4702 = vpack.c.bf16 %v4004, %v4003
    %v4703 = vpack.c.bf16 %v4006, %v4005
    %v4704 = vpack.c.bf16 %v4008, %v4007
    %v4705 = vpack.c.bf16 %v4010, %v4009
    %v4706 = vpack.c.bf16 %v4012, %v4011
    %v4707 = vpack.c.bf16 %v4014, %v4013
    %v4708 = vpack.c.bf16 %v4016, %v4015
    %v4709 = vpack.c.bf16 %v4018, %v4017
    %v4710 = vpack.c.bf16 %v4020, %v4019
    %v4711 = vpack.c.bf16 %v4022, %v4021
    %v4712 = vpack.c.bf16 %v4024, %v4023
    %v4713 = vpack.c.bf16 %v4026, %v4025
    %v4714 = vpack.c.bf16 %v4028, %v4027
    %v4715 = vpack.c.bf16 %v4030, %v4029
    %v4716 = vpack.c.bf16 %v4032, %v4031
    %v4717 = vpack.c.bf16 %v4034, %v4033
    %v4718 = vpack.c.bf16 %v4036, %v4035
    %v4719 = vpack.c.bf16 %v4038, %v4037
    %v4720 = vpack.c.bf16 %v4040, %v4039
    %v4721 = vpack.c.bf16 %v4042, %v4041
    %v4722 = vpack.c.bf16 %v4044, %v4043
    %v4723 = vpack.c.bf16 %v4046, %v4045
    %v4724 = vpack.c.bf16 %v4048, %v4047
    %v4725 = vpack.c.bf16 %v4050, %v4049
    %v4726 = vpack.c.bf16 %v4052, %v4051
    %v4727 = vpack.c.bf16 %v4054, %v4053
    %v4728 = vpack.c.bf16 %v4056, %v4055
    %v4729 = vpack.c.bf16 %v4058, %v4057
    %v4730 = vpack.c.bf16 %v4060, %v4059
    %v4731 = vpack.c.bf16 %v4062, %v4061
    %v4732 = vpack.c.bf16 %v4064, %v4063
    %v4733 = vpack.c.bf16 %v4066, %v4065
    %v4734 = vpack.c.bf16 %v4068, %v4067
    %v4735 = vpack.c.bf16 %v4070, %v4069
    %v4736 = vpack.c.bf16 %v4072, %v4071
    %v4737 = vpack.c.bf16 %v4074, %v4073
    %v4738 = vpack.c.bf16 %v4076, %v4075
    %v4739 = vpack.c.bf16 %v4078, %v4077
    %v4740 = vpack.c.bf16 %v4080, %v4079
    %v4741 = vpack.c.bf16 %v4082, %v4081
    %v4742 = vpack.c.bf16 %v4084, %v4083
    %v4743 = vpack.c.bf16 %v4086, %v4085
    %v4744 = vpack.c.bf16 %v4088, %v4087
    %v4745 = vpack.c.bf16 %v4090, %v4089
    %v4746 = vpack.c.bf16 %v4092, %v4091
    %v4747 = vpack.c.bf16 %v4094, %v4093
    %v4748 = vpack.c.bf16 %v4096, %v4095
    %v4749 = vpack.c.bf16 %v4098, %v4097
    %v4750 = vpack.c.bf16 %v4100, %v4099
    %v4751 = vpack.c.bf16 %v4102, %v4101
    %v4752 = vpack.c.bf16 %v4104, %v4103
    %v4753 = vpack.c.bf16 %v4106, %v4105
    %v4754 = vpack.c.bf16 %v4108, %v4107
    %v4755 = vpack.c.bf16 %v4110, %v4109
    %v4756 = vpack.c.bf16 %v4112, %v4111
    %v4757 = vpack.c.bf16 %v4114, %v4113
    %v4758 = vpack.c.bf16 %v4116, %v4115
    %v4759 = vpack.c.bf16 %v4118, %v4117
    %v4760 = vpack.c.bf16 %v4120, %v4119
    %v4761 = vld [vmem:[%s2] sm:$0xff]
    %v4762 = vld [vmem:[%s2 + $0x8] sm:$0xff]
    %v4763 = vld [vmem:[%s2 + $0x10] sm:$0xff]
    %v4764 = vld [vmem:[%s2 + $0x18] sm:$0xff]
    %v4765 = vld [vmem:[%s2 + $0x20] sm:$0xff]
    %v4766 = vld [vmem:[%s2 + $0x28] sm:$0xff]
    %v4767 = vld [vmem:[%s2 + $0x30] sm:$0xff]
    %v4768 = vld [vmem:[%s2 + $0x38] sm:$0xff]
    %v4769 = vld [vmem:[%s2 + $0x40] sm:$0xff]
    %v4770 = vld [vmem:[%s2 + $0x48] sm:$0xff]
    %v4771 = vld [vmem:[%s2 + $0x50] sm:$0xff]
    %v4772 = vld [vmem:[%s2 + $0x58] sm:$0xff]
    %v4773 = vld [vmem:[%s2 + $0x60] sm:$0xff]
    %v4774 = vld [vmem:[%s2 + $0x68] sm:$0xff]
    %v4775 = vld [vmem:[%s2 + $0x70] sm:$0xff]
    %v4776 = vld [vmem:[%s2 + $0x78] sm:$0xff]
    %v4777 = vld [vmem:[%s2 + $0x80] sm:$0xff]
    %v4778 = vld [vmem:[%s2 + $0x88] sm:$0xff]
    %v4779 = vld [vmem:[%s2 + $0x90] sm:$0xff]
    %v4780 = vld [vmem:[%s2 + $0x98] sm:$0xff]
    %v4781 = vld [vmem:[%s2 + $0xa0] sm:$0xff]
    %v4782 = vld [vmem:[%s2 + $0xa8] sm:$0xff]
    %v4783 = vld [vmem:[%s2 + $0xb0] sm:$0xff]
    %v4784 = vld [vmem:[%s2 + $0xb8] sm:$0xff]
    %v4785 = vld [vmem:[%s2 + $0xc0] sm:$0xff]
    %v4786 = vld [vmem:[%s2 + $0xc8] sm:$0xff]
    %v4787 = vld [vmem:[%s2 + $0xd0] sm:$0xff]
    %v4788 = vld [vmem:[%s2 + $0xd8] sm:$0xff]
    %v4789 = vld [vmem:[%s2 + $0xe0] sm:$0xff]
    %v4790 = vld [vmem:[%s2 + $0xe8] sm:$0xff]
    %v4791 = vld [vmem:[%s2 + $0xf0] sm:$0xff]
    %v4792 = vld [vmem:[%s2 + $0xf8] sm:$0xff]
    %v4793 = vld [vmem:[%s2 + $0x100] sm:$0xff]
    %v4794 = vld [vmem:[%s2 + $0x108] sm:$0xff]
    %v4795 = vld [vmem:[%s2 + $0x110] sm:$0xff]
    %v4796 = vld [vmem:[%s2 + $0x118] sm:$0xff]
    %v4797 = vld [vmem:[%s2 + $0x120] sm:$0xff]
    %v4798 = vld [vmem:[%s2 + $0x128] sm:$0xff]
    %v4799 = vld [vmem:[%s2 + $0x130] sm:$0xff]
    %v4800 = vld [vmem:[%s2 + $0x138] sm:$0xff]
    %v4801 = vld [vmem:[%s2 + $0x140] sm:$0xff]
    %v4802 = vld [vmem:[%s2 + $0x148] sm:$0xff]
    %v4803 = vld [vmem:[%s2 + $0x150] sm:$0xff]
    %v4804 = vld [vmem:[%s2 + $0x158] sm:$0xff]
    %v4805 = vld [vmem:[%s2 + $0x160] sm:$0xff]
    %v4806 = vld [vmem:[%s2 + $0x168] sm:$0xff]
    %v4807 = vld [vmem:[%s2 + $0x170] sm:$0xff]
    %v4808 = vld [vmem:[%s2 + $0x178] sm:$0xff]
    %v4809 = vld [vmem:[%s2 + $0x180] sm:$0xff]
    %v4810 = vld [vmem:[%s2 + $0x188] sm:$0xff]
    %v4811 = vld [vmem:[%s2 + $0x190] sm:$0xff]
    %v4812 = vld [vmem:[%s2 + $0x198] sm:$0xff]
    %v4813 = vld [vmem:[%s2 + $0x1a0] sm:$0xff]
    %v4814 = vld [vmem:[%s2 + $0x1a8] sm:$0xff]
    %v4815 = vld [vmem:[%s2 + $0x1b0] sm:$0xff]
    %v4816 = vld [vmem:[%s2 + $0x1b8] sm:$0xff]
    %v4817 = vld [vmem:[%s2 + $0x1c0] sm:$0xff]
    %v4818 = vld [vmem:[%s2 + $0x1c8] sm:$0xff]
    %v4819 = vld [vmem:[%s2 + $0x1d0] sm:$0xff]
    %v4820 = vld [vmem:[%s2 + $0x1d8] sm:$0xff]
    %v4821 = vld [vmem:[%s2 + $0x1e0] sm:$0xff]
    %v4822 = vld [vmem:[%s2 + $0x1e8] sm:$0xff]
    %v4823 = vld [vmem:[%s2 + $0x1f0] sm:$0xff]
    %v4824 = vld [vmem:[%s2 + $0x1f8] sm:$0xff]
    %v4825 = vld [vmem:[%s2 + $0x200] sm:$0xff]
    %v4826 = vld [vmem:[%s2 + $0x208] sm:$0xff]
    %v4827 = vld [vmem:[%s2 + $0x210] sm:$0xff]
    %v4828 = vld [vmem:[%s2 + $0x218] sm:$0xff]
    %v4829 = vld [vmem:[%s2 + $0x220] sm:$0xff]
    %v4830 = vld [vmem:[%s2 + $0x228] sm:$0xff]
    %v4831 = vld [vmem:[%s2 + $0x230] sm:$0xff]
    %v4832 = vld [vmem:[%s2 + $0x238] sm:$0xff]
    %v4833 = vld [vmem:[%s2 + $0x240] sm:$0xff]
    %v4834 = vld [vmem:[%s2 + $0x248] sm:$0xff]
    %v4835 = vld [vmem:[%s2 + $0x250] sm:$0xff]
    %v4836 = vld [vmem:[%s2 + $0x258] sm:$0xff]
    %v4837 = vld [vmem:[%s2 + $0x260] sm:$0xff]
    %v4838 = vld [vmem:[%s2 + $0x268] sm:$0xff]
    %v4839 = vld [vmem:[%s2 + $0x270] sm:$0xff]
    %v4840 = vld [vmem:[%s2 + $0x278] sm:$0xff]
    %v4841 = vld [vmem:[%s2 + $0x280] sm:$0xff]
    %v4842 = vld [vmem:[%s2 + $0x288] sm:$0xff]
    %v4843 = vld [vmem:[%s2 + $0x290] sm:$0xff]
    %v4844 = vld [vmem:[%s2 + $0x298] sm:$0xff]
    %v4845 = vld [vmem:[%s2 + $0x2a0] sm:$0xff]
    %v4846 = vld [vmem:[%s2 + $0x2a8] sm:$0xff]
    %v4847 = vld [vmem:[%s2 + $0x2b0] sm:$0xff]
    %v4848 = vld [vmem:[%s2 + $0x2b8] sm:$0xff]
    %v4849 = vld [vmem:[%s2 + $0x2c0] sm:$0xff]
    %v4850 = vld [vmem:[%s2 + $0x2c8] sm:$0xff]
    %v4851 = vld [vmem:[%s2 + $0x2d0] sm:$0xff]
    %v4852 = vld [vmem:[%s2 + $0x2d8] sm:$0xff]
    %v4853 = vld [vmem:[%s2 + $0x2e0] sm:$0xff]
    %v4854 = vld [vmem:[%s2 + $0x2e8] sm:$0xff]
    %v4855 = vld [vmem:[%s2 + $0x2f0] sm:$0xff]
    %v4856 = vld [vmem:[%s2 + $0x2f8] sm:$0xff]
    %v4857 = vld [vmem:[%s2 + $0x300] sm:$0xff]
    %v4858 = vld [vmem:[%s2 + $0x308] sm:$0xff]
    %v4859 = vld [vmem:[%s2 + $0x310] sm:$0xff]
    %v4860 = vld [vmem:[%s2 + $0x318] sm:$0xff]
    %v4861 = vld [vmem:[%s2 + $0x320] sm:$0xff]
    %v4862 = vld [vmem:[%s2 + $0x328] sm:$0xff]
    %v4863 = vld [vmem:[%s2 + $0x330] sm:$0xff]
    %v4864 = vld [vmem:[%s2 + $0x338] sm:$0xff]
    %v4865 = vld [vmem:[%s2 + $0x340] sm:$0xff]
    %v4866 = vld [vmem:[%s2 + $0x348] sm:$0xff]
    %v4867 = vld [vmem:[%s2 + $0x350] sm:$0xff]
    %v4868 = vld [vmem:[%s2 + $0x358] sm:$0xff]
    %v4869 = vld [vmem:[%s2 + $0x360] sm:$0xff]
    %v4870 = vld [vmem:[%s2 + $0x368] sm:$0xff]
    %v4871 = vld [vmem:[%s2 + $0x370] sm:$0xff]
    %v4872 = vld [vmem:[%s2 + $0x378] sm:$0xff]
    %v4873 = vld [vmem:[%s2 + $0x380] sm:$0xff]
    %v4874 = vld [vmem:[%s2 + $0x388] sm:$0xff]
    %v4875 = vld [vmem:[%s2 + $0x390] sm:$0xff]
    %v4876 = vld [vmem:[%s2 + $0x398] sm:$0xff]
    %v4877 = vld [vmem:[%s2 + $0x3a0] sm:$0xff]
    %v4878 = vld [vmem:[%s2 + $0x3a8] sm:$0xff]
    %v4879 = vld [vmem:[%s2 + $0x3b0] sm:$0xff]
    %v4880 = vld [vmem:[%s2 + $0x3b8] sm:$0xff]
    %v4881 = vld [vmem:[%s2 + $0x3c0] sm:$0xff]
    %v4882 = vld [vmem:[%s2 + $0x3c8] sm:$0xff]
    %v4883 = vld [vmem:[%s2 + $0x3d0] sm:$0xff]
    %v4884 = vld [vmem:[%s2 + $0x3d8] sm:$0xff]
    %v4885 = vld [vmem:[%s2 + $0x3e0] sm:$0xff]
    %v4886 = vld [vmem:[%s2 + $0x3e8] sm:$0xff]
    %v4887 = vld [vmem:[%s2 + $0x3f0] sm:$0xff]
    %v4888 = vld [vmem:[%s2 + $0x3f8] sm:$0xff]
    %v5145 = vunpack.c.l.b16 %v4505
    %v5146 = vunpack.c.h.b16 %v4505
    %v5147 = vunpack.c.l.b16 %v4506
    %v5148 = vunpack.c.h.b16 %v4506
    %v5149 = vunpack.c.l.b16 %v4507
    %v5150 = vunpack.c.h.b16 %v4507
    %v5151 = vunpack.c.l.b16 %v4508
    %v5152 = vunpack.c.h.b16 %v4508
    %v5153 = vunpack.c.l.b16 %v4509
    %v5154 = vunpack.c.h.b16 %v4509
    %v5155 = vunpack.c.l.b16 %v4510
    %v5156 = vunpack.c.h.b16 %v4510
    %v5157 = vunpack.c.l.b16 %v4511
    %v5158 = vunpack.c.h.b16 %v4511
    %v5159 = vunpack.c.l.b16 %v4512
    %v5160 = vunpack.c.h.b16 %v4512
    %v5161 = vunpack.c.l.b16 %v4513
    %v5162 = vunpack.c.h.b16 %v4513
    %v5163 = vunpack.c.l.b16 %v4514
    %v5164 = vunpack.c.h.b16 %v4514
    %v5165 = vunpack.c.l.b16 %v4515
    %v5166 = vunpack.c.h.b16 %v4515
    %v5167 = vunpack.c.l.b16 %v4516
    %v5168 = vunpack.c.h.b16 %v4516
    %v5169 = vunpack.c.l.b16 %v4517
    %v5170 = vunpack.c.h.b16 %v4517
    %v5171 = vunpack.c.l.b16 %v4518
    %v5172 = vunpack.c.h.b16 %v4518
    %v5173 = vunpack.c.l.b16 %v4519
    %v5174 = vunpack.c.h.b16 %v4519
    %v5175 = vunpack.c.l.b16 %v4520
    %v5176 = vunpack.c.h.b16 %v4520
    %v5177 = vunpack.c.l.b16 %v4521
    %v5178 = vunpack.c.h.b16 %v4521
    %v5179 = vunpack.c.l.b16 %v4522
    %v5180 = vunpack.c.h.b16 %v4522
    %v5181 = vunpack.c.l.b16 %v4523
    %v5182 = vunpack.c.h.b16 %v4523
    %v5183 = vunpack.c.l.b16 %v4524
    %v5184 = vunpack.c.h.b16 %v4524
    %v5185 = vunpack.c.l.b16 %v4525
    %v5186 = vunpack.c.h.b16 %v4525
    %v5187 = vunpack.c.l.b16 %v4526
    %v5188 = vunpack.c.h.b16 %v4526
    %v5189 = vunpack.c.l.b16 %v4527
    %v5190 = vunpack.c.h.b16 %v4527
    %v5191 = vunpack.c.l.b16 %v4528
    %v5192 = vunpack.c.h.b16 %v4528
    %v5193 = vunpack.c.l.b16 %v4529
    %v5194 = vunpack.c.h.b16 %v4529
    %v5195 = vunpack.c.l.b16 %v4530
    %v5196 = vunpack.c.h.b16 %v4530
    %v5197 = vunpack.c.l.b16 %v4531
    %v5198 = vunpack.c.h.b16 %v4531
    %v5199 = vunpack.c.l.b16 %v4532
    %v5200 = vunpack.c.h.b16 %v4532
    %v5201 = vunpack.c.l.b16 %v4533
    %v5202 = vunpack.c.h.b16 %v4533
    %v5203 = vunpack.c.l.b16 %v4534
    %v5204 = vunpack.c.h.b16 %v4534
    %v5205 = vunpack.c.l.b16 %v4535
    %v5206 = vunpack.c.h.b16 %v4535
    %v5207 = vunpack.c.l.b16 %v4536
    %v5208 = vunpack.c.h.b16 %v4536
    %v5209 = vunpack.c.l.b16 %v4537
    %v5210 = vunpack.c.h.b16 %v4537
    %v5211 = vunpack.c.l.b16 %v4538
    %v5212 = vunpack.c.h.b16 %v4538
    %v5213 = vunpack.c.l.b16 %v4539
    %v5214 = vunpack.c.h.b16 %v4539
    %v5215 = vunpack.c.l.b16 %v4540
    %v5216 = vunpack.c.h.b16 %v4540
    %v5217 = vunpack.c.l.b16 %v4541
    %v5218 = vunpack.c.h.b16 %v4541
    %v5219 = vunpack.c.l.b16 %v4542
    %v5220 = vunpack.c.h.b16 %v4542
    %v5221 = vunpack.c.l.b16 %v4543
    %v5222 = vunpack.c.h.b16 %v4543
    %v5223 = vunpack.c.l.b16 %v4544
    %v5224 = vunpack.c.h.b16 %v4544
    %v5225 = vunpack.c.l.b16 %v4545
    %v5226 = vunpack.c.h.b16 %v4545
    %v5227 = vunpack.c.l.b16 %v4546
    %v5228 = vunpack.c.h.b16 %v4546
    %v5229 = vunpack.c.l.b16 %v4547
    %v5230 = vunpack.c.h.b16 %v4547
    %v5231 = vunpack.c.l.b16 %v4548
    %v5232 = vunpack.c.h.b16 %v4548
    %v5233 = vunpack.c.l.b16 %v4549
    %v5234 = vunpack.c.h.b16 %v4549
    %v5235 = vunpack.c.l.b16 %v4550
    %v5236 = vunpack.c.h.b16 %v4550
    %v5237 = vunpack.c.l.b16 %v4551
    %v5238 = vunpack.c.h.b16 %v4551
    %v5239 = vunpack.c.l.b16 %v4552
    %v5240 = vunpack.c.h.b16 %v4552
    %v5241 = vunpack.c.l.b16 %v4553
    %v5242 = vunpack.c.h.b16 %v4553
    %v5243 = vunpack.c.l.b16 %v4554
    %v5244 = vunpack.c.h.b16 %v4554
    %v5245 = vunpack.c.l.b16 %v4555
    %v5246 = vunpack.c.h.b16 %v4555
    %v5247 = vunpack.c.l.b16 %v4556
    %v5248 = vunpack.c.h.b16 %v4556
    %v5249 = vunpack.c.l.b16 %v4557
    %v5250 = vunpack.c.h.b16 %v4557
    %v5251 = vunpack.c.l.b16 %v4558
    %v5252 = vunpack.c.h.b16 %v4558
    %v5253 = vunpack.c.l.b16 %v4559
    %v5254 = vunpack.c.h.b16 %v4559
    %v5255 = vunpack.c.l.b16 %v4560
    %v5256 = vunpack.c.h.b16 %v4560
    %v5257 = vunpack.c.l.b16 %v4561
    %v5258 = vunpack.c.h.b16 %v4561
    %v5259 = vunpack.c.l.b16 %v4562
    %v5260 = vunpack.c.h.b16 %v4562
    %v5261 = vunpack.c.l.b16 %v4563
    %v5262 = vunpack.c.h.b16 %v4563
    %v5263 = vunpack.c.l.b16 %v4564
    %v5264 = vunpack.c.h.b16 %v4564
    %v5265 = vunpack.c.l.b16 %v4565
    %v5266 = vunpack.c.h.b16 %v4565
    %v5267 = vunpack.c.l.b16 %v4566
    %v5268 = vunpack.c.h.b16 %v4566
    %v5269 = vunpack.c.l.b16 %v4567
    %v5270 = vunpack.c.h.b16 %v4567
    %v5271 = vunpack.c.l.b16 %v4568
    %v5272 = vunpack.c.h.b16 %v4568
    %v5273 = vunpack.c.l.b16 %v4569
    %v5274 = vunpack.c.h.b16 %v4569
    %v5275 = vunpack.c.l.b16 %v4570
    %v5276 = vunpack.c.h.b16 %v4570
    %v5277 = vunpack.c.l.b16 %v4571
    %v5278 = vunpack.c.h.b16 %v4571
    %v5279 = vunpack.c.l.b16 %v4572
    %v5280 = vunpack.c.h.b16 %v4572
    %v5281 = vunpack.c.l.b16 %v4573
    %v5282 = vunpack.c.h.b16 %v4573
    %v5283 = vunpack.c.l.b16 %v4574
    %v5284 = vunpack.c.h.b16 %v4574
    %v5285 = vunpack.c.l.b16 %v4575
    %v5286 = vunpack.c.h.b16 %v4575
    %v5287 = vunpack.c.l.b16 %v4576
    %v5288 = vunpack.c.h.b16 %v4576
    %v5289 = vunpack.c.l.b16 %v4577
    %v5290 = vunpack.c.h.b16 %v4577
    %v5291 = vunpack.c.l.b16 %v4578
    %v5292 = vunpack.c.h.b16 %v4578
    %v5293 = vunpack.c.l.b16 %v4579
    %v5294 = vunpack.c.h.b16 %v4579
    %v5295 = vunpack.c.l.b16 %v4580
    %v5296 = vunpack.c.h.b16 %v4580
    %v5297 = vunpack.c.l.b16 %v4581
    %v5298 = vunpack.c.h.b16 %v4581
    %v5299 = vunpack.c.l.b16 %v4582
    %v5300 = vunpack.c.h.b16 %v4582
    %v5301 = vunpack.c.l.b16 %v4583
    %v5302 = vunpack.c.h.b16 %v4583
    %v5303 = vunpack.c.l.b16 %v4584
    %v5304 = vunpack.c.h.b16 %v4584
    %v5305 = vunpack.c.l.b16 %v4585
    %v5306 = vunpack.c.h.b16 %v4585
    %v5307 = vunpack.c.l.b16 %v4586
    %v5308 = vunpack.c.h.b16 %v4586
    %v5309 = vunpack.c.l.b16 %v4587
    %v5310 = vunpack.c.h.b16 %v4587
    %v5311 = vunpack.c.l.b16 %v4588
    %v5312 = vunpack.c.h.b16 %v4588
    %v5313 = vunpack.c.l.b16 %v4589
    %v5314 = vunpack.c.h.b16 %v4589
    %v5315 = vunpack.c.l.b16 %v4590
    %v5316 = vunpack.c.h.b16 %v4590
    %v5317 = vunpack.c.l.b16 %v4591
    %v5318 = vunpack.c.h.b16 %v4591
    %v5319 = vunpack.c.l.b16 %v4592
    %v5320 = vunpack.c.h.b16 %v4592
    %v5321 = vunpack.c.l.b16 %v4593
    %v5322 = vunpack.c.h.b16 %v4593
    %v5323 = vunpack.c.l.b16 %v4594
    %v5324 = vunpack.c.h.b16 %v4594
    %v5325 = vunpack.c.l.b16 %v4595
    %v5326 = vunpack.c.h.b16 %v4595
    %v5327 = vunpack.c.l.b16 %v4596
    %v5328 = vunpack.c.h.b16 %v4596
    %v5329 = vunpack.c.l.b16 %v4597
    %v5330 = vunpack.c.h.b16 %v4597
    %v5331 = vunpack.c.l.b16 %v4598
    %v5332 = vunpack.c.h.b16 %v4598
    %v5333 = vunpack.c.l.b16 %v4599
    %v5334 = vunpack.c.h.b16 %v4599
    %v5335 = vunpack.c.l.b16 %v4600
    %v5336 = vunpack.c.h.b16 %v4600
    %v5337 = vunpack.c.l.b16 %v4601
    %v5338 = vunpack.c.h.b16 %v4601
    %v5339 = vunpack.c.l.b16 %v4602
    %v5340 = vunpack.c.h.b16 %v4602
    %v5341 = vunpack.c.l.b16 %v4603
    %v5342 = vunpack.c.h.b16 %v4603
    %v5343 = vunpack.c.l.b16 %v4604
    %v5344 = vunpack.c.h.b16 %v4604
    %v5345 = vunpack.c.l.b16 %v4605
    %v5346 = vunpack.c.h.b16 %v4605
    %v5347 = vunpack.c.l.b16 %v4606
    %v5348 = vunpack.c.h.b16 %v4606
    %v5349 = vunpack.c.l.b16 %v4607
    %v5350 = vunpack.c.h.b16 %v4607
    %v5351 = vunpack.c.l.b16 %v4608
    %v5352 = vunpack.c.h.b16 %v4608
    %v5353 = vunpack.c.l.b16 %v4609
    %v5354 = vunpack.c.h.b16 %v4609
    %v5355 = vunpack.c.l.b16 %v4610
    %v5356 = vunpack.c.h.b16 %v4610
    %v5357 = vunpack.c.l.b16 %v4611
    %v5358 = vunpack.c.h.b16 %v4611
    %v5359 = vunpack.c.l.b16 %v4612
    %v5360 = vunpack.c.h.b16 %v4612
    %v5361 = vunpack.c.l.b16 %v4613
    %v5362 = vunpack.c.h.b16 %v4613
    %v5363 = vunpack.c.l.b16 %v4614
    %v5364 = vunpack.c.h.b16 %v4614
    %v5365 = vunpack.c.l.b16 %v4615
    %v5366 = vunpack.c.h.b16 %v4615
    %v5367 = vunpack.c.l.b16 %v4616
    %v5368 = vunpack.c.h.b16 %v4616
    %v5369 = vunpack.c.l.b16 %v4617
    %v5370 = vunpack.c.h.b16 %v4617
    %v5371 = vunpack.c.l.b16 %v4618
    %v5372 = vunpack.c.h.b16 %v4618
    %v5373 = vunpack.c.l.b16 %v4619
    %v5374 = vunpack.c.h.b16 %v4619
    %v5375 = vunpack.c.l.b16 %v4620
    %v5376 = vunpack.c.h.b16 %v4620
    %v5377 = vunpack.c.l.b16 %v4621
    %v5378 = vunpack.c.h.b16 %v4621
    %v5379 = vunpack.c.l.b16 %v4622
    %v5380 = vunpack.c.h.b16 %v4622
    %v5381 = vunpack.c.l.b16 %v4623
    %v5382 = vunpack.c.h.b16 %v4623
    %v5383 = vunpack.c.l.b16 %v4624
    %v5384 = vunpack.c.h.b16 %v4624
    %v5385 = vunpack.c.l.b16 %v4625
    %v5386 = vunpack.c.h.b16 %v4625
    %v5387 = vunpack.c.l.b16 %v4626
    %v5388 = vunpack.c.h.b16 %v4626
    %v5389 = vunpack.c.l.b16 %v4627
    %v5390 = vunpack.c.h.b16 %v4627
    %v5391 = vunpack.c.l.b16 %v4628
    %v5392 = vunpack.c.h.b16 %v4628
    %v5393 = vunpack.c.l.b16 %v4629
    %v5394 = vunpack.c.h.b16 %v4629
    %v5395 = vunpack.c.l.b16 %v4630
    %v5396 = vunpack.c.h.b16 %v4630
    %v5397 = vunpack.c.l.b16 %v4631
    %v5398 = vunpack.c.h.b16 %v4631
    %v5399 = vunpack.c.l.b16 %v4632
    %v5400 = vunpack.c.h.b16 %v4632
    %v5401 = vunpack.c.l.b16 %v4633
    %v5402 = vunpack.c.h.b16 %v4633
    %v5403 = vunpack.c.l.b16 %v4634
    %v5404 = vunpack.c.h.b16 %v4634
    %v5405 = vunpack.c.l.b16 %v4635
    %v5406 = vunpack.c.h.b16 %v4635
    %v5407 = vunpack.c.l.b16 %v4636
    %v5408 = vunpack.c.h.b16 %v4636
    %v5409 = vunpack.c.l.b16 %v4637
    %v5410 = vunpack.c.h.b16 %v4637
    %v5411 = vunpack.c.l.b16 %v4638
    %v5412 = vunpack.c.h.b16 %v4638
    %v5413 = vunpack.c.l.b16 %v4639
    %v5414 = vunpack.c.h.b16 %v4639
    %v5415 = vunpack.c.l.b16 %v4640
    %v5416 = vunpack.c.h.b16 %v4640
    %v5417 = vunpack.c.l.b16 %v4641
    %v5418 = vunpack.c.h.b16 %v4641
    %v5419 = vunpack.c.l.b16 %v4642
    %v5420 = vunpack.c.h.b16 %v4642
    %v5421 = vunpack.c.l.b16 %v4643
    %v5422 = vunpack.c.h.b16 %v4643
    %v5423 = vunpack.c.l.b16 %v4644
    %v5424 = vunpack.c.h.b16 %v4644
    %v5425 = vunpack.c.l.b16 %v4645
    %v5426 = vunpack.c.h.b16 %v4645
    %v5427 = vunpack.c.l.b16 %v4646
    %v5428 = vunpack.c.h.b16 %v4646
    %v5429 = vunpack.c.l.b16 %v4647
    %v5430 = vunpack.c.h.b16 %v4647
    %v5431 = vunpack.c.l.b16 %v4648
    %v5432 = vunpack.c.h.b16 %v4648
    %v5433 = vunpack.c.l.b16 %v4649
    %v5434 = vunpack.c.h.b16 %v4649
    %v5435 = vunpack.c.l.b16 %v4650
    %v5436 = vunpack.c.h.b16 %v4650
    %v5437 = vunpack.c.l.b16 %v4651
    %v5438 = vunpack.c.h.b16 %v4651
    %v5439 = vunpack.c.l.b16 %v4652
    %v5440 = vunpack.c.h.b16 %v4652
    %v5441 = vunpack.c.l.b16 %v4653
    %v5442 = vunpack.c.h.b16 %v4653
    %v5443 = vunpack.c.l.b16 %v4654
    %v5444 = vunpack.c.h.b16 %v4654
    %v5445 = vunpack.c.l.b16 %v4655
    %v5446 = vunpack.c.h.b16 %v4655
    %v5447 = vunpack.c.l.b16 %v4656
    %v5448 = vunpack.c.h.b16 %v4656
    %v5449 = vunpack.c.l.b16 %v4657
    %v5450 = vunpack.c.h.b16 %v4657
    %v5451 = vunpack.c.l.b16 %v4658
    %v5452 = vunpack.c.h.b16 %v4658
    %v5453 = vunpack.c.l.b16 %v4659
    %v5454 = vunpack.c.h.b16 %v4659
    %v5455 = vunpack.c.l.b16 %v4660
    %v5456 = vunpack.c.h.b16 %v4660
    %v5457 = vunpack.c.l.b16 %v4661
    %v5458 = vunpack.c.h.b16 %v4661
    %v5459 = vunpack.c.l.b16 %v4662
    %v5460 = vunpack.c.h.b16 %v4662
    %v5461 = vunpack.c.l.b16 %v4663
    %v5462 = vunpack.c.h.b16 %v4663
    %v5463 = vunpack.c.l.b16 %v4664
    %v5464 = vunpack.c.h.b16 %v4664
    %v5465 = vunpack.c.l.b16 %v4665
    %v5466 = vunpack.c.h.b16 %v4665
    %v5467 = vunpack.c.l.b16 %v4666
    %v5468 = vunpack.c.h.b16 %v4666
    %v5469 = vunpack.c.l.b16 %v4667
    %v5470 = vunpack.c.h.b16 %v4667
    %v5471 = vunpack.c.l.b16 %v4668
    %v5472 = vunpack.c.h.b16 %v4668
    %v5473 = vunpack.c.l.b16 %v4669
    %v5474 = vunpack.c.h.b16 %v4669
    %v5475 = vunpack.c.l.b16 %v4670
    %v5476 = vunpack.c.h.b16 %v4670
    %v5477 = vunpack.c.l.b16 %v4671
    %v5478 = vunpack.c.h.b16 %v4671
    %v5479 = vunpack.c.l.b16 %v4672
    %v5480 = vunpack.c.h.b16 %v4672
    %v5481 = vunpack.c.l.b16 %v4673
    %v5482 = vunpack.c.h.b16 %v4673
    %v5483 = vunpack.c.l.b16 %v4674
    %v5484 = vunpack.c.h.b16 %v4674
    %v5485 = vunpack.c.l.b16 %v4675
    %v5486 = vunpack.c.h.b16 %v4675
    %v5487 = vunpack.c.l.b16 %v4676
    %v5488 = vunpack.c.h.b16 %v4676
    %v5489 = vunpack.c.l.b16 %v4677
    %v5490 = vunpack.c.h.b16 %v4677
    %v5491 = vunpack.c.l.b16 %v4678
    %v5492 = vunpack.c.h.b16 %v4678
    %v5493 = vunpack.c.l.b16 %v4679
    %v5494 = vunpack.c.h.b16 %v4679
    %v5495 = vunpack.c.l.b16 %v4680
    %v5496 = vunpack.c.h.b16 %v4680
    %v5497 = vunpack.c.l.b16 %v4681
    %v5498 = vunpack.c.h.b16 %v4681
    %v5499 = vunpack.c.l.b16 %v4682
    %v5500 = vunpack.c.h.b16 %v4682
    %v5501 = vunpack.c.l.b16 %v4683
    %v5502 = vunpack.c.h.b16 %v4683
    %v5503 = vunpack.c.l.b16 %v4684
    %v5504 = vunpack.c.h.b16 %v4684
    %v5505 = vunpack.c.l.b16 %v4685
    %v5506 = vunpack.c.h.b16 %v4685
    %v5507 = vunpack.c.l.b16 %v4686
    %v5508 = vunpack.c.h.b16 %v4686
    %v5509 = vunpack.c.l.b16 %v4687
    %v5510 = vunpack.c.h.b16 %v4687
    %v5511 = vunpack.c.l.b16 %v4688
    %v5512 = vunpack.c.h.b16 %v4688
    %v5513 = vunpack.c.l.b16 %v4689
    %v5514 = vunpack.c.h.b16 %v4689
    %v5515 = vunpack.c.l.b16 %v4690
    %v5516 = vunpack.c.h.b16 %v4690
    %v5517 = vunpack.c.l.b16 %v4691
    %v5518 = vunpack.c.h.b16 %v4691
    %v5519 = vunpack.c.l.b16 %v4692
    %v5520 = vunpack.c.h.b16 %v4692
    %v5521 = vunpack.c.l.b16 %v4693
    %v5522 = vunpack.c.h.b16 %v4693
    %v5523 = vunpack.c.l.b16 %v4694
    %v5524 = vunpack.c.h.b16 %v4694
    %v5525 = vunpack.c.l.b16 %v4695
    %v5526 = vunpack.c.h.b16 %v4695
    %v5527 = vunpack.c.l.b16 %v4696
    %v5528 = vunpack.c.h.b16 %v4696
    %v5529 = vunpack.c.l.b16 %v4697
    %v5530 = vunpack.c.h.b16 %v4697
    %v5531 = vunpack.c.l.b16 %v4698
    %v5532 = vunpack.c.h.b16 %v4698
    %v5533 = vunpack.c.l.b16 %v4699
    %v5534 = vunpack.c.h.b16 %v4699
    %v5535 = vunpack.c.l.b16 %v4700
    %v5536 = vunpack.c.h.b16 %v4700
    %v5537 = vunpack.c.l.b16 %v4701
    %v5538 = vunpack.c.h.b16 %v4701
    %v5539 = vunpack.c.l.b16 %v4702
    %v5540 = vunpack.c.h.b16 %v4702
    %v5541 = vunpack.c.l.b16 %v4703
    %v5542 = vunpack.c.h.b16 %v4703
    %v5543 = vunpack.c.l.b16 %v4704
    %v5544 = vunpack.c.h.b16 %v4704
    %v5545 = vunpack.c.l.b16 %v4705
    %v5546 = vunpack.c.h.b16 %v4705
    %v5547 = vunpack.c.l.b16 %v4706
    %v5548 = vunpack.c.h.b16 %v4706
    %v5549 = vunpack.c.l.b16 %v4707
    %v5550 = vunpack.c.h.b16 %v4707
    %v5551 = vunpack.c.l.b16 %v4708
    %v5552 = vunpack.c.h.b16 %v4708
    %v5553 = vunpack.c.l.b16 %v4709
    %v5554 = vunpack.c.h.b16 %v4709
    %v5555 = vunpack.c.l.b16 %v4710
    %v5556 = vunpack.c.h.b16 %v4710
    %v5557 = vunpack.c.l.b16 %v4711
    %v5558 = vunpack.c.h.b16 %v4711
    %v5559 = vunpack.c.l.b16 %v4712
    %v5560 = vunpack.c.h.b16 %v4712
    %v5561 = vunpack.c.l.b16 %v4713
    %v5562 = vunpack.c.h.b16 %v4713
    %v5563 = vunpack.c.l.b16 %v4714
    %v5564 = vunpack.c.h.b16 %v4714
    %v5565 = vunpack.c.l.b16 %v4715
    %v5566 = vunpack.c.h.b16 %v4715
    %v5567 = vunpack.c.l.b16 %v4716
    %v5568 = vunpack.c.h.b16 %v4716
    %v5569 = vunpack.c.l.b16 %v4717
    %v5570 = vunpack.c.h.b16 %v4717
    %v5571 = vunpack.c.l.b16 %v4718
    %v5572 = vunpack.c.h.b16 %v4718
    %v5573 = vunpack.c.l.b16 %v4719
    %v5574 = vunpack.c.h.b16 %v4719
    %v5575 = vunpack.c.l.b16 %v4720
    %v5576 = vunpack.c.h.b16 %v4720
    %v5577 = vunpack.c.l.b16 %v4721
    %v5578 = vunpack.c.h.b16 %v4721
    %v5579 = vunpack.c.l.b16 %v4722
    %v5580 = vunpack.c.h.b16 %v4722
    %v5581 = vunpack.c.l.b16 %v4723
    %v5582 = vunpack.c.h.b16 %v4723
    %v5583 = vunpack.c.l.b16 %v4724
    %v5584 = vunpack.c.h.b16 %v4724
    %v5585 = vunpack.c.l.b16 %v4725
    %v5586 = vunpack.c.h.b16 %v4725
    %v5587 = vunpack.c.l.b16 %v4726
    %v5588 = vunpack.c.h.b16 %v4726
    %v5589 = vunpack.c.l.b16 %v4727
    %v5590 = vunpack.c.h.b16 %v4727
    %v5591 = vunpack.c.l.b16 %v4728
    %v5592 = vunpack.c.h.b16 %v4728
    %v5593 = vunpack.c.l.b16 %v4729
    %v5594 = vunpack.c.h.b16 %v4729
    %v5595 = vunpack.c.l.b16 %v4730
    %v5596 = vunpack.c.h.b16 %v4730
    %v5597 = vunpack.c.l.b16 %v4731
    %v5598 = vunpack.c.h.b16 %v4731
    %v5599 = vunpack.c.l.b16 %v4732
    %v5600 = vunpack.c.h.b16 %v4732
    %v5601 = vunpack.c.l.b16 %v4733
    %v5602 = vunpack.c.h.b16 %v4733
    %v5603 = vunpack.c.l.b16 %v4734
    %v5604 = vunpack.c.h.b16 %v4734
    %v5605 = vunpack.c.l.b16 %v4735
    %v5606 = vunpack.c.h.b16 %v4735
    %v5607 = vunpack.c.l.b16 %v4736
    %v5608 = vunpack.c.h.b16 %v4736
    %v5609 = vunpack.c.l.b16 %v4737
    %v5610 = vunpack.c.h.b16 %v4737
    %v5611 = vunpack.c.l.b16 %v4738
    %v5612 = vunpack.c.h.b16 %v4738
    %v5613 = vunpack.c.l.b16 %v4739
    %v5614 = vunpack.c.h.b16 %v4739
    %v5615 = vunpack.c.l.b16 %v4740
    %v5616 = vunpack.c.h.b16 %v4740
    %v5617 = vunpack.c.l.b16 %v4741
    %v5618 = vunpack.c.h.b16 %v4741
    %v5619 = vunpack.c.l.b16 %v4742
    %v5620 = vunpack.c.h.b16 %v4742
    %v5621 = vunpack.c.l.b16 %v4743
    %v5622 = vunpack.c.h.b16 %v4743
    %v5623 = vunpack.c.l.b16 %v4744
    %v5624 = vunpack.c.h.b16 %v4744
    %v5625 = vunpack.c.l.b16 %v4745
    %v5626 = vunpack.c.h.b16 %v4745
    %v5627 = vunpack.c.l.b16 %v4746
    %v5628 = vunpack.c.h.b16 %v4746
    %v5629 = vunpack.c.l.b16 %v4747
    %v5630 = vunpack.c.h.b16 %v4747
    %v5631 = vunpack.c.l.b16 %v4748
    %v5632 = vunpack.c.h.b16 %v4748
    %v5633 = vunpack.c.l.b16 %v4749
    %v5634 = vunpack.c.h.b16 %v4749
    %v5635 = vunpack.c.l.b16 %v4750
    %v5636 = vunpack.c.h.b16 %v4750
    %v5637 = vunpack.c.l.b16 %v4751
    %v5638 = vunpack.c.h.b16 %v4751
    %v5639 = vunpack.c.l.b16 %v4752
    %v5640 = vunpack.c.h.b16 %v4752
    %v5641 = vunpack.c.l.b16 %v4753
    %v5642 = vunpack.c.h.b16 %v4753
    %v5643 = vunpack.c.l.b16 %v4754
    %v5644 = vunpack.c.h.b16 %v4754
    %v5645 = vunpack.c.l.b16 %v4755
    %v5646 = vunpack.c.h.b16 %v4755
    %v5647 = vunpack.c.l.b16 %v4756
    %v5648 = vunpack.c.h.b16 %v4756
    %v5649 = vunpack.c.l.b16 %v4757
    %v5650 = vunpack.c.h.b16 %v4757
    %v5651 = vunpack.c.l.b16 %v4758
    %v5652 = vunpack.c.h.b16 %v4758
    %v5653 = vunpack.c.l.b16 %v4759
    %v5654 = vunpack.c.h.b16 %v4759
    %v5655 = vunpack.c.l.b16 %v4760
    %v5656 = vunpack.c.h.b16 %v4760
    %v5657 = vlaneseq
    %v5658 = vand.u32 %v5657, 127
    %v5659 = vlaneseq
    %v5660 = vshrl.u32 %v5659, 7
    %v5661 = vsub.s32 %v5658, %v5660
    %v5662 = vrot.slane %v5145, %v5661
    %v5663 = vadd.s32 %v5658, 4294967288
    %v5664 = vlaneseq
    %v5665 = vshrl.u32 %v5664, 7
    %v5666 = vsub.s32 %v5663, %v5665
    %v5667 = vrot.slane %v5146, %v5666
    %vm5668 = vcmask 130112
    %v5669 = vsel %vm5668, %v5667, %v5662
    %v5670 = vadd.s32 %v5658, 4294967280
    %v5671 = vlaneseq
    %v5672 = vshrl.u32 %v5671, 7
    %v5673 = vsub.s32 %v5670, %v5672
    %v5674 = vrot.slane %v5147, %v5673
    %vm5675 = vcmask 195712
    %v5676 = vsel %vm5675, %v5674, %v5669
    %v5677 = vadd.s32 %v5658, 4294967272
    %v5678 = vlaneseq
    %v5679 = vshrl.u32 %v5678, 7
    %v5680 = vsub.s32 %v5677, %v5679
    %v5681 = vrot.slane %v5148, %v5680
    %vm5682 = vcmask 261312
    %v5683 = vsel %vm5682, %v5681, %v5676
    %v5684 = vadd.s32 %v5658, 4294967264
    %v5685 = vlaneseq
    %v5686 = vshrl.u32 %v5685, 7
    %v5687 = vsub.s32 %v5684, %v5686
    %v5688 = vrot.slane %v5149, %v5687
    %vm5689 = vcmask 326912
    %v5690 = vsel %vm5689, %v5688, %v5683
    %v5691 = vadd.s32 %v5658, 4294967256
    %v5692 = vlaneseq
    %v5693 = vshrl.u32 %v5692, 7
    %v5694 = vsub.s32 %v5691, %v5693
    %v5695 = vrot.slane %v5150, %v5694
    %vm5696 = vcmask 392512
    %v5697 = vsel %vm5696, %v5695, %v5690
    %v5698 = vadd.s32 %v5658, 4294967248
    %v5699 = vlaneseq
    %v5700 = vshrl.u32 %v5699, 7
    %v5701 = vsub.s32 %v5698, %v5700
    %v5702 = vrot.slane %v5151, %v5701
    %vm5703 = vcmask 458112
    %v5704 = vsel %vm5703, %v5702, %v5697
    %v5705 = vadd.s32 %v5658, 4294967240
    %v5706 = vlaneseq
    %v5707 = vshrl.u32 %v5706, 7
    %v5708 = vsub.s32 %v5705, %v5707
    %v5709 = vrot.slane %v5152, %v5708
    %vm5710 = vcmask 523712
    %v5711 = vsel %vm5710, %v5709, %v5704
    %v5712 = vadd.s32 %v5658, 4294967232
    %v5713 = vlaneseq
    %v5714 = vshrl.u32 %v5713, 7
    %v5715 = vsub.s32 %v5712, %v5714
    %v5716 = vrot.slane %v5153, %v5715
    %vm5717 = vcmask 589312
    %v5718 = vsel %vm5717, %v5716, %v5711
    %v5719 = vadd.s32 %v5658, 4294967224
    %v5720 = vlaneseq
    %v5721 = vshrl.u32 %v5720, 7
    %v5722 = vsub.s32 %v5719, %v5721
    %v5723 = vrot.slane %v5154, %v5722
    %vm5724 = vcmask 654912
    %v5725 = vsel %vm5724, %v5723, %v5718
    %v5726 = vadd.s32 %v5658, 4294967216
    %v5727 = vlaneseq
    %v5728 = vshrl.u32 %v5727, 7
    %v5729 = vsub.s32 %v5726, %v5728
    %v5730 = vrot.slane %v5155, %v5729
    %vm5731 = vcmask 720512
    %v5732 = vsel %vm5731, %v5730, %v5725
    %v5733 = vadd.s32 %v5658, 4294967208
    %v5734 = vlaneseq
    %v5735 = vshrl.u32 %v5734, 7
    %v5736 = vsub.s32 %v5733, %v5735
    %v5737 = vrot.slane %v5156, %v5736
    %vm5738 = vcmask 786112
    %v5739 = vsel %vm5738, %v5737, %v5732
    %v5740 = vadd.s32 %v5658, 4294967200
    %v5741 = vlaneseq
    %v5742 = vshrl.u32 %v5741, 7
    %v5743 = vsub.s32 %v5740, %v5742
    %v5744 = vrot.slane %v5157, %v5743
    %vm5745 = vcmask 851712
    %v5746 = vsel %vm5745, %v5744, %v5739
    %v5747 = vadd.s32 %v5658, 4294967192
    %v5748 = vlaneseq
    %v5749 = vshrl.u32 %v5748, 7
    %v5750 = vsub.s32 %v5747, %v5749
    %v5751 = vrot.slane %v5158, %v5750
    %vm5752 = vcmask 917312
    %v5753 = vsel %vm5752, %v5751, %v5746
    %v5754 = vadd.s32 %v5658, 4294967184
    %v5755 = vlaneseq
    %v5756 = vshrl.u32 %v5755, 7
    %v5757 = vsub.s32 %v5754, %v5756
    %v5758 = vrot.slane %v5159, %v5757
    %vm5759 = vcmask 982912
    %v5760 = vsel %vm5759, %v5758, %v5753
    %v5761 = vadd.s32 %v5658, 4294967176
    %v5762 = vlaneseq
    %v5763 = vshrl.u32 %v5762, 7
    %v5764 = vsub.s32 %v5761, %v5763
    %v5765 = vrot.slane %v5160, %v5764
    %vm5766 = vcmask 1048512
    %v5767 = vsel %vm5766, %v5765, %v5760
    %v5768 = vlaneseq
    %v5769 = vshrl.u32 %v5768, 7
    %v5770 = vsub.s32 %v5658, %v5769
    %v5771 = vrot.slane %v5161, %v5770
    %v5772 = vlaneseq
    %v5773 = vshrl.u32 %v5772, 7
    %v5774 = vsub.s32 %v5663, %v5773
    %v5775 = vrot.slane %v5162, %v5774
    %v5776 = vsel %vm5668, %v5775, %v5771
    %v5777 = vlaneseq
    %v5778 = vshrl.u32 %v5777, 7
    %v5779 = vsub.s32 %v5670, %v5778
    %v5780 = vrot.slane %v5163, %v5779
    %v5781 = vsel %vm5675, %v5780, %v5776
    %v5782 = vlaneseq
    %v5783 = vshrl.u32 %v5782, 7
    %v5784 = vsub.s32 %v5677, %v5783
    %v5785 = vrot.slane %v5164, %v5784
    %v5786 = vsel %vm5682, %v5785, %v5781
    %v5787 = vlaneseq
    %v5788 = vshrl.u32 %v5787, 7
    %v5789 = vsub.s32 %v5684, %v5788
    %v5790 = vrot.slane %v5165, %v5789
    %v5791 = vsel %vm5689, %v5790, %v5786
    %v5792 = vlaneseq
    %v5793 = vshrl.u32 %v5792, 7
    %v5794 = vsub.s32 %v5691, %v5793
    %v5795 = vrot.slane %v5166, %v5794
    %v5796 = vsel %vm5696, %v5795, %v5791
    %v5797 = vlaneseq
    %v5798 = vshrl.u32 %v5797, 7
    %v5799 = vsub.s32 %v5698, %v5798
    %v5800 = vrot.slane %v5167, %v5799
    %v5801 = vsel %vm5703, %v5800, %v5796
    %v5802 = vlaneseq
    %v5803 = vshrl.u32 %v5802, 7
    %v5804 = vsub.s32 %v5705, %v5803
    %v5805 = vrot.slane %v5168, %v5804
    %v5806 = vsel %vm5710, %v5805, %v5801
    %v5807 = vlaneseq
    %v5808 = vshrl.u32 %v5807, 7
    %v5809 = vsub.s32 %v5712, %v5808
    %v5810 = vrot.slane %v5169, %v5809
    %v5811 = vsel %vm5717, %v5810, %v5806
    %v5812 = vlaneseq
    %v5813 = vshrl.u32 %v5812, 7
    %v5814 = vsub.s32 %v5719, %v5813
    %v5815 = vrot.slane %v5170, %v5814
    %v5816 = vsel %vm5724, %v5815, %v5811
    %v5817 = vlaneseq
    %v5818 = vshrl.u32 %v5817, 7
    %v5819 = vsub.s32 %v5726, %v5818
    %v5820 = vrot.slane %v5171, %v5819
    %v5821 = vsel %vm5731, %v5820, %v5816
    %v5822 = vlaneseq
    %v5823 = vshrl.u32 %v5822, 7
    %v5824 = vsub.s32 %v5733, %v5823
    %v5825 = vrot.slane %v5172, %v5824
    %v5826 = vsel %vm5738, %v5825, %v5821
    %v5827 = vlaneseq
    %v5828 = vshrl.u32 %v5827, 7
    %v5829 = vsub.s32 %v5740, %v5828
    %v5830 = vrot.slane %v5173, %v5829
    %v5831 = vsel %vm5745, %v5830, %v5826
    %v5832 = vlaneseq
    %v5833 = vshrl.u32 %v5832, 7
    %v5834 = vsub.s32 %v5747, %v5833
    %v5835 = vrot.slane %v5174, %v5834
    %v5836 = vsel %vm5752, %v5835, %v5831
    %v5837 = vlaneseq
    %v5838 = vshrl.u32 %v5837, 7
    %v5839 = vsub.s32 %v5754, %v5838
    %v5840 = vrot.slane %v5175, %v5839
    %v5841 = vsel %vm5759, %v5840, %v5836
    %v5842 = vlaneseq
    %v5843 = vshrl.u32 %v5842, 7
    %v5844 = vsub.s32 %v5761, %v5843
    %v5845 = vrot.slane %v5176, %v5844
    %v5846 = vsel %vm5766, %v5845, %v5841
    %v5847 = vlaneseq
    %v5848 = vshrl.u32 %v5847, 7
    %v5849 = vsub.s32 %v5658, %v5848
    %v5850 = vrot.slane %v5177, %v5849
    %v5851 = vlaneseq
    %v5852 = vshrl.u32 %v5851, 7
    %v5853 = vsub.s32 %v5663, %v5852
    %v5854 = vrot.slane %v5178, %v5853
    %v5855 = vsel %vm5668, %v5854, %v5850
    %v5856 = vlaneseq
    %v5857 = vshrl.u32 %v5856, 7
    %v5858 = vsub.s32 %v5670, %v5857
    %v5859 = vrot.slane %v5179, %v5858
    %v5860 = vsel %vm5675, %v5859, %v5855
    %v5861 = vlaneseq
    %v5862 = vshrl.u32 %v5861, 7
    %v5863 = vsub.s32 %v5677, %v5862
    %v5864 = vrot.slane %v5180, %v5863
    %v5865 = vsel %vm5682, %v5864, %v5860
    %v5866 = vlaneseq
    %v5867 = vshrl.u32 %v5866, 7
    %v5868 = vsub.s32 %v5684, %v5867
    %v5869 = vrot.slane %v5181, %v5868
    %v5870 = vsel %vm5689, %v5869, %v5865
    %v5871 = vlaneseq
    %v5872 = vshrl.u32 %v5871, 7
    %v5873 = vsub.s32 %v5691, %v5872
    %v5874 = vrot.slane %v5182, %v5873
    %v5875 = vsel %vm5696, %v5874, %v5870
    %v5876 = vlaneseq
    %v5877 = vshrl.u32 %v5876, 7
    %v5878 = vsub.s32 %v5698, %v5877
    %v5879 = vrot.slane %v5183, %v5878
    %v5880 = vsel %vm5703, %v5879, %v5875
    %v5881 = vlaneseq
    %v5882 = vshrl.u32 %v5881, 7
    %v5883 = vsub.s32 %v5705, %v5882
    %v5884 = vrot.slane %v5184, %v5883
    %v5885 = vsel %vm5710, %v5884, %v5880
    %v5886 = vlaneseq
    %v5887 = vshrl.u32 %v5886, 7
    %v5888 = vsub.s32 %v5712, %v5887
    %v5889 = vrot.slane %v5185, %v5888
    %v5890 = vsel %vm5717, %v5889, %v5885
    %v5891 = vlaneseq
    %v5892 = vshrl.u32 %v5891, 7
    %v5893 = vsub.s32 %v5719, %v5892
    %v5894 = vrot.slane %v5186, %v5893
    %v5895 = vsel %vm5724, %v5894, %v5890
    %v5896 = vlaneseq
    %v5897 = vshrl.u32 %v5896, 7
    %v5898 = vsub.s32 %v5726, %v5897
    %v5899 = vrot.slane %v5187, %v5898
    %v5900 = vsel %vm5731, %v5899, %v5895
    %v5901 = vlaneseq
    %v5902 = vshrl.u32 %v5901, 7
    %v5903 = vsub.s32 %v5733, %v5902
    %v5904 = vrot.slane %v5188, %v5903
    %v5905 = vsel %vm5738, %v5904, %v5900
    %v5906 = vlaneseq
    %v5907 = vshrl.u32 %v5906, 7
    %v5908 = vsub.s32 %v5740, %v5907
    %v5909 = vrot.slane %v5189, %v5908
    %v5910 = vsel %vm5745, %v5909, %v5905
    %v5911 = vlaneseq
    %v5912 = vshrl.u32 %v5911, 7
    %v5913 = vsub.s32 %v5747, %v5912
    %v5914 = vrot.slane %v5190, %v5913
    %v5915 = vsel %vm5752, %v5914, %v5910
    %v5916 = vlaneseq
    %v5917 = vshrl.u32 %v5916, 7
    %v5918 = vsub.s32 %v5754, %v5917
    %v5919 = vrot.slane %v5191, %v5918
    %v5920 = vsel %vm5759, %v5919, %v5915
    %v5921 = vlaneseq
    %v5922 = vshrl.u32 %v5921, 7
    %v5923 = vsub.s32 %v5761, %v5922
    %v5924 = vrot.slane %v5192, %v5923
    %v5925 = vsel %vm5766, %v5924, %v5920
    %v5926 = vlaneseq
    %v5927 = vshrl.u32 %v5926, 7
    %v5928 = vsub.s32 %v5658, %v5927
    %v5929 = vrot.slane %v5193, %v5928
    %v5930 = vlaneseq
    %v5931 = vshrl.u32 %v5930, 7
    %v5932 = vsub.s32 %v5663, %v5931
    %v5933 = vrot.slane %v5194, %v5932
    %v5934 = vsel %vm5668, %v5933, %v5929
    %v5935 = vlaneseq
    %v5936 = vshrl.u32 %v5935, 7
    %v5937 = vsub.s32 %v5670, %v5936
    %v5938 = vrot.slane %v5195, %v5937
    %v5939 = vsel %vm5675, %v5938, %v5934
    %v5940 = vlaneseq
    %v5941 = vshrl.u32 %v5940, 7
    %v5942 = vsub.s32 %v5677, %v5941
    %v5943 = vrot.slane %v5196, %v5942
    %v5944 = vsel %vm5682, %v5943, %v5939
    %v5945 = vlaneseq
    %v5946 = vshrl.u32 %v5945, 7
    %v5947 = vsub.s32 %v5684, %v5946
    %v5948 = vrot.slane %v5197, %v5947
    %v5949 = vsel %vm5689, %v5948, %v5944
    %v5950 = vlaneseq
    %v5951 = vshrl.u32 %v5950, 7
    %v5952 = vsub.s32 %v5691, %v5951
    %v5953 = vrot.slane %v5198, %v5952
    %v5954 = vsel %vm5696, %v5953, %v5949
    %v5955 = vlaneseq
    %v5956 = vshrl.u32 %v5955, 7
    %v5957 = vsub.s32 %v5698, %v5956
    %v5958 = vrot.slane %v5199, %v5957
    %v5959 = vsel %vm5703, %v5958, %v5954
    %v5960 = vlaneseq
    %v5961 = vshrl.u32 %v5960, 7
    %v5962 = vsub.s32 %v5705, %v5961
    %v5963 = vrot.slane %v5200, %v5962
    %v5964 = vsel %vm5710, %v5963, %v5959
    %v5965 = vlaneseq
    %v5966 = vshrl.u32 %v5965, 7
    %v5967 = vsub.s32 %v5712, %v5966
    %v5968 = vrot.slane %v5201, %v5967
    %v5969 = vsel %vm5717, %v5968, %v5964
    %v5970 = vlaneseq
    %v5971 = vshrl.u32 %v5970, 7
    %v5972 = vsub.s32 %v5719, %v5971
    %v5973 = vrot.slane %v5202, %v5972
    %v5974 = vsel %vm5724, %v5973, %v5969
    %v5975 = vlaneseq
    %v5976 = vshrl.u32 %v5975, 7
    %v5977 = vsub.s32 %v5726, %v5976
    %v5978 = vrot.slane %v5203, %v5977
    %v5979 = vsel %vm5731, %v5978, %v5974
    %v5980 = vlaneseq
    %v5981 = vshrl.u32 %v5980, 7
    %v5982 = vsub.s32 %v5733, %v5981
    %v5983 = vrot.slane %v5204, %v5982
    %v5984 = vsel %vm5738, %v5983, %v5979
    %v5985 = vlaneseq
    %v5986 = vshrl.u32 %v5985, 7
    %v5987 = vsub.s32 %v5740, %v5986
    %v5988 = vrot.slane %v5205, %v5987
    %v5989 = vsel %vm5745, %v5988, %v5984
    %v5990 = vlaneseq
    %v5991 = vshrl.u32 %v5990, 7
    %v5992 = vsub.s32 %v5747, %v5991
    %v5993 = vrot.slane %v5206, %v5992
    %v5994 = vsel %vm5752, %v5993, %v5989
    %v5995 = vlaneseq
    %v5996 = vshrl.u32 %v5995, 7
    %v5997 = vsub.s32 %v5754, %v5996
    %v5998 = vrot.slane %v5207, %v5997
    %v5999 = vsel %vm5759, %v5998, %v5994
    %v6000 = vlaneseq
    %v6001 = vshrl.u32 %v6000, 7
    %v6002 = vsub.s32 %v5761, %v6001
    %v6003 = vrot.slane %v5208, %v6002
    %v6004 = vsel %vm5766, %v6003, %v5999
    %v6005 = vlaneseq
    %v6006 = vshrl.u32 %v6005, 7
    %v6007 = vsub.s32 %v5658, %v6006
    %v6008 = vrot.slane %v5209, %v6007
    %v6009 = vlaneseq
    %v6010 = vshrl.u32 %v6009, 7
    %v6011 = vsub.s32 %v5663, %v6010
    %v6012 = vrot.slane %v5210, %v6011
    %v6013 = vsel %vm5668, %v6012, %v6008
    %v6014 = vlaneseq
    %v6015 = vshrl.u32 %v6014, 7
    %v6016 = vsub.s32 %v5670, %v6015
    %v6017 = vrot.slane %v5211, %v6016
    %v6018 = vsel %vm5675, %v6017, %v6013
    %v6019 = vlaneseq
    %v6020 = vshrl.u32 %v6019, 7
    %v6021 = vsub.s32 %v5677, %v6020
    %v6022 = vrot.slane %v5212, %v6021
    %v6023 = vsel %vm5682, %v6022, %v6018
    %v6024 = vlaneseq
    %v6025 = vshrl.u32 %v6024, 7
    %v6026 = vsub.s32 %v5684, %v6025
    %v6027 = vrot.slane %v5213, %v6026
    %v6028 = vsel %vm5689, %v6027, %v6023
    %v6029 = vlaneseq
    %v6030 = vshrl.u32 %v6029, 7
    %v6031 = vsub.s32 %v5691, %v6030
    %v6032 = vrot.slane %v5214, %v6031
    %v6033 = vsel %vm5696, %v6032, %v6028
    %v6034 = vlaneseq
    %v6035 = vshrl.u32 %v6034, 7
    %v6036 = vsub.s32 %v5698, %v6035
    %v6037 = vrot.slane %v5215, %v6036
    %v6038 = vsel %vm5703, %v6037, %v6033
    %v6039 = vlaneseq
    %v6040 = vshrl.u32 %v6039, 7
    %v6041 = vsub.s32 %v5705, %v6040
    %v6042 = vrot.slane %v5216, %v6041
    %v6043 = vsel %vm5710, %v6042, %v6038
    %v6044 = vlaneseq
    %v6045 = vshrl.u32 %v6044, 7
    %v6046 = vsub.s32 %v5712, %v6045
    %v6047 = vrot.slane %v5217, %v6046
    %v6048 = vsel %vm5717, %v6047, %v6043
    %v6049 = vlaneseq
    %v6050 = vshrl.u32 %v6049, 7
    %v6051 = vsub.s32 %v5719, %v6050
    %v6052 = vrot.slane %v5218, %v6051
    %v6053 = vsel %vm5724, %v6052, %v6048
    %v6054 = vlaneseq
    %v6055 = vshrl.u32 %v6054, 7
    %v6056 = vsub.s32 %v5726, %v6055
    %v6057 = vrot.slane %v5219, %v6056
    %v6058 = vsel %vm5731, %v6057, %v6053
    %v6059 = vlaneseq
    %v6060 = vshrl.u32 %v6059, 7
    %v6061 = vsub.s32 %v5733, %v6060
    %v6062 = vrot.slane %v5220, %v6061
    %v6063 = vsel %vm5738, %v6062, %v6058
    %v6064 = vlaneseq
    %v6065 = vshrl.u32 %v6064, 7
    %v6066 = vsub.s32 %v5740, %v6065
    %v6067 = vrot.slane %v5221, %v6066
    %v6068 = vsel %vm5745, %v6067, %v6063
    %v6069 = vlaneseq
    %v6070 = vshrl.u32 %v6069, 7
    %v6071 = vsub.s32 %v5747, %v6070
    %v6072 = vrot.slane %v5222, %v6071
    %v6073 = vsel %vm5752, %v6072, %v6068
    %v6074 = vlaneseq
    %v6075 = vshrl.u32 %v6074, 7
    %v6076 = vsub.s32 %v5754, %v6075
    %v6077 = vrot.slane %v5223, %v6076
    %v6078 = vsel %vm5759, %v6077, %v6073
    %v6079 = vlaneseq
    %v6080 = vshrl.u32 %v6079, 7
    %v6081 = vsub.s32 %v5761, %v6080
    %v6082 = vrot.slane %v5224, %v6081
    %v6083 = vsel %vm5766, %v6082, %v6078
    %v6084 = vlaneseq
    %v6085 = vshrl.u32 %v6084, 7
    %v6086 = vsub.s32 %v5658, %v6085
    %v6087 = vrot.slane %v5225, %v6086
    %v6088 = vlaneseq
    %v6089 = vshrl.u32 %v6088, 7
    %v6090 = vsub.s32 %v5663, %v6089
    %v6091 = vrot.slane %v5226, %v6090
    %v6092 = vsel %vm5668, %v6091, %v6087
    %v6093 = vlaneseq
    %v6094 = vshrl.u32 %v6093, 7
    %v6095 = vsub.s32 %v5670, %v6094
    %v6096 = vrot.slane %v5227, %v6095
    %v6097 = vsel %vm5675, %v6096, %v6092
    %v6098 = vlaneseq
    %v6099 = vshrl.u32 %v6098, 7
    %v6100 = vsub.s32 %v5677, %v6099
    %v6101 = vrot.slane %v5228, %v6100
    %v6102 = vsel %vm5682, %v6101, %v6097
    %v6103 = vlaneseq
    %v6104 = vshrl.u32 %v6103, 7
    %v6105 = vsub.s32 %v5684, %v6104
    %v6106 = vrot.slane %v5229, %v6105
    %v6107 = vsel %vm5689, %v6106, %v6102
    %v6108 = vlaneseq
    %v6109 = vshrl.u32 %v6108, 7
    %v6110 = vsub.s32 %v5691, %v6109
    %v6111 = vrot.slane %v5230, %v6110
    %v6112 = vsel %vm5696, %v6111, %v6107
    %v6113 = vlaneseq
    %v6114 = vshrl.u32 %v6113, 7
    %v6115 = vsub.s32 %v5698, %v6114
    %v6116 = vrot.slane %v5231, %v6115
    %v6117 = vsel %vm5703, %v6116, %v6112
    %v6118 = vlaneseq
    %v6119 = vshrl.u32 %v6118, 7
    %v6120 = vsub.s32 %v5705, %v6119
    %v6121 = vrot.slane %v5232, %v6120
    %v6122 = vsel %vm5710, %v6121, %v6117
    %v6123 = vlaneseq
    %v6124 = vshrl.u32 %v6123, 7
    %v6125 = vsub.s32 %v5712, %v6124
    %v6126 = vrot.slane %v5233, %v6125
    %v6127 = vsel %vm5717, %v6126, %v6122
    %v6128 = vlaneseq
    %v6129 = vshrl.u32 %v6128, 7
    %v6130 = vsub.s32 %v5719, %v6129
    %v6131 = vrot.slane %v5234, %v6130
    %v6132 = vsel %vm5724, %v6131, %v6127
    %v6133 = vlaneseq
    %v6134 = vshrl.u32 %v6133, 7
    %v6135 = vsub.s32 %v5726, %v6134
    %v6136 = vrot.slane %v5235, %v6135
    %v6137 = vsel %vm5731, %v6136, %v6132
    %v6138 = vlaneseq
    %v6139 = vshrl.u32 %v6138, 7
    %v6140 = vsub.s32 %v5733, %v6139
    %v6141 = vrot.slane %v5236, %v6140
    %v6142 = vsel %vm5738, %v6141, %v6137
    %v6143 = vlaneseq
    %v6144 = vshrl.u32 %v6143, 7
    %v6145 = vsub.s32 %v5740, %v6144
    %v6146 = vrot.slane %v5237, %v6145
    %v6147 = vsel %vm5745, %v6146, %v6142
    %v6148 = vlaneseq
    %v6149 = vshrl.u32 %v6148, 7
    %v6150 = vsub.s32 %v5747, %v6149
    %v6151 = vrot.slane %v5238, %v6150
    %v6152 = vsel %vm5752, %v6151, %v6147
    %v6153 = vlaneseq
    %v6154 = vshrl.u32 %v6153, 7
    %v6155 = vsub.s32 %v5754, %v6154
    %v6156 = vrot.slane %v5239, %v6155
    %v6157 = vsel %vm5759, %v6156, %v6152
    %v6158 = vlaneseq
    %v6159 = vshrl.u32 %v6158, 7
    %v6160 = vsub.s32 %v5761, %v6159
    %v6161 = vrot.slane %v5240, %v6160
    %v6162 = vsel %vm5766, %v6161, %v6157
    %v6163 = vlaneseq
    %v6164 = vshrl.u32 %v6163, 7
    %v6165 = vsub.s32 %v5658, %v6164
    %v6166 = vrot.slane %v5241, %v6165
    %v6167 = vlaneseq
    %v6168 = vshrl.u32 %v6167, 7
    %v6169 = vsub.s32 %v5663, %v6168
    %v6170 = vrot.slane %v5242, %v6169
    %v6171 = vsel %vm5668, %v6170, %v6166
    %v6172 = vlaneseq
    %v6173 = vshrl.u32 %v6172, 7
    %v6174 = vsub.s32 %v5670, %v6173
    %v6175 = vrot.slane %v5243, %v6174
    %v6176 = vsel %vm5675, %v6175, %v6171
    %v6177 = vlaneseq
    %v6178 = vshrl.u32 %v6177, 7
    %v6179 = vsub.s32 %v5677, %v6178
    %v6180 = vrot.slane %v5244, %v6179
    %v6181 = vsel %vm5682, %v6180, %v6176
    %v6182 = vlaneseq
    %v6183 = vshrl.u32 %v6182, 7
    %v6184 = vsub.s32 %v5684, %v6183
    %v6185 = vrot.slane %v5245, %v6184
    %v6186 = vsel %vm5689, %v6185, %v6181
    %v6187 = vlaneseq
    %v6188 = vshrl.u32 %v6187, 7
    %v6189 = vsub.s32 %v5691, %v6188
    %v6190 = vrot.slane %v5246, %v6189
    %v6191 = vsel %vm5696, %v6190, %v6186
    %v6192 = vlaneseq
    %v6193 = vshrl.u32 %v6192, 7
    %v6194 = vsub.s32 %v5698, %v6193
    %v6195 = vrot.slane %v5247, %v6194
    %v6196 = vsel %vm5703, %v6195, %v6191
    %v6197 = vlaneseq
    %v6198 = vshrl.u32 %v6197, 7
    %v6199 = vsub.s32 %v5705, %v6198
    %v6200 = vrot.slane %v5248, %v6199
    %v6201 = vsel %vm5710, %v6200, %v6196
    %v6202 = vlaneseq
    %v6203 = vshrl.u32 %v6202, 7
    %v6204 = vsub.s32 %v5712, %v6203
    %v6205 = vrot.slane %v5249, %v6204
    %v6206 = vsel %vm5717, %v6205, %v6201
    %v6207 = vlaneseq
    %v6208 = vshrl.u32 %v6207, 7
    %v6209 = vsub.s32 %v5719, %v6208
    %v6210 = vrot.slane %v5250, %v6209
    %v6211 = vsel %vm5724, %v6210, %v6206
    %v6212 = vlaneseq
    %v6213 = vshrl.u32 %v6212, 7
    %v6214 = vsub.s32 %v5726, %v6213
    %v6215 = vrot.slane %v5251, %v6214
    %v6216 = vsel %vm5731, %v6215, %v6211
    %v6217 = vlaneseq
    %v6218 = vshrl.u32 %v6217, 7
    %v6219 = vsub.s32 %v5733, %v6218
    %v6220 = vrot.slane %v5252, %v6219
    %v6221 = vsel %vm5738, %v6220, %v6216
    %v6222 = vlaneseq
    %v6223 = vshrl.u32 %v6222, 7
    %v6224 = vsub.s32 %v5740, %v6223
    %v6225 = vrot.slane %v5253, %v6224
    %v6226 = vsel %vm5745, %v6225, %v6221
    %v6227 = vlaneseq
    %v6228 = vshrl.u32 %v6227, 7
    %v6229 = vsub.s32 %v5747, %v6228
    %v6230 = vrot.slane %v5254, %v6229
    %v6231 = vsel %vm5752, %v6230, %v6226
    %v6232 = vlaneseq
    %v6233 = vshrl.u32 %v6232, 7
    %v6234 = vsub.s32 %v5754, %v6233
    %v6235 = vrot.slane %v5255, %v6234
    %v6236 = vsel %vm5759, %v6235, %v6231
    %v6237 = vlaneseq
    %v6238 = vshrl.u32 %v6237, 7
    %v6239 = vsub.s32 %v5761, %v6238
    %v6240 = vrot.slane %v5256, %v6239
    %v6241 = vsel %vm5766, %v6240, %v6236
    %v6242 = vlaneseq
    %v6243 = vshrl.u32 %v6242, 7
    %v6244 = vsub.s32 %v5658, %v6243
    %v6245 = vrot.slane %v5257, %v6244
    %v6246 = vlaneseq
    %v6247 = vshrl.u32 %v6246, 7
    %v6248 = vsub.s32 %v5663, %v6247
    %v6249 = vrot.slane %v5258, %v6248
    %v6250 = vsel %vm5668, %v6249, %v6245
    %v6251 = vlaneseq
    %v6252 = vshrl.u32 %v6251, 7
    %v6253 = vsub.s32 %v5670, %v6252
    %v6254 = vrot.slane %v5259, %v6253
    %v6255 = vsel %vm5675, %v6254, %v6250
    %v6256 = vlaneseq
    %v6257 = vshrl.u32 %v6256, 7
    %v6258 = vsub.s32 %v5677, %v6257
    %v6259 = vrot.slane %v5260, %v6258
    %v6260 = vsel %vm5682, %v6259, %v6255
    %v6261 = vlaneseq
    %v6262 = vshrl.u32 %v6261, 7
    %v6263 = vsub.s32 %v5684, %v6262
    %v6264 = vrot.slane %v5261, %v6263
    %v6265 = vsel %vm5689, %v6264, %v6260
    %v6266 = vlaneseq
    %v6267 = vshrl.u32 %v6266, 7
    %v6268 = vsub.s32 %v5691, %v6267
    %v6269 = vrot.slane %v5262, %v6268
    %v6270 = vsel %vm5696, %v6269, %v6265
    %v6271 = vlaneseq
    %v6272 = vshrl.u32 %v6271, 7
    %v6273 = vsub.s32 %v5698, %v6272
    %v6274 = vrot.slane %v5263, %v6273
    %v6275 = vsel %vm5703, %v6274, %v6270
    %v6276 = vlaneseq
    %v6277 = vshrl.u32 %v6276, 7
    %v6278 = vsub.s32 %v5705, %v6277
    %v6279 = vrot.slane %v5264, %v6278
    %v6280 = vsel %vm5710, %v6279, %v6275
    %v6281 = vlaneseq
    %v6282 = vshrl.u32 %v6281, 7
    %v6283 = vsub.s32 %v5712, %v6282
    %v6284 = vrot.slane %v5265, %v6283
    %v6285 = vsel %vm5717, %v6284, %v6280
    %v6286 = vlaneseq
    %v6287 = vshrl.u32 %v6286, 7
    %v6288 = vsub.s32 %v5719, %v6287
    %v6289 = vrot.slane %v5266, %v6288
    %v6290 = vsel %vm5724, %v6289, %v6285
    %v6291 = vlaneseq
    %v6292 = vshrl.u32 %v6291, 7
    %v6293 = vsub.s32 %v5726, %v6292
    %v6294 = vrot.slane %v5267, %v6293
    %v6295 = vsel %vm5731, %v6294, %v6290
    %v6296 = vlaneseq
    %v6297 = vshrl.u32 %v6296, 7
    %v6298 = vsub.s32 %v5733, %v6297
    %v6299 = vrot.slane %v5268, %v6298
    %v6300 = vsel %vm5738, %v6299, %v6295
    %v6301 = vlaneseq
    %v6302 = vshrl.u32 %v6301, 7
    %v6303 = vsub.s32 %v5740, %v6302
    %v6304 = vrot.slane %v5269, %v6303
    %v6305 = vsel %vm5745, %v6304, %v6300
    %v6306 = vlaneseq
    %v6307 = vshrl.u32 %v6306, 7
    %v6308 = vsub.s32 %v5747, %v6307
    %v6309 = vrot.slane %v5270, %v6308
    %v6310 = vsel %vm5752, %v6309, %v6305
    %v6311 = vlaneseq
    %v6312 = vshrl.u32 %v6311, 7
    %v6313 = vsub.s32 %v5754, %v6312
    %v6314 = vrot.slane %v5271, %v6313
    %v6315 = vsel %vm5759, %v6314, %v6310
    %v6316 = vlaneseq
    %v6317 = vshrl.u32 %v6316, 7
    %v6318 = vsub.s32 %v5761, %v6317
    %v6319 = vrot.slane %v5272, %v6318
    %v6320 = vsel %vm5766, %v6319, %v6315
    %v6321 = vlaneseq
    %v6322 = vshrl.u32 %v6321, 7
    %v6323 = vsub.s32 %v5658, %v6322
    %v6324 = vrot.slane %v5273, %v6323
    %v6325 = vlaneseq
    %v6326 = vshrl.u32 %v6325, 7
    %v6327 = vsub.s32 %v5663, %v6326
    %v6328 = vrot.slane %v5274, %v6327
    %v6329 = vsel %vm5668, %v6328, %v6324
    %v6330 = vlaneseq
    %v6331 = vshrl.u32 %v6330, 7
    %v6332 = vsub.s32 %v5670, %v6331
    %v6333 = vrot.slane %v5275, %v6332
    %v6334 = vsel %vm5675, %v6333, %v6329
    %v6335 = vlaneseq
    %v6336 = vshrl.u32 %v6335, 7
    %v6337 = vsub.s32 %v5677, %v6336
    %v6338 = vrot.slane %v5276, %v6337
    %v6339 = vsel %vm5682, %v6338, %v6334
    %v6340 = vlaneseq
    %v6341 = vshrl.u32 %v6340, 7
    %v6342 = vsub.s32 %v5684, %v6341
    %v6343 = vrot.slane %v5277, %v6342
    %v6344 = vsel %vm5689, %v6343, %v6339
    %v6345 = vlaneseq
    %v6346 = vshrl.u32 %v6345, 7
    %v6347 = vsub.s32 %v5691, %v6346
    %v6348 = vrot.slane %v5278, %v6347
    %v6349 = vsel %vm5696, %v6348, %v6344
    %v6350 = vlaneseq
    %v6351 = vshrl.u32 %v6350, 7
    %v6352 = vsub.s32 %v5698, %v6351
    %v6353 = vrot.slane %v5279, %v6352
    %v6354 = vsel %vm5703, %v6353, %v6349
    %v6355 = vlaneseq
    %v6356 = vshrl.u32 %v6355, 7
    %v6357 = vsub.s32 %v5705, %v6356
    %v6358 = vrot.slane %v5280, %v6357
    %v6359 = vsel %vm5710, %v6358, %v6354
    %v6360 = vlaneseq
    %v6361 = vshrl.u32 %v6360, 7
    %v6362 = vsub.s32 %v5712, %v6361
    %v6363 = vrot.slane %v5281, %v6362
    %v6364 = vsel %vm5717, %v6363, %v6359
    %v6365 = vlaneseq
    %v6366 = vshrl.u32 %v6365, 7
    %v6367 = vsub.s32 %v5719, %v6366
    %v6368 = vrot.slane %v5282, %v6367
    %v6369 = vsel %vm5724, %v6368, %v6364
    %v6370 = vlaneseq
    %v6371 = vshrl.u32 %v6370, 7
    %v6372 = vsub.s32 %v5726, %v6371
    %v6373 = vrot.slane %v5283, %v6372
    %v6374 = vsel %vm5731, %v6373, %v6369
    %v6375 = vlaneseq
    %v6376 = vshrl.u32 %v6375, 7
    %v6377 = vsub.s32 %v5733, %v6376
    %v6378 = vrot.slane %v5284, %v6377
    %v6379 = vsel %vm5738, %v6378, %v6374
    %v6380 = vlaneseq
    %v6381 = vshrl.u32 %v6380, 7
    %v6382 = vsub.s32 %v5740, %v6381
    %v6383 = vrot.slane %v5285, %v6382
    %v6384 = vsel %vm5745, %v6383, %v6379
    %v6385 = vlaneseq
    %v6386 = vshrl.u32 %v6385, 7
    %v6387 = vsub.s32 %v5747, %v6386
    %v6388 = vrot.slane %v5286, %v6387
    %v6389 = vsel %vm5752, %v6388, %v6384
    %v6390 = vlaneseq
    %v6391 = vshrl.u32 %v6390, 7
    %v6392 = vsub.s32 %v5754, %v6391
    %v6393 = vrot.slane %v5287, %v6392
    %v6394 = vsel %vm5759, %v6393, %v6389
    %v6395 = vlaneseq
    %v6396 = vshrl.u32 %v6395, 7
    %v6397 = vsub.s32 %v5761, %v6396
    %v6398 = vrot.slane %v5288, %v6397
    %v6399 = vsel %vm5766, %v6398, %v6394
    %v6400 = vlaneseq
    %v6401 = vshrl.u32 %v6400, 7
    %v6402 = vsub.s32 %v5658, %v6401
    %v6403 = vrot.slane %v5289, %v6402
    %v6404 = vlaneseq
    %v6405 = vshrl.u32 %v6404, 7
    %v6406 = vsub.s32 %v5663, %v6405
    %v6407 = vrot.slane %v5290, %v6406
    %v6408 = vsel %vm5668, %v6407, %v6403
    %v6409 = vlaneseq
    %v6410 = vshrl.u32 %v6409, 7
    %v6411 = vsub.s32 %v5670, %v6410
    %v6412 = vrot.slane %v5291, %v6411
    %v6413 = vsel %vm5675, %v6412, %v6408
    %v6414 = vlaneseq
    %v6415 = vshrl.u32 %v6414, 7
    %v6416 = vsub.s32 %v5677, %v6415
    %v6417 = vrot.slane %v5292, %v6416
    %v6418 = vsel %vm5682, %v6417, %v6413
    %v6419 = vlaneseq
    %v6420 = vshrl.u32 %v6419, 7
    %v6421 = vsub.s32 %v5684, %v6420
    %v6422 = vrot.slane %v5293, %v6421
    %v6423 = vsel %vm5689, %v6422, %v6418
    %v6424 = vlaneseq
    %v6425 = vshrl.u32 %v6424, 7
    %v6426 = vsub.s32 %v5691, %v6425
    %v6427 = vrot.slane %v5294, %v6426
    %v6428 = vsel %vm5696, %v6427, %v6423
    %v6429 = vlaneseq
    %v6430 = vshrl.u32 %v6429, 7
    %v6431 = vsub.s32 %v5698, %v6430
    %v6432 = vrot.slane %v5295, %v6431
    %v6433 = vsel %vm5703, %v6432, %v6428
    %v6434 = vlaneseq
    %v6435 = vshrl.u32 %v6434, 7
    %v6436 = vsub.s32 %v5705, %v6435
    %v6437 = vrot.slane %v5296, %v6436
    %v6438 = vsel %vm5710, %v6437, %v6433
    %v6439 = vlaneseq
    %v6440 = vshrl.u32 %v6439, 7
    %v6441 = vsub.s32 %v5712, %v6440
    %v6442 = vrot.slane %v5297, %v6441
    %v6443 = vsel %vm5717, %v6442, %v6438
    %v6444 = vlaneseq
    %v6445 = vshrl.u32 %v6444, 7
    %v6446 = vsub.s32 %v5719, %v6445
    %v6447 = vrot.slane %v5298, %v6446
    %v6448 = vsel %vm5724, %v6447, %v6443
    %v6449 = vlaneseq
    %v6450 = vshrl.u32 %v6449, 7
    %v6451 = vsub.s32 %v5726, %v6450
    %v6452 = vrot.slane %v5299, %v6451
    %v6453 = vsel %vm5731, %v6452, %v6448
    %v6454 = vlaneseq
    %v6455 = vshrl.u32 %v6454, 7
    %v6456 = vsub.s32 %v5733, %v6455
    %v6457 = vrot.slane %v5300, %v6456
    %v6458 = vsel %vm5738, %v6457, %v6453
    %v6459 = vlaneseq
    %v6460 = vshrl.u32 %v6459, 7
    %v6461 = vsub.s32 %v5740, %v6460
    %v6462 = vrot.slane %v5301, %v6461
    %v6463 = vsel %vm5745, %v6462, %v6458
    %v6464 = vlaneseq
    %v6465 = vshrl.u32 %v6464, 7
    %v6466 = vsub.s32 %v5747, %v6465
    %v6467 = vrot.slane %v5302, %v6466
    %v6468 = vsel %vm5752, %v6467, %v6463
    %v6469 = vlaneseq
    %v6470 = vshrl.u32 %v6469, 7
    %v6471 = vsub.s32 %v5754, %v6470
    %v6472 = vrot.slane %v5303, %v6471
    %v6473 = vsel %vm5759, %v6472, %v6468
    %v6474 = vlaneseq
    %v6475 = vshrl.u32 %v6474, 7
    %v6476 = vsub.s32 %v5761, %v6475
    %v6477 = vrot.slane %v5304, %v6476
    %v6478 = vsel %vm5766, %v6477, %v6473
    %v6479 = vlaneseq
    %v6480 = vshrl.u32 %v6479, 7
    %v6481 = vsub.s32 %v5658, %v6480
    %v6482 = vrot.slane %v5305, %v6481
    %v6483 = vlaneseq
    %v6484 = vshrl.u32 %v6483, 7
    %v6485 = vsub.s32 %v5663, %v6484
    %v6486 = vrot.slane %v5306, %v6485
    %v6487 = vsel %vm5668, %v6486, %v6482
    %v6488 = vlaneseq
    %v6489 = vshrl.u32 %v6488, 7
    %v6490 = vsub.s32 %v5670, %v6489
    %v6491 = vrot.slane %v5307, %v6490
    %v6492 = vsel %vm5675, %v6491, %v6487
    %v6493 = vlaneseq
    %v6494 = vshrl.u32 %v6493, 7
    %v6495 = vsub.s32 %v5677, %v6494
    %v6496 = vrot.slane %v5308, %v6495
    %v6497 = vsel %vm5682, %v6496, %v6492
    %v6498 = vlaneseq
    %v6499 = vshrl.u32 %v6498, 7
    %v6500 = vsub.s32 %v5684, %v6499
    %v6501 = vrot.slane %v5309, %v6500
    %v6502 = vsel %vm5689, %v6501, %v6497
    %v6503 = vlaneseq
    %v6504 = vshrl.u32 %v6503, 7
    %v6505 = vsub.s32 %v5691, %v6504
    %v6506 = vrot.slane %v5310, %v6505
    %v6507 = vsel %vm5696, %v6506, %v6502
    %v6508 = vlaneseq
    %v6509 = vshrl.u32 %v6508, 7
    %v6510 = vsub.s32 %v5698, %v6509
    %v6511 = vrot.slane %v5311, %v6510
    %v6512 = vsel %vm5703, %v6511, %v6507
    %v6513 = vlaneseq
    %v6514 = vshrl.u32 %v6513, 7
    %v6515 = vsub.s32 %v5705, %v6514
    %v6516 = vrot.slane %v5312, %v6515
    %v6517 = vsel %vm5710, %v6516, %v6512
    %v6518 = vlaneseq
    %v6519 = vshrl.u32 %v6518, 7
    %v6520 = vsub.s32 %v5712, %v6519
    %v6521 = vrot.slane %v5313, %v6520
    %v6522 = vsel %vm5717, %v6521, %v6517
    %v6523 = vlaneseq
    %v6524 = vshrl.u32 %v6523, 7
    %v6525 = vsub.s32 %v5719, %v6524
    %v6526 = vrot.slane %v5314, %v6525
    %v6527 = vsel %vm5724, %v6526, %v6522
    %v6528 = vlaneseq
    %v6529 = vshrl.u32 %v6528, 7
    %v6530 = vsub.s32 %v5726, %v6529
    %v6531 = vrot.slane %v5315, %v6530
    %v6532 = vsel %vm5731, %v6531, %v6527
    %v6533 = vlaneseq
    %v6534 = vshrl.u32 %v6533, 7
    %v6535 = vsub.s32 %v5733, %v6534
    %v6536 = vrot.slane %v5316, %v6535
    %v6537 = vsel %vm5738, %v6536, %v6532
    %v6538 = vlaneseq
    %v6539 = vshrl.u32 %v6538, 7
    %v6540 = vsub.s32 %v5740, %v6539
    %v6541 = vrot.slane %v5317, %v6540
    %v6542 = vsel %vm5745, %v6541, %v6537
    %v6543 = vlaneseq
    %v6544 = vshrl.u32 %v6543, 7
    %v6545 = vsub.s32 %v5747, %v6544
    %v6546 = vrot.slane %v5318, %v6545
    %v6547 = vsel %vm5752, %v6546, %v6542
    %v6548 = vlaneseq
    %v6549 = vshrl.u32 %v6548, 7
    %v6550 = vsub.s32 %v5754, %v6549
    %v6551 = vrot.slane %v5319, %v6550
    %v6552 = vsel %vm5759, %v6551, %v6547
    %v6553 = vlaneseq
    %v6554 = vshrl.u32 %v6553, 7
    %v6555 = vsub.s32 %v5761, %v6554
    %v6556 = vrot.slane %v5320, %v6555
    %v6557 = vsel %vm5766, %v6556, %v6552
    %v6558 = vlaneseq
    %v6559 = vshrl.u32 %v6558, 7
    %v6560 = vsub.s32 %v5658, %v6559
    %v6561 = vrot.slane %v5321, %v6560
    %v6562 = vlaneseq
    %v6563 = vshrl.u32 %v6562, 7
    %v6564 = vsub.s32 %v5663, %v6563
    %v6565 = vrot.slane %v5322, %v6564
    %v6566 = vsel %vm5668, %v6565, %v6561
    %v6567 = vlaneseq
    %v6568 = vshrl.u32 %v6567, 7
    %v6569 = vsub.s32 %v5670, %v6568
    %v6570 = vrot.slane %v5323, %v6569
    %v6571 = vsel %vm5675, %v6570, %v6566
    %v6572 = vlaneseq
    %v6573 = vshrl.u32 %v6572, 7
    %v6574 = vsub.s32 %v5677, %v6573
    %v6575 = vrot.slane %v5324, %v6574
    %v6576 = vsel %vm5682, %v6575, %v6571
    %v6577 = vlaneseq
    %v6578 = vshrl.u32 %v6577, 7
    %v6579 = vsub.s32 %v5684, %v6578
    %v6580 = vrot.slane %v5325, %v6579
    %v6581 = vsel %vm5689, %v6580, %v6576
    %v6582 = vlaneseq
    %v6583 = vshrl.u32 %v6582, 7
    %v6584 = vsub.s32 %v5691, %v6583
    %v6585 = vrot.slane %v5326, %v6584
    %v6586 = vsel %vm5696, %v6585, %v6581
    %v6587 = vlaneseq
    %v6588 = vshrl.u32 %v6587, 7
    %v6589 = vsub.s32 %v5698, %v6588
    %v6590 = vrot.slane %v5327, %v6589
    %v6591 = vsel %vm5703, %v6590, %v6586
    %v6592 = vlaneseq
    %v6593 = vshrl.u32 %v6592, 7
    %v6594 = vsub.s32 %v5705, %v6593
    %v6595 = vrot.slane %v5328, %v6594
    %v6596 = vsel %vm5710, %v6595, %v6591
    %v6597 = vlaneseq
    %v6598 = vshrl.u32 %v6597, 7
    %v6599 = vsub.s32 %v5712, %v6598
    %v6600 = vrot.slane %v5329, %v6599
    %v6601 = vsel %vm5717, %v6600, %v6596
    %v6602 = vlaneseq
    %v6603 = vshrl.u32 %v6602, 7
    %v6604 = vsub.s32 %v5719, %v6603
    %v6605 = vrot.slane %v5330, %v6604
    %v6606 = vsel %vm5724, %v6605, %v6601
    %v6607 = vlaneseq
    %v6608 = vshrl.u32 %v6607, 7
    %v6609 = vsub.s32 %v5726, %v6608
    %v6610 = vrot.slane %v5331, %v6609
    %v6611 = vsel %vm5731, %v6610, %v6606
    %v6612 = vlaneseq
    %v6613 = vshrl.u32 %v6612, 7
    %v6614 = vsub.s32 %v5733, %v6613
    %v6615 = vrot.slane %v5332, %v6614
    %v6616 = vsel %vm5738, %v6615, %v6611
    %v6617 = vlaneseq
    %v6618 = vshrl.u32 %v6617, 7
    %v6619 = vsub.s32 %v5740, %v6618
    %v6620 = vrot.slane %v5333, %v6619
    %v6621 = vsel %vm5745, %v6620, %v6616
    %v6622 = vlaneseq
    %v6623 = vshrl.u32 %v6622, 7
    %v6624 = vsub.s32 %v5747, %v6623
    %v6625 = vrot.slane %v5334, %v6624
    %v6626 = vsel %vm5752, %v6625, %v6621
    %v6627 = vlaneseq
    %v6628 = vshrl.u32 %v6627, 7
    %v6629 = vsub.s32 %v5754, %v6628
    %v6630 = vrot.slane %v5335, %v6629
    %v6631 = vsel %vm5759, %v6630, %v6626
    %v6632 = vlaneseq
    %v6633 = vshrl.u32 %v6632, 7
    %v6634 = vsub.s32 %v5761, %v6633
    %v6635 = vrot.slane %v5336, %v6634
    %v6636 = vsel %vm5766, %v6635, %v6631
    %v6637 = vlaneseq
    %v6638 = vshrl.u32 %v6637, 7
    %v6639 = vsub.s32 %v5658, %v6638
    %v6640 = vrot.slane %v5337, %v6639
    %v6641 = vlaneseq
    %v6642 = vshrl.u32 %v6641, 7
    %v6643 = vsub.s32 %v5663, %v6642
    %v6644 = vrot.slane %v5338, %v6643
    %v6645 = vsel %vm5668, %v6644, %v6640
    %v6646 = vlaneseq
    %v6647 = vshrl.u32 %v6646, 7
    %v6648 = vsub.s32 %v5670, %v6647
    %v6649 = vrot.slane %v5339, %v6648
    %v6650 = vsel %vm5675, %v6649, %v6645
    %v6651 = vlaneseq
    %v6652 = vshrl.u32 %v6651, 7
    %v6653 = vsub.s32 %v5677, %v6652
    %v6654 = vrot.slane %v5340, %v6653
    %v6655 = vsel %vm5682, %v6654, %v6650
    %v6656 = vlaneseq
    %v6657 = vshrl.u32 %v6656, 7
    %v6658 = vsub.s32 %v5684, %v6657
    %v6659 = vrot.slane %v5341, %v6658
    %v6660 = vsel %vm5689, %v6659, %v6655
    %v6661 = vlaneseq
    %v6662 = vshrl.u32 %v6661, 7
    %v6663 = vsub.s32 %v5691, %v6662
    %v6664 = vrot.slane %v5342, %v6663
    %v6665 = vsel %vm5696, %v6664, %v6660
    %v6666 = vlaneseq
    %v6667 = vshrl.u32 %v6666, 7
    %v6668 = vsub.s32 %v5698, %v6667
    %v6669 = vrot.slane %v5343, %v6668
    %v6670 = vsel %vm5703, %v6669, %v6665
    %v6671 = vlaneseq
    %v6672 = vshrl.u32 %v6671, 7
    %v6673 = vsub.s32 %v5705, %v6672
    %v6674 = vrot.slane %v5344, %v6673
    %v6675 = vsel %vm5710, %v6674, %v6670
    %v6676 = vlaneseq
    %v6677 = vshrl.u32 %v6676, 7
    %v6678 = vsub.s32 %v5712, %v6677
    %v6679 = vrot.slane %v5345, %v6678
    %v6680 = vsel %vm5717, %v6679, %v6675
    %v6681 = vlaneseq
    %v6682 = vshrl.u32 %v6681, 7
    %v6683 = vsub.s32 %v5719, %v6682
    %v6684 = vrot.slane %v5346, %v6683
    %v6685 = vsel %vm5724, %v6684, %v6680
    %v6686 = vlaneseq
    %v6687 = vshrl.u32 %v6686, 7
    %v6688 = vsub.s32 %v5726, %v6687
    %v6689 = vrot.slane %v5347, %v6688
    %v6690 = vsel %vm5731, %v6689, %v6685
    %v6691 = vlaneseq
    %v6692 = vshrl.u32 %v6691, 7
    %v6693 = vsub.s32 %v5733, %v6692
    %v6694 = vrot.slane %v5348, %v6693
    %v6695 = vsel %vm5738, %v6694, %v6690
    %v6696 = vlaneseq
    %v6697 = vshrl.u32 %v6696, 7
    %v6698 = vsub.s32 %v5740, %v6697
    %v6699 = vrot.slane %v5349, %v6698
    %v6700 = vsel %vm5745, %v6699, %v6695
    %v6701 = vlaneseq
    %v6702 = vshrl.u32 %v6701, 7
    %v6703 = vsub.s32 %v5747, %v6702
    %v6704 = vrot.slane %v5350, %v6703
    %v6705 = vsel %vm5752, %v6704, %v6700
    %v6706 = vlaneseq
    %v6707 = vshrl.u32 %v6706, 7
    %v6708 = vsub.s32 %v5754, %v6707
    %v6709 = vrot.slane %v5351, %v6708
    %v6710 = vsel %vm5759, %v6709, %v6705
    %v6711 = vlaneseq
    %v6712 = vshrl.u32 %v6711, 7
    %v6713 = vsub.s32 %v5761, %v6712
    %v6714 = vrot.slane %v5352, %v6713
    %v6715 = vsel %vm5766, %v6714, %v6710
    %v6716 = vlaneseq
    %v6717 = vshrl.u32 %v6716, 7
    %v6718 = vsub.s32 %v5658, %v6717
    %v6719 = vrot.slane %v5353, %v6718
    %v6720 = vlaneseq
    %v6721 = vshrl.u32 %v6720, 7
    %v6722 = vsub.s32 %v5663, %v6721
    %v6723 = vrot.slane %v5354, %v6722
    %v6724 = vsel %vm5668, %v6723, %v6719
    %v6725 = vlaneseq
    %v6726 = vshrl.u32 %v6725, 7
    %v6727 = vsub.s32 %v5670, %v6726
    %v6728 = vrot.slane %v5355, %v6727
    %v6729 = vsel %vm5675, %v6728, %v6724
    %v6730 = vlaneseq
    %v6731 = vshrl.u32 %v6730, 7
    %v6732 = vsub.s32 %v5677, %v6731
    %v6733 = vrot.slane %v5356, %v6732
    %v6734 = vsel %vm5682, %v6733, %v6729
    %v6735 = vlaneseq
    %v6736 = vshrl.u32 %v6735, 7
    %v6737 = vsub.s32 %v5684, %v6736
    %v6738 = vrot.slane %v5357, %v6737
    %v6739 = vsel %vm5689, %v6738, %v6734
    %v6740 = vlaneseq
    %v6741 = vshrl.u32 %v6740, 7
    %v6742 = vsub.s32 %v5691, %v6741
    %v6743 = vrot.slane %v5358, %v6742
    %v6744 = vsel %vm5696, %v6743, %v6739
    %v6745 = vlaneseq
    %v6746 = vshrl.u32 %v6745, 7
    %v6747 = vsub.s32 %v5698, %v6746
    %v6748 = vrot.slane %v5359, %v6747
    %v6749 = vsel %vm5703, %v6748, %v6744
    %v6750 = vlaneseq
    %v6751 = vshrl.u32 %v6750, 7
    %v6752 = vsub.s32 %v5705, %v6751
    %v6753 = vrot.slane %v5360, %v6752
    %v6754 = vsel %vm5710, %v6753, %v6749
    %v6755 = vlaneseq
    %v6756 = vshrl.u32 %v6755, 7
    %v6757 = vsub.s32 %v5712, %v6756
    %v6758 = vrot.slane %v5361, %v6757
    %v6759 = vsel %vm5717, %v6758, %v6754
    %v6760 = vlaneseq
    %v6761 = vshrl.u32 %v6760, 7
    %v6762 = vsub.s32 %v5719, %v6761
    %v6763 = vrot.slane %v5362, %v6762
    %v6764 = vsel %vm5724, %v6763, %v6759
    %v6765 = vlaneseq
    %v6766 = vshrl.u32 %v6765, 7
    %v6767 = vsub.s32 %v5726, %v6766
    %v6768 = vrot.slane %v5363, %v6767
    %v6769 = vsel %vm5731, %v6768, %v6764
    %v6770 = vlaneseq
    %v6771 = vshrl.u32 %v6770, 7
    %v6772 = vsub.s32 %v5733, %v6771
    %v6773 = vrot.slane %v5364, %v6772
    %v6774 = vsel %vm5738, %v6773, %v6769
    %v6775 = vlaneseq
    %v6776 = vshrl.u32 %v6775, 7
    %v6777 = vsub.s32 %v5740, %v6776
    %v6778 = vrot.slane %v5365, %v6777
    %v6779 = vsel %vm5745, %v6778, %v6774
    %v6780 = vlaneseq
    %v6781 = vshrl.u32 %v6780, 7
    %v6782 = vsub.s32 %v5747, %v6781
    %v6783 = vrot.slane %v5366, %v6782
    %v6784 = vsel %vm5752, %v6783, %v6779
    %v6785 = vlaneseq
    %v6786 = vshrl.u32 %v6785, 7
    %v6787 = vsub.s32 %v5754, %v6786
    %v6788 = vrot.slane %v5367, %v6787
    %v6789 = vsel %vm5759, %v6788, %v6784
    %v6790 = vlaneseq
    %v6791 = vshrl.u32 %v6790, 7
    %v6792 = vsub.s32 %v5761, %v6791
    %v6793 = vrot.slane %v5368, %v6792
    %v6794 = vsel %vm5766, %v6793, %v6789
    %v6795 = vlaneseq
    %v6796 = vshrl.u32 %v6795, 7
    %v6797 = vsub.s32 %v5658, %v6796
    %v6798 = vrot.slane %v5369, %v6797
    %v6799 = vlaneseq
    %v6800 = vshrl.u32 %v6799, 7
    %v6801 = vsub.s32 %v5663, %v6800
    %v6802 = vrot.slane %v5370, %v6801
    %v6803 = vsel %vm5668, %v6802, %v6798
    %v6804 = vlaneseq
    %v6805 = vshrl.u32 %v6804, 7
    %v6806 = vsub.s32 %v5670, %v6805
    %v6807 = vrot.slane %v5371, %v6806
    %v6808 = vsel %vm5675, %v6807, %v6803
    %v6809 = vlaneseq
    %v6810 = vshrl.u32 %v6809, 7
    %v6811 = vsub.s32 %v5677, %v6810
    %v6812 = vrot.slane %v5372, %v6811
    %v6813 = vsel %vm5682, %v6812, %v6808
    %v6814 = vlaneseq
    %v6815 = vshrl.u32 %v6814, 7
    %v6816 = vsub.s32 %v5684, %v6815
    %v6817 = vrot.slane %v5373, %v6816
    %v6818 = vsel %vm5689, %v6817, %v6813
    %v6819 = vlaneseq
    %v6820 = vshrl.u32 %v6819, 7
    %v6821 = vsub.s32 %v5691, %v6820
    %v6822 = vrot.slane %v5374, %v6821
    %v6823 = vsel %vm5696, %v6822, %v6818
    %v6824 = vlaneseq
    %v6825 = vshrl.u32 %v6824, 7
    %v6826 = vsub.s32 %v5698, %v6825
    %v6827 = vrot.slane %v5375, %v6826
    %v6828 = vsel %vm5703, %v6827, %v6823
    %v6829 = vlaneseq
    %v6830 = vshrl.u32 %v6829, 7
    %v6831 = vsub.s32 %v5705, %v6830
    %v6832 = vrot.slane %v5376, %v6831
    %v6833 = vsel %vm5710, %v6832, %v6828
    %v6834 = vlaneseq
    %v6835 = vshrl.u32 %v6834, 7
    %v6836 = vsub.s32 %v5712, %v6835
    %v6837 = vrot.slane %v5377, %v6836
    %v6838 = vsel %vm5717, %v6837, %v6833
    %v6839 = vlaneseq
    %v6840 = vshrl.u32 %v6839, 7
    %v6841 = vsub.s32 %v5719, %v6840
    %v6842 = vrot.slane %v5378, %v6841
    %v6843 = vsel %vm5724, %v6842, %v6838
    %v6844 = vlaneseq
    %v6845 = vshrl.u32 %v6844, 7
    %v6846 = vsub.s32 %v5726, %v6845
    %v6847 = vrot.slane %v5379, %v6846
    %v6848 = vsel %vm5731, %v6847, %v6843
    %v6849 = vlaneseq
    %v6850 = vshrl.u32 %v6849, 7
    %v6851 = vsub.s32 %v5733, %v6850
    %v6852 = vrot.slane %v5380, %v6851
    %v6853 = vsel %vm5738, %v6852, %v6848
    %v6854 = vlaneseq
    %v6855 = vshrl.u32 %v6854, 7
    %v6856 = vsub.s32 %v5740, %v6855
    %v6857 = vrot.slane %v5381, %v6856
    %v6858 = vsel %vm5745, %v6857, %v6853
    %v6859 = vlaneseq
    %v6860 = vshrl.u32 %v6859, 7
    %v6861 = vsub.s32 %v5747, %v6860
    %v6862 = vrot.slane %v5382, %v6861
    %v6863 = vsel %vm5752, %v6862, %v6858
    %v6864 = vlaneseq
    %v6865 = vshrl.u32 %v6864, 7
    %v6866 = vsub.s32 %v5754, %v6865
    %v6867 = vrot.slane %v5383, %v6866
    %v6868 = vsel %vm5759, %v6867, %v6863
    %v6869 = vlaneseq
    %v6870 = vshrl.u32 %v6869, 7
    %v6871 = vsub.s32 %v5761, %v6870
    %v6872 = vrot.slane %v5384, %v6871
    %v6873 = vsel %vm5766, %v6872, %v6868
    %v6874 = vlaneseq
    %v6875 = vshrl.u32 %v6874, 7
    %v6876 = vsub.s32 %v5658, %v6875
    %v6877 = vrot.slane %v5385, %v6876
    %v6878 = vlaneseq
    %v6879 = vshrl.u32 %v6878, 7
    %v6880 = vsub.s32 %v5663, %v6879
    %v6881 = vrot.slane %v5386, %v6880
    %v6882 = vsel %vm5668, %v6881, %v6877
    %v6883 = vlaneseq
    %v6884 = vshrl.u32 %v6883, 7
    %v6885 = vsub.s32 %v5670, %v6884
    %v6886 = vrot.slane %v5387, %v6885
    %v6887 = vsel %vm5675, %v6886, %v6882
    %v6888 = vlaneseq
    %v6889 = vshrl.u32 %v6888, 7
    %v6890 = vsub.s32 %v5677, %v6889
    %v6891 = vrot.slane %v5388, %v6890
    %v6892 = vsel %vm5682, %v6891, %v6887
    %v6893 = vlaneseq
    %v6894 = vshrl.u32 %v6893, 7
    %v6895 = vsub.s32 %v5684, %v6894
    %v6896 = vrot.slane %v5389, %v6895
    %v6897 = vsel %vm5689, %v6896, %v6892
    %v6898 = vlaneseq
    %v6899 = vshrl.u32 %v6898, 7
    %v6900 = vsub.s32 %v5691, %v6899
    %v6901 = vrot.slane %v5390, %v6900
    %v6902 = vsel %vm5696, %v6901, %v6897
    %v6903 = vlaneseq
    %v6904 = vshrl.u32 %v6903, 7
    %v6905 = vsub.s32 %v5698, %v6904
    %v6906 = vrot.slane %v5391, %v6905
    %v6907 = vsel %vm5703, %v6906, %v6902
    %v6908 = vlaneseq
    %v6909 = vshrl.u32 %v6908, 7
    %v6910 = vsub.s32 %v5705, %v6909
    %v6911 = vrot.slane %v5392, %v6910
    %v6912 = vsel %vm5710, %v6911, %v6907
    %v6913 = vlaneseq
    %v6914 = vshrl.u32 %v6913, 7
    %v6915 = vsub.s32 %v5712, %v6914
    %v6916 = vrot.slane %v5393, %v6915
    %v6917 = vsel %vm5717, %v6916, %v6912
    %v6918 = vlaneseq
    %v6919 = vshrl.u32 %v6918, 7
    %v6920 = vsub.s32 %v5719, %v6919
    %v6921 = vrot.slane %v5394, %v6920
    %v6922 = vsel %vm5724, %v6921, %v6917
    %v6923 = vlaneseq
    %v6924 = vshrl.u32 %v6923, 7
    %v6925 = vsub.s32 %v5726, %v6924
    %v6926 = vrot.slane %v5395, %v6925
    %v6927 = vsel %vm5731, %v6926, %v6922
    %v6928 = vlaneseq
    %v6929 = vshrl.u32 %v6928, 7
    %v6930 = vsub.s32 %v5733, %v6929
    %v6931 = vrot.slane %v5396, %v6930
    %v6932 = vsel %vm5738, %v6931, %v6927
    %v6933 = vlaneseq
    %v6934 = vshrl.u32 %v6933, 7
    %v6935 = vsub.s32 %v5740, %v6934
    %v6936 = vrot.slane %v5397, %v6935
    %v6937 = vsel %vm5745, %v6936, %v6932
    %v6938 = vlaneseq
    %v6939 = vshrl.u32 %v6938, 7
    %v6940 = vsub.s32 %v5747, %v6939
    %v6941 = vrot.slane %v5398, %v6940
    %v6942 = vsel %vm5752, %v6941, %v6937
    %v6943 = vlaneseq
    %v6944 = vshrl.u32 %v6943, 7
    %v6945 = vsub.s32 %v5754, %v6944
    %v6946 = vrot.slane %v5399, %v6945
    %v6947 = vsel %vm5759, %v6946, %v6942
    %v6948 = vlaneseq
    %v6949 = vshrl.u32 %v6948, 7
    %v6950 = vsub.s32 %v5761, %v6949
    %v6951 = vrot.slane %v5400, %v6950
    %v6952 = vsel %vm5766, %v6951, %v6947
    %v6953 = vlaneseq
    %v6954 = vshrl.u32 %v6953, 7
    %v6955 = vsub.s32 %v5658, %v6954
    %v6956 = vrot.slane %v5401, %v6955
    %v6957 = vlaneseq
    %v6958 = vshrl.u32 %v6957, 7
    %v6959 = vsub.s32 %v5663, %v6958
    %v6960 = vrot.slane %v5402, %v6959
    %v6961 = vsel %vm5668, %v6960, %v6956
    %v6962 = vlaneseq
    %v6963 = vshrl.u32 %v6962, 7
    %v6964 = vsub.s32 %v5670, %v6963
    %v6965 = vrot.slane %v5403, %v6964
    %v6966 = vsel %vm5675, %v6965, %v6961
    %v6967 = vlaneseq
    %v6968 = vshrl.u32 %v6967, 7
    %v6969 = vsub.s32 %v5677, %v6968
    %v6970 = vrot.slane %v5404, %v6969
    %v6971 = vsel %vm5682, %v6970, %v6966
    %v6972 = vlaneseq
    %v6973 = vshrl.u32 %v6972, 7
    %v6974 = vsub.s32 %v5684, %v6973
    %v6975 = vrot.slane %v5405, %v6974
    %v6976 = vsel %vm5689, %v6975, %v6971
    %v6977 = vlaneseq
    %v6978 = vshrl.u32 %v6977, 7
    %v6979 = vsub.s32 %v5691, %v6978
    %v6980 = vrot.slane %v5406, %v6979
    %v6981 = vsel %vm5696, %v6980, %v6976
    %v6982 = vlaneseq
    %v6983 = vshrl.u32 %v6982, 7
    %v6984 = vsub.s32 %v5698, %v6983
    %v6985 = vrot.slane %v5407, %v6984
    %v6986 = vsel %vm5703, %v6985, %v6981
    %v6987 = vlaneseq
    %v6988 = vshrl.u32 %v6987, 7
    %v6989 = vsub.s32 %v5705, %v6988
    %v6990 = vrot.slane %v5408, %v6989
    %v6991 = vsel %vm5710, %v6990, %v6986
    %v6992 = vlaneseq
    %v6993 = vshrl.u32 %v6992, 7
    %v6994 = vsub.s32 %v5712, %v6993
    %v6995 = vrot.slane %v5409, %v6994
    %v6996 = vsel %vm5717, %v6995, %v6991
    %v6997 = vlaneseq
    %v6998 = vshrl.u32 %v6997, 7
    %v6999 = vsub.s32 %v5719, %v6998
    %v7000 = vrot.slane %v5410, %v6999
    %v7001 = vsel %vm5724, %v7000, %v6996
    %v7002 = vlaneseq
    %v7003 = vshrl.u32 %v7002, 7
    %v7004 = vsub.s32 %v5726, %v7003
    %v7005 = vrot.slane %v5411, %v7004
    %v7006 = vsel %vm5731, %v7005, %v7001
    %v7007 = vlaneseq
    %v7008 = vshrl.u32 %v7007, 7
    %v7009 = vsub.s32 %v5733, %v7008
    %v7010 = vrot.slane %v5412, %v7009
    %v7011 = vsel %vm5738, %v7010, %v7006
    %v7012 = vlaneseq
    %v7013 = vshrl.u32 %v7012, 7
    %v7014 = vsub.s32 %v5740, %v7013
    %v7015 = vrot.slane %v5413, %v7014
    %v7016 = vsel %vm5745, %v7015, %v7011
    %v7017 = vlaneseq
    %v7018 = vshrl.u32 %v7017, 7
    %v7019 = vsub.s32 %v5747, %v7018
    %v7020 = vrot.slane %v5414, %v7019
    %v7021 = vsel %vm5752, %v7020, %v7016
    %v7022 = vlaneseq
    %v7023 = vshrl.u32 %v7022, 7
    %v7024 = vsub.s32 %v5754, %v7023
    %v7025 = vrot.slane %v5415, %v7024
    %v7026 = vsel %vm5759, %v7025, %v7021
    %v7027 = vlaneseq
    %v7028 = vshrl.u32 %v7027, 7
    %v7029 = vsub.s32 %v5761, %v7028
    %v7030 = vrot.slane %v5416, %v7029
    %v7031 = vsel %vm5766, %v7030, %v7026
    %v7032 = vlaneseq
    %v7033 = vshrl.u32 %v7032, 7
    %v7034 = vsub.s32 %v5658, %v7033
    %v7035 = vrot.slane %v5417, %v7034
    %v7036 = vlaneseq
    %v7037 = vshrl.u32 %v7036, 7
    %v7038 = vsub.s32 %v5663, %v7037
    %v7039 = vrot.slane %v5418, %v7038
    %v7040 = vsel %vm5668, %v7039, %v7035
    %v7041 = vlaneseq
    %v7042 = vshrl.u32 %v7041, 7
    %v7043 = vsub.s32 %v5670, %v7042
    %v7044 = vrot.slane %v5419, %v7043
    %v7045 = vsel %vm5675, %v7044, %v7040
    %v7046 = vlaneseq
    %v7047 = vshrl.u32 %v7046, 7
    %v7048 = vsub.s32 %v5677, %v7047
    %v7049 = vrot.slane %v5420, %v7048
    %v7050 = vsel %vm5682, %v7049, %v7045
    %v7051 = vlaneseq
    %v7052 = vshrl.u32 %v7051, 7
    %v7053 = vsub.s32 %v5684, %v7052
    %v7054 = vrot.slane %v5421, %v7053
    %v7055 = vsel %vm5689, %v7054, %v7050
    %v7056 = vlaneseq
    %v7057 = vshrl.u32 %v7056, 7
    %v7058 = vsub.s32 %v5691, %v7057
    %v7059 = vrot.slane %v5422, %v7058
    %v7060 = vsel %vm5696, %v7059, %v7055
    %v7061 = vlaneseq
    %v7062 = vshrl.u32 %v7061, 7
    %v7063 = vsub.s32 %v5698, %v7062
    %v7064 = vrot.slane %v5423, %v7063
    %v7065 = vsel %vm5703, %v7064, %v7060
    %v7066 = vlaneseq
    %v7067 = vshrl.u32 %v7066, 7
    %v7068 = vsub.s32 %v5705, %v7067
    %v7069 = vrot.slane %v5424, %v7068
    %v7070 = vsel %vm5710, %v7069, %v7065
    %v7071 = vlaneseq
    %v7072 = vshrl.u32 %v7071, 7
    %v7073 = vsub.s32 %v5712, %v7072
    %v7074 = vrot.slane %v5425, %v7073
    %v7075 = vsel %vm5717, %v7074, %v7070
    %v7076 = vlaneseq
    %v7077 = vshrl.u32 %v7076, 7
    %v7078 = vsub.s32 %v5719, %v7077
    %v7079 = vrot.slane %v5426, %v7078
    %v7080 = vsel %vm5724, %v7079, %v7075
    %v7081 = vlaneseq
    %v7082 = vshrl.u32 %v7081, 7
    %v7083 = vsub.s32 %v5726, %v7082
    %v7084 = vrot.slane %v5427, %v7083
    %v7085 = vsel %vm5731, %v7084, %v7080
    %v7086 = vlaneseq
    %v7087 = vshrl.u32 %v7086, 7
    %v7088 = vsub.s32 %v5733, %v7087
    %v7089 = vrot.slane %v5428, %v7088
    %v7090 = vsel %vm5738, %v7089, %v7085
    %v7091 = vlaneseq
    %v7092 = vshrl.u32 %v7091, 7
    %v7093 = vsub.s32 %v5740, %v7092
    %v7094 = vrot.slane %v5429, %v7093
    %v7095 = vsel %vm5745, %v7094, %v7090
    %v7096 = vlaneseq
    %v7097 = vshrl.u32 %v7096, 7
    %v7098 = vsub.s32 %v5747, %v7097
    %v7099 = vrot.slane %v5430, %v7098
    %v7100 = vsel %vm5752, %v7099, %v7095
    %v7101 = vlaneseq
    %v7102 = vshrl.u32 %v7101, 7
    %v7103 = vsub.s32 %v5754, %v7102
    %v7104 = vrot.slane %v5431, %v7103
    %v7105 = vsel %vm5759, %v7104, %v7100
    %v7106 = vlaneseq
    %v7107 = vshrl.u32 %v7106, 7
    %v7108 = vsub.s32 %v5761, %v7107
    %v7109 = vrot.slane %v5432, %v7108
    %v7110 = vsel %vm5766, %v7109, %v7105
    %v7111 = vlaneseq
    %v7112 = vshrl.u32 %v7111, 7
    %v7113 = vsub.s32 %v5658, %v7112
    %v7114 = vrot.slane %v5433, %v7113
    %v7115 = vlaneseq
    %v7116 = vshrl.u32 %v7115, 7
    %v7117 = vsub.s32 %v5663, %v7116
    %v7118 = vrot.slane %v5434, %v7117
    %v7119 = vsel %vm5668, %v7118, %v7114
    %v7120 = vlaneseq
    %v7121 = vshrl.u32 %v7120, 7
    %v7122 = vsub.s32 %v5670, %v7121
    %v7123 = vrot.slane %v5435, %v7122
    %v7124 = vsel %vm5675, %v7123, %v7119
    %v7125 = vlaneseq
    %v7126 = vshrl.u32 %v7125, 7
    %v7127 = vsub.s32 %v5677, %v7126
    %v7128 = vrot.slane %v5436, %v7127
    %v7129 = vsel %vm5682, %v7128, %v7124
    %v7130 = vlaneseq
    %v7131 = vshrl.u32 %v7130, 7
    %v7132 = vsub.s32 %v5684, %v7131
    %v7133 = vrot.slane %v5437, %v7132
    %v7134 = vsel %vm5689, %v7133, %v7129
    %v7135 = vlaneseq
    %v7136 = vshrl.u32 %v7135, 7
    %v7137 = vsub.s32 %v5691, %v7136
    %v7138 = vrot.slane %v5438, %v7137
    %v7139 = vsel %vm5696, %v7138, %v7134
    %v7140 = vlaneseq
    %v7141 = vshrl.u32 %v7140, 7
    %v7142 = vsub.s32 %v5698, %v7141
    %v7143 = vrot.slane %v5439, %v7142
    %v7144 = vsel %vm5703, %v7143, %v7139
    %v7145 = vlaneseq
    %v7146 = vshrl.u32 %v7145, 7
    %v7147 = vsub.s32 %v5705, %v7146
    %v7148 = vrot.slane %v5440, %v7147
    %v7149 = vsel %vm5710, %v7148, %v7144
    %v7150 = vlaneseq
    %v7151 = vshrl.u32 %v7150, 7
    %v7152 = vsub.s32 %v5712, %v7151
    %v7153 = vrot.slane %v5441, %v7152
    %v7154 = vsel %vm5717, %v7153, %v7149
    %v7155 = vlaneseq
    %v7156 = vshrl.u32 %v7155, 7
    %v7157 = vsub.s32 %v5719, %v7156
    %v7158 = vrot.slane %v5442, %v7157
    %v7159 = vsel %vm5724, %v7158, %v7154
    %v7160 = vlaneseq
    %v7161 = vshrl.u32 %v7160, 7
    %v7162 = vsub.s32 %v5726, %v7161
    %v7163 = vrot.slane %v5443, %v7162
    %v7164 = vsel %vm5731, %v7163, %v7159
    %v7165 = vlaneseq
    %v7166 = vshrl.u32 %v7165, 7
    %v7167 = vsub.s32 %v5733, %v7166
    %v7168 = vrot.slane %v5444, %v7167
    %v7169 = vsel %vm5738, %v7168, %v7164
    %v7170 = vlaneseq
    %v7171 = vshrl.u32 %v7170, 7
    %v7172 = vsub.s32 %v5740, %v7171
    %v7173 = vrot.slane %v5445, %v7172
    %v7174 = vsel %vm5745, %v7173, %v7169
    %v7175 = vlaneseq
    %v7176 = vshrl.u32 %v7175, 7
    %v7177 = vsub.s32 %v5747, %v7176
    %v7178 = vrot.slane %v5446, %v7177
    %v7179 = vsel %vm5752, %v7178, %v7174
    %v7180 = vlaneseq
    %v7181 = vshrl.u32 %v7180, 7
    %v7182 = vsub.s32 %v5754, %v7181
    %v7183 = vrot.slane %v5447, %v7182
    %v7184 = vsel %vm5759, %v7183, %v7179
    %v7185 = vlaneseq
    %v7186 = vshrl.u32 %v7185, 7
    %v7187 = vsub.s32 %v5761, %v7186
    %v7188 = vrot.slane %v5448, %v7187
    %v7189 = vsel %vm5766, %v7188, %v7184
    %v7190 = vlaneseq
    %v7191 = vshrl.u32 %v7190, 7
    %v7192 = vsub.s32 %v5658, %v7191
    %v7193 = vrot.slane %v5449, %v7192
    %v7194 = vlaneseq
    %v7195 = vshrl.u32 %v7194, 7
    %v7196 = vsub.s32 %v5663, %v7195
    %v7197 = vrot.slane %v5450, %v7196
    %v7198 = vsel %vm5668, %v7197, %v7193
    %v7199 = vlaneseq
    %v7200 = vshrl.u32 %v7199, 7
    %v7201 = vsub.s32 %v5670, %v7200
    %v7202 = vrot.slane %v5451, %v7201
    %v7203 = vsel %vm5675, %v7202, %v7198
    %v7204 = vlaneseq
    %v7205 = vshrl.u32 %v7204, 7
    %v7206 = vsub.s32 %v5677, %v7205
    %v7207 = vrot.slane %v5452, %v7206
    %v7208 = vsel %vm5682, %v7207, %v7203
    %v7209 = vlaneseq
    %v7210 = vshrl.u32 %v7209, 7
    %v7211 = vsub.s32 %v5684, %v7210
    %v7212 = vrot.slane %v5453, %v7211
    %v7213 = vsel %vm5689, %v7212, %v7208
    %v7214 = vlaneseq
    %v7215 = vshrl.u32 %v7214, 7
    %v7216 = vsub.s32 %v5691, %v7215
    %v7217 = vrot.slane %v5454, %v7216
    %v7218 = vsel %vm5696, %v7217, %v7213
    %v7219 = vlaneseq
    %v7220 = vshrl.u32 %v7219, 7
    %v7221 = vsub.s32 %v5698, %v7220
    %v7222 = vrot.slane %v5455, %v7221
    %v7223 = vsel %vm5703, %v7222, %v7218
    %v7224 = vlaneseq
    %v7225 = vshrl.u32 %v7224, 7
    %v7226 = vsub.s32 %v5705, %v7225
    %v7227 = vrot.slane %v5456, %v7226
    %v7228 = vsel %vm5710, %v7227, %v7223
    %v7229 = vlaneseq
    %v7230 = vshrl.u32 %v7229, 7
    %v7231 = vsub.s32 %v5712, %v7230
    %v7232 = vrot.slane %v5457, %v7231
    %v7233 = vsel %vm5717, %v7232, %v7228
    %v7234 = vlaneseq
    %v7235 = vshrl.u32 %v7234, 7
    %v7236 = vsub.s32 %v5719, %v7235
    %v7237 = vrot.slane %v5458, %v7236
    %v7238 = vsel %vm5724, %v7237, %v7233
    %v7239 = vlaneseq
    %v7240 = vshrl.u32 %v7239, 7
    %v7241 = vsub.s32 %v5726, %v7240
    %v7242 = vrot.slane %v5459, %v7241
    %v7243 = vsel %vm5731, %v7242, %v7238
    %v7244 = vlaneseq
    %v7245 = vshrl.u32 %v7244, 7
    %v7246 = vsub.s32 %v5733, %v7245
    %v7247 = vrot.slane %v5460, %v7246
    %v7248 = vsel %vm5738, %v7247, %v7243
    %v7249 = vlaneseq
    %v7250 = vshrl.u32 %v7249, 7
    %v7251 = vsub.s32 %v5740, %v7250
    %v7252 = vrot.slane %v5461, %v7251
    %v7253 = vsel %vm5745, %v7252, %v7248
    %v7254 = vlaneseq
    %v7255 = vshrl.u32 %v7254, 7
    %v7256 = vsub.s32 %v5747, %v7255
    %v7257 = vrot.slane %v5462, %v7256
    %v7258 = vsel %vm5752, %v7257, %v7253
    %v7259 = vlaneseq
    %v7260 = vshrl.u32 %v7259, 7
    %v7261 = vsub.s32 %v5754, %v7260
    %v7262 = vrot.slane %v5463, %v7261
    %v7263 = vsel %vm5759, %v7262, %v7258
    %v7264 = vlaneseq
    %v7265 = vshrl.u32 %v7264, 7
    %v7266 = vsub.s32 %v5761, %v7265
    %v7267 = vrot.slane %v5464, %v7266
    %v7268 = vsel %vm5766, %v7267, %v7263
    %v7269 = vlaneseq
    %v7270 = vshrl.u32 %v7269, 7
    %v7271 = vsub.s32 %v5658, %v7270
    %v7272 = vrot.slane %v5465, %v7271
    %v7273 = vlaneseq
    %v7274 = vshrl.u32 %v7273, 7
    %v7275 = vsub.s32 %v5663, %v7274
    %v7276 = vrot.slane %v5466, %v7275
    %v7277 = vsel %vm5668, %v7276, %v7272
    %v7278 = vlaneseq
    %v7279 = vshrl.u32 %v7278, 7
    %v7280 = vsub.s32 %v5670, %v7279
    %v7281 = vrot.slane %v5467, %v7280
    %v7282 = vsel %vm5675, %v7281, %v7277
    %v7283 = vlaneseq
    %v7284 = vshrl.u32 %v7283, 7
    %v7285 = vsub.s32 %v5677, %v7284
    %v7286 = vrot.slane %v5468, %v7285
    %v7287 = vsel %vm5682, %v7286, %v7282
    %v7288 = vlaneseq
    %v7289 = vshrl.u32 %v7288, 7
    %v7290 = vsub.s32 %v5684, %v7289
    %v7291 = vrot.slane %v5469, %v7290
    %v7292 = vsel %vm5689, %v7291, %v7287
    %v7293 = vlaneseq
    %v7294 = vshrl.u32 %v7293, 7
    %v7295 = vsub.s32 %v5691, %v7294
    %v7296 = vrot.slane %v5470, %v7295
    %v7297 = vsel %vm5696, %v7296, %v7292
    %v7298 = vlaneseq
    %v7299 = vshrl.u32 %v7298, 7
    %v7300 = vsub.s32 %v5698, %v7299
    %v7301 = vrot.slane %v5471, %v7300
    %v7302 = vsel %vm5703, %v7301, %v7297
    %v7303 = vlaneseq
    %v7304 = vshrl.u32 %v7303, 7
    %v7305 = vsub.s32 %v5705, %v7304
    %v7306 = vrot.slane %v5472, %v7305
    %v7307 = vsel %vm5710, %v7306, %v7302
    %v7308 = vlaneseq
    %v7309 = vshrl.u32 %v7308, 7
    %v7310 = vsub.s32 %v5712, %v7309
    %v7311 = vrot.slane %v5473, %v7310
    %v7312 = vsel %vm5717, %v7311, %v7307
    %v7313 = vlaneseq
    %v7314 = vshrl.u32 %v7313, 7
    %v7315 = vsub.s32 %v5719, %v7314
    %v7316 = vrot.slane %v5474, %v7315
    %v7317 = vsel %vm5724, %v7316, %v7312
    %v7318 = vlaneseq
    %v7319 = vshrl.u32 %v7318, 7
    %v7320 = vsub.s32 %v5726, %v7319
    %v7321 = vrot.slane %v5475, %v7320
    %v7322 = vsel %vm5731, %v7321, %v7317
    %v7323 = vlaneseq
    %v7324 = vshrl.u32 %v7323, 7
    %v7325 = vsub.s32 %v5733, %v7324
    %v7326 = vrot.slane %v5476, %v7325
    %v7327 = vsel %vm5738, %v7326, %v7322
    %v7328 = vlaneseq
    %v7329 = vshrl.u32 %v7328, 7
    %v7330 = vsub.s32 %v5740, %v7329
    %v7331 = vrot.slane %v5477, %v7330
    %v7332 = vsel %vm5745, %v7331, %v7327
    %v7333 = vlaneseq
    %v7334 = vshrl.u32 %v7333, 7
    %v7335 = vsub.s32 %v5747, %v7334
    %v7336 = vrot.slane %v5478, %v7335
    %v7337 = vsel %vm5752, %v7336, %v7332
    %v7338 = vlaneseq
    %v7339 = vshrl.u32 %v7338, 7
    %v7340 = vsub.s32 %v5754, %v7339
    %v7341 = vrot.slane %v5479, %v7340
    %v7342 = vsel %vm5759, %v7341, %v7337
    %v7343 = vlaneseq
    %v7344 = vshrl.u32 %v7343, 7
    %v7345 = vsub.s32 %v5761, %v7344
    %v7346 = vrot.slane %v5480, %v7345
    %v7347 = vsel %vm5766, %v7346, %v7342
    %v7348 = vlaneseq
    %v7349 = vshrl.u32 %v7348, 7
    %v7350 = vsub.s32 %v5658, %v7349
    %v7351 = vrot.slane %v5481, %v7350
    %v7352 = vlaneseq
    %v7353 = vshrl.u32 %v7352, 7
    %v7354 = vsub.s32 %v5663, %v7353
    %v7355 = vrot.slane %v5482, %v7354
    %v7356 = vsel %vm5668, %v7355, %v7351
    %v7357 = vlaneseq
    %v7358 = vshrl.u32 %v7357, 7
    %v7359 = vsub.s32 %v5670, %v7358
    %v7360 = vrot.slane %v5483, %v7359
    %v7361 = vsel %vm5675, %v7360, %v7356
    %v7362 = vlaneseq
    %v7363 = vshrl.u32 %v7362, 7
    %v7364 = vsub.s32 %v5677, %v7363
    %v7365 = vrot.slane %v5484, %v7364
    %v7366 = vsel %vm5682, %v7365, %v7361
    %v7367 = vlaneseq
    %v7368 = vshrl.u32 %v7367, 7
    %v7369 = vsub.s32 %v5684, %v7368
    %v7370 = vrot.slane %v5485, %v7369
    %v7371 = vsel %vm5689, %v7370, %v7366
    %v7372 = vlaneseq
    %v7373 = vshrl.u32 %v7372, 7
    %v7374 = vsub.s32 %v5691, %v7373
    %v7375 = vrot.slane %v5486, %v7374
    %v7376 = vsel %vm5696, %v7375, %v7371
    %v7377 = vlaneseq
    %v7378 = vshrl.u32 %v7377, 7
    %v7379 = vsub.s32 %v5698, %v7378
    %v7380 = vrot.slane %v5487, %v7379
    %v7381 = vsel %vm5703, %v7380, %v7376
    %v7382 = vlaneseq
    %v7383 = vshrl.u32 %v7382, 7
    %v7384 = vsub.s32 %v5705, %v7383
    %v7385 = vrot.slane %v5488, %v7384
    %v7386 = vsel %vm5710, %v7385, %v7381
    %v7387 = vlaneseq
    %v7388 = vshrl.u32 %v7387, 7
    %v7389 = vsub.s32 %v5712, %v7388
    %v7390 = vrot.slane %v5489, %v7389
    %v7391 = vsel %vm5717, %v7390, %v7386
    %v7392 = vlaneseq
    %v7393 = vshrl.u32 %v7392, 7
    %v7394 = vsub.s32 %v5719, %v7393
    %v7395 = vrot.slane %v5490, %v7394
    %v7396 = vsel %vm5724, %v7395, %v7391
    %v7397 = vlaneseq
    %v7398 = vshrl.u32 %v7397, 7
    %v7399 = vsub.s32 %v5726, %v7398
    %v7400 = vrot.slane %v5491, %v7399
    %v7401 = vsel %vm5731, %v7400, %v7396
    %v7402 = vlaneseq
    %v7403 = vshrl.u32 %v7402, 7
    %v7404 = vsub.s32 %v5733, %v7403
    %v7405 = vrot.slane %v5492, %v7404
    %v7406 = vsel %vm5738, %v7405, %v7401
    %v7407 = vlaneseq
    %v7408 = vshrl.u32 %v7407, 7
    %v7409 = vsub.s32 %v5740, %v7408
    %v7410 = vrot.slane %v5493, %v7409
    %v7411 = vsel %vm5745, %v7410, %v7406
    %v7412 = vlaneseq
    %v7413 = vshrl.u32 %v7412, 7
    %v7414 = vsub.s32 %v5747, %v7413
    %v7415 = vrot.slane %v5494, %v7414
    %v7416 = vsel %vm5752, %v7415, %v7411
    %v7417 = vlaneseq
    %v7418 = vshrl.u32 %v7417, 7
    %v7419 = vsub.s32 %v5754, %v7418
    %v7420 = vrot.slane %v5495, %v7419
    %v7421 = vsel %vm5759, %v7420, %v7416
    %v7422 = vlaneseq
    %v7423 = vshrl.u32 %v7422, 7
    %v7424 = vsub.s32 %v5761, %v7423
    %v7425 = vrot.slane %v5496, %v7424
    %v7426 = vsel %vm5766, %v7425, %v7421
    %v7427 = vlaneseq
    %v7428 = vshrl.u32 %v7427, 7
    %v7429 = vsub.s32 %v5658, %v7428
    %v7430 = vrot.slane %v5497, %v7429
    %v7431 = vlaneseq
    %v7432 = vshrl.u32 %v7431, 7
    %v7433 = vsub.s32 %v5663, %v7432
    %v7434 = vrot.slane %v5498, %v7433
    %v7435 = vsel %vm5668, %v7434, %v7430
    %v7436 = vlaneseq
    %v7437 = vshrl.u32 %v7436, 7
    %v7438 = vsub.s32 %v5670, %v7437
    %v7439 = vrot.slane %v5499, %v7438
    %v7440 = vsel %vm5675, %v7439, %v7435
    %v7441 = vlaneseq
    %v7442 = vshrl.u32 %v7441, 7
    %v7443 = vsub.s32 %v5677, %v7442
    %v7444 = vrot.slane %v5500, %v7443
    %v7445 = vsel %vm5682, %v7444, %v7440
    %v7446 = vlaneseq
    %v7447 = vshrl.u32 %v7446, 7
    %v7448 = vsub.s32 %v5684, %v7447
    %v7449 = vrot.slane %v5501, %v7448
    %v7450 = vsel %vm5689, %v7449, %v7445
    %v7451 = vlaneseq
    %v7452 = vshrl.u32 %v7451, 7
    %v7453 = vsub.s32 %v5691, %v7452
    %v7454 = vrot.slane %v5502, %v7453
    %v7455 = vsel %vm5696, %v7454, %v7450
    %v7456 = vlaneseq
    %v7457 = vshrl.u32 %v7456, 7
    %v7458 = vsub.s32 %v5698, %v7457
    %v7459 = vrot.slane %v5503, %v7458
    %v7460 = vsel %vm5703, %v7459, %v7455
    %v7461 = vlaneseq
    %v7462 = vshrl.u32 %v7461, 7
    %v7463 = vsub.s32 %v5705, %v7462
    %v7464 = vrot.slane %v5504, %v7463
    %v7465 = vsel %vm5710, %v7464, %v7460
    %v7466 = vlaneseq
    %v7467 = vshrl.u32 %v7466, 7
    %v7468 = vsub.s32 %v5712, %v7467
    %v7469 = vrot.slane %v5505, %v7468
    %v7470 = vsel %vm5717, %v7469, %v7465
    %v7471 = vlaneseq
    %v7472 = vshrl.u32 %v7471, 7
    %v7473 = vsub.s32 %v5719, %v7472
    %v7474 = vrot.slane %v5506, %v7473
    %v7475 = vsel %vm5724, %v7474, %v7470
    %v7476 = vlaneseq
    %v7477 = vshrl.u32 %v7476, 7
    %v7478 = vsub.s32 %v5726, %v7477
    %v7479 = vrot.slane %v5507, %v7478
    %v7480 = vsel %vm5731, %v7479, %v7475
    %v7481 = vlaneseq
    %v7482 = vshrl.u32 %v7481, 7
    %v7483 = vsub.s32 %v5733, %v7482
    %v7484 = vrot.slane %v5508, %v7483
    %v7485 = vsel %vm5738, %v7484, %v7480
    %v7486 = vlaneseq
    %v7487 = vshrl.u32 %v7486, 7
    %v7488 = vsub.s32 %v5740, %v7487
    %v7489 = vrot.slane %v5509, %v7488
    %v7490 = vsel %vm5745, %v7489, %v7485
    %v7491 = vlaneseq
    %v7492 = vshrl.u32 %v7491, 7
    %v7493 = vsub.s32 %v5747, %v7492
    %v7494 = vrot.slane %v5510, %v7493
    %v7495 = vsel %vm5752, %v7494, %v7490
    %v7496 = vlaneseq
    %v7497 = vshrl.u32 %v7496, 7
    %v7498 = vsub.s32 %v5754, %v7497
    %v7499 = vrot.slane %v5511, %v7498
    %v7500 = vsel %vm5759, %v7499, %v7495
    %v7501 = vlaneseq
    %v7502 = vshrl.u32 %v7501, 7
    %v7503 = vsub.s32 %v5761, %v7502
    %v7504 = vrot.slane %v5512, %v7503
    %v7505 = vsel %vm5766, %v7504, %v7500
    %v7506 = vlaneseq
    %v7507 = vshrl.u32 %v7506, 7
    %v7508 = vsub.s32 %v5658, %v7507
    %v7509 = vrot.slane %v5513, %v7508
    %v7510 = vlaneseq
    %v7511 = vshrl.u32 %v7510, 7
    %v7512 = vsub.s32 %v5663, %v7511
    %v7513 = vrot.slane %v5514, %v7512
    %v7514 = vsel %vm5668, %v7513, %v7509
    %v7515 = vlaneseq
    %v7516 = vshrl.u32 %v7515, 7
    %v7517 = vsub.s32 %v5670, %v7516
    %v7518 = vrot.slane %v5515, %v7517
    %v7519 = vsel %vm5675, %v7518, %v7514
    %v7520 = vlaneseq
    %v7521 = vshrl.u32 %v7520, 7
    %v7522 = vsub.s32 %v5677, %v7521
    %v7523 = vrot.slane %v5516, %v7522
    %v7524 = vsel %vm5682, %v7523, %v7519
    %v7525 = vlaneseq
    %v7526 = vshrl.u32 %v7525, 7
    %v7527 = vsub.s32 %v5684, %v7526
    %v7528 = vrot.slane %v5517, %v7527
    %v7529 = vsel %vm5689, %v7528, %v7524
    %v7530 = vlaneseq
    %v7531 = vshrl.u32 %v7530, 7
    %v7532 = vsub.s32 %v5691, %v7531
    %v7533 = vrot.slane %v5518, %v7532
    %v7534 = vsel %vm5696, %v7533, %v7529
    %v7535 = vlaneseq
    %v7536 = vshrl.u32 %v7535, 7
    %v7537 = vsub.s32 %v5698, %v7536
    %v7538 = vrot.slane %v5519, %v7537
    %v7539 = vsel %vm5703, %v7538, %v7534
    %v7540 = vlaneseq
    %v7541 = vshrl.u32 %v7540, 7
    %v7542 = vsub.s32 %v5705, %v7541
    %v7543 = vrot.slane %v5520, %v7542
    %v7544 = vsel %vm5710, %v7543, %v7539
    %v7545 = vlaneseq
    %v7546 = vshrl.u32 %v7545, 7
    %v7547 = vsub.s32 %v5712, %v7546
    %v7548 = vrot.slane %v5521, %v7547
    %v7549 = vsel %vm5717, %v7548, %v7544
    %v7550 = vlaneseq
    %v7551 = vshrl.u32 %v7550, 7
    %v7552 = vsub.s32 %v5719, %v7551
    %v7553 = vrot.slane %v5522, %v7552
    %v7554 = vsel %vm5724, %v7553, %v7549
    %v7555 = vlaneseq
    %v7556 = vshrl.u32 %v7555, 7
    %v7557 = vsub.s32 %v5726, %v7556
    %v7558 = vrot.slane %v5523, %v7557
    %v7559 = vsel %vm5731, %v7558, %v7554
    %v7560 = vlaneseq
    %v7561 = vshrl.u32 %v7560, 7
    %v7562 = vsub.s32 %v5733, %v7561
    %v7563 = vrot.slane %v5524, %v7562
    %v7564 = vsel %vm5738, %v7563, %v7559
    %v7565 = vlaneseq
    %v7566 = vshrl.u32 %v7565, 7
    %v7567 = vsub.s32 %v5740, %v7566
    %v7568 = vrot.slane %v5525, %v7567
    %v7569 = vsel %vm5745, %v7568, %v7564
    %v7570 = vlaneseq
    %v7571 = vshrl.u32 %v7570, 7
    %v7572 = vsub.s32 %v5747, %v7571
    %v7573 = vrot.slane %v5526, %v7572
    %v7574 = vsel %vm5752, %v7573, %v7569
    %v7575 = vlaneseq
    %v7576 = vshrl.u32 %v7575, 7
    %v7577 = vsub.s32 %v5754, %v7576
    %v7578 = vrot.slane %v5527, %v7577
    %v7579 = vsel %vm5759, %v7578, %v7574
    %v7580 = vlaneseq
    %v7581 = vshrl.u32 %v7580, 7
    %v7582 = vsub.s32 %v5761, %v7581
    %v7583 = vrot.slane %v5528, %v7582
    %v7584 = vsel %vm5766, %v7583, %v7579
    %v7585 = vlaneseq
    %v7586 = vshrl.u32 %v7585, 7
    %v7587 = vsub.s32 %v5658, %v7586
    %v7588 = vrot.slane %v5529, %v7587
    %v7589 = vlaneseq
    %v7590 = vshrl.u32 %v7589, 7
    %v7591 = vsub.s32 %v5663, %v7590
    %v7592 = vrot.slane %v5530, %v7591
    %v7593 = vsel %vm5668, %v7592, %v7588
    %v7594 = vlaneseq
    %v7595 = vshrl.u32 %v7594, 7
    %v7596 = vsub.s32 %v5670, %v7595
    %v7597 = vrot.slane %v5531, %v7596
    %v7598 = vsel %vm5675, %v7597, %v7593
    %v7599 = vlaneseq
    %v7600 = vshrl.u32 %v7599, 7
    %v7601 = vsub.s32 %v5677, %v7600
    %v7602 = vrot.slane %v5532, %v7601
    %v7603 = vsel %vm5682, %v7602, %v7598
    %v7604 = vlaneseq
    %v7605 = vshrl.u32 %v7604, 7
    %v7606 = vsub.s32 %v5684, %v7605
    %v7607 = vrot.slane %v5533, %v7606
    %v7608 = vsel %vm5689, %v7607, %v7603
    %v7609 = vlaneseq
    %v7610 = vshrl.u32 %v7609, 7
    %v7611 = vsub.s32 %v5691, %v7610
    %v7612 = vrot.slane %v5534, %v7611
    %v7613 = vsel %vm5696, %v7612, %v7608
    %v7614 = vlaneseq
    %v7615 = vshrl.u32 %v7614, 7
    %v7616 = vsub.s32 %v5698, %v7615
    %v7617 = vrot.slane %v5535, %v7616
    %v7618 = vsel %vm5703, %v7617, %v7613
    %v7619 = vlaneseq
    %v7620 = vshrl.u32 %v7619, 7
    %v7621 = vsub.s32 %v5705, %v7620
    %v7622 = vrot.slane %v5536, %v7621
    %v7623 = vsel %vm5710, %v7622, %v7618
    %v7624 = vlaneseq
    %v7625 = vshrl.u32 %v7624, 7
    %v7626 = vsub.s32 %v5712, %v7625
    %v7627 = vrot.slane %v5537, %v7626
    %v7628 = vsel %vm5717, %v7627, %v7623
    %v7629 = vlaneseq
    %v7630 = vshrl.u32 %v7629, 7
    %v7631 = vsub.s32 %v5719, %v7630
    %v7632 = vrot.slane %v5538, %v7631
    %v7633 = vsel %vm5724, %v7632, %v7628
    %v7634 = vlaneseq
    %v7635 = vshrl.u32 %v7634, 7
    %v7636 = vsub.s32 %v5726, %v7635
    %v7637 = vrot.slane %v5539, %v7636
    %v7638 = vsel %vm5731, %v7637, %v7633
    %v7639 = vlaneseq
    %v7640 = vshrl.u32 %v7639, 7
    %v7641 = vsub.s32 %v5733, %v7640
    %v7642 = vrot.slane %v5540, %v7641
    %v7643 = vsel %vm5738, %v7642, %v7638
    %v7644 = vlaneseq
    %v7645 = vshrl.u32 %v7644, 7
    %v7646 = vsub.s32 %v5740, %v7645
    %v7647 = vrot.slane %v5541, %v7646
    %v7648 = vsel %vm5745, %v7647, %v7643
    %v7649 = vlaneseq
    %v7650 = vshrl.u32 %v7649, 7
    %v7651 = vsub.s32 %v5747, %v7650
    %v7652 = vrot.slane %v5542, %v7651
    %v7653 = vsel %vm5752, %v7652, %v7648
    %v7654 = vlaneseq
    %v7655 = vshrl.u32 %v7654, 7
    %v7656 = vsub.s32 %v5754, %v7655
    %v7657 = vrot.slane %v5543, %v7656
    %v7658 = vsel %vm5759, %v7657, %v7653
    %v7659 = vlaneseq
    %v7660 = vshrl.u32 %v7659, 7
    %v7661 = vsub.s32 %v5761, %v7660
    %v7662 = vrot.slane %v5544, %v7661
    %v7663 = vsel %vm5766, %v7662, %v7658
    %v7664 = vlaneseq
    %v7665 = vshrl.u32 %v7664, 7
    %v7666 = vsub.s32 %v5658, %v7665
    %v7667 = vrot.slane %v5545, %v7666
    %v7668 = vlaneseq
    %v7669 = vshrl.u32 %v7668, 7
    %v7670 = vsub.s32 %v5663, %v7669
    %v7671 = vrot.slane %v5546, %v7670
    %v7672 = vsel %vm5668, %v7671, %v7667
    %v7673 = vlaneseq
    %v7674 = vshrl.u32 %v7673, 7
    %v7675 = vsub.s32 %v5670, %v7674
    %v7676 = vrot.slane %v5547, %v7675
    %v7677 = vsel %vm5675, %v7676, %v7672
    %v7678 = vlaneseq
    %v7679 = vshrl.u32 %v7678, 7
    %v7680 = vsub.s32 %v5677, %v7679
    %v7681 = vrot.slane %v5548, %v7680
    %v7682 = vsel %vm5682, %v7681, %v7677
    %v7683 = vlaneseq
    %v7684 = vshrl.u32 %v7683, 7
    %v7685 = vsub.s32 %v5684, %v7684
    %v7686 = vrot.slane %v5549, %v7685
    %v7687 = vsel %vm5689, %v7686, %v7682
    %v7688 = vlaneseq
    %v7689 = vshrl.u32 %v7688, 7
    %v7690 = vsub.s32 %v5691, %v7689
    %v7691 = vrot.slane %v5550, %v7690
    %v7692 = vsel %vm5696, %v7691, %v7687
    %v7693 = vlaneseq
    %v7694 = vshrl.u32 %v7693, 7
    %v7695 = vsub.s32 %v5698, %v7694
    %v7696 = vrot.slane %v5551, %v7695
    %v7697 = vsel %vm5703, %v7696, %v7692
    %v7698 = vlaneseq
    %v7699 = vshrl.u32 %v7698, 7
    %v7700 = vsub.s32 %v5705, %v7699
    %v7701 = vrot.slane %v5552, %v7700
    %v7702 = vsel %vm5710, %v7701, %v7697
    %v7703 = vlaneseq
    %v7704 = vshrl.u32 %v7703, 7
    %v7705 = vsub.s32 %v5712, %v7704
    %v7706 = vrot.slane %v5553, %v7705
    %v7707 = vsel %vm5717, %v7706, %v7702
    %v7708 = vlaneseq
    %v7709 = vshrl.u32 %v7708, 7
    %v7710 = vsub.s32 %v5719, %v7709
    %v7711 = vrot.slane %v5554, %v7710
    %v7712 = vsel %vm5724, %v7711, %v7707
    %v7713 = vlaneseq
    %v7714 = vshrl.u32 %v7713, 7
    %v7715 = vsub.s32 %v5726, %v7714
    %v7716 = vrot.slane %v5555, %v7715
    %v7717 = vsel %vm5731, %v7716, %v7712
    %v7718 = vlaneseq
    %v7719 = vshrl.u32 %v7718, 7
    %v7720 = vsub.s32 %v5733, %v7719
    %v7721 = vrot.slane %v5556, %v7720
    %v7722 = vsel %vm5738, %v7721, %v7717
    %v7723 = vlaneseq
    %v7724 = vshrl.u32 %v7723, 7
    %v7725 = vsub.s32 %v5740, %v7724
    %v7726 = vrot.slane %v5557, %v7725
    %v7727 = vsel %vm5745, %v7726, %v7722
    %v7728 = vlaneseq
    %v7729 = vshrl.u32 %v7728, 7
    %v7730 = vsub.s32 %v5747, %v7729
    %v7731 = vrot.slane %v5558, %v7730
    %v7732 = vsel %vm5752, %v7731, %v7727
    %v7733 = vlaneseq
    %v7734 = vshrl.u32 %v7733, 7
    %v7735 = vsub.s32 %v5754, %v7734
    %v7736 = vrot.slane %v5559, %v7735
    %v7737 = vsel %vm5759, %v7736, %v7732
    %v7738 = vlaneseq
    %v7739 = vshrl.u32 %v7738, 7
    %v7740 = vsub.s32 %v5761, %v7739
    %v7741 = vrot.slane %v5560, %v7740
    %v7742 = vsel %vm5766, %v7741, %v7737
    %v7743 = vlaneseq
    %v7744 = vshrl.u32 %v7743, 7
    %v7745 = vsub.s32 %v5658, %v7744
    %v7746 = vrot.slane %v5561, %v7745
    %v7747 = vlaneseq
    %v7748 = vshrl.u32 %v7747, 7
    %v7749 = vsub.s32 %v5663, %v7748
    %v7750 = vrot.slane %v5562, %v7749
    %v7751 = vsel %vm5668, %v7750, %v7746
    %v7752 = vlaneseq
    %v7753 = vshrl.u32 %v7752, 7
    %v7754 = vsub.s32 %v5670, %v7753
    %v7755 = vrot.slane %v5563, %v7754
    %v7756 = vsel %vm5675, %v7755, %v7751
    %v7757 = vlaneseq
    %v7758 = vshrl.u32 %v7757, 7
    %v7759 = vsub.s32 %v5677, %v7758
    %v7760 = vrot.slane %v5564, %v7759
    %v7761 = vsel %vm5682, %v7760, %v7756
    %v7762 = vlaneseq
    %v7763 = vshrl.u32 %v7762, 7
    %v7764 = vsub.s32 %v5684, %v7763
    %v7765 = vrot.slane %v5565, %v7764
    %v7766 = vsel %vm5689, %v7765, %v7761
    %v7767 = vlaneseq
    %v7768 = vshrl.u32 %v7767, 7
    %v7769 = vsub.s32 %v5691, %v7768
    %v7770 = vrot.slane %v5566, %v7769
    %v7771 = vsel %vm5696, %v7770, %v7766
    %v7772 = vlaneseq
    %v7773 = vshrl.u32 %v7772, 7
    %v7774 = vsub.s32 %v5698, %v7773
    %v7775 = vrot.slane %v5567, %v7774
    %v7776 = vsel %vm5703, %v7775, %v7771
    %v7777 = vlaneseq
    %v7778 = vshrl.u32 %v7777, 7
    %v7779 = vsub.s32 %v5705, %v7778
    %v7780 = vrot.slane %v5568, %v7779
    %v7781 = vsel %vm5710, %v7780, %v7776
    %v7782 = vlaneseq
    %v7783 = vshrl.u32 %v7782, 7
    %v7784 = vsub.s32 %v5712, %v7783
    %v7785 = vrot.slane %v5569, %v7784
    %v7786 = vsel %vm5717, %v7785, %v7781
    %v7787 = vlaneseq
    %v7788 = vshrl.u32 %v7787, 7
    %v7789 = vsub.s32 %v5719, %v7788
    %v7790 = vrot.slane %v5570, %v7789
    %v7791 = vsel %vm5724, %v7790, %v7786
    %v7792 = vlaneseq
    %v7793 = vshrl.u32 %v7792, 7
    %v7794 = vsub.s32 %v5726, %v7793
    %v7795 = vrot.slane %v5571, %v7794
    %v7796 = vsel %vm5731, %v7795, %v7791
    %v7797 = vlaneseq
    %v7798 = vshrl.u32 %v7797, 7
    %v7799 = vsub.s32 %v5733, %v7798
    %v7800 = vrot.slane %v5572, %v7799
    %v7801 = vsel %vm5738, %v7800, %v7796
    %v7802 = vlaneseq
    %v7803 = vshrl.u32 %v7802, 7
    %v7804 = vsub.s32 %v5740, %v7803
    %v7805 = vrot.slane %v5573, %v7804
    %v7806 = vsel %vm5745, %v7805, %v7801
    %v7807 = vlaneseq
    %v7808 = vshrl.u32 %v7807, 7
    %v7809 = vsub.s32 %v5747, %v7808
    %v7810 = vrot.slane %v5574, %v7809
    %v7811 = vsel %vm5752, %v7810, %v7806
    %v7812 = vlaneseq
    %v7813 = vshrl.u32 %v7812, 7
    %v7814 = vsub.s32 %v5754, %v7813
    %v7815 = vrot.slane %v5575, %v7814
    %v7816 = vsel %vm5759, %v7815, %v7811
    %v7817 = vlaneseq
    %v7818 = vshrl.u32 %v7817, 7
    %v7819 = vsub.s32 %v5761, %v7818
    %v7820 = vrot.slane %v5576, %v7819
    %v7821 = vsel %vm5766, %v7820, %v7816
    %v7822 = vlaneseq
    %v7823 = vshrl.u32 %v7822, 7
    %v7824 = vsub.s32 %v5658, %v7823
    %v7825 = vrot.slane %v5577, %v7824
    %v7826 = vlaneseq
    %v7827 = vshrl.u32 %v7826, 7
    %v7828 = vsub.s32 %v5663, %v7827
    %v7829 = vrot.slane %v5578, %v7828
    %v7830 = vsel %vm5668, %v7829, %v7825
    %v7831 = vlaneseq
    %v7832 = vshrl.u32 %v7831, 7
    %v7833 = vsub.s32 %v5670, %v7832
    %v7834 = vrot.slane %v5579, %v7833
    %v7835 = vsel %vm5675, %v7834, %v7830
    %v7836 = vlaneseq
    %v7837 = vshrl.u32 %v7836, 7
    %v7838 = vsub.s32 %v5677, %v7837
    %v7839 = vrot.slane %v5580, %v7838
    %v7840 = vsel %vm5682, %v7839, %v7835
    %v7841 = vlaneseq
    %v7842 = vshrl.u32 %v7841, 7
    %v7843 = vsub.s32 %v5684, %v7842
    %v7844 = vrot.slane %v5581, %v7843
    %v7845 = vsel %vm5689, %v7844, %v7840
    %v7846 = vlaneseq
    %v7847 = vshrl.u32 %v7846, 7
    %v7848 = vsub.s32 %v5691, %v7847
    %v7849 = vrot.slane %v5582, %v7848
    %v7850 = vsel %vm5696, %v7849, %v7845
    %v7851 = vlaneseq
    %v7852 = vshrl.u32 %v7851, 7
    %v7853 = vsub.s32 %v5698, %v7852
    %v7854 = vrot.slane %v5583, %v7853
    %v7855 = vsel %vm5703, %v7854, %v7850
    %v7856 = vlaneseq
    %v7857 = vshrl.u32 %v7856, 7
    %v7858 = vsub.s32 %v5705, %v7857
    %v7859 = vrot.slane %v5584, %v7858
    %v7860 = vsel %vm5710, %v7859, %v7855
    %v7861 = vlaneseq
    %v7862 = vshrl.u32 %v7861, 7
    %v7863 = vsub.s32 %v5712, %v7862
    %v7864 = vrot.slane %v5585, %v7863
    %v7865 = vsel %vm5717, %v7864, %v7860
    %v7866 = vlaneseq
    %v7867 = vshrl.u32 %v7866, 7
    %v7868 = vsub.s32 %v5719, %v7867
    %v7869 = vrot.slane %v5586, %v7868
    %v7870 = vsel %vm5724, %v7869, %v7865
    %v7871 = vlaneseq
    %v7872 = vshrl.u32 %v7871, 7
    %v7873 = vsub.s32 %v5726, %v7872
    %v7874 = vrot.slane %v5587, %v7873
    %v7875 = vsel %vm5731, %v7874, %v7870
    %v7876 = vlaneseq
    %v7877 = vshrl.u32 %v7876, 7
    %v7878 = vsub.s32 %v5733, %v7877
    %v7879 = vrot.slane %v5588, %v7878
    %v7880 = vsel %vm5738, %v7879, %v7875
    %v7881 = vlaneseq
    %v7882 = vshrl.u32 %v7881, 7
    %v7883 = vsub.s32 %v5740, %v7882
    %v7884 = vrot.slane %v5589, %v7883
    %v7885 = vsel %vm5745, %v7884, %v7880
    %v7886 = vlaneseq
    %v7887 = vshrl.u32 %v7886, 7
    %v7888 = vsub.s32 %v5747, %v7887
    %v7889 = vrot.slane %v5590, %v7888
    %v7890 = vsel %vm5752, %v7889, %v7885
    %v7891 = vlaneseq
    %v7892 = vshrl.u32 %v7891, 7
    %v7893 = vsub.s32 %v5754, %v7892
    %v7894 = vrot.slane %v5591, %v7893
    %v7895 = vsel %vm5759, %v7894, %v7890
    %v7896 = vlaneseq
    %v7897 = vshrl.u32 %v7896, 7
    %v7898 = vsub.s32 %v5761, %v7897
    %v7899 = vrot.slane %v5592, %v7898
    %v7900 = vsel %vm5766, %v7899, %v7895
    %v7901 = vlaneseq
    %v7902 = vshrl.u32 %v7901, 7
    %v7903 = vsub.s32 %v5658, %v7902
    %v7904 = vrot.slane %v5593, %v7903
    %v7905 = vlaneseq
    %v7906 = vshrl.u32 %v7905, 7
    %v7907 = vsub.s32 %v5663, %v7906
    %v7908 = vrot.slane %v5594, %v7907
    %v7909 = vsel %vm5668, %v7908, %v7904
    %v7910 = vlaneseq
    %v7911 = vshrl.u32 %v7910, 7
    %v7912 = vsub.s32 %v5670, %v7911
    %v7913 = vrot.slane %v5595, %v7912
    %v7914 = vsel %vm5675, %v7913, %v7909
    %v7915 = vlaneseq
    %v7916 = vshrl.u32 %v7915, 7
    %v7917 = vsub.s32 %v5677, %v7916
    %v7918 = vrot.slane %v5596, %v7917
    %v7919 = vsel %vm5682, %v7918, %v7914
    %v7920 = vlaneseq
    %v7921 = vshrl.u32 %v7920, 7
    %v7922 = vsub.s32 %v5684, %v7921
    %v7923 = vrot.slane %v5597, %v7922
    %v7924 = vsel %vm5689, %v7923, %v7919
    %v7925 = vlaneseq
    %v7926 = vshrl.u32 %v7925, 7
    %v7927 = vsub.s32 %v5691, %v7926
    %v7928 = vrot.slane %v5598, %v7927
    %v7929 = vsel %vm5696, %v7928, %v7924
    %v7930 = vlaneseq
    %v7931 = vshrl.u32 %v7930, 7
    %v7932 = vsub.s32 %v5698, %v7931
    %v7933 = vrot.slane %v5599, %v7932
    %v7934 = vsel %vm5703, %v7933, %v7929
    %v7935 = vlaneseq
    %v7936 = vshrl.u32 %v7935, 7
    %v7937 = vsub.s32 %v5705, %v7936
    %v7938 = vrot.slane %v5600, %v7937
    %v7939 = vsel %vm5710, %v7938, %v7934
    %v7940 = vlaneseq
    %v7941 = vshrl.u32 %v7940, 7
    %v7942 = vsub.s32 %v5712, %v7941
    %v7943 = vrot.slane %v5601, %v7942
    %v7944 = vsel %vm5717, %v7943, %v7939
    %v7945 = vlaneseq
    %v7946 = vshrl.u32 %v7945, 7
    %v7947 = vsub.s32 %v5719, %v7946
    %v7948 = vrot.slane %v5602, %v7947
    %v7949 = vsel %vm5724, %v7948, %v7944
    %v7950 = vlaneseq
    %v7951 = vshrl.u32 %v7950, 7
    %v7952 = vsub.s32 %v5726, %v7951
    %v7953 = vrot.slane %v5603, %v7952
    %v7954 = vsel %vm5731, %v7953, %v7949
    %v7955 = vlaneseq
    %v7956 = vshrl.u32 %v7955, 7
    %v7957 = vsub.s32 %v5733, %v7956
    %v7958 = vrot.slane %v5604, %v7957
    %v7959 = vsel %vm5738, %v7958, %v7954
    %v7960 = vlaneseq
    %v7961 = vshrl.u32 %v7960, 7
    %v7962 = vsub.s32 %v5740, %v7961
    %v7963 = vrot.slane %v5605, %v7962
    %v7964 = vsel %vm5745, %v7963, %v7959
    %v7965 = vlaneseq
    %v7966 = vshrl.u32 %v7965, 7
    %v7967 = vsub.s32 %v5747, %v7966
    %v7968 = vrot.slane %v5606, %v7967
    %v7969 = vsel %vm5752, %v7968, %v7964
    %v7970 = vlaneseq
    %v7971 = vshrl.u32 %v7970, 7
    %v7972 = vsub.s32 %v5754, %v7971
    %v7973 = vrot.slane %v5607, %v7972
    %v7974 = vsel %vm5759, %v7973, %v7969
    %v7975 = vlaneseq
    %v7976 = vshrl.u32 %v7975, 7
    %v7977 = vsub.s32 %v5761, %v7976
    %v7978 = vrot.slane %v5608, %v7977
    %v7979 = vsel %vm5766, %v7978, %v7974
    %v7980 = vlaneseq
    %v7981 = vshrl.u32 %v7980, 7
    %v7982 = vsub.s32 %v5658, %v7981
    %v7983 = vrot.slane %v5609, %v7982
    %v7984 = vlaneseq
    %v7985 = vshrl.u32 %v7984, 7
    %v7986 = vsub.s32 %v5663, %v7985
    %v7987 = vrot.slane %v5610, %v7986
    %v7988 = vsel %vm5668, %v7987, %v7983
    %v7989 = vlaneseq
    %v7990 = vshrl.u32 %v7989, 7
    %v7991 = vsub.s32 %v5670, %v7990
    %v7992 = vrot.slane %v5611, %v7991
    %v7993 = vsel %vm5675, %v7992, %v7988
    %v7994 = vlaneseq
    %v7995 = vshrl.u32 %v7994, 7
    %v7996 = vsub.s32 %v5677, %v7995
    %v7997 = vrot.slane %v5612, %v7996
    %v7998 = vsel %vm5682, %v7997, %v7993
    %v7999 = vlaneseq
    %v8000 = vshrl.u32 %v7999, 7
    %v8001 = vsub.s32 %v5684, %v8000
    %v8002 = vrot.slane %v5613, %v8001
    %v8003 = vsel %vm5689, %v8002, %v7998
    %v8004 = vlaneseq
    %v8005 = vshrl.u32 %v8004, 7
    %v8006 = vsub.s32 %v5691, %v8005
    %v8007 = vrot.slane %v5614, %v8006
    %v8008 = vsel %vm5696, %v8007, %v8003
    %v8009 = vlaneseq
    %v8010 = vshrl.u32 %v8009, 7
    %v8011 = vsub.s32 %v5698, %v8010
    %v8012 = vrot.slane %v5615, %v8011
    %v8013 = vsel %vm5703, %v8012, %v8008
    %v8014 = vlaneseq
    %v8015 = vshrl.u32 %v8014, 7
    %v8016 = vsub.s32 %v5705, %v8015
    %v8017 = vrot.slane %v5616, %v8016
    %v8018 = vsel %vm5710, %v8017, %v8013
    %v8019 = vlaneseq
    %v8020 = vshrl.u32 %v8019, 7
    %v8021 = vsub.s32 %v5712, %v8020
    %v8022 = vrot.slane %v5617, %v8021
    %v8023 = vsel %vm5717, %v8022, %v8018
    %v8024 = vlaneseq
    %v8025 = vshrl.u32 %v8024, 7
    %v8026 = vsub.s32 %v5719, %v8025
    %v8027 = vrot.slane %v5618, %v8026
    %v8028 = vsel %vm5724, %v8027, %v8023
    %v8029 = vlaneseq
    %v8030 = vshrl.u32 %v8029, 7
    %v8031 = vsub.s32 %v5726, %v8030
    %v8032 = vrot.slane %v5619, %v8031
    %v8033 = vsel %vm5731, %v8032, %v8028
    %v8034 = vlaneseq
    %v8035 = vshrl.u32 %v8034, 7
    %v8036 = vsub.s32 %v5733, %v8035
    %v8037 = vrot.slane %v5620, %v8036
    %v8038 = vsel %vm5738, %v8037, %v8033
    %v8039 = vlaneseq
    %v8040 = vshrl.u32 %v8039, 7
    %v8041 = vsub.s32 %v5740, %v8040
    %v8042 = vrot.slane %v5621, %v8041
    %v8043 = vsel %vm5745, %v8042, %v8038
    %v8044 = vlaneseq
    %v8045 = vshrl.u32 %v8044, 7
    %v8046 = vsub.s32 %v5747, %v8045
    %v8047 = vrot.slane %v5622, %v8046
    %v8048 = vsel %vm5752, %v8047, %v8043
    %v8049 = vlaneseq
    %v8050 = vshrl.u32 %v8049, 7
    %v8051 = vsub.s32 %v5754, %v8050
    %v8052 = vrot.slane %v5623, %v8051
    %v8053 = vsel %vm5759, %v8052, %v8048
    %v8054 = vlaneseq
    %v8055 = vshrl.u32 %v8054, 7
    %v8056 = vsub.s32 %v5761, %v8055
    %v8057 = vrot.slane %v5624, %v8056
    %v8058 = vsel %vm5766, %v8057, %v8053
    %v8059 = vlaneseq
    %v8060 = vshrl.u32 %v8059, 7
    %v8061 = vsub.s32 %v5658, %v8060
    %v8062 = vrot.slane %v5625, %v8061
    %v8063 = vlaneseq
    %v8064 = vshrl.u32 %v8063, 7
    %v8065 = vsub.s32 %v5663, %v8064
    %v8066 = vrot.slane %v5626, %v8065
    %v8067 = vsel %vm5668, %v8066, %v8062
    %v8068 = vlaneseq
    %v8069 = vshrl.u32 %v8068, 7
    %v8070 = vsub.s32 %v5670, %v8069
    %v8071 = vrot.slane %v5627, %v8070
    %v8072 = vsel %vm5675, %v8071, %v8067
    %v8073 = vlaneseq
    %v8074 = vshrl.u32 %v8073, 7
    %v8075 = vsub.s32 %v5677, %v8074
    %v8076 = vrot.slane %v5628, %v8075
    %v8077 = vsel %vm5682, %v8076, %v8072
    %v8078 = vlaneseq
    %v8079 = vshrl.u32 %v8078, 7
    %v8080 = vsub.s32 %v5684, %v8079
    %v8081 = vrot.slane %v5629, %v8080
    %v8082 = vsel %vm5689, %v8081, %v8077
    %v8083 = vlaneseq
    %v8084 = vshrl.u32 %v8083, 7
    %v8085 = vsub.s32 %v5691, %v8084
    %v8086 = vrot.slane %v5630, %v8085
    %v8087 = vsel %vm5696, %v8086, %v8082
    %v8088 = vlaneseq
    %v8089 = vshrl.u32 %v8088, 7
    %v8090 = vsub.s32 %v5698, %v8089
    %v8091 = vrot.slane %v5631, %v8090
    %v8092 = vsel %vm5703, %v8091, %v8087
    %v8093 = vlaneseq
    %v8094 = vshrl.u32 %v8093, 7
    %v8095 = vsub.s32 %v5705, %v8094
    %v8096 = vrot.slane %v5632, %v8095
    %v8097 = vsel %vm5710, %v8096, %v8092
    %v8098 = vlaneseq
    %v8099 = vshrl.u32 %v8098, 7
    %v8100 = vsub.s32 %v5712, %v8099
    %v8101 = vrot.slane %v5633, %v8100
    %v8102 = vsel %vm5717, %v8101, %v8097
    %v8103 = vlaneseq
    %v8104 = vshrl.u32 %v8103, 7
    %v8105 = vsub.s32 %v5719, %v8104
    %v8106 = vrot.slane %v5634, %v8105
    %v8107 = vsel %vm5724, %v8106, %v8102
    %v8108 = vlaneseq
    %v8109 = vshrl.u32 %v8108, 7
    %v8110 = vsub.s32 %v5726, %v8109
    %v8111 = vrot.slane %v5635, %v8110
    %v8112 = vsel %vm5731, %v8111, %v8107
    %v8113 = vlaneseq
    %v8114 = vshrl.u32 %v8113, 7
    %v8115 = vsub.s32 %v5733, %v8114
    %v8116 = vrot.slane %v5636, %v8115
    %v8117 = vsel %vm5738, %v8116, %v8112
    %v8118 = vlaneseq
    %v8119 = vshrl.u32 %v8118, 7
    %v8120 = vsub.s32 %v5740, %v8119
    %v8121 = vrot.slane %v5637, %v8120
    %v8122 = vsel %vm5745, %v8121, %v8117
    %v8123 = vlaneseq
    %v8124 = vshrl.u32 %v8123, 7
    %v8125 = vsub.s32 %v5747, %v8124
    %v8126 = vrot.slane %v5638, %v8125
    %v8127 = vsel %vm5752, %v8126, %v8122
    %v8128 = vlaneseq
    %v8129 = vshrl.u32 %v8128, 7
    %v8130 = vsub.s32 %v5754, %v8129
    %v8131 = vrot.slane %v5639, %v8130
    %v8132 = vsel %vm5759, %v8131, %v8127
    %v8133 = vlaneseq
    %v8134 = vshrl.u32 %v8133, 7
    %v8135 = vsub.s32 %v5761, %v8134
    %v8136 = vrot.slane %v5640, %v8135
    %v8137 = vsel %vm5766, %v8136, %v8132
    %v8138 = vlaneseq
    %v8139 = vshrl.u32 %v8138, 7
    %v8140 = vsub.s32 %v5658, %v8139
    %v8141 = vrot.slane %v5641, %v8140
    %v8142 = vlaneseq
    %v8143 = vshrl.u32 %v8142, 7
    %v8144 = vsub.s32 %v5663, %v8143
    %v8145 = vrot.slane %v5642, %v8144
    %v8146 = vsel %vm5668, %v8145, %v8141
    %v8147 = vlaneseq
    %v8148 = vshrl.u32 %v8147, 7
    %v8149 = vsub.s32 %v5670, %v8148
    %v8150 = vrot.slane %v5643, %v8149
    %v8151 = vsel %vm5675, %v8150, %v8146
    %v8152 = vlaneseq
    %v8153 = vshrl.u32 %v8152, 7
    %v8154 = vsub.s32 %v5677, %v8153
    %v8155 = vrot.slane %v5644, %v8154
    %v8156 = vsel %vm5682, %v8155, %v8151
    %v8157 = vlaneseq
    %v8158 = vshrl.u32 %v8157, 7
    %v8159 = vsub.s32 %v5684, %v8158
    %v8160 = vrot.slane %v5645, %v8159
    %v8161 = vsel %vm5689, %v8160, %v8156
    %v8162 = vlaneseq
    %v8163 = vshrl.u32 %v8162, 7
    %v8164 = vsub.s32 %v5691, %v8163
    %v8165 = vrot.slane %v5646, %v8164
    %v8166 = vsel %vm5696, %v8165, %v8161
    %v8167 = vlaneseq
    %v8168 = vshrl.u32 %v8167, 7
    %v8169 = vsub.s32 %v5698, %v8168
    %v8170 = vrot.slane %v5647, %v8169
    %v8171 = vsel %vm5703, %v8170, %v8166
    %v8172 = vlaneseq
    %v8173 = vshrl.u32 %v8172, 7
    %v8174 = vsub.s32 %v5705, %v8173
    %v8175 = vrot.slane %v5648, %v8174
    %v8176 = vsel %vm5710, %v8175, %v8171
    %v8177 = vlaneseq
    %v8178 = vshrl.u32 %v8177, 7
    %v8179 = vsub.s32 %v5712, %v8178
    %v8180 = vrot.slane %v5649, %v8179
    %v8181 = vsel %vm5717, %v8180, %v8176
    %v8182 = vlaneseq
    %v8183 = vshrl.u32 %v8182, 7
    %v8184 = vsub.s32 %v5719, %v8183
    %v8185 = vrot.slane %v5650, %v8184
    %v8186 = vsel %vm5724, %v8185, %v8181
    %v8187 = vlaneseq
    %v8188 = vshrl.u32 %v8187, 7
    %v8189 = vsub.s32 %v5726, %v8188
    %v8190 = vrot.slane %v5651, %v8189
    %v8191 = vsel %vm5731, %v8190, %v8186
    %v8192 = vlaneseq
    %v8193 = vshrl.u32 %v8192, 7
    %v8194 = vsub.s32 %v5733, %v8193
    %v8195 = vrot.slane %v5652, %v8194
    %v8196 = vsel %vm5738, %v8195, %v8191
    %v8197 = vlaneseq
    %v8198 = vshrl.u32 %v8197, 7
    %v8199 = vsub.s32 %v5740, %v8198
    %v8200 = vrot.slane %v5653, %v8199
    %v8201 = vsel %vm5745, %v8200, %v8196
    %v8202 = vlaneseq
    %v8203 = vshrl.u32 %v8202, 7
    %v8204 = vsub.s32 %v5747, %v8203
    %v8205 = vrot.slane %v5654, %v8204
    %v8206 = vsel %vm5752, %v8205, %v8201
    %v8207 = vlaneseq
    %v8208 = vshrl.u32 %v8207, 7
    %v8209 = vsub.s32 %v5754, %v8208
    %v8210 = vrot.slane %v5655, %v8209
    %v8211 = vsel %vm5759, %v8210, %v8206
    %v8212 = vlaneseq
    %v8213 = vshrl.u32 %v8212, 7
    %v8214 = vsub.s32 %v5761, %v8213
    %v8215 = vrot.slane %v5656, %v8214
    %v8216 = vsel %vm5766, %v8215, %v8211
    %vm8217 = vcmask 1041409
    %v8218 = vsel %vm8217, %v6083, %v5767
    %vm8219 = vcmask 1042434
    %v8220 = vsel %vm8219, %v6399, %v8218
    %vm8221 = vcmask 1043459
    %v8222 = vsel %vm8221, %v6715, %v8220
    %vm8223 = vcmask 1044484
    %v8224 = vsel %vm8223, %v7031, %v8222
    %vm8225 = vcmask 1045509
    %v8226 = vsel %vm8225, %v7347, %v8224
    %vm8227 = vcmask 1046534
    %v8228 = vsel %vm8227, %v7663, %v8226
    %vm8229 = vcmask 1047559
    %v8230 = vsel %vm8229, %v7979, %v8228
    %v8231 = vsel %vm8217, %v6162, %v5846
    %v8232 = vsel %vm8219, %v6478, %v8231
    %v8233 = vsel %vm8221, %v6794, %v8232
    %v8234 = vsel %vm8223, %v7110, %v8233
    %v8235 = vsel %vm8225, %v7426, %v8234
    %v8236 = vsel %vm8227, %v7742, %v8235
    %v8237 = vsel %vm8229, %v8058, %v8236
    %v8238 = vsel %vm8217, %v6241, %v5925
    %v8239 = vsel %vm8219, %v6557, %v8238
    %v8240 = vsel %vm8221, %v6873, %v8239
    %v8241 = vsel %vm8223, %v7189, %v8240
    %v8242 = vsel %vm8225, %v7505, %v8241
    %v8243 = vsel %vm8227, %v7821, %v8242
    %v8244 = vsel %vm8229, %v8137, %v8243
    %v8245 = vsel %vm8217, %v6320, %v6004
    %v8246 = vsel %vm8219, %v6636, %v8245
    %v8247 = vsel %vm8221, %v6952, %v8246
    %v8248 = vsel %vm8223, %v7268, %v8247
    %v8249 = vsel %vm8225, %v7584, %v8248
    %v8250 = vsel %vm8227, %v7900, %v8249
    %v8251 = vsel %vm8229, %v8216, %v8250
    %v8252 = vpack.c.b16 %v8230, %v8230
    %v8253 = vpack.c.b16 %v8237, %v8237
    %v8254 = vpack.c.b16 %v8244, %v8244
    %v8255 = vpack.c.b16 %v8251, %v8251
    %v8388 = vunpack.c.l.b16 %v4761
    %v8389 = vunpack.c.h.b16 %v4761
    %v8390 = vunpack.c.l.b16 %v4762
    %v8391 = vunpack.c.h.b16 %v4762
    %v8392 = vunpack.c.l.b16 %v4763
    %v8393 = vunpack.c.h.b16 %v4763
    %v8394 = vunpack.c.l.b16 %v4764
    %v8395 = vunpack.c.h.b16 %v4764
    %v8396 = vunpack.c.l.b16 %v4765
    %v8397 = vunpack.c.h.b16 %v4765
    %v8398 = vunpack.c.l.b16 %v4766
    %v8399 = vunpack.c.h.b16 %v4766
    %v8400 = vunpack.c.l.b16 %v4767
    %v8401 = vunpack.c.h.b16 %v4767
    %v8402 = vunpack.c.l.b16 %v4768
    %v8403 = vunpack.c.h.b16 %v4768
    %v8404 = vunpack.c.l.b16 %v4769
    %v8405 = vunpack.c.h.b16 %v4769
    %v8406 = vunpack.c.l.b16 %v4770
    %v8407 = vunpack.c.h.b16 %v4770
    %v8408 = vunpack.c.l.b16 %v4771
    %v8409 = vunpack.c.h.b16 %v4771
    %v8410 = vunpack.c.l.b16 %v4772
    %v8411 = vunpack.c.h.b16 %v4772
    %v8412 = vunpack.c.l.b16 %v4773
    %v8413 = vunpack.c.h.b16 %v4773
    %v8414 = vunpack.c.l.b16 %v4774
    %v8415 = vunpack.c.h.b16 %v4774
    %v8416 = vunpack.c.l.b16 %v4775
    %v8417 = vunpack.c.h.b16 %v4775
    %v8418 = vunpack.c.l.b16 %v4776
    %v8419 = vunpack.c.h.b16 %v4776
    %v8420 = vunpack.c.l.b16 %v4777
    %v8421 = vunpack.c.h.b16 %v4777
    %v8422 = vunpack.c.l.b16 %v4778
    %v8423 = vunpack.c.h.b16 %v4778
    %v8424 = vunpack.c.l.b16 %v4779
    %v8425 = vunpack.c.h.b16 %v4779
    %v8426 = vunpack.c.l.b16 %v4780
    %v8427 = vunpack.c.h.b16 %v4780
    %v8428 = vunpack.c.l.b16 %v4781
    %v8429 = vunpack.c.h.b16 %v4781
    %v8430 = vunpack.c.l.b16 %v4782
    %v8431 = vunpack.c.h.b16 %v4782
    %v8432 = vunpack.c.l.b16 %v4783
    %v8433 = vunpack.c.h.b16 %v4783
    %v8434 = vunpack.c.l.b16 %v4784
    %v8435 = vunpack.c.h.b16 %v4784
    %v8436 = vunpack.c.l.b16 %v4785
    %v8437 = vunpack.c.h.b16 %v4785
    %v8438 = vunpack.c.l.b16 %v4786
    %v8439 = vunpack.c.h.b16 %v4786
    %v8440 = vunpack.c.l.b16 %v4787
    %v8441 = vunpack.c.h.b16 %v4787
    %v8442 = vunpack.c.l.b16 %v4788
    %v8443 = vunpack.c.h.b16 %v4788
    %v8444 = vunpack.c.l.b16 %v4789
    %v8445 = vunpack.c.h.b16 %v4789
    %v8446 = vunpack.c.l.b16 %v4790
    %v8447 = vunpack.c.h.b16 %v4790
    %v8448 = vunpack.c.l.b16 %v4791
    %v8449 = vunpack.c.h.b16 %v4791
    %v8450 = vunpack.c.l.b16 %v4792
    %v8451 = vunpack.c.h.b16 %v4792
    %v8452 = vunpack.c.l.b16 %v4793
    %v8453 = vunpack.c.h.b16 %v4793
    %v8454 = vunpack.c.l.b16 %v4794
    %v8455 = vunpack.c.h.b16 %v4794
    %v8456 = vunpack.c.l.b16 %v4795
    %v8457 = vunpack.c.h.b16 %v4795
    %v8458 = vunpack.c.l.b16 %v4796
    %v8459 = vunpack.c.h.b16 %v4796
    %v8460 = vunpack.c.l.b16 %v4797
    %v8461 = vunpack.c.h.b16 %v4797
    %v8462 = vunpack.c.l.b16 %v4798
    %v8463 = vunpack.c.h.b16 %v4798
    %v8464 = vunpack.c.l.b16 %v4799
    %v8465 = vunpack.c.h.b16 %v4799
    %v8466 = vunpack.c.l.b16 %v4800
    %v8467 = vunpack.c.h.b16 %v4800
    %v8468 = vunpack.c.l.b16 %v4801
    %v8469 = vunpack.c.h.b16 %v4801
    %v8470 = vunpack.c.l.b16 %v4802
    %v8471 = vunpack.c.h.b16 %v4802
    %v8472 = vunpack.c.l.b16 %v4803
    %v8473 = vunpack.c.h.b16 %v4803
    %v8474 = vunpack.c.l.b16 %v4804
    %v8475 = vunpack.c.h.b16 %v4804
    %v8476 = vunpack.c.l.b16 %v4805
    %v8477 = vunpack.c.h.b16 %v4805
    %v8478 = vunpack.c.l.b16 %v4806
    %v8479 = vunpack.c.h.b16 %v4806
    %v8480 = vunpack.c.l.b16 %v4807
    %v8481 = vunpack.c.h.b16 %v4807
    %v8482 = vunpack.c.l.b16 %v4808
    %v8483 = vunpack.c.h.b16 %v4808
    %v8484 = vunpack.c.l.b16 %v4809
    %v8485 = vunpack.c.h.b16 %v4809
    %v8486 = vunpack.c.l.b16 %v4810
    %v8487 = vunpack.c.h.b16 %v4810
    %v8488 = vunpack.c.l.b16 %v4811
    %v8489 = vunpack.c.h.b16 %v4811
    %v8490 = vunpack.c.l.b16 %v4812
    %v8491 = vunpack.c.h.b16 %v4812
    %v8492 = vunpack.c.l.b16 %v4813
    %v8493 = vunpack.c.h.b16 %v4813
    %v8494 = vunpack.c.l.b16 %v4814
    %v8495 = vunpack.c.h.b16 %v4814
    %v8496 = vunpack.c.l.b16 %v4815
    %v8497 = vunpack.c.h.b16 %v4815
    %v8498 = vunpack.c.l.b16 %v4816
    %v8499 = vunpack.c.h.b16 %v4816
    %v8500 = vunpack.c.l.b16 %v4817
    %v8501 = vunpack.c.h.b16 %v4817
    %v8502 = vunpack.c.l.b16 %v4818
    %v8503 = vunpack.c.h.b16 %v4818
    %v8504 = vunpack.c.l.b16 %v4819
    %v8505 = vunpack.c.h.b16 %v4819
    %v8506 = vunpack.c.l.b16 %v4820
    %v8507 = vunpack.c.h.b16 %v4820
    %v8508 = vunpack.c.l.b16 %v4821
    %v8509 = vunpack.c.h.b16 %v4821
    %v8510 = vunpack.c.l.b16 %v4822
    %v8511 = vunpack.c.h.b16 %v4822
    %v8512 = vunpack.c.l.b16 %v4823
    %v8513 = vunpack.c.h.b16 %v4823
    %v8514 = vunpack.c.l.b16 %v4824
    %v8515 = vunpack.c.h.b16 %v4824
    %v8516 = vunpack.c.l.b16 %v4825
    %v8517 = vunpack.c.h.b16 %v4825
    %v8518 = vunpack.c.l.b16 %v4826
    %v8519 = vunpack.c.h.b16 %v4826
    %v8520 = vunpack.c.l.b16 %v4827
    %v8521 = vunpack.c.h.b16 %v4827
    %v8522 = vunpack.c.l.b16 %v4828
    %v8523 = vunpack.c.h.b16 %v4828
    %v8524 = vunpack.c.l.b16 %v4829
    %v8525 = vunpack.c.h.b16 %v4829
    %v8526 = vunpack.c.l.b16 %v4830
    %v8527 = vunpack.c.h.b16 %v4830
    %v8528 = vunpack.c.l.b16 %v4831
    %v8529 = vunpack.c.h.b16 %v4831
    %v8530 = vunpack.c.l.b16 %v4832
    %v8531 = vunpack.c.h.b16 %v4832
    %v8532 = vunpack.c.l.b16 %v4833
    %v8533 = vunpack.c.h.b16 %v4833
    %v8534 = vunpack.c.l.b16 %v4834
    %v8535 = vunpack.c.h.b16 %v4834
    %v8536 = vunpack.c.l.b16 %v4835
    %v8537 = vunpack.c.h.b16 %v4835
    %v8538 = vunpack.c.l.b16 %v4836
    %v8539 = vunpack.c.h.b16 %v4836
    %v8540 = vunpack.c.l.b16 %v4837
    %v8541 = vunpack.c.h.b16 %v4837
    %v8542 = vunpack.c.l.b16 %v4838
    %v8543 = vunpack.c.h.b16 %v4838
    %v8544 = vunpack.c.l.b16 %v4839
    %v8545 = vunpack.c.h.b16 %v4839
    %v8546 = vunpack.c.l.b16 %v4840
    %v8547 = vunpack.c.h.b16 %v4840
    %v8548 = vunpack.c.l.b16 %v4841
    %v8549 = vunpack.c.h.b16 %v4841
    %v8550 = vunpack.c.l.b16 %v4842
    %v8551 = vunpack.c.h.b16 %v4842
    %v8552 = vunpack.c.l.b16 %v4843
    %v8553 = vunpack.c.h.b16 %v4843
    %v8554 = vunpack.c.l.b16 %v4844
    %v8555 = vunpack.c.h.b16 %v4844
    %v8556 = vunpack.c.l.b16 %v4845
    %v8557 = vunpack.c.h.b16 %v4845
    %v8558 = vunpack.c.l.b16 %v4846
    %v8559 = vunpack.c.h.b16 %v4846
    %v8560 = vunpack.c.l.b16 %v4847
    %v8561 = vunpack.c.h.b16 %v4847
    %v8562 = vunpack.c.l.b16 %v4848
    %v8563 = vunpack.c.h.b16 %v4848
    %v8564 = vunpack.c.l.b16 %v4849
    %v8565 = vunpack.c.h.b16 %v4849
    %v8566 = vunpack.c.l.b16 %v4850
    %v8567 = vunpack.c.h.b16 %v4850
    %v8568 = vunpack.c.l.b16 %v4851
    %v8569 = vunpack.c.h.b16 %v4851
    %v8570 = vunpack.c.l.b16 %v4852
    %v8571 = vunpack.c.h.b16 %v4852
    %v8572 = vunpack.c.l.b16 %v4853
    %v8573 = vunpack.c.h.b16 %v4853
    %v8574 = vunpack.c.l.b16 %v4854
    %v8575 = vunpack.c.h.b16 %v4854
    %v8576 = vunpack.c.l.b16 %v4855
    %v8577 = vunpack.c.h.b16 %v4855
    %v8578 = vunpack.c.l.b16 %v4856
    %v8579 = vunpack.c.h.b16 %v4856
    %v8580 = vunpack.c.l.b16 %v4857
    %v8581 = vunpack.c.h.b16 %v4857
    %v8582 = vunpack.c.l.b16 %v4858
    %v8583 = vunpack.c.h.b16 %v4858
    %v8584 = vunpack.c.l.b16 %v4859
    %v8585 = vunpack.c.h.b16 %v4859
    %v8586 = vunpack.c.l.b16 %v4860
    %v8587 = vunpack.c.h.b16 %v4860
    %v8588 = vunpack.c.l.b16 %v4861
    %v8589 = vunpack.c.h.b16 %v4861
    %v8590 = vunpack.c.l.b16 %v4862
    %v8591 = vunpack.c.h.b16 %v4862
    %v8592 = vunpack.c.l.b16 %v4863
    %v8593 = vunpack.c.h.b16 %v4863
    %v8594 = vunpack.c.l.b16 %v4864
    %v8595 = vunpack.c.h.b16 %v4864
    %v8596 = vunpack.c.l.b16 %v4865
    %v8597 = vunpack.c.h.b16 %v4865
    %v8598 = vunpack.c.l.b16 %v4866
    %v8599 = vunpack.c.h.b16 %v4866
    %v8600 = vunpack.c.l.b16 %v4867
    %v8601 = vunpack.c.h.b16 %v4867
    %v8602 = vunpack.c.l.b16 %v4868
    %v8603 = vunpack.c.h.b16 %v4868
    %v8604 = vunpack.c.l.b16 %v4869
    %v8605 = vunpack.c.h.b16 %v4869
    %v8606 = vunpack.c.l.b16 %v4870
    %v8607 = vunpack.c.h.b16 %v4870
    %v8608 = vunpack.c.l.b16 %v4871
    %v8609 = vunpack.c.h.b16 %v4871
    %v8610 = vunpack.c.l.b16 %v4872
    %v8611 = vunpack.c.h.b16 %v4872
    %v8612 = vunpack.c.l.b16 %v4873
    %v8613 = vunpack.c.h.b16 %v4873
    %v8614 = vunpack.c.l.b16 %v4874
    %v8615 = vunpack.c.h.b16 %v4874
    %v8616 = vunpack.c.l.b16 %v4875
    %v8617 = vunpack.c.h.b16 %v4875
    %v8618 = vunpack.c.l.b16 %v4876
    %v8619 = vunpack.c.h.b16 %v4876
    %v8620 = vunpack.c.l.b16 %v4877
    %v8621 = vunpack.c.h.b16 %v4877
    %v8622 = vunpack.c.l.b16 %v4878
    %v8623 = vunpack.c.h.b16 %v4878
    %v8624 = vunpack.c.l.b16 %v4879
    %v8625 = vunpack.c.h.b16 %v4879
    %v8626 = vunpack.c.l.b16 %v4880
    %v8627 = vunpack.c.h.b16 %v4880
    %v8628 = vunpack.c.l.b16 %v4881
    %v8629 = vunpack.c.h.b16 %v4881
    %v8630 = vunpack.c.l.b16 %v4882
    %v8631 = vunpack.c.h.b16 %v4882
    %v8632 = vunpack.c.l.b16 %v4883
    %v8633 = vunpack.c.h.b16 %v4883
    %v8634 = vunpack.c.l.b16 %v4884
    %v8635 = vunpack.c.h.b16 %v4884
    %v8636 = vunpack.c.l.b16 %v4885
    %v8637 = vunpack.c.h.b16 %v4885
    %v8638 = vunpack.c.l.b16 %v4886
    %v8639 = vunpack.c.h.b16 %v4886
    %v8640 = vunpack.c.l.b16 %v4887
    %v8641 = vunpack.c.h.b16 %v4887
    %v8642 = vunpack.c.l.b16 %v4888
    %v8643 = vunpack.c.h.b16 %v4888
    %v8644 = vpack.c.b16 %v8392, %v8388
    %v8645 = vpack.c.b16 %v8393, %v8389
    %v8646 = vpack.c.b16 %v8394, %v8390
    %v8647 = vpack.c.b16 %v8395, %v8391
    %v8648 = vpack.c.b16 %v8400, %v8396
    %v8649 = vpack.c.b16 %v8401, %v8397
    %v8650 = vpack.c.b16 %v8402, %v8398
    %v8651 = vpack.c.b16 %v8403, %v8399
    %v8652 = vpack.c.b16 %v8408, %v8404
    %v8653 = vpack.c.b16 %v8409, %v8405
    %v8654 = vpack.c.b16 %v8410, %v8406
    %v8655 = vpack.c.b16 %v8411, %v8407
    %v8656 = vpack.c.b16 %v8416, %v8412
    %v8657 = vpack.c.b16 %v8417, %v8413
    %v8658 = vpack.c.b16 %v8418, %v8414
    %v8659 = vpack.c.b16 %v8419, %v8415
    %v8660 = vpack.c.b16 %v8424, %v8420
    %v8661 = vpack.c.b16 %v8425, %v8421
    %v8662 = vpack.c.b16 %v8426, %v8422
    %v8663 = vpack.c.b16 %v8427, %v8423
    %v8664 = vpack.c.b16 %v8432, %v8428
    %v8665 = vpack.c.b16 %v8433, %v8429
    %v8666 = vpack.c.b16 %v8434, %v8430
    %v8667 = vpack.c.b16 %v8435, %v8431
    %v8668 = vpack.c.b16 %v8440, %v8436
    %v8669 = vpack.c.b16 %v8441, %v8437
    %v8670 = vpack.c.b16 %v8442, %v8438
    %v8671 = vpack.c.b16 %v8443, %v8439
    %v8672 = vpack.c.b16 %v8448, %v8444
    %v8673 = vpack.c.b16 %v8449, %v8445
    %v8674 = vpack.c.b16 %v8450, %v8446
    %v8675 = vpack.c.b16 %v8451, %v8447
    %v8676 = vpack.c.b16 %v8456, %v8452
    %v8677 = vpack.c.b16 %v8457, %v8453
    %v8678 = vpack.c.b16 %v8458, %v8454
    %v8679 = vpack.c.b16 %v8459, %v8455
    %v8680 = vpack.c.b16 %v8464, %v8460
    %v8681 = vpack.c.b16 %v8465, %v8461
    %v8682 = vpack.c.b16 %v8466, %v8462
    %v8683 = vpack.c.b16 %v8467, %v8463
    %v8684 = vpack.c.b16 %v8472, %v8468
    %v8685 = vpack.c.b16 %v8473, %v8469
    %v8686 = vpack.c.b16 %v8474, %v8470
    %v8687 = vpack.c.b16 %v8475, %v8471
    %v8688 = vpack.c.b16 %v8480, %v8476
    %v8689 = vpack.c.b16 %v8481, %v8477
    %v8690 = vpack.c.b16 %v8482, %v8478
    %v8691 = vpack.c.b16 %v8483, %v8479
    %v8692 = vpack.c.b16 %v8488, %v8484
    %v8693 = vpack.c.b16 %v8489, %v8485
    %v8694 = vpack.c.b16 %v8490, %v8486
    %v8695 = vpack.c.b16 %v8491, %v8487
    %v8696 = vpack.c.b16 %v8496, %v8492
    %v8697 = vpack.c.b16 %v8497, %v8493
    %v8698 = vpack.c.b16 %v8498, %v8494
    %v8699 = vpack.c.b16 %v8499, %v8495
    %v8700 = vpack.c.b16 %v8504, %v8500
    %v8701 = vpack.c.b16 %v8505, %v8501
    %v8702 = vpack.c.b16 %v8506, %v8502
    %v8703 = vpack.c.b16 %v8507, %v8503
    %v8704 = vpack.c.b16 %v8512, %v8508
    %v8705 = vpack.c.b16 %v8513, %v8509
    %v8706 = vpack.c.b16 %v8514, %v8510
    %v8707 = vpack.c.b16 %v8515, %v8511
    %v8708 = vpack.c.b16 %v8520, %v8516
    %v8709 = vpack.c.b16 %v8521, %v8517
    %v8710 = vpack.c.b16 %v8522, %v8518
    %v8711 = vpack.c.b16 %v8523, %v8519
    %v8712 = vpack.c.b16 %v8528, %v8524
    %v8713 = vpack.c.b16 %v8529, %v8525
    %v8714 = vpack.c.b16 %v8530, %v8526
    %v8715 = vpack.c.b16 %v8531, %v8527
    %v8716 = vpack.c.b16 %v8536, %v8532
    %v8717 = vpack.c.b16 %v8537, %v8533
    %v8718 = vpack.c.b16 %v8538, %v8534
    %v8719 = vpack.c.b16 %v8539, %v8535
    %v8720 = vpack.c.b16 %v8544, %v8540
    %v8721 = vpack.c.b16 %v8545, %v8541
    %v8722 = vpack.c.b16 %v8546, %v8542
    %v8723 = vpack.c.b16 %v8547, %v8543
    %v8724 = vpack.c.b16 %v8552, %v8548
    %v8725 = vpack.c.b16 %v8553, %v8549
    %v8726 = vpack.c.b16 %v8554, %v8550
    %v8727 = vpack.c.b16 %v8555, %v8551
    %v8728 = vpack.c.b16 %v8560, %v8556
    %v8729 = vpack.c.b16 %v8561, %v8557
    %v8730 = vpack.c.b16 %v8562, %v8558
    %v8731 = vpack.c.b16 %v8563, %v8559
    %v8732 = vpack.c.b16 %v8568, %v8564
    %v8733 = vpack.c.b16 %v8569, %v8565
    %v8734 = vpack.c.b16 %v8570, %v8566
    %v8735 = vpack.c.b16 %v8571, %v8567
    %v8736 = vpack.c.b16 %v8576, %v8572
    %v8737 = vpack.c.b16 %v8577, %v8573
    %v8738 = vpack.c.b16 %v8578, %v8574
    %v8739 = vpack.c.b16 %v8579, %v8575
    %v8740 = vpack.c.b16 %v8584, %v8580
    %v8741 = vpack.c.b16 %v8585, %v8581
    %v8742 = vpack.c.b16 %v8586, %v8582
    %v8743 = vpack.c.b16 %v8587, %v8583
    %v8744 = vpack.c.b16 %v8592, %v8588
    %v8745 = vpack.c.b16 %v8593, %v8589
    %v8746 = vpack.c.b16 %v8594, %v8590
    %v8747 = vpack.c.b16 %v8595, %v8591
    %v8748 = vpack.c.b16 %v8600, %v8596
    %v8749 = vpack.c.b16 %v8601, %v8597
    %v8750 = vpack.c.b16 %v8602, %v8598
    %v8751 = vpack.c.b16 %v8603, %v8599
    %v8752 = vpack.c.b16 %v8608, %v8604
    %v8753 = vpack.c.b16 %v8609, %v8605
    %v8754 = vpack.c.b16 %v8610, %v8606
    %v8755 = vpack.c.b16 %v8611, %v8607
    %v8756 = vpack.c.b16 %v8616, %v8612
    %v8757 = vpack.c.b16 %v8617, %v8613
    %v8758 = vpack.c.b16 %v8618, %v8614
    %v8759 = vpack.c.b16 %v8619, %v8615
    %v8760 = vpack.c.b16 %v8624, %v8620
    %v8761 = vpack.c.b16 %v8625, %v8621
    %v8762 = vpack.c.b16 %v8626, %v8622
    %v8763 = vpack.c.b16 %v8627, %v8623
    %v8764 = vpack.c.b16 %v8632, %v8628
    %v8765 = vpack.c.b16 %v8633, %v8629
    %v8766 = vpack.c.b16 %v8634, %v8630
    %v8767 = vpack.c.b16 %v8635, %v8631
    %v8768 = vpack.c.b16 %v8640, %v8636
    %v8769 = vpack.c.b16 %v8641, %v8637
    %v8770 = vpack.c.b16 %v8642, %v8638
    %v8771 = vpack.c.b16 %v8643, %v8639
    %8900 = vmatprep.subr.bf16.mxu0 %v8673
    %8901 = vmatpush1.bf16.msra.mxu0 %v8672
    %8902 = vmatprep.subr.bf16.mxu0 %v8669
    %8903 = vmatpush1.bf16.msra.mxu0 %v8668
    %8904 = vmatprep.subr.bf16.mxu0 %v8665
    %8905 = vmatpush1.bf16.msra.mxu0 %v8664
    %8906 = vmatprep.subr.bf16.mxu0 %v8661
    %8907 = vmatpush1.bf16.msra.mxu0 %v8660
    %8908 = vmatprep.subr.bf16.mxu0 %v8657
    %8909 = vmatpush1.bf16.msra.mxu0 %v8656
    %8910 = vmatprep.subr.bf16.mxu0 %v8653
    %8911 = vmatpush1.bf16.msra.mxu0 %v8652
    %8912 = vmatprep.subr.bf16.mxu0 %v8649
    %8913 = vmatpush1.bf16.msra.mxu0 %v8648
    %8914 = vmatprep.subr.bf16.mxu0 %v8645
    %8915 = vmatpush1.bf16.msra.mxu0 %v8644
    %8916 = vmatprep.subr.bf16.mxu0 %v8705
    %8917 = vmatpush2.bf16.msra.mxu0 %v8704
    %8918 = vmatprep.subr.bf16.mxu0 %v8701
    %8919 = vmatpush2.bf16.msra.mxu0 %v8700
    %8920 = vmatprep.subr.bf16.mxu0 %v8697
    %8921 = vmatpush2.bf16.msra.mxu0 %v8696
    %8922 = vmatprep.subr.bf16.mxu0 %v8693
    %8923 = vmatpush2.bf16.msra.mxu0 %v8692
    %8924 = vmatprep.subr.bf16.mxu0 %v8689
    %8925 = vmatpush2.bf16.msra.mxu0 %v8688
    %8926 = vmatprep.subr.bf16.mxu0 %v8685
    %8927 = vmatpush2.bf16.msra.mxu0 %v8684
    %8928 = vmatprep.subr.bf16.mxu0 %v8681
    %8929 = vmatpush2.bf16.msra.mxu0 %v8680
    %8930 = vmatprep.subr.bf16.mxu0 %v8677
    %8931 = vmatpush2.bf16.msra.mxu0 %v8676
    %8932 = vmatprep.mubr.bf16.mxu0 %v8253
    %8933 = vmatmul.mubr.bf16.gmra.mxu0 %v8252
    %v8934 = vpop.f32.mrf.mxu0
    %v8935 = vadd.f32 0.0, %v8934
    %v8936 = vpop.f32.mrf.mxu0
    %v8937 = vadd.f32 0.0, %v8936
    %v8938 = vpop.f32.mrf.mxu0
    %v8939 = vpop.f32.mrf.mxu0
    %8940 = vdwg.mxu0
    %8941 = vmatprep.subr.bf16.mxu0 %v8737
    %8942 = vmatpush1.bf16.msra.mxu0 %v8736
    %8943 = vmatprep.subr.bf16.mxu0 %v8733
    %8944 = vmatpush1.bf16.msra.mxu0 %v8732
    %8945 = vmatprep.subr.bf16.mxu0 %v8729
    %8946 = vmatpush1.bf16.msra.mxu0 %v8728
    %8947 = vmatprep.subr.bf16.mxu0 %v8725
    %8948 = vmatpush1.bf16.msra.mxu0 %v8724
    %8949 = vmatprep.subr.bf16.mxu0 %v8721
    %8950 = vmatpush1.bf16.msra.mxu0 %v8720
    %8951 = vmatprep.subr.bf16.mxu0 %v8717
    %8952 = vmatpush1.bf16.msra.mxu0 %v8716
    %8953 = vmatprep.subr.bf16.mxu0 %v8713
    %8954 = vmatpush1.bf16.msra.mxu0 %v8712
    %8955 = vmatprep.subr.bf16.mxu0 %v8709
    %8956 = vmatpush1.bf16.msra.mxu0 %v8708
    %8957 = vmatprep.subr.bf16.mxu0 %v8769
    %8958 = vmatpush2.bf16.msra.mxu0 %v8768
    %8959 = vmatprep.subr.bf16.mxu0 %v8765
    %8960 = vmatpush2.bf16.msra.mxu0 %v8764
    %8961 = vmatprep.subr.bf16.mxu0 %v8761
    %8962 = vmatpush2.bf16.msra.mxu0 %v8760
    %8963 = vmatprep.subr.bf16.mxu0 %v8757
    %8964 = vmatpush2.bf16.msra.mxu0 %v8756
    %8965 = vmatprep.subr.bf16.mxu0 %v8753
    %8966 = vmatpush2.bf16.msra.mxu0 %v8752
    %8967 = vmatprep.subr.bf16.mxu0 %v8749
    %8968 = vmatpush2.bf16.msra.mxu0 %v8748
    %8969 = vmatprep.subr.bf16.mxu0 %v8745
    %8970 = vmatpush2.bf16.msra.mxu0 %v8744
    %8971 = vmatprep.subr.bf16.mxu0 %v8741
    %8972 = vmatpush2.bf16.msra.mxu0 %v8740
    %8973 = vmatprep.mubr.bf16.mxu0 %v8255
    %8974 = vmatmul.mubr.bf16.gmra.mxu0 %v8254
    %v8975 = vpop.f32.mrf.mxu0
    %v8976 = vadd.f32 %v8935, %v8975
    %v8977 = vpop.f32.mrf.mxu0
    %v8978 = vadd.f32 %v8937, %v8977
    %v8979 = vpop.f32.mrf.mxu0
    %v8980 = vpop.f32.mrf.mxu0
    %8981 = vdwg.mxu0
    %8982 = vmatprep.subr.bf16.mxu0 %v8675
    %8983 = vmatpush1.bf16.msra.mxu0 %v8674
    %8984 = vmatprep.subr.bf16.mxu0 %v8671
    %8985 = vmatpush1.bf16.msra.mxu0 %v8670
    %8986 = vmatprep.subr.bf16.mxu0 %v8667
    %8987 = vmatpush1.bf16.msra.mxu0 %v8666
    %8988 = vmatprep.subr.bf16.mxu0 %v8663
    %8989 = vmatpush1.bf16.msra.mxu0 %v8662
    %8990 = vmatprep.subr.bf16.mxu0 %v8659
    %8991 = vmatpush1.bf16.msra.mxu0 %v8658
    %8992 = vmatprep.subr.bf16.mxu0 %v8655
    %8993 = vmatpush1.bf16.msra.mxu0 %v8654
    %8994 = vmatprep.subr.bf16.mxu0 %v8651
    %8995 = vmatpush1.bf16.msra.mxu0 %v8650
    %8996 = vmatprep.subr.bf16.mxu0 %v8647
    %8997 = vmatpush1.bf16.msra.mxu0 %v8646
    %8998 = vmatprep.subr.bf16.mxu0 %v8707
    %8999 = vmatpush2.bf16.msra.mxu0 %v8706
    %9000 = vmatprep.subr.bf16.mxu0 %v8703
    %9001 = vmatpush2.bf16.msra.mxu0 %v8702
    %9002 = vmatprep.subr.bf16.mxu0 %v8699
    %9003 = vmatpush2.bf16.msra.mxu0 %v8698
    %9004 = vmatprep.subr.bf16.mxu0 %v8695
    %9005 = vmatpush2.bf16.msra.mxu0 %v8694
    %9006 = vmatprep.subr.bf16.mxu0 %v8691
    %9007 = vmatpush2.bf16.msra.mxu0 %v8690
    %9008 = vmatprep.subr.bf16.mxu0 %v8687
    %9009 = vmatpush2.bf16.msra.mxu0 %v8686
    %9010 = vmatprep.subr.bf16.mxu0 %v8683
    %9011 = vmatpush2.bf16.msra.mxu0 %v8682
    %9012 = vmatprep.subr.bf16.mxu0 %v8679
    %9013 = vmatpush2.bf16.msra.mxu0 %v8678
    %9014 = vmatprep.mubr.bf16.mxu0 %v8253
    %9015 = vmatmul.mubr.bf16.gmra.mxu0 %v8252
    %v9016 = vpop.f32.mrf.mxu0
    %v9017 = vadd.f32 0.0, %v9016
    %v9018 = vpop.f32.mrf.mxu0
    %v9019 = vadd.f32 0.0, %v9018
    %v9020 = vpop.f32.mrf.mxu0
    %v9021 = vpop.f32.mrf.mxu0
    %9022 = vdwg.mxu0
    %9023 = vmatprep.subr.bf16.mxu0 %v8739
    %9024 = vmatpush1.bf16.msra.mxu0 %v8738
    %9025 = vmatprep.subr.bf16.mxu0 %v8735
    %9026 = vmatpush1.bf16.msra.mxu0 %v8734
    %9027 = vmatprep.subr.bf16.mxu0 %v8731
    %9028 = vmatpush1.bf16.msra.mxu0 %v8730
    %9029 = vmatprep.subr.bf16.mxu0 %v8727
    %9030 = vmatpush1.bf16.msra.mxu0 %v8726
    %9031 = vmatprep.subr.bf16.mxu0 %v8723
    %9032 = vmatpush1.bf16.msra.mxu0 %v8722
    %9033 = vmatprep.subr.bf16.mxu0 %v8719
    %9034 = vmatpush1.bf16.msra.mxu0 %v8718
    %9035 = vmatprep.subr.bf16.mxu0 %v8715
    %9036 = vmatpush1.bf16.msra.mxu0 %v8714
    %9037 = vmatprep.subr.bf16.mxu0 %v8711
    %9038 = vmatpush1.bf16.msra.mxu0 %v8710
    %9039 = vmatprep.subr.bf16.mxu0 %v8771
    %9040 = vmatpush2.bf16.msra.mxu0 %v8770
    %9041 = vmatprep.subr.bf16.mxu0 %v8767
    %9042 = vmatpush2.bf16.msra.mxu0 %v8766
    %9043 = vmatprep.subr.bf16.mxu0 %v8763
    %9044 = vmatpush2.bf16.msra.mxu0 %v8762
    %9045 = vmatprep.subr.bf16.mxu0 %v8759
    %9046 = vmatpush2.bf16.msra.mxu0 %v8758
    %9047 = vmatprep.subr.bf16.mxu0 %v8755
    %9048 = vmatpush2.bf16.msra.mxu0 %v8754
    %9049 = vmatprep.subr.bf16.mxu0 %v8751
    %9050 = vmatpush2.bf16.msra.mxu0 %v8750
    %9051 = vmatprep.subr.bf16.mxu0 %v8747
    %9052 = vmatpush2.bf16.msra.mxu0 %v8746
    %9053 = vmatprep.subr.bf16.mxu0 %v8743
    %9054 = vmatpush2.bf16.msra.mxu0 %v8742
    %9055 = vmatprep.mubr.bf16.mxu0 %v8255
    %9056 = vmatmul.mubr.bf16.gmra.mxu0 %v8254
    %v9057 = vpop.f32.mrf.mxu0
    %v9058 = vadd.f32 %v9017, %v9057
    %v9059 = vpop.f32.mrf.mxu0
    %v9060 = vadd.f32 %v9019, %v9059
    %v9061 = vpop.f32.mrf.mxu0
    %v9062 = vpop.f32.mrf.mxu0
    %9063 = vdwg.mxu0
    %v9320 = vunpack.c.l.b16 %v4121
    %v9321 = vunpack.c.h.b16 %v4121
    %v9322 = vunpack.c.l.b16 %v4122
    %v9323 = vunpack.c.h.b16 %v4122
    %v9324 = vunpack.c.l.b16 %v4123
    %v9325 = vunpack.c.h.b16 %v4123
    %v9326 = vunpack.c.l.b16 %v4124
    %v9327 = vunpack.c.h.b16 %v4124
    %v9328 = vunpack.c.l.b16 %v4125
    %v9329 = vunpack.c.h.b16 %v4125
    %v9330 = vunpack.c.l.b16 %v4126
    %v9331 = vunpack.c.h.b16 %v4126
    %v9332 = vunpack.c.l.b16 %v4127
    %v9333 = vunpack.c.h.b16 %v4127
    %v9334 = vunpack.c.l.b16 %v4128
    %v9335 = vunpack.c.h.b16 %v4128
    %v9336 = vunpack.c.l.b16 %v4129
    %v9337 = vunpack.c.h.b16 %v4129
    %v9338 = vunpack.c.l.b16 %v4130
    %v9339 = vunpack.c.h.b16 %v4130
    %v9340 = vunpack.c.l.b16 %v4131
    %v9341 = vunpack.c.h.b16 %v4131
    %v9342 = vunpack.c.l.b16 %v4132
    %v9343 = vunpack.c.h.b16 %v4132
    %v9344 = vunpack.c.l.b16 %v4133
    %v9345 = vunpack.c.h.b16 %v4133
    %v9346 = vunpack.c.l.b16 %v4134
    %v9347 = vunpack.c.h.b16 %v4134
    %v9348 = vunpack.c.l.b16 %v4135
    %v9349 = vunpack.c.h.b16 %v4135
    %v9350 = vunpack.c.l.b16 %v4136
    %v9351 = vunpack.c.h.b16 %v4136
    %v9352 = vunpack.c.l.b16 %v4137
    %v9353 = vunpack.c.h.b16 %v4137
    %v9354 = vunpack.c.l.b16 %v4138
    %v9355 = vunpack.c.h.b16 %v4138
    %v9356 = vunpack.c.l.b16 %v4139
    %v9357 = vunpack.c.h.b16 %v4139
    %v9358 = vunpack.c.l.b16 %v4140
    %v9359 = vunpack.c.h.b16 %v4140
    %v9360 = vunpack.c.l.b16 %v4141
    %v9361 = vunpack.c.h.b16 %v4141
    %v9362 = vunpack.c.l.b16 %v4142
    %v9363 = vunpack.c.h.b16 %v4142
    %v9364 = vunpack.c.l.b16 %v4143
    %v9365 = vunpack.c.h.b16 %v4143
    %v9366 = vunpack.c.l.b16 %v4144
    %v9367 = vunpack.c.h.b16 %v4144
    %v9368 = vunpack.c.l.b16 %v4145
    %v9369 = vunpack.c.h.b16 %v4145
    %v9370 = vunpack.c.l.b16 %v4146
    %v9371 = vunpack.c.h.b16 %v4146
    %v9372 = vunpack.c.l.b16 %v4147
    %v9373 = vunpack.c.h.b16 %v4147
    %v9374 = vunpack.c.l.b16 %v4148
    %v9375 = vunpack.c.h.b16 %v4148
    %v9376 = vunpack.c.l.b16 %v4149
    %v9377 = vunpack.c.h.b16 %v4149
    %v9378 = vunpack.c.l.b16 %v4150
    %v9379 = vunpack.c.h.b16 %v4150
    %v9380 = vunpack.c.l.b16 %v4151
    %v9381 = vunpack.c.h.b16 %v4151
    %v9382 = vunpack.c.l.b16 %v4152
    %v9383 = vunpack.c.h.b16 %v4152
    %v9384 = vunpack.c.l.b16 %v4153
    %v9385 = vunpack.c.h.b16 %v4153
    %v9386 = vunpack.c.l.b16 %v4154
    %v9387 = vunpack.c.h.b16 %v4154
    %v9388 = vunpack.c.l.b16 %v4155
    %v9389 = vunpack.c.h.b16 %v4155
    %v9390 = vunpack.c.l.b16 %v4156
    %v9391 = vunpack.c.h.b16 %v4156
    %v9392 = vunpack.c.l.b16 %v4157
    %v9393 = vunpack.c.h.b16 %v4157
    %v9394 = vunpack.c.l.b16 %v4158
    %v9395 = vunpack.c.h.b16 %v4158
    %v9396 = vunpack.c.l.b16 %v4159
    %v9397 = vunpack.c.h.b16 %v4159
    %v9398 = vunpack.c.l.b16 %v4160
    %v9399 = vunpack.c.h.b16 %v4160
    %v9400 = vunpack.c.l.b16 %v4161
    %v9401 = vunpack.c.h.b16 %v4161
    %v9402 = vunpack.c.l.b16 %v4162
    %v9403 = vunpack.c.h.b16 %v4162
    %v9404 = vunpack.c.l.b16 %v4163
    %v9405 = vunpack.c.h.b16 %v4163
    %v9406 = vunpack.c.l.b16 %v4164
    %v9407 = vunpack.c.h.b16 %v4164
    %v9408 = vunpack.c.l.b16 %v4165
    %v9409 = vunpack.c.h.b16 %v4165
    %v9410 = vunpack.c.l.b16 %v4166
    %v9411 = vunpack.c.h.b16 %v4166
    %v9412 = vunpack.c.l.b16 %v4167
    %v9413 = vunpack.c.h.b16 %v4167
    %v9414 = vunpack.c.l.b16 %v4168
    %v9415 = vunpack.c.h.b16 %v4168
    %v9416 = vunpack.c.l.b16 %v4169
    %v9417 = vunpack.c.h.b16 %v4169
    %v9418 = vunpack.c.l.b16 %v4170
    %v9419 = vunpack.c.h.b16 %v4170
    %v9420 = vunpack.c.l.b16 %v4171
    %v9421 = vunpack.c.h.b16 %v4171
    %v9422 = vunpack.c.l.b16 %v4172
    %v9423 = vunpack.c.h.b16 %v4172
    %v9424 = vunpack.c.l.b16 %v4173
    %v9425 = vunpack.c.h.b16 %v4173
    %v9426 = vunpack.c.l.b16 %v4174
    %v9427 = vunpack.c.h.b16 %v4174
    %v9428 = vunpack.c.l.b16 %v4175
    %v9429 = vunpack.c.h.b16 %v4175
    %v9430 = vunpack.c.l.b16 %v4176
    %v9431 = vunpack.c.h.b16 %v4176
    %v9432 = vunpack.c.l.b16 %v4177
    %v9433 = vunpack.c.h.b16 %v4177
    %v9434 = vunpack.c.l.b16 %v4178
    %v9435 = vunpack.c.h.b16 %v4178
    %v9436 = vunpack.c.l.b16 %v4179
    %v9437 = vunpack.c.h.b16 %v4179
    %v9438 = vunpack.c.l.b16 %v4180
    %v9439 = vunpack.c.h.b16 %v4180
    %v9440 = vunpack.c.l.b16 %v4181
    %v9441 = vunpack.c.h.b16 %v4181
    %v9442 = vunpack.c.l.b16 %v4182
    %v9443 = vunpack.c.h.b16 %v4182
    %v9444 = vunpack.c.l.b16 %v4183
    %v9445 = vunpack.c.h.b16 %v4183
    %v9446 = vunpack.c.l.b16 %v4184
    %v9447 = vunpack.c.h.b16 %v4184
    %v9448 = vunpack.c.l.b16 %v4185
    %v9449 = vunpack.c.h.b16 %v4185
    %v9450 = vunpack.c.l.b16 %v4186
    %v9451 = vunpack.c.h.b16 %v4186
    %v9452 = vunpack.c.l.b16 %v4187
    %v9453 = vunpack.c.h.b16 %v4187
    %v9454 = vunpack.c.l.b16 %v4188
    %v9455 = vunpack.c.h.b16 %v4188
    %v9456 = vunpack.c.l.b16 %v4189
    %v9457 = vunpack.c.h.b16 %v4189
    %v9458 = vunpack.c.l.b16 %v4190
    %v9459 = vunpack.c.h.b16 %v4190
    %v9460 = vunpack.c.l.b16 %v4191
    %v9461 = vunpack.c.h.b16 %v4191
    %v9462 = vunpack.c.l.b16 %v4192
    %v9463 = vunpack.c.h.b16 %v4192
    %v9464 = vunpack.c.l.b16 %v4193
    %v9465 = vunpack.c.h.b16 %v4193
    %v9466 = vunpack.c.l.b16 %v4194
    %v9467 = vunpack.c.h.b16 %v4194
    %v9468 = vunpack.c.l.b16 %v4195
    %v9469 = vunpack.c.h.b16 %v4195
    %v9470 = vunpack.c.l.b16 %v4196
    %v9471 = vunpack.c.h.b16 %v4196
    %v9472 = vunpack.c.l.b16 %v4197
    %v9473 = vunpack.c.h.b16 %v4197
    %v9474 = vunpack.c.l.b16 %v4198
    %v9475 = vunpack.c.h.b16 %v4198
    %v9476 = vunpack.c.l.b16 %v4199
    %v9477 = vunpack.c.h.b16 %v4199
    %v9478 = vunpack.c.l.b16 %v4200
    %v9479 = vunpack.c.h.b16 %v4200
    %v9480 = vunpack.c.l.b16 %v4201
    %v9481 = vunpack.c.h.b16 %v4201
    %v9482 = vunpack.c.l.b16 %v4202
    %v9483 = vunpack.c.h.b16 %v4202
    %v9484 = vunpack.c.l.b16 %v4203
    %v9485 = vunpack.c.h.b16 %v4203
    %v9486 = vunpack.c.l.b16 %v4204
    %v9487 = vunpack.c.h.b16 %v4204
    %v9488 = vunpack.c.l.b16 %v4205
    %v9489 = vunpack.c.h.b16 %v4205
    %v9490 = vunpack.c.l.b16 %v4206
    %v9491 = vunpack.c.h.b16 %v4206
    %v9492 = vunpack.c.l.b16 %v4207
    %v9493 = vunpack.c.h.b16 %v4207
    %v9494 = vunpack.c.l.b16 %v4208
    %v9495 = vunpack.c.h.b16 %v4208
    %v9496 = vunpack.c.l.b16 %v4209
    %v9497 = vunpack.c.h.b16 %v4209
    %v9498 = vunpack.c.l.b16 %v4210
    %v9499 = vunpack.c.h.b16 %v4210
    %v9500 = vunpack.c.l.b16 %v4211
    %v9501 = vunpack.c.h.b16 %v4211
    %v9502 = vunpack.c.l.b16 %v4212
    %v9503 = vunpack.c.h.b16 %v4212
    %v9504 = vunpack.c.l.b16 %v4213
    %v9505 = vunpack.c.h.b16 %v4213
    %v9506 = vunpack.c.l.b16 %v4214
    %v9507 = vunpack.c.h.b16 %v4214
    %v9508 = vunpack.c.l.b16 %v4215
    %v9509 = vunpack.c.h.b16 %v4215
    %v9510 = vunpack.c.l.b16 %v4216
    %v9511 = vunpack.c.h.b16 %v4216
    %v9512 = vunpack.c.l.b16 %v4217
    %v9513 = vunpack.c.h.b16 %v4217
    %v9514 = vunpack.c.l.b16 %v4218
    %v9515 = vunpack.c.h.b16 %v4218
    %v9516 = vunpack.c.l.b16 %v4219
    %v9517 = vunpack.c.h.b16 %v4219
    %v9518 = vunpack.c.l.b16 %v4220
    %v9519 = vunpack.c.h.b16 %v4220
    %v9520 = vunpack.c.l.b16 %v4221
    %v9521 = vunpack.c.h.b16 %v4221
    %v9522 = vunpack.c.l.b16 %v4222
    %v9523 = vunpack.c.h.b16 %v4222
    %v9524 = vunpack.c.l.b16 %v4223
    %v9525 = vunpack.c.h.b16 %v4223
    %v9526 = vunpack.c.l.b16 %v4224
    %v9527 = vunpack.c.h.b16 %v4224
    %v9528 = vunpack.c.l.b16 %v4225
    %v9529 = vunpack.c.h.b16 %v4225
    %v9530 = vunpack.c.l.b16 %v4226
    %v9531 = vunpack.c.h.b16 %v4226
    %v9532 = vunpack.c.l.b16 %v4227
    %v9533 = vunpack.c.h.b16 %v4227
    %v9534 = vunpack.c.l.b16 %v4228
    %v9535 = vunpack.c.h.b16 %v4228
    %v9536 = vunpack.c.l.b16 %v4229
    %v9537 = vunpack.c.h.b16 %v4229
    %v9538 = vunpack.c.l.b16 %v4230
    %v9539 = vunpack.c.h.b16 %v4230
    %v9540 = vunpack.c.l.b16 %v4231
    %v9541 = vunpack.c.h.b16 %v4231
    %v9542 = vunpack.c.l.b16 %v4232
    %v9543 = vunpack.c.h.b16 %v4232
    %v9544 = vunpack.c.l.b16 %v4233
    %v9545 = vunpack.c.h.b16 %v4233
    %v9546 = vunpack.c.l.b16 %v4234
    %v9547 = vunpack.c.h.b16 %v4234
    %v9548 = vunpack.c.l.b16 %v4235
    %v9549 = vunpack.c.h.b16 %v4235
    %v9550 = vunpack.c.l.b16 %v4236
    %v9551 = vunpack.c.h.b16 %v4236
    %v9552 = vunpack.c.l.b16 %v4237
    %v9553 = vunpack.c.h.b16 %v4237
    %v9554 = vunpack.c.l.b16 %v4238
    %v9555 = vunpack.c.h.b16 %v4238
    %v9556 = vunpack.c.l.b16 %v4239
    %v9557 = vunpack.c.h.b16 %v4239
    %v9558 = vunpack.c.l.b16 %v4240
    %v9559 = vunpack.c.h.b16 %v4240
    %v9560 = vunpack.c.l.b16 %v4241
    %v9561 = vunpack.c.h.b16 %v4241
    %v9562 = vunpack.c.l.b16 %v4242
    %v9563 = vunpack.c.h.b16 %v4242
    %v9564 = vunpack.c.l.b16 %v4243
    %v9565 = vunpack.c.h.b16 %v4243
    %v9566 = vunpack.c.l.b16 %v4244
    %v9567 = vunpack.c.h.b16 %v4244
    %v9568 = vunpack.c.l.b16 %v4245
    %v9569 = vunpack.c.h.b16 %v4245
    %v9570 = vunpack.c.l.b16 %v4246
    %v9571 = vunpack.c.h.b16 %v4246
    %v9572 = vunpack.c.l.b16 %v4247
    %v9573 = vunpack.c.h.b16 %v4247
    %v9574 = vunpack.c.l.b16 %v4248
    %v9575 = vunpack.c.h.b16 %v4248
    %v9576 = vunpack.c.l.b16 %v4249
    %v9577 = vunpack.c.h.b16 %v4249
    %v9578 = vunpack.c.l.b16 %v4250
    %v9579 = vunpack.c.h.b16 %v4250
    %v9580 = vunpack.c.l.b16 %v4251
    %v9581 = vunpack.c.h.b16 %v4251
    %v9582 = vunpack.c.l.b16 %v4252
    %v9583 = vunpack.c.h.b16 %v4252
    %v9584 = vunpack.c.l.b16 %v4253
    %v9585 = vunpack.c.h.b16 %v4253
    %v9586 = vunpack.c.l.b16 %v4254
    %v9587 = vunpack.c.h.b16 %v4254
    %v9588 = vunpack.c.l.b16 %v4255
    %v9589 = vunpack.c.h.b16 %v4255
    %v9590 = vunpack.c.l.b16 %v4256
    %v9591 = vunpack.c.h.b16 %v4256
    %v9592 = vunpack.c.l.b16 %v4257
    %v9593 = vunpack.c.h.b16 %v4257
    %v9594 = vunpack.c.l.b16 %v4258
    %v9595 = vunpack.c.h.b16 %v4258
    %v9596 = vunpack.c.l.b16 %v4259
    %v9597 = vunpack.c.h.b16 %v4259
    %v9598 = vunpack.c.l.b16 %v4260
    %v9599 = vunpack.c.h.b16 %v4260
    %v9600 = vunpack.c.l.b16 %v4261
    %v9601 = vunpack.c.h.b16 %v4261
    %v9602 = vunpack.c.l.b16 %v4262
    %v9603 = vunpack.c.h.b16 %v4262
    %v9604 = vunpack.c.l.b16 %v4263
    %v9605 = vunpack.c.h.b16 %v4263
    %v9606 = vunpack.c.l.b16 %v4264
    %v9607 = vunpack.c.h.b16 %v4264
    %v9608 = vunpack.c.l.b16 %v4265
    %v9609 = vunpack.c.h.b16 %v4265
    %v9610 = vunpack.c.l.b16 %v4266
    %v9611 = vunpack.c.h.b16 %v4266
    %v9612 = vunpack.c.l.b16 %v4267
    %v9613 = vunpack.c.h.b16 %v4267
    %v9614 = vunpack.c.l.b16 %v4268
    %v9615 = vunpack.c.h.b16 %v4268
    %v9616 = vunpack.c.l.b16 %v4269
    %v9617 = vunpack.c.h.b16 %v4269
    %v9618 = vunpack.c.l.b16 %v4270
    %v9619 = vunpack.c.h.b16 %v4270
    %v9620 = vunpack.c.l.b16 %v4271
    %v9621 = vunpack.c.h.b16 %v4271
    %v9622 = vunpack.c.l.b16 %v4272
    %v9623 = vunpack.c.h.b16 %v4272
    %v9624 = vunpack.c.l.b16 %v4273
    %v9625 = vunpack.c.h.b16 %v4273
    %v9626 = vunpack.c.l.b16 %v4274
    %v9627 = vunpack.c.h.b16 %v4274
    %v9628 = vunpack.c.l.b16 %v4275
    %v9629 = vunpack.c.h.b16 %v4275
    %v9630 = vunpack.c.l.b16 %v4276
    %v9631 = vunpack.c.h.b16 %v4276
    %v9632 = vunpack.c.l.b16 %v4277
    %v9633 = vunpack.c.h.b16 %v4277
    %v9634 = vunpack.c.l.b16 %v4278
    %v9635 = vunpack.c.h.b16 %v4278
    %v9636 = vunpack.c.l.b16 %v4279
    %v9637 = vunpack.c.h.b16 %v4279
    %v9638 = vunpack.c.l.b16 %v4280
    %v9639 = vunpack.c.h.b16 %v4280
    %v9640 = vunpack.c.l.b16 %v4281
    %v9641 = vunpack.c.h.b16 %v4281
    %v9642 = vunpack.c.l.b16 %v4282
    %v9643 = vunpack.c.h.b16 %v4282
    %v9644 = vunpack.c.l.b16 %v4283
    %v9645 = vunpack.c.h.b16 %v4283
    %v9646 = vunpack.c.l.b16 %v4284
    %v9647 = vunpack.c.h.b16 %v4284
    %v9648 = vunpack.c.l.b16 %v4285
    %v9649 = vunpack.c.h.b16 %v4285
    %v9650 = vunpack.c.l.b16 %v4286
    %v9651 = vunpack.c.h.b16 %v4286
    %v9652 = vunpack.c.l.b16 %v4287
    %v9653 = vunpack.c.h.b16 %v4287
    %v9654 = vunpack.c.l.b16 %v4288
    %v9655 = vunpack.c.h.b16 %v4288
    %v9656 = vunpack.c.l.b16 %v4289
    %v9657 = vunpack.c.h.b16 %v4289
    %v9658 = vunpack.c.l.b16 %v4290
    %v9659 = vunpack.c.h.b16 %v4290
    %v9660 = vunpack.c.l.b16 %v4291
    %v9661 = vunpack.c.h.b16 %v4291
    %v9662 = vunpack.c.l.b16 %v4292
    %v9663 = vunpack.c.h.b16 %v4292
    %v9664 = vunpack.c.l.b16 %v4293
    %v9665 = vunpack.c.h.b16 %v4293
    %v9666 = vunpack.c.l.b16 %v4294
    %v9667 = vunpack.c.h.b16 %v4294
    %v9668 = vunpack.c.l.b16 %v4295
    %v9669 = vunpack.c.h.b16 %v4295
    %v9670 = vunpack.c.l.b16 %v4296
    %v9671 = vunpack.c.h.b16 %v4296
    %v9672 = vunpack.c.l.b16 %v4297
    %v9673 = vunpack.c.h.b16 %v4297
    %v9674 = vunpack.c.l.b16 %v4298
    %v9675 = vunpack.c.h.b16 %v4298
    %v9676 = vunpack.c.l.b16 %v4299
    %v9677 = vunpack.c.h.b16 %v4299
    %v9678 = vunpack.c.l.b16 %v4300
    %v9679 = vunpack.c.h.b16 %v4300
    %v9680 = vunpack.c.l.b16 %v4301
    %v9681 = vunpack.c.h.b16 %v4301
    %v9682 = vunpack.c.l.b16 %v4302
    %v9683 = vunpack.c.h.b16 %v4302
    %v9684 = vunpack.c.l.b16 %v4303
    %v9685 = vunpack.c.h.b16 %v4303
    %v9686 = vunpack.c.l.b16 %v4304
    %v9687 = vunpack.c.h.b16 %v4304
    %v9688 = vunpack.c.l.b16 %v4305
    %v9689 = vunpack.c.h.b16 %v4305
    %v9690 = vunpack.c.l.b16 %v4306
    %v9691 = vunpack.c.h.b16 %v4306
    %v9692 = vunpack.c.l.b16 %v4307
    %v9693 = vunpack.c.h.b16 %v4307
    %v9694 = vunpack.c.l.b16 %v4308
    %v9695 = vunpack.c.h.b16 %v4308
    %v9696 = vunpack.c.l.b16 %v4309
    %v9697 = vunpack.c.h.b16 %v4309
    %v9698 = vunpack.c.l.b16 %v4310
    %v9699 = vunpack.c.h.b16 %v4310
    %v9700 = vunpack.c.l.b16 %v4311
    %v9701 = vunpack.c.h.b16 %v4311
    %v9702 = vunpack.c.l.b16 %v4312
    %v9703 = vunpack.c.h.b16 %v4312
    %v9704 = vunpack.c.l.b16 %v4313
    %v9705 = vunpack.c.h.b16 %v4313
    %v9706 = vunpack.c.l.b16 %v4314
    %v9707 = vunpack.c.h.b16 %v4314
    %v9708 = vunpack.c.l.b16 %v4315
    %v9709 = vunpack.c.h.b16 %v4315
    %v9710 = vunpack.c.l.b16 %v4316
    %v9711 = vunpack.c.h.b16 %v4316
    %v9712 = vunpack.c.l.b16 %v4317
    %v9713 = vunpack.c.h.b16 %v4317
    %v9714 = vunpack.c.l.b16 %v4318
    %v9715 = vunpack.c.h.b16 %v4318
    %v9716 = vunpack.c.l.b16 %v4319
    %v9717 = vunpack.c.h.b16 %v4319
    %v9718 = vunpack.c.l.b16 %v4320
    %v9719 = vunpack.c.h.b16 %v4320
    %v9720 = vunpack.c.l.b16 %v4321
    %v9721 = vunpack.c.h.b16 %v4321
    %v9722 = vunpack.c.l.b16 %v4322
    %v9723 = vunpack.c.h.b16 %v4322
    %v9724 = vunpack.c.l.b16 %v4323
    %v9725 = vunpack.c.h.b16 %v4323
    %v9726 = vunpack.c.l.b16 %v4324
    %v9727 = vunpack.c.h.b16 %v4324
    %v9728 = vunpack.c.l.b16 %v4325
    %v9729 = vunpack.c.h.b16 %v4325
    %v9730 = vunpack.c.l.b16 %v4326
    %v9731 = vunpack.c.h.b16 %v4326
    %v9732 = vunpack.c.l.b16 %v4327
    %v9733 = vunpack.c.h.b16 %v4327
    %v9734 = vunpack.c.l.b16 %v4328
    %v9735 = vunpack.c.h.b16 %v4328
    %v9736 = vunpack.c.l.b16 %v4329
    %v9737 = vunpack.c.h.b16 %v4329
    %v9738 = vunpack.c.l.b16 %v4330
    %v9739 = vunpack.c.h.b16 %v4330
    %v9740 = vunpack.c.l.b16 %v4331
    %v9741 = vunpack.c.h.b16 %v4331
    %v9742 = vunpack.c.l.b16 %v4332
    %v9743 = vunpack.c.h.b16 %v4332
    %v9744 = vunpack.c.l.b16 %v4333
    %v9745 = vunpack.c.h.b16 %v4333
    %v9746 = vunpack.c.l.b16 %v4334
    %v9747 = vunpack.c.h.b16 %v4334
    %v9748 = vunpack.c.l.b16 %v4335
    %v9749 = vunpack.c.h.b16 %v4335
    %v9750 = vunpack.c.l.b16 %v4336
    %v9751 = vunpack.c.h.b16 %v4336
    %v9752 = vunpack.c.l.b16 %v4337
    %v9753 = vunpack.c.h.b16 %v4337
    %v9754 = vunpack.c.l.b16 %v4338
    %v9755 = vunpack.c.h.b16 %v4338
    %v9756 = vunpack.c.l.b16 %v4339
    %v9757 = vunpack.c.h.b16 %v4339
    %v9758 = vunpack.c.l.b16 %v4340
    %v9759 = vunpack.c.h.b16 %v4340
    %v9760 = vunpack.c.l.b16 %v4341
    %v9761 = vunpack.c.h.b16 %v4341
    %v9762 = vunpack.c.l.b16 %v4342
    %v9763 = vunpack.c.h.b16 %v4342
    %v9764 = vunpack.c.l.b16 %v4343
    %v9765 = vunpack.c.h.b16 %v4343
    %v9766 = vunpack.c.l.b16 %v4344
    %v9767 = vunpack.c.h.b16 %v4344
    %v9768 = vunpack.c.l.b16 %v4345
    %v9769 = vunpack.c.h.b16 %v4345
    %v9770 = vunpack.c.l.b16 %v4346
    %v9771 = vunpack.c.h.b16 %v4346
    %v9772 = vunpack.c.l.b16 %v4347
    %v9773 = vunpack.c.h.b16 %v4347
    %v9774 = vunpack.c.l.b16 %v4348
    %v9775 = vunpack.c.h.b16 %v4348
    %v9776 = vunpack.c.l.b16 %v4349
    %v9777 = vunpack.c.h.b16 %v4349
    %v9778 = vunpack.c.l.b16 %v4350
    %v9779 = vunpack.c.h.b16 %v4350
    %v9780 = vunpack.c.l.b16 %v4351
    %v9781 = vunpack.c.h.b16 %v4351
    %v9782 = vunpack.c.l.b16 %v4352
    %v9783 = vunpack.c.h.b16 %v4352
    %v9784 = vunpack.c.l.b16 %v4353
    %v9785 = vunpack.c.h.b16 %v4353
    %v9786 = vunpack.c.l.b16 %v4354
    %v9787 = vunpack.c.h.b16 %v4354
    %v9788 = vunpack.c.l.b16 %v4355
    %v9789 = vunpack.c.h.b16 %v4355
    %v9790 = vunpack.c.l.b16 %v4356
    %v9791 = vunpack.c.h.b16 %v4356
    %v9792 = vunpack.c.l.b16 %v4357
    %v9793 = vunpack.c.h.b16 %v4357
    %v9794 = vunpack.c.l.b16 %v4358
    %v9795 = vunpack.c.h.b16 %v4358
    %v9796 = vunpack.c.l.b16 %v4359
    %v9797 = vunpack.c.h.b16 %v4359
    %v9798 = vunpack.c.l.b16 %v4360
    %v9799 = vunpack.c.h.b16 %v4360
    %v9800 = vunpack.c.l.b16 %v4361
    %v9801 = vunpack.c.h.b16 %v4361
    %v9802 = vunpack.c.l.b16 %v4362
    %v9803 = vunpack.c.h.b16 %v4362
    %v9804 = vunpack.c.l.b16 %v4363
    %v9805 = vunpack.c.h.b16 %v4363
    %v9806 = vunpack.c.l.b16 %v4364
    %v9807 = vunpack.c.h.b16 %v4364
    %v9808 = vunpack.c.l.b16 %v4365
    %v9809 = vunpack.c.h.b16 %v4365
    %v9810 = vunpack.c.l.b16 %v4366
    %v9811 = vunpack.c.h.b16 %v4366
    %v9812 = vunpack.c.l.b16 %v4367
    %v9813 = vunpack.c.h.b16 %v4367
    %v9814 = vunpack.c.l.b16 %v4368
    %v9815 = vunpack.c.h.b16 %v4368
    %v9816 = vunpack.c.l.b16 %v4369
    %v9817 = vunpack.c.h.b16 %v4369
    %v9818 = vunpack.c.l.b16 %v4370
    %v9819 = vunpack.c.h.b16 %v4370
    %v9820 = vunpack.c.l.b16 %v4371
    %v9821 = vunpack.c.h.b16 %v4371
    %v9822 = vunpack.c.l.b16 %v4372
    %v9823 = vunpack.c.h.b16 %v4372
    %v9824 = vunpack.c.l.b16 %v4373
    %v9825 = vunpack.c.h.b16 %v4373
    %v9826 = vunpack.c.l.b16 %v4374
    %v9827 = vunpack.c.h.b16 %v4374
    %v9828 = vunpack.c.l.b16 %v4375
    %v9829 = vunpack.c.h.b16 %v4375
    %v9830 = vunpack.c.l.b16 %v4376
    %v9831 = vunpack.c.h.b16 %v4376
    %v9832 = vlaneseq
    %v9833 = vshrl.u32 %v9832, 7
    %v9834 = vsub.s32 %v5658, %v9833
    %v9835 = vrot.slane %v9320, %v9834
    %v9836 = vlaneseq
    %v9837 = vshrl.u32 %v9836, 7
    %v9838 = vsub.s32 %v5663, %v9837
    %v9839 = vrot.slane %v9321, %v9838
    %v9840 = vsel %vm5668, %v9839, %v9835
    %v9841 = vlaneseq
    %v9842 = vshrl.u32 %v9841, 7
    %v9843 = vsub.s32 %v5670, %v9842
    %v9844 = vrot.slane %v9322, %v9843
    %v9845 = vsel %vm5675, %v9844, %v9840
    %v9846 = vlaneseq
    %v9847 = vshrl.u32 %v9846, 7
    %v9848 = vsub.s32 %v5677, %v9847
    %v9849 = vrot.slane %v9323, %v9848
    %v9850 = vsel %vm5682, %v9849, %v9845
    %v9851 = vlaneseq
    %v9852 = vshrl.u32 %v9851, 7
    %v9853 = vsub.s32 %v5684, %v9852
    %v9854 = vrot.slane %v9324, %v9853
    %v9855 = vsel %vm5689, %v9854, %v9850
    %v9856 = vlaneseq
    %v9857 = vshrl.u32 %v9856, 7
    %v9858 = vsub.s32 %v5691, %v9857
    %v9859 = vrot.slane %v9325, %v9858
    %v9860 = vsel %vm5696, %v9859, %v9855
    %v9861 = vlaneseq
    %v9862 = vshrl.u32 %v9861, 7
    %v9863 = vsub.s32 %v5698, %v9862
    %v9864 = vrot.slane %v9326, %v9863
    %v9865 = vsel %vm5703, %v9864, %v9860
    %v9866 = vlaneseq
    %v9867 = vshrl.u32 %v9866, 7
    %v9868 = vsub.s32 %v5705, %v9867
    %v9869 = vrot.slane %v9327, %v9868
    %v9870 = vsel %vm5710, %v9869, %v9865
    %v9871 = vlaneseq
    %v9872 = vshrl.u32 %v9871, 7
    %v9873 = vsub.s32 %v5712, %v9872
    %v9874 = vrot.slane %v9328, %v9873
    %v9875 = vsel %vm5717, %v9874, %v9870
    %v9876 = vlaneseq
    %v9877 = vshrl.u32 %v9876, 7
    %v9878 = vsub.s32 %v5719, %v9877
    %v9879 = vrot.slane %v9329, %v9878
    %v9880 = vsel %vm5724, %v9879, %v9875
    %v9881 = vlaneseq
    %v9882 = vshrl.u32 %v9881, 7
    %v9883 = vsub.s32 %v5726, %v9882
    %v9884 = vrot.slane %v9330, %v9883
    %v9885 = vsel %vm5731, %v9884, %v9880
    %v9886 = vlaneseq
    %v9887 = vshrl.u32 %v9886, 7
    %v9888 = vsub.s32 %v5733, %v9887
    %v9889 = vrot.slane %v9331, %v9888
    %v9890 = vsel %vm5738, %v9889, %v9885
    %v9891 = vlaneseq
    %v9892 = vshrl.u32 %v9891, 7
    %v9893 = vsub.s32 %v5740, %v9892
    %v9894 = vrot.slane %v9332, %v9893
    %v9895 = vsel %vm5745, %v9894, %v9890
    %v9896 = vlaneseq
    %v9897 = vshrl.u32 %v9896, 7
    %v9898 = vsub.s32 %v5747, %v9897
    %v9899 = vrot.slane %v9333, %v9898
    %v9900 = vsel %vm5752, %v9899, %v9895
    %v9901 = vlaneseq
    %v9902 = vshrl.u32 %v9901, 7
    %v9903 = vsub.s32 %v5754, %v9902
    %v9904 = vrot.slane %v9334, %v9903
    %v9905 = vsel %vm5759, %v9904, %v9900
    %v9906 = vlaneseq
    %v9907 = vshrl.u32 %v9906, 7
    %v9908 = vsub.s32 %v5761, %v9907
    %v9909 = vrot.slane %v9335, %v9908
    %v9910 = vsel %vm5766, %v9909, %v9905
    %v9911 = vlaneseq
    %v9912 = vshrl.u32 %v9911, 7
    %v9913 = vsub.s32 %v5658, %v9912
    %v9914 = vrot.slane %v9336, %v9913
    %v9915 = vlaneseq
    %v9916 = vshrl.u32 %v9915, 7
    %v9917 = vsub.s32 %v5663, %v9916
    %v9918 = vrot.slane %v9337, %v9917
    %v9919 = vsel %vm5668, %v9918, %v9914
    %v9920 = vlaneseq
    %v9921 = vshrl.u32 %v9920, 7
    %v9922 = vsub.s32 %v5670, %v9921
    %v9923 = vrot.slane %v9338, %v9922
    %v9924 = vsel %vm5675, %v9923, %v9919
    %v9925 = vlaneseq
    %v9926 = vshrl.u32 %v9925, 7
    %v9927 = vsub.s32 %v5677, %v9926
    %v9928 = vrot.slane %v9339, %v9927
    %v9929 = vsel %vm5682, %v9928, %v9924
    %v9930 = vlaneseq
    %v9931 = vshrl.u32 %v9930, 7
    %v9932 = vsub.s32 %v5684, %v9931
    %v9933 = vrot.slane %v9340, %v9932
    %v9934 = vsel %vm5689, %v9933, %v9929
    %v9935 = vlaneseq
    %v9936 = vshrl.u32 %v9935, 7
    %v9937 = vsub.s32 %v5691, %v9936
    %v9938 = vrot.slane %v9341, %v9937
    %v9939 = vsel %vm5696, %v9938, %v9934
    %v9940 = vlaneseq
    %v9941 = vshrl.u32 %v9940, 7
    %v9942 = vsub.s32 %v5698, %v9941
    %v9943 = vrot.slane %v9342, %v9942
    %v9944 = vsel %vm5703, %v9943, %v9939
    %v9945 = vlaneseq
    %v9946 = vshrl.u32 %v9945, 7
    %v9947 = vsub.s32 %v5705, %v9946
    %v9948 = vrot.slane %v9343, %v9947
    %v9949 = vsel %vm5710, %v9948, %v9944
    %v9950 = vlaneseq
    %v9951 = vshrl.u32 %v9950, 7
    %v9952 = vsub.s32 %v5712, %v9951
    %v9953 = vrot.slane %v9344, %v9952
    %v9954 = vsel %vm5717, %v9953, %v9949
    %v9955 = vlaneseq
    %v9956 = vshrl.u32 %v9955, 7
    %v9957 = vsub.s32 %v5719, %v9956
    %v9958 = vrot.slane %v9345, %v9957
    %v9959 = vsel %vm5724, %v9958, %v9954
    %v9960 = vlaneseq
    %v9961 = vshrl.u32 %v9960, 7
    %v9962 = vsub.s32 %v5726, %v9961
    %v9963 = vrot.slane %v9346, %v9962
    %v9964 = vsel %vm5731, %v9963, %v9959
    %v9965 = vlaneseq
    %v9966 = vshrl.u32 %v9965, 7
    %v9967 = vsub.s32 %v5733, %v9966
    %v9968 = vrot.slane %v9347, %v9967
    %v9969 = vsel %vm5738, %v9968, %v9964
    %v9970 = vlaneseq
    %v9971 = vshrl.u32 %v9970, 7
    %v9972 = vsub.s32 %v5740, %v9971
    %v9973 = vrot.slane %v9348, %v9972
    %v9974 = vsel %vm5745, %v9973, %v9969
    %v9975 = vlaneseq
    %v9976 = vshrl.u32 %v9975, 7
    %v9977 = vsub.s32 %v5747, %v9976
    %v9978 = vrot.slane %v9349, %v9977
    %v9979 = vsel %vm5752, %v9978, %v9974
    %v9980 = vlaneseq
    %v9981 = vshrl.u32 %v9980, 7
    %v9982 = vsub.s32 %v5754, %v9981
    %v9983 = vrot.slane %v9350, %v9982
    %v9984 = vsel %vm5759, %v9983, %v9979
    %v9985 = vlaneseq
    %v9986 = vshrl.u32 %v9985, 7
    %v9987 = vsub.s32 %v5761, %v9986
    %v9988 = vrot.slane %v9351, %v9987
    %v9989 = vsel %vm5766, %v9988, %v9984
    %v9990 = vlaneseq
    %v9991 = vshrl.u32 %v9990, 7
    %v9992 = vsub.s32 %v5658, %v9991
    %v9993 = vrot.slane %v9352, %v9992
    %v9994 = vlaneseq
    %v9995 = vshrl.u32 %v9994, 7
    %v9996 = vsub.s32 %v5663, %v9995
    %v9997 = vrot.slane %v9353, %v9996
    %v9998 = vsel %vm5668, %v9997, %v9993
    %v9999 = vlaneseq
    %v10000 = vshrl.u32 %v9999, 7
    %v10001 = vsub.s32 %v5670, %v10000
    %v10002 = vrot.slane %v9354, %v10001
    %v10003 = vsel %vm5675, %v10002, %v9998
    %v10004 = vlaneseq
    %v10005 = vshrl.u32 %v10004, 7
    %v10006 = vsub.s32 %v5677, %v10005
    %v10007 = vrot.slane %v9355, %v10006
    %v10008 = vsel %vm5682, %v10007, %v10003
    %v10009 = vlaneseq
    %v10010 = vshrl.u32 %v10009, 7
    %v10011 = vsub.s32 %v5684, %v10010
    %v10012 = vrot.slane %v9356, %v10011
    %v10013 = vsel %vm5689, %v10012, %v10008
    %v10014 = vlaneseq
    %v10015 = vshrl.u32 %v10014, 7
    %v10016 = vsub.s32 %v5691, %v10015
    %v10017 = vrot.slane %v9357, %v10016
    %v10018 = vsel %vm5696, %v10017, %v10013
    %v10019 = vlaneseq
    %v10020 = vshrl.u32 %v10019, 7
    %v10021 = vsub.s32 %v5698, %v10020
    %v10022 = vrot.slane %v9358, %v10021
    %v10023 = vsel %vm5703, %v10022, %v10018
    %v10024 = vlaneseq
    %v10025 = vshrl.u32 %v10024, 7
    %v10026 = vsub.s32 %v5705, %v10025
    %v10027 = vrot.slane %v9359, %v10026
    %v10028 = vsel %vm5710, %v10027, %v10023
    %v10029 = vlaneseq
    %v10030 = vshrl.u32 %v10029, 7
    %v10031 = vsub.s32 %v5712, %v10030
    %v10032 = vrot.slane %v9360, %v10031
    %v10033 = vsel %vm5717, %v10032, %v10028
    %v10034 = vlaneseq
    %v10035 = vshrl.u32 %v10034, 7
    %v10036 = vsub.s32 %v5719, %v10035
    %v10037 = vrot.slane %v9361, %v10036
    %v10038 = vsel %vm5724, %v10037, %v10033
    %v10039 = vlaneseq
    %v10040 = vshrl.u32 %v10039, 7
    %v10041 = vsub.s32 %v5726, %v10040
    %v10042 = vrot.slane %v9362, %v10041
    %v10043 = vsel %vm5731, %v10042, %v10038
    %v10044 = vlaneseq
    %v10045 = vshrl.u32 %v10044, 7
    %v10046 = vsub.s32 %v5733, %v10045
    %v10047 = vrot.slane %v9363, %v10046
    %v10048 = vsel %vm5738, %v10047, %v10043
    %v10049 = vlaneseq
    %v10050 = vshrl.u32 %v10049, 7
    %v10051 = vsub.s32 %v5740, %v10050
    %v10052 = vrot.slane %v9364, %v10051
    %v10053 = vsel %vm5745, %v10052, %v10048
    %v10054 = vlaneseq
    %v10055 = vshrl.u32 %v10054, 7
    %v10056 = vsub.s32 %v5747, %v10055
    %v10057 = vrot.slane %v9365, %v10056
    %v10058 = vsel %vm5752, %v10057, %v10053
    %v10059 = vlaneseq
    %v10060 = vshrl.u32 %v10059, 7
    %v10061 = vsub.s32 %v5754, %v10060
    %v10062 = vrot.slane %v9366, %v10061
    %v10063 = vsel %vm5759, %v10062, %v10058
    %v10064 = vlaneseq
    %v10065 = vshrl.u32 %v10064, 7
    %v10066 = vsub.s32 %v5761, %v10065
    %v10067 = vrot.slane %v9367, %v10066
    %v10068 = vsel %vm5766, %v10067, %v10063
    %v10069 = vlaneseq
    %v10070 = vshrl.u32 %v10069, 7
    %v10071 = vsub.s32 %v5658, %v10070
    %v10072 = vrot.slane %v9368, %v10071
    %v10073 = vlaneseq
    %v10074 = vshrl.u32 %v10073, 7
    %v10075 = vsub.s32 %v5663, %v10074
    %v10076 = vrot.slane %v9369, %v10075
    %v10077 = vsel %vm5668, %v10076, %v10072
    %v10078 = vlaneseq
    %v10079 = vshrl.u32 %v10078, 7
    %v10080 = vsub.s32 %v5670, %v10079
    %v10081 = vrot.slane %v9370, %v10080
    %v10082 = vsel %vm5675, %v10081, %v10077
    %v10083 = vlaneseq
    %v10084 = vshrl.u32 %v10083, 7
    %v10085 = vsub.s32 %v5677, %v10084
    %v10086 = vrot.slane %v9371, %v10085
    %v10087 = vsel %vm5682, %v10086, %v10082
    %v10088 = vlaneseq
    %v10089 = vshrl.u32 %v10088, 7
    %v10090 = vsub.s32 %v5684, %v10089
    %v10091 = vrot.slane %v9372, %v10090
    %v10092 = vsel %vm5689, %v10091, %v10087
    %v10093 = vlaneseq
    %v10094 = vshrl.u32 %v10093, 7
    %v10095 = vsub.s32 %v5691, %v10094
    %v10096 = vrot.slane %v9373, %v10095
    %v10097 = vsel %vm5696, %v10096, %v10092
    %v10098 = vlaneseq
    %v10099 = vshrl.u32 %v10098, 7
    %v10100 = vsub.s32 %v5698, %v10099
    %v10101 = vrot.slane %v9374, %v10100
    %v10102 = vsel %vm5703, %v10101, %v10097
    %v10103 = vlaneseq
    %v10104 = vshrl.u32 %v10103, 7
    %v10105 = vsub.s32 %v5705, %v10104
    %v10106 = vrot.slane %v9375, %v10105
    %v10107 = vsel %vm5710, %v10106, %v10102
    %v10108 = vlaneseq
    %v10109 = vshrl.u32 %v10108, 7
    %v10110 = vsub.s32 %v5712, %v10109
    %v10111 = vrot.slane %v9376, %v10110
    %v10112 = vsel %vm5717, %v10111, %v10107
    %v10113 = vlaneseq
    %v10114 = vshrl.u32 %v10113, 7
    %v10115 = vsub.s32 %v5719, %v10114
    %v10116 = vrot.slane %v9377, %v10115
    %v10117 = vsel %vm5724, %v10116, %v10112
    %v10118 = vlaneseq
    %v10119 = vshrl.u32 %v10118, 7
    %v10120 = vsub.s32 %v5726, %v10119
    %v10121 = vrot.slane %v9378, %v10120
    %v10122 = vsel %vm5731, %v10121, %v10117
    %v10123 = vlaneseq
    %v10124 = vshrl.u32 %v10123, 7
    %v10125 = vsub.s32 %v5733, %v10124
    %v10126 = vrot.slane %v9379, %v10125
    %v10127 = vsel %vm5738, %v10126, %v10122
    %v10128 = vlaneseq
    %v10129 = vshrl.u32 %v10128, 7
    %v10130 = vsub.s32 %v5740, %v10129
    %v10131 = vrot.slane %v9380, %v10130
    %v10132 = vsel %vm5745, %v10131, %v10127
    %v10133 = vlaneseq
    %v10134 = vshrl.u32 %v10133, 7
    %v10135 = vsub.s32 %v5747, %v10134
    %v10136 = vrot.slane %v9381, %v10135
    %v10137 = vsel %vm5752, %v10136, %v10132
    %v10138 = vlaneseq
    %v10139 = vshrl.u32 %v10138, 7
    %v10140 = vsub.s32 %v5754, %v10139
    %v10141 = vrot.slane %v9382, %v10140
    %v10142 = vsel %vm5759, %v10141, %v10137
    %v10143 = vlaneseq
    %v10144 = vshrl.u32 %v10143, 7
    %v10145 = vsub.s32 %v5761, %v10144
    %v10146 = vrot.slane %v9383, %v10145
    %v10147 = vsel %vm5766, %v10146, %v10142
    %v10148 = vlaneseq
    %v10149 = vshrl.u32 %v10148, 7
    %v10150 = vsub.s32 %v5658, %v10149
    %v10151 = vrot.slane %v9384, %v10150
    %v10152 = vlaneseq
    %v10153 = vshrl.u32 %v10152, 7
    %v10154 = vsub.s32 %v5663, %v10153
    %v10155 = vrot.slane %v9385, %v10154
    %v10156 = vsel %vm5668, %v10155, %v10151
    %v10157 = vlaneseq
    %v10158 = vshrl.u32 %v10157, 7
    %v10159 = vsub.s32 %v5670, %v10158
    %v10160 = vrot.slane %v9386, %v10159
    %v10161 = vsel %vm5675, %v10160, %v10156
    %v10162 = vlaneseq
    %v10163 = vshrl.u32 %v10162, 7
    %v10164 = vsub.s32 %v5677, %v10163
    %v10165 = vrot.slane %v9387, %v10164
    %v10166 = vsel %vm5682, %v10165, %v10161
    %v10167 = vlaneseq
    %v10168 = vshrl.u32 %v10167, 7
    %v10169 = vsub.s32 %v5684, %v10168
    %v10170 = vrot.slane %v9388, %v10169
    %v10171 = vsel %vm5689, %v10170, %v10166
    %v10172 = vlaneseq
    %v10173 = vshrl.u32 %v10172, 7
    %v10174 = vsub.s32 %v5691, %v10173
    %v10175 = vrot.slane %v9389, %v10174
    %v10176 = vsel %vm5696, %v10175, %v10171
    %v10177 = vlaneseq
    %v10178 = vshrl.u32 %v10177, 7
    %v10179 = vsub.s32 %v5698, %v10178
    %v10180 = vrot.slane %v9390, %v10179
    %v10181 = vsel %vm5703, %v10180, %v10176
    %v10182 = vlaneseq
    %v10183 = vshrl.u32 %v10182, 7
    %v10184 = vsub.s32 %v5705, %v10183
    %v10185 = vrot.slane %v9391, %v10184
    %v10186 = vsel %vm5710, %v10185, %v10181
    %v10187 = vlaneseq
    %v10188 = vshrl.u32 %v10187, 7
    %v10189 = vsub.s32 %v5712, %v10188
    %v10190 = vrot.slane %v9392, %v10189
    %v10191 = vsel %vm5717, %v10190, %v10186
    %v10192 = vlaneseq
    %v10193 = vshrl.u32 %v10192, 7
    %v10194 = vsub.s32 %v5719, %v10193
    %v10195 = vrot.slane %v9393, %v10194
    %v10196 = vsel %vm5724, %v10195, %v10191
    %v10197 = vlaneseq
    %v10198 = vshrl.u32 %v10197, 7
    %v10199 = vsub.s32 %v5726, %v10198
    %v10200 = vrot.slane %v9394, %v10199
    %v10201 = vsel %vm5731, %v10200, %v10196
    %v10202 = vlaneseq
    %v10203 = vshrl.u32 %v10202, 7
    %v10204 = vsub.s32 %v5733, %v10203
    %v10205 = vrot.slane %v9395, %v10204
    %v10206 = vsel %vm5738, %v10205, %v10201
    %v10207 = vlaneseq
    %v10208 = vshrl.u32 %v10207, 7
    %v10209 = vsub.s32 %v5740, %v10208
    %v10210 = vrot.slane %v9396, %v10209
    %v10211 = vsel %vm5745, %v10210, %v10206
    %v10212 = vlaneseq
    %v10213 = vshrl.u32 %v10212, 7
    %v10214 = vsub.s32 %v5747, %v10213
    %v10215 = vrot.slane %v9397, %v10214
    %v10216 = vsel %vm5752, %v10215, %v10211
    %v10217 = vlaneseq
    %v10218 = vshrl.u32 %v10217, 7
    %v10219 = vsub.s32 %v5754, %v10218
    %v10220 = vrot.slane %v9398, %v10219
    %v10221 = vsel %vm5759, %v10220, %v10216
    %v10222 = vlaneseq
    %v10223 = vshrl.u32 %v10222, 7
    %v10224 = vsub.s32 %v5761, %v10223
    %v10225 = vrot.slane %v9399, %v10224
    %v10226 = vsel %vm5766, %v10225, %v10221
    %v10227 = vlaneseq
    %v10228 = vshrl.u32 %v10227, 7
    %v10229 = vsub.s32 %v5658, %v10228
    %v10230 = vrot.slane %v9400, %v10229
    %v10231 = vlaneseq
    %v10232 = vshrl.u32 %v10231, 7
    %v10233 = vsub.s32 %v5663, %v10232
    %v10234 = vrot.slane %v9401, %v10233
    %v10235 = vsel %vm5668, %v10234, %v10230
    %v10236 = vlaneseq
    %v10237 = vshrl.u32 %v10236, 7
    %v10238 = vsub.s32 %v5670, %v10237
    %v10239 = vrot.slane %v9402, %v10238
    %v10240 = vsel %vm5675, %v10239, %v10235
    %v10241 = vlaneseq
    %v10242 = vshrl.u32 %v10241, 7
    %v10243 = vsub.s32 %v5677, %v10242
    %v10244 = vrot.slane %v9403, %v10243
    %v10245 = vsel %vm5682, %v10244, %v10240
    %v10246 = vlaneseq
    %v10247 = vshrl.u32 %v10246, 7
    %v10248 = vsub.s32 %v5684, %v10247
    %v10249 = vrot.slane %v9404, %v10248
    %v10250 = vsel %vm5689, %v10249, %v10245
    %v10251 = vlaneseq
    %v10252 = vshrl.u32 %v10251, 7
    %v10253 = vsub.s32 %v5691, %v10252
    %v10254 = vrot.slane %v9405, %v10253
    %v10255 = vsel %vm5696, %v10254, %v10250
    %v10256 = vlaneseq
    %v10257 = vshrl.u32 %v10256, 7
    %v10258 = vsub.s32 %v5698, %v10257
    %v10259 = vrot.slane %v9406, %v10258
    %v10260 = vsel %vm5703, %v10259, %v10255
    %v10261 = vlaneseq
    %v10262 = vshrl.u32 %v10261, 7
    %v10263 = vsub.s32 %v5705, %v10262
    %v10264 = vrot.slane %v9407, %v10263
    %v10265 = vsel %vm5710, %v10264, %v10260
    %v10266 = vlaneseq
    %v10267 = vshrl.u32 %v10266, 7
    %v10268 = vsub.s32 %v5712, %v10267
    %v10269 = vrot.slane %v9408, %v10268
    %v10270 = vsel %vm5717, %v10269, %v10265
    %v10271 = vlaneseq
    %v10272 = vshrl.u32 %v10271, 7
    %v10273 = vsub.s32 %v5719, %v10272
    %v10274 = vrot.slane %v9409, %v10273
    %v10275 = vsel %vm5724, %v10274, %v10270
    %v10276 = vlaneseq
    %v10277 = vshrl.u32 %v10276, 7
    %v10278 = vsub.s32 %v5726, %v10277
    %v10279 = vrot.slane %v9410, %v10278
    %v10280 = vsel %vm5731, %v10279, %v10275
    %v10281 = vlaneseq
    %v10282 = vshrl.u32 %v10281, 7
    %v10283 = vsub.s32 %v5733, %v10282
    %v10284 = vrot.slane %v9411, %v10283
    %v10285 = vsel %vm5738, %v10284, %v10280
    %v10286 = vlaneseq
    %v10287 = vshrl.u32 %v10286, 7
    %v10288 = vsub.s32 %v5740, %v10287
    %v10289 = vrot.slane %v9412, %v10288
    %v10290 = vsel %vm5745, %v10289, %v10285
    %v10291 = vlaneseq
    %v10292 = vshrl.u32 %v10291, 7
    %v10293 = vsub.s32 %v5747, %v10292
    %v10294 = vrot.slane %v9413, %v10293
    %v10295 = vsel %vm5752, %v10294, %v10290
    %v10296 = vlaneseq
    %v10297 = vshrl.u32 %v10296, 7
    %v10298 = vsub.s32 %v5754, %v10297
    %v10299 = vrot.slane %v9414, %v10298
    %v10300 = vsel %vm5759, %v10299, %v10295
    %v10301 = vlaneseq
    %v10302 = vshrl.u32 %v10301, 7
    %v10303 = vsub.s32 %v5761, %v10302
    %v10304 = vrot.slane %v9415, %v10303
    %v10305 = vsel %vm5766, %v10304, %v10300
    %v10306 = vlaneseq
    %v10307 = vshrl.u32 %v10306, 7
    %v10308 = vsub.s32 %v5658, %v10307
    %v10309 = vrot.slane %v9416, %v10308
    %v10310 = vlaneseq
    %v10311 = vshrl.u32 %v10310, 7
    %v10312 = vsub.s32 %v5663, %v10311
    %v10313 = vrot.slane %v9417, %v10312
    %v10314 = vsel %vm5668, %v10313, %v10309
    %v10315 = vlaneseq
    %v10316 = vshrl.u32 %v10315, 7
    %v10317 = vsub.s32 %v5670, %v10316
    %v10318 = vrot.slane %v9418, %v10317
    %v10319 = vsel %vm5675, %v10318, %v10314
    %v10320 = vlaneseq
    %v10321 = vshrl.u32 %v10320, 7
    %v10322 = vsub.s32 %v5677, %v10321
    %v10323 = vrot.slane %v9419, %v10322
    %v10324 = vsel %vm5682, %v10323, %v10319
    %v10325 = vlaneseq
    %v10326 = vshrl.u32 %v10325, 7
    %v10327 = vsub.s32 %v5684, %v10326
    %v10328 = vrot.slane %v9420, %v10327
    %v10329 = vsel %vm5689, %v10328, %v10324
    %v10330 = vlaneseq
    %v10331 = vshrl.u32 %v10330, 7
    %v10332 = vsub.s32 %v5691, %v10331
    %v10333 = vrot.slane %v9421, %v10332
    %v10334 = vsel %vm5696, %v10333, %v10329
    %v10335 = vlaneseq
    %v10336 = vshrl.u32 %v10335, 7
    %v10337 = vsub.s32 %v5698, %v10336
    %v10338 = vrot.slane %v9422, %v10337
    %v10339 = vsel %vm5703, %v10338, %v10334
    %v10340 = vlaneseq
    %v10341 = vshrl.u32 %v10340, 7
    %v10342 = vsub.s32 %v5705, %v10341
    %v10343 = vrot.slane %v9423, %v10342
    %v10344 = vsel %vm5710, %v10343, %v10339
    %v10345 = vlaneseq
    %v10346 = vshrl.u32 %v10345, 7
    %v10347 = vsub.s32 %v5712, %v10346
    %v10348 = vrot.slane %v9424, %v10347
    %v10349 = vsel %vm5717, %v10348, %v10344
    %v10350 = vlaneseq
    %v10351 = vshrl.u32 %v10350, 7
    %v10352 = vsub.s32 %v5719, %v10351
    %v10353 = vrot.slane %v9425, %v10352
    %v10354 = vsel %vm5724, %v10353, %v10349
    %v10355 = vlaneseq
    %v10356 = vshrl.u32 %v10355, 7
    %v10357 = vsub.s32 %v5726, %v10356
    %v10358 = vrot.slane %v9426, %v10357
    %v10359 = vsel %vm5731, %v10358, %v10354
    %v10360 = vlaneseq
    %v10361 = vshrl.u32 %v10360, 7
    %v10362 = vsub.s32 %v5733, %v10361
    %v10363 = vrot.slane %v9427, %v10362
    %v10364 = vsel %vm5738, %v10363, %v10359
    %v10365 = vlaneseq
    %v10366 = vshrl.u32 %v10365, 7
    %v10367 = vsub.s32 %v5740, %v10366
    %v10368 = vrot.slane %v9428, %v10367
    %v10369 = vsel %vm5745, %v10368, %v10364
    %v10370 = vlaneseq
    %v10371 = vshrl.u32 %v10370, 7
    %v10372 = vsub.s32 %v5747, %v10371
    %v10373 = vrot.slane %v9429, %v10372
    %v10374 = vsel %vm5752, %v10373, %v10369
    %v10375 = vlaneseq
    %v10376 = vshrl.u32 %v10375, 7
    %v10377 = vsub.s32 %v5754, %v10376
    %v10378 = vrot.slane %v9430, %v10377
    %v10379 = vsel %vm5759, %v10378, %v10374
    %v10380 = vlaneseq
    %v10381 = vshrl.u32 %v10380, 7
    %v10382 = vsub.s32 %v5761, %v10381
    %v10383 = vrot.slane %v9431, %v10382
    %v10384 = vsel %vm5766, %v10383, %v10379
    %v10385 = vlaneseq
    %v10386 = vshrl.u32 %v10385, 7
    %v10387 = vsub.s32 %v5658, %v10386
    %v10388 = vrot.slane %v9432, %v10387
    %v10389 = vlaneseq
    %v10390 = vshrl.u32 %v10389, 7
    %v10391 = vsub.s32 %v5663, %v10390
    %v10392 = vrot.slane %v9433, %v10391
    %v10393 = vsel %vm5668, %v10392, %v10388
    %v10394 = vlaneseq
    %v10395 = vshrl.u32 %v10394, 7
    %v10396 = vsub.s32 %v5670, %v10395
    %v10397 = vrot.slane %v9434, %v10396
    %v10398 = vsel %vm5675, %v10397, %v10393
    %v10399 = vlaneseq
    %v10400 = vshrl.u32 %v10399, 7
    %v10401 = vsub.s32 %v5677, %v10400
    %v10402 = vrot.slane %v9435, %v10401
    %v10403 = vsel %vm5682, %v10402, %v10398
    %v10404 = vlaneseq
    %v10405 = vshrl.u32 %v10404, 7
    %v10406 = vsub.s32 %v5684, %v10405
    %v10407 = vrot.slane %v9436, %v10406
    %v10408 = vsel %vm5689, %v10407, %v10403
    %v10409 = vlaneseq
    %v10410 = vshrl.u32 %v10409, 7
    %v10411 = vsub.s32 %v5691, %v10410
    %v10412 = vrot.slane %v9437, %v10411
    %v10413 = vsel %vm5696, %v10412, %v10408
    %v10414 = vlaneseq
    %v10415 = vshrl.u32 %v10414, 7
    %v10416 = vsub.s32 %v5698, %v10415
    %v10417 = vrot.slane %v9438, %v10416
    %v10418 = vsel %vm5703, %v10417, %v10413
    %v10419 = vlaneseq
    %v10420 = vshrl.u32 %v10419, 7
    %v10421 = vsub.s32 %v5705, %v10420
    %v10422 = vrot.slane %v9439, %v10421
    %v10423 = vsel %vm5710, %v10422, %v10418
    %v10424 = vlaneseq
    %v10425 = vshrl.u32 %v10424, 7
    %v10426 = vsub.s32 %v5712, %v10425
    %v10427 = vrot.slane %v9440, %v10426
    %v10428 = vsel %vm5717, %v10427, %v10423
    %v10429 = vlaneseq
    %v10430 = vshrl.u32 %v10429, 7
    %v10431 = vsub.s32 %v5719, %v10430
    %v10432 = vrot.slane %v9441, %v10431
    %v10433 = vsel %vm5724, %v10432, %v10428
    %v10434 = vlaneseq
    %v10435 = vshrl.u32 %v10434, 7
    %v10436 = vsub.s32 %v5726, %v10435
    %v10437 = vrot.slane %v9442, %v10436
    %v10438 = vsel %vm5731, %v10437, %v10433
    %v10439 = vlaneseq
    %v10440 = vshrl.u32 %v10439, 7
    %v10441 = vsub.s32 %v5733, %v10440
    %v10442 = vrot.slane %v9443, %v10441
    %v10443 = vsel %vm5738, %v10442, %v10438
    %v10444 = vlaneseq
    %v10445 = vshrl.u32 %v10444, 7
    %v10446 = vsub.s32 %v5740, %v10445
    %v10447 = vrot.slane %v9444, %v10446
    %v10448 = vsel %vm5745, %v10447, %v10443
    %v10449 = vlaneseq
    %v10450 = vshrl.u32 %v10449, 7
    %v10451 = vsub.s32 %v5747, %v10450
    %v10452 = vrot.slane %v9445, %v10451
    %v10453 = vsel %vm5752, %v10452, %v10448
    %v10454 = vlaneseq
    %v10455 = vshrl.u32 %v10454, 7
    %v10456 = vsub.s32 %v5754, %v10455
    %v10457 = vrot.slane %v9446, %v10456
    %v10458 = vsel %vm5759, %v10457, %v10453
    %v10459 = vlaneseq
    %v10460 = vshrl.u32 %v10459, 7
    %v10461 = vsub.s32 %v5761, %v10460
    %v10462 = vrot.slane %v9447, %v10461
    %v10463 = vsel %vm5766, %v10462, %v10458
    %v10464 = vlaneseq
    %v10465 = vshrl.u32 %v10464, 7
    %v10466 = vsub.s32 %v5658, %v10465
    %v10467 = vrot.slane %v9448, %v10466
    %v10468 = vlaneseq
    %v10469 = vshrl.u32 %v10468, 7
    %v10470 = vsub.s32 %v5663, %v10469
    %v10471 = vrot.slane %v9449, %v10470
    %v10472 = vsel %vm5668, %v10471, %v10467
    %v10473 = vlaneseq
    %v10474 = vshrl.u32 %v10473, 7
    %v10475 = vsub.s32 %v5670, %v10474
    %v10476 = vrot.slane %v9450, %v10475
    %v10477 = vsel %vm5675, %v10476, %v10472
    %v10478 = vlaneseq
    %v10479 = vshrl.u32 %v10478, 7
    %v10480 = vsub.s32 %v5677, %v10479
    %v10481 = vrot.slane %v9451, %v10480
    %v10482 = vsel %vm5682, %v10481, %v10477
    %v10483 = vlaneseq
    %v10484 = vshrl.u32 %v10483, 7
    %v10485 = vsub.s32 %v5684, %v10484
    %v10486 = vrot.slane %v9452, %v10485
    %v10487 = vsel %vm5689, %v10486, %v10482
    %v10488 = vlaneseq
    %v10489 = vshrl.u32 %v10488, 7
    %v10490 = vsub.s32 %v5691, %v10489
    %v10491 = vrot.slane %v9453, %v10490
    %v10492 = vsel %vm5696, %v10491, %v10487
    %v10493 = vlaneseq
    %v10494 = vshrl.u32 %v10493, 7
    %v10495 = vsub.s32 %v5698, %v10494
    %v10496 = vrot.slane %v9454, %v10495
    %v10497 = vsel %vm5703, %v10496, %v10492
    %v10498 = vlaneseq
    %v10499 = vshrl.u32 %v10498, 7
    %v10500 = vsub.s32 %v5705, %v10499
    %v10501 = vrot.slane %v9455, %v10500
    %v10502 = vsel %vm5710, %v10501, %v10497
    %v10503 = vlaneseq
    %v10504 = vshrl.u32 %v10503, 7
    %v10505 = vsub.s32 %v5712, %v10504
    %v10506 = vrot.slane %v9456, %v10505
    %v10507 = vsel %vm5717, %v10506, %v10502
    %v10508 = vlaneseq
    %v10509 = vshrl.u32 %v10508, 7
    %v10510 = vsub.s32 %v5719, %v10509
    %v10511 = vrot.slane %v9457, %v10510
    %v10512 = vsel %vm5724, %v10511, %v10507
    %v10513 = vlaneseq
    %v10514 = vshrl.u32 %v10513, 7
    %v10515 = vsub.s32 %v5726, %v10514
    %v10516 = vrot.slane %v9458, %v10515
    %v10517 = vsel %vm5731, %v10516, %v10512
    %v10518 = vlaneseq
    %v10519 = vshrl.u32 %v10518, 7
    %v10520 = vsub.s32 %v5733, %v10519
    %v10521 = vrot.slane %v9459, %v10520
    %v10522 = vsel %vm5738, %v10521, %v10517
    %v10523 = vlaneseq
    %v10524 = vshrl.u32 %v10523, 7
    %v10525 = vsub.s32 %v5740, %v10524
    %v10526 = vrot.slane %v9460, %v10525
    %v10527 = vsel %vm5745, %v10526, %v10522
    %v10528 = vlaneseq
    %v10529 = vshrl.u32 %v10528, 7
    %v10530 = vsub.s32 %v5747, %v10529
    %v10531 = vrot.slane %v9461, %v10530
    %v10532 = vsel %vm5752, %v10531, %v10527
    %v10533 = vlaneseq
    %v10534 = vshrl.u32 %v10533, 7
    %v10535 = vsub.s32 %v5754, %v10534
    %v10536 = vrot.slane %v9462, %v10535
    %v10537 = vsel %vm5759, %v10536, %v10532
    %v10538 = vlaneseq
    %v10539 = vshrl.u32 %v10538, 7
    %v10540 = vsub.s32 %v5761, %v10539
    %v10541 = vrot.slane %v9463, %v10540
    %v10542 = vsel %vm5766, %v10541, %v10537
    %v10543 = vlaneseq
    %v10544 = vshrl.u32 %v10543, 7
    %v10545 = vsub.s32 %v5658, %v10544
    %v10546 = vrot.slane %v9464, %v10545
    %v10547 = vlaneseq
    %v10548 = vshrl.u32 %v10547, 7
    %v10549 = vsub.s32 %v5663, %v10548
    %v10550 = vrot.slane %v9465, %v10549
    %v10551 = vsel %vm5668, %v10550, %v10546
    %v10552 = vlaneseq
    %v10553 = vshrl.u32 %v10552, 7
    %v10554 = vsub.s32 %v5670, %v10553
    %v10555 = vrot.slane %v9466, %v10554
    %v10556 = vsel %vm5675, %v10555, %v10551
    %v10557 = vlaneseq
    %v10558 = vshrl.u32 %v10557, 7
    %v10559 = vsub.s32 %v5677, %v10558
    %v10560 = vrot.slane %v9467, %v10559
    %v10561 = vsel %vm5682, %v10560, %v10556
    %v10562 = vlaneseq
    %v10563 = vshrl.u32 %v10562, 7
    %v10564 = vsub.s32 %v5684, %v10563
    %v10565 = vrot.slane %v9468, %v10564
    %v10566 = vsel %vm5689, %v10565, %v10561
    %v10567 = vlaneseq
    %v10568 = vshrl.u32 %v10567, 7
    %v10569 = vsub.s32 %v5691, %v10568
    %v10570 = vrot.slane %v9469, %v10569
    %v10571 = vsel %vm5696, %v10570, %v10566
    %v10572 = vlaneseq
    %v10573 = vshrl.u32 %v10572, 7
    %v10574 = vsub.s32 %v5698, %v10573
    %v10575 = vrot.slane %v9470, %v10574
    %v10576 = vsel %vm5703, %v10575, %v10571
    %v10577 = vlaneseq
    %v10578 = vshrl.u32 %v10577, 7
    %v10579 = vsub.s32 %v5705, %v10578
    %v10580 = vrot.slane %v9471, %v10579
    %v10581 = vsel %vm5710, %v10580, %v10576
    %v10582 = vlaneseq
    %v10583 = vshrl.u32 %v10582, 7
    %v10584 = vsub.s32 %v5712, %v10583
    %v10585 = vrot.slane %v9472, %v10584
    %v10586 = vsel %vm5717, %v10585, %v10581
    %v10587 = vlaneseq
    %v10588 = vshrl.u32 %v10587, 7
    %v10589 = vsub.s32 %v5719, %v10588
    %v10590 = vrot.slane %v9473, %v10589
    %v10591 = vsel %vm5724, %v10590, %v10586
    %v10592 = vlaneseq
    %v10593 = vshrl.u32 %v10592, 7
    %v10594 = vsub.s32 %v5726, %v10593
    %v10595 = vrot.slane %v9474, %v10594
    %v10596 = vsel %vm5731, %v10595, %v10591
    %v10597 = vlaneseq
    %v10598 = vshrl.u32 %v10597, 7
    %v10599 = vsub.s32 %v5733, %v10598
    %v10600 = vrot.slane %v9475, %v10599
    %v10601 = vsel %vm5738, %v10600, %v10596
    %v10602 = vlaneseq
    %v10603 = vshrl.u32 %v10602, 7
    %v10604 = vsub.s32 %v5740, %v10603
    %v10605 = vrot.slane %v9476, %v10604
    %v10606 = vsel %vm5745, %v10605, %v10601
    %v10607 = vlaneseq
    %v10608 = vshrl.u32 %v10607, 7
    %v10609 = vsub.s32 %v5747, %v10608
    %v10610 = vrot.slane %v9477, %v10609
    %v10611 = vsel %vm5752, %v10610, %v10606
    %v10612 = vlaneseq
    %v10613 = vshrl.u32 %v10612, 7
    %v10614 = vsub.s32 %v5754, %v10613
    %v10615 = vrot.slane %v9478, %v10614
    %v10616 = vsel %vm5759, %v10615, %v10611
    %v10617 = vlaneseq
    %v10618 = vshrl.u32 %v10617, 7
    %v10619 = vsub.s32 %v5761, %v10618
    %v10620 = vrot.slane %v9479, %v10619
    %v10621 = vsel %vm5766, %v10620, %v10616
    %v10622 = vlaneseq
    %v10623 = vshrl.u32 %v10622, 7
    %v10624 = vsub.s32 %v5658, %v10623
    %v10625 = vrot.slane %v9480, %v10624
    %v10626 = vlaneseq
    %v10627 = vshrl.u32 %v10626, 7
    %v10628 = vsub.s32 %v5663, %v10627
    %v10629 = vrot.slane %v9481, %v10628
    %v10630 = vsel %vm5668, %v10629, %v10625
    %v10631 = vlaneseq
    %v10632 = vshrl.u32 %v10631, 7
    %v10633 = vsub.s32 %v5670, %v10632
    %v10634 = vrot.slane %v9482, %v10633
    %v10635 = vsel %vm5675, %v10634, %v10630
    %v10636 = vlaneseq
    %v10637 = vshrl.u32 %v10636, 7
    %v10638 = vsub.s32 %v5677, %v10637
    %v10639 = vrot.slane %v9483, %v10638
    %v10640 = vsel %vm5682, %v10639, %v10635
    %v10641 = vlaneseq
    %v10642 = vshrl.u32 %v10641, 7
    %v10643 = vsub.s32 %v5684, %v10642
    %v10644 = vrot.slane %v9484, %v10643
    %v10645 = vsel %vm5689, %v10644, %v10640
    %v10646 = vlaneseq
    %v10647 = vshrl.u32 %v10646, 7
    %v10648 = vsub.s32 %v5691, %v10647
    %v10649 = vrot.slane %v9485, %v10648
    %v10650 = vsel %vm5696, %v10649, %v10645
    %v10651 = vlaneseq
    %v10652 = vshrl.u32 %v10651, 7
    %v10653 = vsub.s32 %v5698, %v10652
    %v10654 = vrot.slane %v9486, %v10653
    %v10655 = vsel %vm5703, %v10654, %v10650
    %v10656 = vlaneseq
    %v10657 = vshrl.u32 %v10656, 7
    %v10658 = vsub.s32 %v5705, %v10657
    %v10659 = vrot.slane %v9487, %v10658
    %v10660 = vsel %vm5710, %v10659, %v10655
    %v10661 = vlaneseq
    %v10662 = vshrl.u32 %v10661, 7
    %v10663 = vsub.s32 %v5712, %v10662
    %v10664 = vrot.slane %v9488, %v10663
    %v10665 = vsel %vm5717, %v10664, %v10660
    %v10666 = vlaneseq
    %v10667 = vshrl.u32 %v10666, 7
    %v10668 = vsub.s32 %v5719, %v10667
    %v10669 = vrot.slane %v9489, %v10668
    %v10670 = vsel %vm5724, %v10669, %v10665
    %v10671 = vlaneseq
    %v10672 = vshrl.u32 %v10671, 7
    %v10673 = vsub.s32 %v5726, %v10672
    %v10674 = vrot.slane %v9490, %v10673
    %v10675 = vsel %vm5731, %v10674, %v10670
    %v10676 = vlaneseq
    %v10677 = vshrl.u32 %v10676, 7
    %v10678 = vsub.s32 %v5733, %v10677
    %v10679 = vrot.slane %v9491, %v10678
    %v10680 = vsel %vm5738, %v10679, %v10675
    %v10681 = vlaneseq
    %v10682 = vshrl.u32 %v10681, 7
    %v10683 = vsub.s32 %v5740, %v10682
    %v10684 = vrot.slane %v9492, %v10683
    %v10685 = vsel %vm5745, %v10684, %v10680
    %v10686 = vlaneseq
    %v10687 = vshrl.u32 %v10686, 7
    %v10688 = vsub.s32 %v5747, %v10687
    %v10689 = vrot.slane %v9493, %v10688
    %v10690 = vsel %vm5752, %v10689, %v10685
    %v10691 = vlaneseq
    %v10692 = vshrl.u32 %v10691, 7
    %v10693 = vsub.s32 %v5754, %v10692
    %v10694 = vrot.slane %v9494, %v10693
    %v10695 = vsel %vm5759, %v10694, %v10690
    %v10696 = vlaneseq
    %v10697 = vshrl.u32 %v10696, 7
    %v10698 = vsub.s32 %v5761, %v10697
    %v10699 = vrot.slane %v9495, %v10698
    %v10700 = vsel %vm5766, %v10699, %v10695
    %v10701 = vlaneseq
    %v10702 = vshrl.u32 %v10701, 7
    %v10703 = vsub.s32 %v5658, %v10702
    %v10704 = vrot.slane %v9496, %v10703
    %v10705 = vlaneseq
    %v10706 = vshrl.u32 %v10705, 7
    %v10707 = vsub.s32 %v5663, %v10706
    %v10708 = vrot.slane %v9497, %v10707
    %v10709 = vsel %vm5668, %v10708, %v10704
    %v10710 = vlaneseq
    %v10711 = vshrl.u32 %v10710, 7
    %v10712 = vsub.s32 %v5670, %v10711
    %v10713 = vrot.slane %v9498, %v10712
    %v10714 = vsel %vm5675, %v10713, %v10709
    %v10715 = vlaneseq
    %v10716 = vshrl.u32 %v10715, 7
    %v10717 = vsub.s32 %v5677, %v10716
    %v10718 = vrot.slane %v9499, %v10717
    %v10719 = vsel %vm5682, %v10718, %v10714
    %v10720 = vlaneseq
    %v10721 = vshrl.u32 %v10720, 7
    %v10722 = vsub.s32 %v5684, %v10721
    %v10723 = vrot.slane %v9500, %v10722
    %v10724 = vsel %vm5689, %v10723, %v10719
    %v10725 = vlaneseq
    %v10726 = vshrl.u32 %v10725, 7
    %v10727 = vsub.s32 %v5691, %v10726
    %v10728 = vrot.slane %v9501, %v10727
    %v10729 = vsel %vm5696, %v10728, %v10724
    %v10730 = vlaneseq
    %v10731 = vshrl.u32 %v10730, 7
    %v10732 = vsub.s32 %v5698, %v10731
    %v10733 = vrot.slane %v9502, %v10732
    %v10734 = vsel %vm5703, %v10733, %v10729
    %v10735 = vlaneseq
    %v10736 = vshrl.u32 %v10735, 7
    %v10737 = vsub.s32 %v5705, %v10736
    %v10738 = vrot.slane %v9503, %v10737
    %v10739 = vsel %vm5710, %v10738, %v10734
    %v10740 = vlaneseq
    %v10741 = vshrl.u32 %v10740, 7
    %v10742 = vsub.s32 %v5712, %v10741
    %v10743 = vrot.slane %v9504, %v10742
    %v10744 = vsel %vm5717, %v10743, %v10739
    %v10745 = vlaneseq
    %v10746 = vshrl.u32 %v10745, 7
    %v10747 = vsub.s32 %v5719, %v10746
    %v10748 = vrot.slane %v9505, %v10747
    %v10749 = vsel %vm5724, %v10748, %v10744
    %v10750 = vlaneseq
    %v10751 = vshrl.u32 %v10750, 7
    %v10752 = vsub.s32 %v5726, %v10751
    %v10753 = vrot.slane %v9506, %v10752
    %v10754 = vsel %vm5731, %v10753, %v10749
    %v10755 = vlaneseq
    %v10756 = vshrl.u32 %v10755, 7
    %v10757 = vsub.s32 %v5733, %v10756
    %v10758 = vrot.slane %v9507, %v10757
    %v10759 = vsel %vm5738, %v10758, %v10754
    %v10760 = vlaneseq
    %v10761 = vshrl.u32 %v10760, 7
    %v10762 = vsub.s32 %v5740, %v10761
    %v10763 = vrot.slane %v9508, %v10762
    %v10764 = vsel %vm5745, %v10763, %v10759
    %v10765 = vlaneseq
    %v10766 = vshrl.u32 %v10765, 7
    %v10767 = vsub.s32 %v5747, %v10766
    %v10768 = vrot.slane %v9509, %v10767
    %v10769 = vsel %vm5752, %v10768, %v10764
    %v10770 = vlaneseq
    %v10771 = vshrl.u32 %v10770, 7
    %v10772 = vsub.s32 %v5754, %v10771
    %v10773 = vrot.slane %v9510, %v10772
    %v10774 = vsel %vm5759, %v10773, %v10769
    %v10775 = vlaneseq
    %v10776 = vshrl.u32 %v10775, 7
    %v10777 = vsub.s32 %v5761, %v10776
    %v10778 = vrot.slane %v9511, %v10777
    %v10779 = vsel %vm5766, %v10778, %v10774
    %v10780 = vlaneseq
    %v10781 = vshrl.u32 %v10780, 7
    %v10782 = vsub.s32 %v5658, %v10781
    %v10783 = vrot.slane %v9512, %v10782
    %v10784 = vlaneseq
    %v10785 = vshrl.u32 %v10784, 7
    %v10786 = vsub.s32 %v5663, %v10785
    %v10787 = vrot.slane %v9513, %v10786
    %v10788 = vsel %vm5668, %v10787, %v10783
    %v10789 = vlaneseq
    %v10790 = vshrl.u32 %v10789, 7
    %v10791 = vsub.s32 %v5670, %v10790
    %v10792 = vrot.slane %v9514, %v10791
    %v10793 = vsel %vm5675, %v10792, %v10788
    %v10794 = vlaneseq
    %v10795 = vshrl.u32 %v10794, 7
    %v10796 = vsub.s32 %v5677, %v10795
    %v10797 = vrot.slane %v9515, %v10796
    %v10798 = vsel %vm5682, %v10797, %v10793
    %v10799 = vlaneseq
    %v10800 = vshrl.u32 %v10799, 7
    %v10801 = vsub.s32 %v5684, %v10800
    %v10802 = vrot.slane %v9516, %v10801
    %v10803 = vsel %vm5689, %v10802, %v10798
    %v10804 = vlaneseq
    %v10805 = vshrl.u32 %v10804, 7
    %v10806 = vsub.s32 %v5691, %v10805
    %v10807 = vrot.slane %v9517, %v10806
    %v10808 = vsel %vm5696, %v10807, %v10803
    %v10809 = vlaneseq
    %v10810 = vshrl.u32 %v10809, 7
    %v10811 = vsub.s32 %v5698, %v10810
    %v10812 = vrot.slane %v9518, %v10811
    %v10813 = vsel %vm5703, %v10812, %v10808
    %v10814 = vlaneseq
    %v10815 = vshrl.u32 %v10814, 7
    %v10816 = vsub.s32 %v5705, %v10815
    %v10817 = vrot.slane %v9519, %v10816
    %v10818 = vsel %vm5710, %v10817, %v10813
    %v10819 = vlaneseq
    %v10820 = vshrl.u32 %v10819, 7
    %v10821 = vsub.s32 %v5712, %v10820
    %v10822 = vrot.slane %v9520, %v10821
    %v10823 = vsel %vm5717, %v10822, %v10818
    %v10824 = vlaneseq
    %v10825 = vshrl.u32 %v10824, 7
    %v10826 = vsub.s32 %v5719, %v10825
    %v10827 = vrot.slane %v9521, %v10826
    %v10828 = vsel %vm5724, %v10827, %v10823
    %v10829 = vlaneseq
    %v10830 = vshrl.u32 %v10829, 7
    %v10831 = vsub.s32 %v5726, %v10830
    %v10832 = vrot.slane %v9522, %v10831
    %v10833 = vsel %vm5731, %v10832, %v10828
    %v10834 = vlaneseq
    %v10835 = vshrl.u32 %v10834, 7
    %v10836 = vsub.s32 %v5733, %v10835
    %v10837 = vrot.slane %v9523, %v10836
    %v10838 = vsel %vm5738, %v10837, %v10833
    %v10839 = vlaneseq
    %v10840 = vshrl.u32 %v10839, 7
    %v10841 = vsub.s32 %v5740, %v10840
    %v10842 = vrot.slane %v9524, %v10841
    %v10843 = vsel %vm5745, %v10842, %v10838
    %v10844 = vlaneseq
    %v10845 = vshrl.u32 %v10844, 7
    %v10846 = vsub.s32 %v5747, %v10845
    %v10847 = vrot.slane %v9525, %v10846
    %v10848 = vsel %vm5752, %v10847, %v10843
    %v10849 = vlaneseq
    %v10850 = vshrl.u32 %v10849, 7
    %v10851 = vsub.s32 %v5754, %v10850
    %v10852 = vrot.slane %v9526, %v10851
    %v10853 = vsel %vm5759, %v10852, %v10848
    %v10854 = vlaneseq
    %v10855 = vshrl.u32 %v10854, 7
    %v10856 = vsub.s32 %v5761, %v10855
    %v10857 = vrot.slane %v9527, %v10856
    %v10858 = vsel %vm5766, %v10857, %v10853
    %v10859 = vlaneseq
    %v10860 = vshrl.u32 %v10859, 7
    %v10861 = vsub.s32 %v5658, %v10860
    %v10862 = vrot.slane %v9528, %v10861
    %v10863 = vlaneseq
    %v10864 = vshrl.u32 %v10863, 7
    %v10865 = vsub.s32 %v5663, %v10864
    %v10866 = vrot.slane %v9529, %v10865
    %v10867 = vsel %vm5668, %v10866, %v10862
    %v10868 = vlaneseq
    %v10869 = vshrl.u32 %v10868, 7
    %v10870 = vsub.s32 %v5670, %v10869
    %v10871 = vrot.slane %v9530, %v10870
    %v10872 = vsel %vm5675, %v10871, %v10867
    %v10873 = vlaneseq
    %v10874 = vshrl.u32 %v10873, 7
    %v10875 = vsub.s32 %v5677, %v10874
    %v10876 = vrot.slane %v9531, %v10875
    %v10877 = vsel %vm5682, %v10876, %v10872
    %v10878 = vlaneseq
    %v10879 = vshrl.u32 %v10878, 7
    %v10880 = vsub.s32 %v5684, %v10879
    %v10881 = vrot.slane %v9532, %v10880
    %v10882 = vsel %vm5689, %v10881, %v10877
    %v10883 = vlaneseq
    %v10884 = vshrl.u32 %v10883, 7
    %v10885 = vsub.s32 %v5691, %v10884
    %v10886 = vrot.slane %v9533, %v10885
    %v10887 = vsel %vm5696, %v10886, %v10882
    %v10888 = vlaneseq
    %v10889 = vshrl.u32 %v10888, 7
    %v10890 = vsub.s32 %v5698, %v10889
    %v10891 = vrot.slane %v9534, %v10890
    %v10892 = vsel %vm5703, %v10891, %v10887
    %v10893 = vlaneseq
    %v10894 = vshrl.u32 %v10893, 7
    %v10895 = vsub.s32 %v5705, %v10894
    %v10896 = vrot.slane %v9535, %v10895
    %v10897 = vsel %vm5710, %v10896, %v10892
    %v10898 = vlaneseq
    %v10899 = vshrl.u32 %v10898, 7
    %v10900 = vsub.s32 %v5712, %v10899
    %v10901 = vrot.slane %v9536, %v10900
    %v10902 = vsel %vm5717, %v10901, %v10897
    %v10903 = vlaneseq
    %v10904 = vshrl.u32 %v10903, 7
    %v10905 = vsub.s32 %v5719, %v10904
    %v10906 = vrot.slane %v9537, %v10905
    %v10907 = vsel %vm5724, %v10906, %v10902
    %v10908 = vlaneseq
    %v10909 = vshrl.u32 %v10908, 7
    %v10910 = vsub.s32 %v5726, %v10909
    %v10911 = vrot.slane %v9538, %v10910
    %v10912 = vsel %vm5731, %v10911, %v10907
    %v10913 = vlaneseq
    %v10914 = vshrl.u32 %v10913, 7
    %v10915 = vsub.s32 %v5733, %v10914
    %v10916 = vrot.slane %v9539, %v10915
    %v10917 = vsel %vm5738, %v10916, %v10912
    %v10918 = vlaneseq
    %v10919 = vshrl.u32 %v10918, 7
    %v10920 = vsub.s32 %v5740, %v10919
    %v10921 = vrot.slane %v9540, %v10920
    %v10922 = vsel %vm5745, %v10921, %v10917
    %v10923 = vlaneseq
    %v10924 = vshrl.u32 %v10923, 7
    %v10925 = vsub.s32 %v5747, %v10924
    %v10926 = vrot.slane %v9541, %v10925
    %v10927 = vsel %vm5752, %v10926, %v10922
    %v10928 = vlaneseq
    %v10929 = vshrl.u32 %v10928, 7
    %v10930 = vsub.s32 %v5754, %v10929
    %v10931 = vrot.slane %v9542, %v10930
    %v10932 = vsel %vm5759, %v10931, %v10927
    %v10933 = vlaneseq
    %v10934 = vshrl.u32 %v10933, 7
    %v10935 = vsub.s32 %v5761, %v10934
    %v10936 = vrot.slane %v9543, %v10935
    %v10937 = vsel %vm5766, %v10936, %v10932
    %v10938 = vlaneseq
    %v10939 = vshrl.u32 %v10938, 7
    %v10940 = vsub.s32 %v5658, %v10939
    %v10941 = vrot.slane %v9544, %v10940
    %v10942 = vlaneseq
    %v10943 = vshrl.u32 %v10942, 7
    %v10944 = vsub.s32 %v5663, %v10943
    %v10945 = vrot.slane %v9545, %v10944
    %v10946 = vsel %vm5668, %v10945, %v10941
    %v10947 = vlaneseq
    %v10948 = vshrl.u32 %v10947, 7
    %v10949 = vsub.s32 %v5670, %v10948
    %v10950 = vrot.slane %v9546, %v10949
    %v10951 = vsel %vm5675, %v10950, %v10946
    %v10952 = vlaneseq
    %v10953 = vshrl.u32 %v10952, 7
    %v10954 = vsub.s32 %v5677, %v10953
    %v10955 = vrot.slane %v9547, %v10954
    %v10956 = vsel %vm5682, %v10955, %v10951
    %v10957 = vlaneseq
    %v10958 = vshrl.u32 %v10957, 7
    %v10959 = vsub.s32 %v5684, %v10958
    %v10960 = vrot.slane %v9548, %v10959
    %v10961 = vsel %vm5689, %v10960, %v10956
    %v10962 = vlaneseq
    %v10963 = vshrl.u32 %v10962, 7
    %v10964 = vsub.s32 %v5691, %v10963
    %v10965 = vrot.slane %v9549, %v10964
    %v10966 = vsel %vm5696, %v10965, %v10961
    %v10967 = vlaneseq
    %v10968 = vshrl.u32 %v10967, 7
    %v10969 = vsub.s32 %v5698, %v10968
    %v10970 = vrot.slane %v9550, %v10969
    %v10971 = vsel %vm5703, %v10970, %v10966
    %v10972 = vlaneseq
    %v10973 = vshrl.u32 %v10972, 7
    %v10974 = vsub.s32 %v5705, %v10973
    %v10975 = vrot.slane %v9551, %v10974
    %v10976 = vsel %vm5710, %v10975, %v10971
    %v10977 = vlaneseq
    %v10978 = vshrl.u32 %v10977, 7
    %v10979 = vsub.s32 %v5712, %v10978
    %v10980 = vrot.slane %v9552, %v10979
    %v10981 = vsel %vm5717, %v10980, %v10976
    %v10982 = vlaneseq
    %v10983 = vshrl.u32 %v10982, 7
    %v10984 = vsub.s32 %v5719, %v10983
    %v10985 = vrot.slane %v9553, %v10984
    %v10986 = vsel %vm5724, %v10985, %v10981
    %v10987 = vlaneseq
    %v10988 = vshrl.u32 %v10987, 7
    %v10989 = vsub.s32 %v5726, %v10988
    %v10990 = vrot.slane %v9554, %v10989
    %v10991 = vsel %vm5731, %v10990, %v10986
    %v10992 = vlaneseq
    %v10993 = vshrl.u32 %v10992, 7
    %v10994 = vsub.s32 %v5733, %v10993
    %v10995 = vrot.slane %v9555, %v10994
    %v10996 = vsel %vm5738, %v10995, %v10991
    %v10997 = vlaneseq
    %v10998 = vshrl.u32 %v10997, 7
    %v10999 = vsub.s32 %v5740, %v10998
    %v11000 = vrot.slane %v9556, %v10999
    %v11001 = vsel %vm5745, %v11000, %v10996
    %v11002 = vlaneseq
    %v11003 = vshrl.u32 %v11002, 7
    %v11004 = vsub.s32 %v5747, %v11003
    %v11005 = vrot.slane %v9557, %v11004
    %v11006 = vsel %vm5752, %v11005, %v11001
    %v11007 = vlaneseq
    %v11008 = vshrl.u32 %v11007, 7
    %v11009 = vsub.s32 %v5754, %v11008
    %v11010 = vrot.slane %v9558, %v11009
    %v11011 = vsel %vm5759, %v11010, %v11006
    %v11012 = vlaneseq
    %v11013 = vshrl.u32 %v11012, 7
    %v11014 = vsub.s32 %v5761, %v11013
    %v11015 = vrot.slane %v9559, %v11014
    %v11016 = vsel %vm5766, %v11015, %v11011
    %v11017 = vlaneseq
    %v11018 = vshrl.u32 %v11017, 7
    %v11019 = vsub.s32 %v5658, %v11018
    %v11020 = vrot.slane %v9560, %v11019
    %v11021 = vlaneseq
    %v11022 = vshrl.u32 %v11021, 7
    %v11023 = vsub.s32 %v5663, %v11022
    %v11024 = vrot.slane %v9561, %v11023
    %v11025 = vsel %vm5668, %v11024, %v11020
    %v11026 = vlaneseq
    %v11027 = vshrl.u32 %v11026, 7
    %v11028 = vsub.s32 %v5670, %v11027
    %v11029 = vrot.slane %v9562, %v11028
    %v11030 = vsel %vm5675, %v11029, %v11025
    %v11031 = vlaneseq
    %v11032 = vshrl.u32 %v11031, 7
    %v11033 = vsub.s32 %v5677, %v11032
    %v11034 = vrot.slane %v9563, %v11033
    %v11035 = vsel %vm5682, %v11034, %v11030
    %v11036 = vlaneseq
    %v11037 = vshrl.u32 %v11036, 7
    %v11038 = vsub.s32 %v5684, %v11037
    %v11039 = vrot.slane %v9564, %v11038
    %v11040 = vsel %vm5689, %v11039, %v11035
    %v11041 = vlaneseq
    %v11042 = vshrl.u32 %v11041, 7
    %v11043 = vsub.s32 %v5691, %v11042
    %v11044 = vrot.slane %v9565, %v11043
    %v11045 = vsel %vm5696, %v11044, %v11040
    %v11046 = vlaneseq
    %v11047 = vshrl.u32 %v11046, 7
    %v11048 = vsub.s32 %v5698, %v11047
    %v11049 = vrot.slane %v9566, %v11048
    %v11050 = vsel %vm5703, %v11049, %v11045
    %v11051 = vlaneseq
    %v11052 = vshrl.u32 %v11051, 7
    %v11053 = vsub.s32 %v5705, %v11052
    %v11054 = vrot.slane %v9567, %v11053
    %v11055 = vsel %vm5710, %v11054, %v11050
    %v11056 = vlaneseq
    %v11057 = vshrl.u32 %v11056, 7
    %v11058 = vsub.s32 %v5712, %v11057
    %v11059 = vrot.slane %v9568, %v11058
    %v11060 = vsel %vm5717, %v11059, %v11055
    %v11061 = vlaneseq
    %v11062 = vshrl.u32 %v11061, 7
    %v11063 = vsub.s32 %v5719, %v11062
    %v11064 = vrot.slane %v9569, %v11063
    %v11065 = vsel %vm5724, %v11064, %v11060
    %v11066 = vlaneseq
    %v11067 = vshrl.u32 %v11066, 7
    %v11068 = vsub.s32 %v5726, %v11067
    %v11069 = vrot.slane %v9570, %v11068
    %v11070 = vsel %vm5731, %v11069, %v11065
    %v11071 = vlaneseq
    %v11072 = vshrl.u32 %v11071, 7
    %v11073 = vsub.s32 %v5733, %v11072
    %v11074 = vrot.slane %v9571, %v11073
    %v11075 = vsel %vm5738, %v11074, %v11070
    %v11076 = vlaneseq
    %v11077 = vshrl.u32 %v11076, 7
    %v11078 = vsub.s32 %v5740, %v11077
    %v11079 = vrot.slane %v9572, %v11078
    %v11080 = vsel %vm5745, %v11079, %v11075
    %v11081 = vlaneseq
    %v11082 = vshrl.u32 %v11081, 7
    %v11083 = vsub.s32 %v5747, %v11082
    %v11084 = vrot.slane %v9573, %v11083
    %v11085 = vsel %vm5752, %v11084, %v11080
    %v11086 = vlaneseq
    %v11087 = vshrl.u32 %v11086, 7
    %v11088 = vsub.s32 %v5754, %v11087
    %v11089 = vrot.slane %v9574, %v11088
    %v11090 = vsel %vm5759, %v11089, %v11085
    %v11091 = vlaneseq
    %v11092 = vshrl.u32 %v11091, 7
    %v11093 = vsub.s32 %v5761, %v11092
    %v11094 = vrot.slane %v9575, %v11093
    %v11095 = vsel %vm5766, %v11094, %v11090
    %v11096 = vlaneseq
    %v11097 = vshrl.u32 %v11096, 7
    %v11098 = vsub.s32 %v5658, %v11097
    %v11099 = vrot.slane %v9576, %v11098
    %v11100 = vlaneseq
    %v11101 = vshrl.u32 %v11100, 7
    %v11102 = vsub.s32 %v5663, %v11101
    %v11103 = vrot.slane %v9577, %v11102
    %v11104 = vsel %vm5668, %v11103, %v11099
    %v11105 = vlaneseq
    %v11106 = vshrl.u32 %v11105, 7
    %v11107 = vsub.s32 %v5670, %v11106
    %v11108 = vrot.slane %v9578, %v11107
    %v11109 = vsel %vm5675, %v11108, %v11104
    %v11110 = vlaneseq
    %v11111 = vshrl.u32 %v11110, 7
    %v11112 = vsub.s32 %v5677, %v11111
    %v11113 = vrot.slane %v9579, %v11112
    %v11114 = vsel %vm5682, %v11113, %v11109
    %v11115 = vlaneseq
    %v11116 = vshrl.u32 %v11115, 7
    %v11117 = vsub.s32 %v5684, %v11116
    %v11118 = vrot.slane %v9580, %v11117
    %v11119 = vsel %vm5689, %v11118, %v11114
    %v11120 = vlaneseq
    %v11121 = vshrl.u32 %v11120, 7
    %v11122 = vsub.s32 %v5691, %v11121
    %v11123 = vrot.slane %v9581, %v11122
    %v11124 = vsel %vm5696, %v11123, %v11119
    %v11125 = vlaneseq
    %v11126 = vshrl.u32 %v11125, 7
    %v11127 = vsub.s32 %v5698, %v11126
    %v11128 = vrot.slane %v9582, %v11127
    %v11129 = vsel %vm5703, %v11128, %v11124
    %v11130 = vlaneseq
    %v11131 = vshrl.u32 %v11130, 7
    %v11132 = vsub.s32 %v5705, %v11131
    %v11133 = vrot.slane %v9583, %v11132
    %v11134 = vsel %vm5710, %v11133, %v11129
    %v11135 = vlaneseq
    %v11136 = vshrl.u32 %v11135, 7
    %v11137 = vsub.s32 %v5712, %v11136
    %v11138 = vrot.slane %v9584, %v11137
    %v11139 = vsel %vm5717, %v11138, %v11134
    %v11140 = vlaneseq
    %v11141 = vshrl.u32 %v11140, 7
    %v11142 = vsub.s32 %v5719, %v11141
    %v11143 = vrot.slane %v9585, %v11142
    %v11144 = vsel %vm5724, %v11143, %v11139
    %v11145 = vlaneseq
    %v11146 = vshrl.u32 %v11145, 7
    %v11147 = vsub.s32 %v5726, %v11146
    %v11148 = vrot.slane %v9586, %v11147
    %v11149 = vsel %vm5731, %v11148, %v11144
    %v11150 = vlaneseq
    %v11151 = vshrl.u32 %v11150, 7
    %v11152 = vsub.s32 %v5733, %v11151
    %v11153 = vrot.slane %v9587, %v11152
    %v11154 = vsel %vm5738, %v11153, %v11149
    %v11155 = vlaneseq
    %v11156 = vshrl.u32 %v11155, 7
    %v11157 = vsub.s32 %v5740, %v11156
    %v11158 = vrot.slane %v9588, %v11157
    %v11159 = vsel %vm5745, %v11158, %v11154
    %v11160 = vlaneseq
    %v11161 = vshrl.u32 %v11160, 7
    %v11162 = vsub.s32 %v5747, %v11161
    %v11163 = vrot.slane %v9589, %v11162
    %v11164 = vsel %vm5752, %v11163, %v11159
    %v11165 = vlaneseq
    %v11166 = vshrl.u32 %v11165, 7
    %v11167 = vsub.s32 %v5754, %v11166
    %v11168 = vrot.slane %v9590, %v11167
    %v11169 = vsel %vm5759, %v11168, %v11164
    %v11170 = vlaneseq
    %v11171 = vshrl.u32 %v11170, 7
    %v11172 = vsub.s32 %v5761, %v11171
    %v11173 = vrot.slane %v9591, %v11172
    %v11174 = vsel %vm5766, %v11173, %v11169
    %v11175 = vlaneseq
    %v11176 = vshrl.u32 %v11175, 7
    %v11177 = vsub.s32 %v5658, %v11176
    %v11178 = vrot.slane %v9592, %v11177
    %v11179 = vlaneseq
    %v11180 = vshrl.u32 %v11179, 7
    %v11181 = vsub.s32 %v5663, %v11180
    %v11182 = vrot.slane %v9593, %v11181
    %v11183 = vsel %vm5668, %v11182, %v11178
    %v11184 = vlaneseq
    %v11185 = vshrl.u32 %v11184, 7
    %v11186 = vsub.s32 %v5670, %v11185
    %v11187 = vrot.slane %v9594, %v11186
    %v11188 = vsel %vm5675, %v11187, %v11183
    %v11189 = vlaneseq
    %v11190 = vshrl.u32 %v11189, 7
    %v11191 = vsub.s32 %v5677, %v11190
    %v11192 = vrot.slane %v9595, %v11191
    %v11193 = vsel %vm5682, %v11192, %v11188
    %v11194 = vlaneseq
    %v11195 = vshrl.u32 %v11194, 7
    %v11196 = vsub.s32 %v5684, %v11195
    %v11197 = vrot.slane %v9596, %v11196
    %v11198 = vsel %vm5689, %v11197, %v11193
    %v11199 = vlaneseq
    %v11200 = vshrl.u32 %v11199, 7
    %v11201 = vsub.s32 %v5691, %v11200
    %v11202 = vrot.slane %v9597, %v11201
    %v11203 = vsel %vm5696, %v11202, %v11198
    %v11204 = vlaneseq
    %v11205 = vshrl.u32 %v11204, 7
    %v11206 = vsub.s32 %v5698, %v11205
    %v11207 = vrot.slane %v9598, %v11206
    %v11208 = vsel %vm5703, %v11207, %v11203
    %v11209 = vlaneseq
    %v11210 = vshrl.u32 %v11209, 7
    %v11211 = vsub.s32 %v5705, %v11210
    %v11212 = vrot.slane %v9599, %v11211
    %v11213 = vsel %vm5710, %v11212, %v11208
    %v11214 = vlaneseq
    %v11215 = vshrl.u32 %v11214, 7
    %v11216 = vsub.s32 %v5712, %v11215
    %v11217 = vrot.slane %v9600, %v11216
    %v11218 = vsel %vm5717, %v11217, %v11213
    %v11219 = vlaneseq
    %v11220 = vshrl.u32 %v11219, 7
    %v11221 = vsub.s32 %v5719, %v11220
    %v11222 = vrot.slane %v9601, %v11221
    %v11223 = vsel %vm5724, %v11222, %v11218
    %v11224 = vlaneseq
    %v11225 = vshrl.u32 %v11224, 7
    %v11226 = vsub.s32 %v5726, %v11225
    %v11227 = vrot.slane %v9602, %v11226
    %v11228 = vsel %vm5731, %v11227, %v11223
    %v11229 = vlaneseq
    %v11230 = vshrl.u32 %v11229, 7
    %v11231 = vsub.s32 %v5733, %v11230
    %v11232 = vrot.slane %v9603, %v11231
    %v11233 = vsel %vm5738, %v11232, %v11228
    %v11234 = vlaneseq
    %v11235 = vshrl.u32 %v11234, 7
    %v11236 = vsub.s32 %v5740, %v11235
    %v11237 = vrot.slane %v9604, %v11236
    %v11238 = vsel %vm5745, %v11237, %v11233
    %v11239 = vlaneseq
    %v11240 = vshrl.u32 %v11239, 7
    %v11241 = vsub.s32 %v5747, %v11240
    %v11242 = vrot.slane %v9605, %v11241
    %v11243 = vsel %vm5752, %v11242, %v11238
    %v11244 = vlaneseq
    %v11245 = vshrl.u32 %v11244, 7
    %v11246 = vsub.s32 %v5754, %v11245
    %v11247 = vrot.slane %v9606, %v11246
    %v11248 = vsel %vm5759, %v11247, %v11243
    %v11249 = vlaneseq
    %v11250 = vshrl.u32 %v11249, 7
    %v11251 = vsub.s32 %v5761, %v11250
    %v11252 = vrot.slane %v9607, %v11251
    %v11253 = vsel %vm5766, %v11252, %v11248
    %v11254 = vlaneseq
    %v11255 = vshrl.u32 %v11254, 7
    %v11256 = vsub.s32 %v5658, %v11255
    %v11257 = vrot.slane %v9608, %v11256
    %v11258 = vlaneseq
    %v11259 = vshrl.u32 %v11258, 7
    %v11260 = vsub.s32 %v5663, %v11259
    %v11261 = vrot.slane %v9609, %v11260
    %v11262 = vsel %vm5668, %v11261, %v11257
    %v11263 = vlaneseq
    %v11264 = vshrl.u32 %v11263, 7
    %v11265 = vsub.s32 %v5670, %v11264
    %v11266 = vrot.slane %v9610, %v11265
    %v11267 = vsel %vm5675, %v11266, %v11262
    %v11268 = vlaneseq
    %v11269 = vshrl.u32 %v11268, 7
    %v11270 = vsub.s32 %v5677, %v11269
    %v11271 = vrot.slane %v9611, %v11270
    %v11272 = vsel %vm5682, %v11271, %v11267
    %v11273 = vlaneseq
    %v11274 = vshrl.u32 %v11273, 7
    %v11275 = vsub.s32 %v5684, %v11274
    %v11276 = vrot.slane %v9612, %v11275
    %v11277 = vsel %vm5689, %v11276, %v11272
    %v11278 = vlaneseq
    %v11279 = vshrl.u32 %v11278, 7
    %v11280 = vsub.s32 %v5691, %v11279
    %v11281 = vrot.slane %v9613, %v11280
    %v11282 = vsel %vm5696, %v11281, %v11277
    %v11283 = vlaneseq
    %v11284 = vshrl.u32 %v11283, 7
    %v11285 = vsub.s32 %v5698, %v11284
    %v11286 = vrot.slane %v9614, %v11285
    %v11287 = vsel %vm5703, %v11286, %v11282
    %v11288 = vlaneseq
    %v11289 = vshrl.u32 %v11288, 7
    %v11290 = vsub.s32 %v5705, %v11289
    %v11291 = vrot.slane %v9615, %v11290
    %v11292 = vsel %vm5710, %v11291, %v11287
    %v11293 = vlaneseq
    %v11294 = vshrl.u32 %v11293, 7
    %v11295 = vsub.s32 %v5712, %v11294
    %v11296 = vrot.slane %v9616, %v11295
    %v11297 = vsel %vm5717, %v11296, %v11292
    %v11298 = vlaneseq
    %v11299 = vshrl.u32 %v11298, 7
    %v11300 = vsub.s32 %v5719, %v11299
    %v11301 = vrot.slane %v9617, %v11300
    %v11302 = vsel %vm5724, %v11301, %v11297
    %v11303 = vlaneseq
    %v11304 = vshrl.u32 %v11303, 7
    %v11305 = vsub.s32 %v5726, %v11304
    %v11306 = vrot.slane %v9618, %v11305
    %v11307 = vsel %vm5731, %v11306, %v11302
    %v11308 = vlaneseq
    %v11309 = vshrl.u32 %v11308, 7
    %v11310 = vsub.s32 %v5733, %v11309
    %v11311 = vrot.slane %v9619, %v11310
    %v11312 = vsel %vm5738, %v11311, %v11307
    %v11313 = vlaneseq
    %v11314 = vshrl.u32 %v11313, 7
    %v11315 = vsub.s32 %v5740, %v11314
    %v11316 = vrot.slane %v9620, %v11315
    %v11317 = vsel %vm5745, %v11316, %v11312
    %v11318 = vlaneseq
    %v11319 = vshrl.u32 %v11318, 7
    %v11320 = vsub.s32 %v5747, %v11319
    %v11321 = vrot.slane %v9621, %v11320
    %v11322 = vsel %vm5752, %v11321, %v11317
    %v11323 = vlaneseq
    %v11324 = vshrl.u32 %v11323, 7
    %v11325 = vsub.s32 %v5754, %v11324
    %v11326 = vrot.slane %v9622, %v11325
    %v11327 = vsel %vm5759, %v11326, %v11322
    %v11328 = vlaneseq
    %v11329 = vshrl.u32 %v11328, 7
    %v11330 = vsub.s32 %v5761, %v11329
    %v11331 = vrot.slane %v9623, %v11330
    %v11332 = vsel %vm5766, %v11331, %v11327
    %v11333 = vlaneseq
    %v11334 = vshrl.u32 %v11333, 7
    %v11335 = vsub.s32 %v5658, %v11334
    %v11336 = vrot.slane %v9624, %v11335
    %v11337 = vlaneseq
    %v11338 = vshrl.u32 %v11337, 7
    %v11339 = vsub.s32 %v5663, %v11338
    %v11340 = vrot.slane %v9625, %v11339
    %v11341 = vsel %vm5668, %v11340, %v11336
    %v11342 = vlaneseq
    %v11343 = vshrl.u32 %v11342, 7
    %v11344 = vsub.s32 %v5670, %v11343
    %v11345 = vrot.slane %v9626, %v11344
    %v11346 = vsel %vm5675, %v11345, %v11341
    %v11347 = vlaneseq
    %v11348 = vshrl.u32 %v11347, 7
    %v11349 = vsub.s32 %v5677, %v11348
    %v11350 = vrot.slane %v9627, %v11349
    %v11351 = vsel %vm5682, %v11350, %v11346
    %v11352 = vlaneseq
    %v11353 = vshrl.u32 %v11352, 7
    %v11354 = vsub.s32 %v5684, %v11353
    %v11355 = vrot.slane %v9628, %v11354
    %v11356 = vsel %vm5689, %v11355, %v11351
    %v11357 = vlaneseq
    %v11358 = vshrl.u32 %v11357, 7
    %v11359 = vsub.s32 %v5691, %v11358
    %v11360 = vrot.slane %v9629, %v11359
    %v11361 = vsel %vm5696, %v11360, %v11356
    %v11362 = vlaneseq
    %v11363 = vshrl.u32 %v11362, 7
    %v11364 = vsub.s32 %v5698, %v11363
    %v11365 = vrot.slane %v9630, %v11364
    %v11366 = vsel %vm5703, %v11365, %v11361
    %v11367 = vlaneseq
    %v11368 = vshrl.u32 %v11367, 7
    %v11369 = vsub.s32 %v5705, %v11368
    %v11370 = vrot.slane %v9631, %v11369
    %v11371 = vsel %vm5710, %v11370, %v11366
    %v11372 = vlaneseq
    %v11373 = vshrl.u32 %v11372, 7
    %v11374 = vsub.s32 %v5712, %v11373
    %v11375 = vrot.slane %v9632, %v11374
    %v11376 = vsel %vm5717, %v11375, %v11371
    %v11377 = vlaneseq
    %v11378 = vshrl.u32 %v11377, 7
    %v11379 = vsub.s32 %v5719, %v11378
    %v11380 = vrot.slane %v9633, %v11379
    %v11381 = vsel %vm5724, %v11380, %v11376
    %v11382 = vlaneseq
    %v11383 = vshrl.u32 %v11382, 7
    %v11384 = vsub.s32 %v5726, %v11383
    %v11385 = vrot.slane %v9634, %v11384
    %v11386 = vsel %vm5731, %v11385, %v11381
    %v11387 = vlaneseq
    %v11388 = vshrl.u32 %v11387, 7
    %v11389 = vsub.s32 %v5733, %v11388
    %v11390 = vrot.slane %v9635, %v11389
    %v11391 = vsel %vm5738, %v11390, %v11386
    %v11392 = vlaneseq
    %v11393 = vshrl.u32 %v11392, 7
    %v11394 = vsub.s32 %v5740, %v11393
    %v11395 = vrot.slane %v9636, %v11394
    %v11396 = vsel %vm5745, %v11395, %v11391
    %v11397 = vlaneseq
    %v11398 = vshrl.u32 %v11397, 7
    %v11399 = vsub.s32 %v5747, %v11398
    %v11400 = vrot.slane %v9637, %v11399
    %v11401 = vsel %vm5752, %v11400, %v11396
    %v11402 = vlaneseq
    %v11403 = vshrl.u32 %v11402, 7
    %v11404 = vsub.s32 %v5754, %v11403
    %v11405 = vrot.slane %v9638, %v11404
    %v11406 = vsel %vm5759, %v11405, %v11401
    %v11407 = vlaneseq
    %v11408 = vshrl.u32 %v11407, 7
    %v11409 = vsub.s32 %v5761, %v11408
    %v11410 = vrot.slane %v9639, %v11409
    %v11411 = vsel %vm5766, %v11410, %v11406
    %v11412 = vlaneseq
    %v11413 = vshrl.u32 %v11412, 7
    %v11414 = vsub.s32 %v5658, %v11413
    %v11415 = vrot.slane %v9640, %v11414
    %v11416 = vlaneseq
    %v11417 = vshrl.u32 %v11416, 7
    %v11418 = vsub.s32 %v5663, %v11417
    %v11419 = vrot.slane %v9641, %v11418
    %v11420 = vsel %vm5668, %v11419, %v11415
    %v11421 = vlaneseq
    %v11422 = vshrl.u32 %v11421, 7
    %v11423 = vsub.s32 %v5670, %v11422
    %v11424 = vrot.slane %v9642, %v11423
    %v11425 = vsel %vm5675, %v11424, %v11420
    %v11426 = vlaneseq
    %v11427 = vshrl.u32 %v11426, 7
    %v11428 = vsub.s32 %v5677, %v11427
    %v11429 = vrot.slane %v9643, %v11428
    %v11430 = vsel %vm5682, %v11429, %v11425
    %v11431 = vlaneseq
    %v11432 = vshrl.u32 %v11431, 7
    %v11433 = vsub.s32 %v5684, %v11432
    %v11434 = vrot.slane %v9644, %v11433
    %v11435 = vsel %vm5689, %v11434, %v11430
    %v11436 = vlaneseq
    %v11437 = vshrl.u32 %v11436, 7
    %v11438 = vsub.s32 %v5691, %v11437
    %v11439 = vrot.slane %v9645, %v11438
    %v11440 = vsel %vm5696, %v11439, %v11435
    %v11441 = vlaneseq
    %v11442 = vshrl.u32 %v11441, 7
    %v11443 = vsub.s32 %v5698, %v11442
    %v11444 = vrot.slane %v9646, %v11443
    %v11445 = vsel %vm5703, %v11444, %v11440
    %v11446 = vlaneseq
    %v11447 = vshrl.u32 %v11446, 7
    %v11448 = vsub.s32 %v5705, %v11447
    %v11449 = vrot.slane %v9647, %v11448
    %v11450 = vsel %vm5710, %v11449, %v11445
    %v11451 = vlaneseq
    %v11452 = vshrl.u32 %v11451, 7
    %v11453 = vsub.s32 %v5712, %v11452
    %v11454 = vrot.slane %v9648, %v11453
    %v11455 = vsel %vm5717, %v11454, %v11450
    %v11456 = vlaneseq
    %v11457 = vshrl.u32 %v11456, 7
    %v11458 = vsub.s32 %v5719, %v11457
    %v11459 = vrot.slane %v9649, %v11458
    %v11460 = vsel %vm5724, %v11459, %v11455
    %v11461 = vlaneseq
    %v11462 = vshrl.u32 %v11461, 7
    %v11463 = vsub.s32 %v5726, %v11462
    %v11464 = vrot.slane %v9650, %v11463
    %v11465 = vsel %vm5731, %v11464, %v11460
    %v11466 = vlaneseq
    %v11467 = vshrl.u32 %v11466, 7
    %v11468 = vsub.s32 %v5733, %v11467
    %v11469 = vrot.slane %v9651, %v11468
    %v11470 = vsel %vm5738, %v11469, %v11465
    %v11471 = vlaneseq
    %v11472 = vshrl.u32 %v11471, 7
    %v11473 = vsub.s32 %v5740, %v11472
    %v11474 = vrot.slane %v9652, %v11473
    %v11475 = vsel %vm5745, %v11474, %v11470
    %v11476 = vlaneseq
    %v11477 = vshrl.u32 %v11476, 7
    %v11478 = vsub.s32 %v5747, %v11477
    %v11479 = vrot.slane %v9653, %v11478
    %v11480 = vsel %vm5752, %v11479, %v11475
    %v11481 = vlaneseq
    %v11482 = vshrl.u32 %v11481, 7
    %v11483 = vsub.s32 %v5754, %v11482
    %v11484 = vrot.slane %v9654, %v11483
    %v11485 = vsel %vm5759, %v11484, %v11480
    %v11486 = vlaneseq
    %v11487 = vshrl.u32 %v11486, 7
    %v11488 = vsub.s32 %v5761, %v11487
    %v11489 = vrot.slane %v9655, %v11488
    %v11490 = vsel %vm5766, %v11489, %v11485
    %v11491 = vlaneseq
    %v11492 = vshrl.u32 %v11491, 7
    %v11493 = vsub.s32 %v5658, %v11492
    %v11494 = vrot.slane %v9656, %v11493
    %v11495 = vlaneseq
    %v11496 = vshrl.u32 %v11495, 7
    %v11497 = vsub.s32 %v5663, %v11496
    %v11498 = vrot.slane %v9657, %v11497
    %v11499 = vsel %vm5668, %v11498, %v11494
    %v11500 = vlaneseq
    %v11501 = vshrl.u32 %v11500, 7
    %v11502 = vsub.s32 %v5670, %v11501
    %v11503 = vrot.slane %v9658, %v11502
    %v11504 = vsel %vm5675, %v11503, %v11499
    %v11505 = vlaneseq
    %v11506 = vshrl.u32 %v11505, 7
    %v11507 = vsub.s32 %v5677, %v11506
    %v11508 = vrot.slane %v9659, %v11507
    %v11509 = vsel %vm5682, %v11508, %v11504
    %v11510 = vlaneseq
    %v11511 = vshrl.u32 %v11510, 7
    %v11512 = vsub.s32 %v5684, %v11511
    %v11513 = vrot.slane %v9660, %v11512
    %v11514 = vsel %vm5689, %v11513, %v11509
    %v11515 = vlaneseq
    %v11516 = vshrl.u32 %v11515, 7
    %v11517 = vsub.s32 %v5691, %v11516
    %v11518 = vrot.slane %v9661, %v11517
    %v11519 = vsel %vm5696, %v11518, %v11514
    %v11520 = vlaneseq
    %v11521 = vshrl.u32 %v11520, 7
    %v11522 = vsub.s32 %v5698, %v11521
    %v11523 = vrot.slane %v9662, %v11522
    %v11524 = vsel %vm5703, %v11523, %v11519
    %v11525 = vlaneseq
    %v11526 = vshrl.u32 %v11525, 7
    %v11527 = vsub.s32 %v5705, %v11526
    %v11528 = vrot.slane %v9663, %v11527
    %v11529 = vsel %vm5710, %v11528, %v11524
    %v11530 = vlaneseq
    %v11531 = vshrl.u32 %v11530, 7
    %v11532 = vsub.s32 %v5712, %v11531
    %v11533 = vrot.slane %v9664, %v11532
    %v11534 = vsel %vm5717, %v11533, %v11529
    %v11535 = vlaneseq
    %v11536 = vshrl.u32 %v11535, 7
    %v11537 = vsub.s32 %v5719, %v11536
    %v11538 = vrot.slane %v9665, %v11537
    %v11539 = vsel %vm5724, %v11538, %v11534
    %v11540 = vlaneseq
    %v11541 = vshrl.u32 %v11540, 7
    %v11542 = vsub.s32 %v5726, %v11541
    %v11543 = vrot.slane %v9666, %v11542
    %v11544 = vsel %vm5731, %v11543, %v11539
    %v11545 = vlaneseq
    %v11546 = vshrl.u32 %v11545, 7
    %v11547 = vsub.s32 %v5733, %v11546
    %v11548 = vrot.slane %v9667, %v11547
    %v11549 = vsel %vm5738, %v11548, %v11544
    %v11550 = vlaneseq
    %v11551 = vshrl.u32 %v11550, 7
    %v11552 = vsub.s32 %v5740, %v11551
    %v11553 = vrot.slane %v9668, %v11552
    %v11554 = vsel %vm5745, %v11553, %v11549
    %v11555 = vlaneseq
    %v11556 = vshrl.u32 %v11555, 7
    %v11557 = vsub.s32 %v5747, %v11556
    %v11558 = vrot.slane %v9669, %v11557
    %v11559 = vsel %vm5752, %v11558, %v11554
    %v11560 = vlaneseq
    %v11561 = vshrl.u32 %v11560, 7
    %v11562 = vsub.s32 %v5754, %v11561
    %v11563 = vrot.slane %v9670, %v11562
    %v11564 = vsel %vm5759, %v11563, %v11559
    %v11565 = vlaneseq
    %v11566 = vshrl.u32 %v11565, 7
    %v11567 = vsub.s32 %v5761, %v11566
    %v11568 = vrot.slane %v9671, %v11567
    %v11569 = vsel %vm5766, %v11568, %v11564
    %v11570 = vlaneseq
    %v11571 = vshrl.u32 %v11570, 7
    %v11572 = vsub.s32 %v5658, %v11571
    %v11573 = vrot.slane %v9672, %v11572
    %v11574 = vlaneseq
    %v11575 = vshrl.u32 %v11574, 7
    %v11576 = vsub.s32 %v5663, %v11575
    %v11577 = vrot.slane %v9673, %v11576
    %v11578 = vsel %vm5668, %v11577, %v11573
    %v11579 = vlaneseq
    %v11580 = vshrl.u32 %v11579, 7
    %v11581 = vsub.s32 %v5670, %v11580
    %v11582 = vrot.slane %v9674, %v11581
    %v11583 = vsel %vm5675, %v11582, %v11578
    %v11584 = vlaneseq
    %v11585 = vshrl.u32 %v11584, 7
    %v11586 = vsub.s32 %v5677, %v11585
    %v11587 = vrot.slane %v9675, %v11586
    %v11588 = vsel %vm5682, %v11587, %v11583
    %v11589 = vlaneseq
    %v11590 = vshrl.u32 %v11589, 7
    %v11591 = vsub.s32 %v5684, %v11590
    %v11592 = vrot.slane %v9676, %v11591
    %v11593 = vsel %vm5689, %v11592, %v11588
    %v11594 = vlaneseq
    %v11595 = vshrl.u32 %v11594, 7
    %v11596 = vsub.s32 %v5691, %v11595
    %v11597 = vrot.slane %v9677, %v11596
    %v11598 = vsel %vm5696, %v11597, %v11593
    %v11599 = vlaneseq
    %v11600 = vshrl.u32 %v11599, 7
    %v11601 = vsub.s32 %v5698, %v11600
    %v11602 = vrot.slane %v9678, %v11601
    %v11603 = vsel %vm5703, %v11602, %v11598
    %v11604 = vlaneseq
    %v11605 = vshrl.u32 %v11604, 7
    %v11606 = vsub.s32 %v5705, %v11605
    %v11607 = vrot.slane %v9679, %v11606
    %v11608 = vsel %vm5710, %v11607, %v11603
    %v11609 = vlaneseq
    %v11610 = vshrl.u32 %v11609, 7
    %v11611 = vsub.s32 %v5712, %v11610
    %v11612 = vrot.slane %v9680, %v11611
    %v11613 = vsel %vm5717, %v11612, %v11608
    %v11614 = vlaneseq
    %v11615 = vshrl.u32 %v11614, 7
    %v11616 = vsub.s32 %v5719, %v11615
    %v11617 = vrot.slane %v9681, %v11616
    %v11618 = vsel %vm5724, %v11617, %v11613
    %v11619 = vlaneseq
    %v11620 = vshrl.u32 %v11619, 7
    %v11621 = vsub.s32 %v5726, %v11620
    %v11622 = vrot.slane %v9682, %v11621
    %v11623 = vsel %vm5731, %v11622, %v11618
    %v11624 = vlaneseq
    %v11625 = vshrl.u32 %v11624, 7
    %v11626 = vsub.s32 %v5733, %v11625
    %v11627 = vrot.slane %v9683, %v11626
    %v11628 = vsel %vm5738, %v11627, %v11623
    %v11629 = vlaneseq
    %v11630 = vshrl.u32 %v11629, 7
    %v11631 = vsub.s32 %v5740, %v11630
    %v11632 = vrot.slane %v9684, %v11631
    %v11633 = vsel %vm5745, %v11632, %v11628
    %v11634 = vlaneseq
    %v11635 = vshrl.u32 %v11634, 7
    %v11636 = vsub.s32 %v5747, %v11635
    %v11637 = vrot.slane %v9685, %v11636
    %v11638 = vsel %vm5752, %v11637, %v11633
    %v11639 = vlaneseq
    %v11640 = vshrl.u32 %v11639, 7
    %v11641 = vsub.s32 %v5754, %v11640
    %v11642 = vrot.slane %v9686, %v11641
    %v11643 = vsel %vm5759, %v11642, %v11638
    %v11644 = vlaneseq
    %v11645 = vshrl.u32 %v11644, 7
    %v11646 = vsub.s32 %v5761, %v11645
    %v11647 = vrot.slane %v9687, %v11646
    %v11648 = vsel %vm5766, %v11647, %v11643
    %v11649 = vlaneseq
    %v11650 = vshrl.u32 %v11649, 7
    %v11651 = vsub.s32 %v5658, %v11650
    %v11652 = vrot.slane %v9688, %v11651
    %v11653 = vlaneseq
    %v11654 = vshrl.u32 %v11653, 7
    %v11655 = vsub.s32 %v5663, %v11654
    %v11656 = vrot.slane %v9689, %v11655
    %v11657 = vsel %vm5668, %v11656, %v11652
    %v11658 = vlaneseq
    %v11659 = vshrl.u32 %v11658, 7
    %v11660 = vsub.s32 %v5670, %v11659
    %v11661 = vrot.slane %v9690, %v11660
    %v11662 = vsel %vm5675, %v11661, %v11657
    %v11663 = vlaneseq
    %v11664 = vshrl.u32 %v11663, 7
    %v11665 = vsub.s32 %v5677, %v11664
    %v11666 = vrot.slane %v9691, %v11665
    %v11667 = vsel %vm5682, %v11666, %v11662
    %v11668 = vlaneseq
    %v11669 = vshrl.u32 %v11668, 7
    %v11670 = vsub.s32 %v5684, %v11669
    %v11671 = vrot.slane %v9692, %v11670
    %v11672 = vsel %vm5689, %v11671, %v11667
    %v11673 = vlaneseq
    %v11674 = vshrl.u32 %v11673, 7
    %v11675 = vsub.s32 %v5691, %v11674
    %v11676 = vrot.slane %v9693, %v11675
    %v11677 = vsel %vm5696, %v11676, %v11672
    %v11678 = vlaneseq
    %v11679 = vshrl.u32 %v11678, 7
    %v11680 = vsub.s32 %v5698, %v11679
    %v11681 = vrot.slane %v9694, %v11680
    %v11682 = vsel %vm5703, %v11681, %v11677
    %v11683 = vlaneseq
    %v11684 = vshrl.u32 %v11683, 7
    %v11685 = vsub.s32 %v5705, %v11684
    %v11686 = vrot.slane %v9695, %v11685
    %v11687 = vsel %vm5710, %v11686, %v11682
    %v11688 = vlaneseq
    %v11689 = vshrl.u32 %v11688, 7
    %v11690 = vsub.s32 %v5712, %v11689
    %v11691 = vrot.slane %v9696, %v11690
    %v11692 = vsel %vm5717, %v11691, %v11687
    %v11693 = vlaneseq
    %v11694 = vshrl.u32 %v11693, 7
    %v11695 = vsub.s32 %v5719, %v11694
    %v11696 = vrot.slane %v9697, %v11695
    %v11697 = vsel %vm5724, %v11696, %v11692
    %v11698 = vlaneseq
    %v11699 = vshrl.u32 %v11698, 7
    %v11700 = vsub.s32 %v5726, %v11699
    %v11701 = vrot.slane %v9698, %v11700
    %v11702 = vsel %vm5731, %v11701, %v11697
    %v11703 = vlaneseq
    %v11704 = vshrl.u32 %v11703, 7
    %v11705 = vsub.s32 %v5733, %v11704
    %v11706 = vrot.slane %v9699, %v11705
    %v11707 = vsel %vm5738, %v11706, %v11702
    %v11708 = vlaneseq
    %v11709 = vshrl.u32 %v11708, 7
    %v11710 = vsub.s32 %v5740, %v11709
    %v11711 = vrot.slane %v9700, %v11710
    %v11712 = vsel %vm5745, %v11711, %v11707
    %v11713 = vlaneseq
    %v11714 = vshrl.u32 %v11713, 7
    %v11715 = vsub.s32 %v5747, %v11714
    %v11716 = vrot.slane %v9701, %v11715
    %v11717 = vsel %vm5752, %v11716, %v11712
    %v11718 = vlaneseq
    %v11719 = vshrl.u32 %v11718, 7
    %v11720 = vsub.s32 %v5754, %v11719
    %v11721 = vrot.slane %v9702, %v11720
    %v11722 = vsel %vm5759, %v11721, %v11717
    %v11723 = vlaneseq
    %v11724 = vshrl.u32 %v11723, 7
    %v11725 = vsub.s32 %v5761, %v11724
    %v11726 = vrot.slane %v9703, %v11725
    %v11727 = vsel %vm5766, %v11726, %v11722
    %v11728 = vlaneseq
    %v11729 = vshrl.u32 %v11728, 7
    %v11730 = vsub.s32 %v5658, %v11729
    %v11731 = vrot.slane %v9704, %v11730
    %v11732 = vlaneseq
    %v11733 = vshrl.u32 %v11732, 7
    %v11734 = vsub.s32 %v5663, %v11733
    %v11735 = vrot.slane %v9705, %v11734
    %v11736 = vsel %vm5668, %v11735, %v11731
    %v11737 = vlaneseq
    %v11738 = vshrl.u32 %v11737, 7
    %v11739 = vsub.s32 %v5670, %v11738
    %v11740 = vrot.slane %v9706, %v11739
    %v11741 = vsel %vm5675, %v11740, %v11736
    %v11742 = vlaneseq
    %v11743 = vshrl.u32 %v11742, 7
    %v11744 = vsub.s32 %v5677, %v11743
    %v11745 = vrot.slane %v9707, %v11744
    %v11746 = vsel %vm5682, %v11745, %v11741
    %v11747 = vlaneseq
    %v11748 = vshrl.u32 %v11747, 7
    %v11749 = vsub.s32 %v5684, %v11748
    %v11750 = vrot.slane %v9708, %v11749
    %v11751 = vsel %vm5689, %v11750, %v11746
    %v11752 = vlaneseq
    %v11753 = vshrl.u32 %v11752, 7
    %v11754 = vsub.s32 %v5691, %v11753
    %v11755 = vrot.slane %v9709, %v11754
    %v11756 = vsel %vm5696, %v11755, %v11751
    %v11757 = vlaneseq
    %v11758 = vshrl.u32 %v11757, 7
    %v11759 = vsub.s32 %v5698, %v11758
    %v11760 = vrot.slane %v9710, %v11759
    %v11761 = vsel %vm5703, %v11760, %v11756
    %v11762 = vlaneseq
    %v11763 = vshrl.u32 %v11762, 7
    %v11764 = vsub.s32 %v5705, %v11763
    %v11765 = vrot.slane %v9711, %v11764
    %v11766 = vsel %vm5710, %v11765, %v11761
    %v11767 = vlaneseq
    %v11768 = vshrl.u32 %v11767, 7
    %v11769 = vsub.s32 %v5712, %v11768
    %v11770 = vrot.slane %v9712, %v11769
    %v11771 = vsel %vm5717, %v11770, %v11766
    %v11772 = vlaneseq
    %v11773 = vshrl.u32 %v11772, 7
    %v11774 = vsub.s32 %v5719, %v11773
    %v11775 = vrot.slane %v9713, %v11774
    %v11776 = vsel %vm5724, %v11775, %v11771
    %v11777 = vlaneseq
    %v11778 = vshrl.u32 %v11777, 7
    %v11779 = vsub.s32 %v5726, %v11778
    %v11780 = vrot.slane %v9714, %v11779
    %v11781 = vsel %vm5731, %v11780, %v11776
    %v11782 = vlaneseq
    %v11783 = vshrl.u32 %v11782, 7
    %v11784 = vsub.s32 %v5733, %v11783
    %v11785 = vrot.slane %v9715, %v11784
    %v11786 = vsel %vm5738, %v11785, %v11781
    %v11787 = vlaneseq
    %v11788 = vshrl.u32 %v11787, 7
    %v11789 = vsub.s32 %v5740, %v11788
    %v11790 = vrot.slane %v9716, %v11789
    %v11791 = vsel %vm5745, %v11790, %v11786
    %v11792 = vlaneseq
    %v11793 = vshrl.u32 %v11792, 7
    %v11794 = vsub.s32 %v5747, %v11793
    %v11795 = vrot.slane %v9717, %v11794
    %v11796 = vsel %vm5752, %v11795, %v11791
    %v11797 = vlaneseq
    %v11798 = vshrl.u32 %v11797, 7
    %v11799 = vsub.s32 %v5754, %v11798
    %v11800 = vrot.slane %v9718, %v11799
    %v11801 = vsel %vm5759, %v11800, %v11796
    %v11802 = vlaneseq
    %v11803 = vshrl.u32 %v11802, 7
    %v11804 = vsub.s32 %v5761, %v11803
    %v11805 = vrot.slane %v9719, %v11804
    %v11806 = vsel %vm5766, %v11805, %v11801
    %v11807 = vlaneseq
    %v11808 = vshrl.u32 %v11807, 7
    %v11809 = vsub.s32 %v5658, %v11808
    %v11810 = vrot.slane %v9720, %v11809
    %v11811 = vlaneseq
    %v11812 = vshrl.u32 %v11811, 7
    %v11813 = vsub.s32 %v5663, %v11812
    %v11814 = vrot.slane %v9721, %v11813
    %v11815 = vsel %vm5668, %v11814, %v11810
    %v11816 = vlaneseq
    %v11817 = vshrl.u32 %v11816, 7
    %v11818 = vsub.s32 %v5670, %v11817
    %v11819 = vrot.slane %v9722, %v11818
    %v11820 = vsel %vm5675, %v11819, %v11815
    %v11821 = vlaneseq
    %v11822 = vshrl.u32 %v11821, 7
    %v11823 = vsub.s32 %v5677, %v11822
    %v11824 = vrot.slane %v9723, %v11823
    %v11825 = vsel %vm5682, %v11824, %v11820
    %v11826 = vlaneseq
    %v11827 = vshrl.u32 %v11826, 7
    %v11828 = vsub.s32 %v5684, %v11827
    %v11829 = vrot.slane %v9724, %v11828
    %v11830 = vsel %vm5689, %v11829, %v11825
    %v11831 = vlaneseq
    %v11832 = vshrl.u32 %v11831, 7
    %v11833 = vsub.s32 %v5691, %v11832
    %v11834 = vrot.slane %v9725, %v11833
    %v11835 = vsel %vm5696, %v11834, %v11830
    %v11836 = vlaneseq
    %v11837 = vshrl.u32 %v11836, 7
    %v11838 = vsub.s32 %v5698, %v11837
    %v11839 = vrot.slane %v9726, %v11838
    %v11840 = vsel %vm5703, %v11839, %v11835
    %v11841 = vlaneseq
    %v11842 = vshrl.u32 %v11841, 7
    %v11843 = vsub.s32 %v5705, %v11842
    %v11844 = vrot.slane %v9727, %v11843
    %v11845 = vsel %vm5710, %v11844, %v11840
    %v11846 = vlaneseq
    %v11847 = vshrl.u32 %v11846, 7
    %v11848 = vsub.s32 %v5712, %v11847
    %v11849 = vrot.slane %v9728, %v11848
    %v11850 = vsel %vm5717, %v11849, %v11845
    %v11851 = vlaneseq
    %v11852 = vshrl.u32 %v11851, 7
    %v11853 = vsub.s32 %v5719, %v11852
    %v11854 = vrot.slane %v9729, %v11853
    %v11855 = vsel %vm5724, %v11854, %v11850
    %v11856 = vlaneseq
    %v11857 = vshrl.u32 %v11856, 7
    %v11858 = vsub.s32 %v5726, %v11857
    %v11859 = vrot.slane %v9730, %v11858
    %v11860 = vsel %vm5731, %v11859, %v11855
    %v11861 = vlaneseq
    %v11862 = vshrl.u32 %v11861, 7
    %v11863 = vsub.s32 %v5733, %v11862
    %v11864 = vrot.slane %v9731, %v11863
    %v11865 = vsel %vm5738, %v11864, %v11860
    %v11866 = vlaneseq
    %v11867 = vshrl.u32 %v11866, 7
    %v11868 = vsub.s32 %v5740, %v11867
    %v11869 = vrot.slane %v9732, %v11868
    %v11870 = vsel %vm5745, %v11869, %v11865
    %v11871 = vlaneseq
    %v11872 = vshrl.u32 %v11871, 7
    %v11873 = vsub.s32 %v5747, %v11872
    %v11874 = vrot.slane %v9733, %v11873
    %v11875 = vsel %vm5752, %v11874, %v11870
    %v11876 = vlaneseq
    %v11877 = vshrl.u32 %v11876, 7
    %v11878 = vsub.s32 %v5754, %v11877
    %v11879 = vrot.slane %v9734, %v11878
    %v11880 = vsel %vm5759, %v11879, %v11875
    %v11881 = vlaneseq
    %v11882 = vshrl.u32 %v11881, 7
    %v11883 = vsub.s32 %v5761, %v11882
    %v11884 = vrot.slane %v9735, %v11883
    %v11885 = vsel %vm5766, %v11884, %v11880
    %v11886 = vlaneseq
    %v11887 = vshrl.u32 %v11886, 7
    %v11888 = vsub.s32 %v5658, %v11887
    %v11889 = vrot.slane %v9736, %v11888
    %v11890 = vlaneseq
    %v11891 = vshrl.u32 %v11890, 7
    %v11892 = vsub.s32 %v5663, %v11891
    %v11893 = vrot.slane %v9737, %v11892
    %v11894 = vsel %vm5668, %v11893, %v11889
    %v11895 = vlaneseq
    %v11896 = vshrl.u32 %v11895, 7
    %v11897 = vsub.s32 %v5670, %v11896
    %v11898 = vrot.slane %v9738, %v11897
    %v11899 = vsel %vm5675, %v11898, %v11894
    %v11900 = vlaneseq
    %v11901 = vshrl.u32 %v11900, 7
    %v11902 = vsub.s32 %v5677, %v11901
    %v11903 = vrot.slane %v9739, %v11902
    %v11904 = vsel %vm5682, %v11903, %v11899
    %v11905 = vlaneseq
    %v11906 = vshrl.u32 %v11905, 7
    %v11907 = vsub.s32 %v5684, %v11906
    %v11908 = vrot.slane %v9740, %v11907
    %v11909 = vsel %vm5689, %v11908, %v11904
    %v11910 = vlaneseq
    %v11911 = vshrl.u32 %v11910, 7
    %v11912 = vsub.s32 %v5691, %v11911
    %v11913 = vrot.slane %v9741, %v11912
    %v11914 = vsel %vm5696, %v11913, %v11909
    %v11915 = vlaneseq
    %v11916 = vshrl.u32 %v11915, 7
    %v11917 = vsub.s32 %v5698, %v11916
    %v11918 = vrot.slane %v9742, %v11917
    %v11919 = vsel %vm5703, %v11918, %v11914
    %v11920 = vlaneseq
    %v11921 = vshrl.u32 %v11920, 7
    %v11922 = vsub.s32 %v5705, %v11921
    %v11923 = vrot.slane %v9743, %v11922
    %v11924 = vsel %vm5710, %v11923, %v11919
    %v11925 = vlaneseq
    %v11926 = vshrl.u32 %v11925, 7
    %v11927 = vsub.s32 %v5712, %v11926
    %v11928 = vrot.slane %v9744, %v11927
    %v11929 = vsel %vm5717, %v11928, %v11924
    %v11930 = vlaneseq
    %v11931 = vshrl.u32 %v11930, 7
    %v11932 = vsub.s32 %v5719, %v11931
    %v11933 = vrot.slane %v9745, %v11932
    %v11934 = vsel %vm5724, %v11933, %v11929
    %v11935 = vlaneseq
    %v11936 = vshrl.u32 %v11935, 7
    %v11937 = vsub.s32 %v5726, %v11936
    %v11938 = vrot.slane %v9746, %v11937
    %v11939 = vsel %vm5731, %v11938, %v11934
    %v11940 = vlaneseq
    %v11941 = vshrl.u32 %v11940, 7
    %v11942 = vsub.s32 %v5733, %v11941
    %v11943 = vrot.slane %v9747, %v11942
    %v11944 = vsel %vm5738, %v11943, %v11939
    %v11945 = vlaneseq
    %v11946 = vshrl.u32 %v11945, 7
    %v11947 = vsub.s32 %v5740, %v11946
    %v11948 = vrot.slane %v9748, %v11947
    %v11949 = vsel %vm5745, %v11948, %v11944
    %v11950 = vlaneseq
    %v11951 = vshrl.u32 %v11950, 7
    %v11952 = vsub.s32 %v5747, %v11951
    %v11953 = vrot.slane %v9749, %v11952
    %v11954 = vsel %vm5752, %v11953, %v11949
    %v11955 = vlaneseq
    %v11956 = vshrl.u32 %v11955, 7
    %v11957 = vsub.s32 %v5754, %v11956
    %v11958 = vrot.slane %v9750, %v11957
    %v11959 = vsel %vm5759, %v11958, %v11954
    %v11960 = vlaneseq
    %v11961 = vshrl.u32 %v11960, 7
    %v11962 = vsub.s32 %v5761, %v11961
    %v11963 = vrot.slane %v9751, %v11962
    %v11964 = vsel %vm5766, %v11963, %v11959
    %v11965 = vlaneseq
    %v11966 = vshrl.u32 %v11965, 7
    %v11967 = vsub.s32 %v5658, %v11966
    %v11968 = vrot.slane %v9752, %v11967
    %v11969 = vlaneseq
    %v11970 = vshrl.u32 %v11969, 7
    %v11971 = vsub.s32 %v5663, %v11970
    %v11972 = vrot.slane %v9753, %v11971
    %v11973 = vsel %vm5668, %v11972, %v11968
    %v11974 = vlaneseq
    %v11975 = vshrl.u32 %v11974, 7
    %v11976 = vsub.s32 %v5670, %v11975
    %v11977 = vrot.slane %v9754, %v11976
    %v11978 = vsel %vm5675, %v11977, %v11973
    %v11979 = vlaneseq
    %v11980 = vshrl.u32 %v11979, 7
    %v11981 = vsub.s32 %v5677, %v11980
    %v11982 = vrot.slane %v9755, %v11981
    %v11983 = vsel %vm5682, %v11982, %v11978
    %v11984 = vlaneseq
    %v11985 = vshrl.u32 %v11984, 7
    %v11986 = vsub.s32 %v5684, %v11985
    %v11987 = vrot.slane %v9756, %v11986
    %v11988 = vsel %vm5689, %v11987, %v11983
    %v11989 = vlaneseq
    %v11990 = vshrl.u32 %v11989, 7
    %v11991 = vsub.s32 %v5691, %v11990
    %v11992 = vrot.slane %v9757, %v11991
    %v11993 = vsel %vm5696, %v11992, %v11988
    %v11994 = vlaneseq
    %v11995 = vshrl.u32 %v11994, 7
    %v11996 = vsub.s32 %v5698, %v11995
    %v11997 = vrot.slane %v9758, %v11996
    %v11998 = vsel %vm5703, %v11997, %v11993
    %v11999 = vlaneseq
    %v12000 = vshrl.u32 %v11999, 7
    %v12001 = vsub.s32 %v5705, %v12000
    %v12002 = vrot.slane %v9759, %v12001
    %v12003 = vsel %vm5710, %v12002, %v11998
    %v12004 = vlaneseq
    %v12005 = vshrl.u32 %v12004, 7
    %v12006 = vsub.s32 %v5712, %v12005
    %v12007 = vrot.slane %v9760, %v12006
    %v12008 = vsel %vm5717, %v12007, %v12003
    %v12009 = vlaneseq
    %v12010 = vshrl.u32 %v12009, 7
    %v12011 = vsub.s32 %v5719, %v12010
    %v12012 = vrot.slane %v9761, %v12011
    %v12013 = vsel %vm5724, %v12012, %v12008
    %v12014 = vlaneseq
    %v12015 = vshrl.u32 %v12014, 7
    %v12016 = vsub.s32 %v5726, %v12015
    %v12017 = vrot.slane %v9762, %v12016
    %v12018 = vsel %vm5731, %v12017, %v12013
    %v12019 = vlaneseq
    %v12020 = vshrl.u32 %v12019, 7
    %v12021 = vsub.s32 %v5733, %v12020
    %v12022 = vrot.slane %v9763, %v12021
    %v12023 = vsel %vm5738, %v12022, %v12018
    %v12024 = vlaneseq
    %v12025 = vshrl.u32 %v12024, 7
    %v12026 = vsub.s32 %v5740, %v12025
    %v12027 = vrot.slane %v9764, %v12026
    %v12028 = vsel %vm5745, %v12027, %v12023
    %v12029 = vlaneseq
    %v12030 = vshrl.u32 %v12029, 7
    %v12031 = vsub.s32 %v5747, %v12030
    %v12032 = vrot.slane %v9765, %v12031
    %v12033 = vsel %vm5752, %v12032, %v12028
    %v12034 = vlaneseq
    %v12035 = vshrl.u32 %v12034, 7
    %v12036 = vsub.s32 %v5754, %v12035
    %v12037 = vrot.slane %v9766, %v12036
    %v12038 = vsel %vm5759, %v12037, %v12033
    %v12039 = vlaneseq
    %v12040 = vshrl.u32 %v12039, 7
    %v12041 = vsub.s32 %v5761, %v12040
    %v12042 = vrot.slane %v9767, %v12041
    %v12043 = vsel %vm5766, %v12042, %v12038
    %v12044 = vlaneseq
    %v12045 = vshrl.u32 %v12044, 7
    %v12046 = vsub.s32 %v5658, %v12045
    %v12047 = vrot.slane %v9768, %v12046
    %v12048 = vlaneseq
    %v12049 = vshrl.u32 %v12048, 7
    %v12050 = vsub.s32 %v5663, %v12049
    %v12051 = vrot.slane %v9769, %v12050
    %v12052 = vsel %vm5668, %v12051, %v12047
    %v12053 = vlaneseq
    %v12054 = vshrl.u32 %v12053, 7
    %v12055 = vsub.s32 %v5670, %v12054
    %v12056 = vrot.slane %v9770, %v12055
    %v12057 = vsel %vm5675, %v12056, %v12052
    %v12058 = vlaneseq
    %v12059 = vshrl.u32 %v12058, 7
    %v12060 = vsub.s32 %v5677, %v12059
    %v12061 = vrot.slane %v9771, %v12060
    %v12062 = vsel %vm5682, %v12061, %v12057
    %v12063 = vlaneseq
    %v12064 = vshrl.u32 %v12063, 7
    %v12065 = vsub.s32 %v5684, %v12064
    %v12066 = vrot.slane %v9772, %v12065
    %v12067 = vsel %vm5689, %v12066, %v12062
    %v12068 = vlaneseq
    %v12069 = vshrl.u32 %v12068, 7
    %v12070 = vsub.s32 %v5691, %v12069
    %v12071 = vrot.slane %v9773, %v12070
    %v12072 = vsel %vm5696, %v12071, %v12067
    %v12073 = vlaneseq
    %v12074 = vshrl.u32 %v12073, 7
    %v12075 = vsub.s32 %v5698, %v12074
    %v12076 = vrot.slane %v9774, %v12075
    %v12077 = vsel %vm5703, %v12076, %v12072
    %v12078 = vlaneseq
    %v12079 = vshrl.u32 %v12078, 7
    %v12080 = vsub.s32 %v5705, %v12079
    %v12081 = vrot.slane %v9775, %v12080
    %v12082 = vsel %vm5710, %v12081, %v12077
    %v12083 = vlaneseq
    %v12084 = vshrl.u32 %v12083, 7
    %v12085 = vsub.s32 %v5712, %v12084
    %v12086 = vrot.slane %v9776, %v12085
    %v12087 = vsel %vm5717, %v12086, %v12082
    %v12088 = vlaneseq
    %v12089 = vshrl.u32 %v12088, 7
    %v12090 = vsub.s32 %v5719, %v12089
    %v12091 = vrot.slane %v9777, %v12090
    %v12092 = vsel %vm5724, %v12091, %v12087
    %v12093 = vlaneseq
    %v12094 = vshrl.u32 %v12093, 7
    %v12095 = vsub.s32 %v5726, %v12094
    %v12096 = vrot.slane %v9778, %v12095
    %v12097 = vsel %vm5731, %v12096, %v12092
    %v12098 = vlaneseq
    %v12099 = vshrl.u32 %v12098, 7
    %v12100 = vsub.s32 %v5733, %v12099
    %v12101 = vrot.slane %v9779, %v12100
    %v12102 = vsel %vm5738, %v12101, %v12097
    %v12103 = vlaneseq
    %v12104 = vshrl.u32 %v12103, 7
    %v12105 = vsub.s32 %v5740, %v12104
    %v12106 = vrot.slane %v9780, %v12105
    %v12107 = vsel %vm5745, %v12106, %v12102
    %v12108 = vlaneseq
    %v12109 = vshrl.u32 %v12108, 7
    %v12110 = vsub.s32 %v5747, %v12109
    %v12111 = vrot.slane %v9781, %v12110
    %v12112 = vsel %vm5752, %v12111, %v12107
    %v12113 = vlaneseq
    %v12114 = vshrl.u32 %v12113, 7
    %v12115 = vsub.s32 %v5754, %v12114
    %v12116 = vrot.slane %v9782, %v12115
    %v12117 = vsel %vm5759, %v12116, %v12112
    %v12118 = vlaneseq
    %v12119 = vshrl.u32 %v12118, 7
    %v12120 = vsub.s32 %v5761, %v12119
    %v12121 = vrot.slane %v9783, %v12120
    %v12122 = vsel %vm5766, %v12121, %v12117
    %v12123 = vlaneseq
    %v12124 = vshrl.u32 %v12123, 7
    %v12125 = vsub.s32 %v5658, %v12124
    %v12126 = vrot.slane %v9784, %v12125
    %v12127 = vlaneseq
    %v12128 = vshrl.u32 %v12127, 7
    %v12129 = vsub.s32 %v5663, %v12128
    %v12130 = vrot.slane %v9785, %v12129
    %v12131 = vsel %vm5668, %v12130, %v12126
    %v12132 = vlaneseq
    %v12133 = vshrl.u32 %v12132, 7
    %v12134 = vsub.s32 %v5670, %v12133
    %v12135 = vrot.slane %v9786, %v12134
    %v12136 = vsel %vm5675, %v12135, %v12131
    %v12137 = vlaneseq
    %v12138 = vshrl.u32 %v12137, 7
    %v12139 = vsub.s32 %v5677, %v12138
    %v12140 = vrot.slane %v9787, %v12139
    %v12141 = vsel %vm5682, %v12140, %v12136
    %v12142 = vlaneseq
    %v12143 = vshrl.u32 %v12142, 7
    %v12144 = vsub.s32 %v5684, %v12143
    %v12145 = vrot.slane %v9788, %v12144
    %v12146 = vsel %vm5689, %v12145, %v12141
    %v12147 = vlaneseq
    %v12148 = vshrl.u32 %v12147, 7
    %v12149 = vsub.s32 %v5691, %v12148
    %v12150 = vrot.slane %v9789, %v12149
    %v12151 = vsel %vm5696, %v12150, %v12146
    %v12152 = vlaneseq
    %v12153 = vshrl.u32 %v12152, 7
    %v12154 = vsub.s32 %v5698, %v12153
    %v12155 = vrot.slane %v9790, %v12154
    %v12156 = vsel %vm5703, %v12155, %v12151
    %v12157 = vlaneseq
    %v12158 = vshrl.u32 %v12157, 7
    %v12159 = vsub.s32 %v5705, %v12158
    %v12160 = vrot.slane %v9791, %v12159
    %v12161 = vsel %vm5710, %v12160, %v12156
    %v12162 = vlaneseq
    %v12163 = vshrl.u32 %v12162, 7
    %v12164 = vsub.s32 %v5712, %v12163
    %v12165 = vrot.slane %v9792, %v12164
    %v12166 = vsel %vm5717, %v12165, %v12161
    %v12167 = vlaneseq
    %v12168 = vshrl.u32 %v12167, 7
    %v12169 = vsub.s32 %v5719, %v12168
    %v12170 = vrot.slane %v9793, %v12169
    %v12171 = vsel %vm5724, %v12170, %v12166
    %v12172 = vlaneseq
    %v12173 = vshrl.u32 %v12172, 7
    %v12174 = vsub.s32 %v5726, %v12173
    %v12175 = vrot.slane %v9794, %v12174
    %v12176 = vsel %vm5731, %v12175, %v12171
    %v12177 = vlaneseq
    %v12178 = vshrl.u32 %v12177, 7
    %v12179 = vsub.s32 %v5733, %v12178
    %v12180 = vrot.slane %v9795, %v12179
    %v12181 = vsel %vm5738, %v12180, %v12176
    %v12182 = vlaneseq
    %v12183 = vshrl.u32 %v12182, 7
    %v12184 = vsub.s32 %v5740, %v12183
    %v12185 = vrot.slane %v9796, %v12184
    %v12186 = vsel %vm5745, %v12185, %v12181
    %v12187 = vlaneseq
    %v12188 = vshrl.u32 %v12187, 7
    %v12189 = vsub.s32 %v5747, %v12188
    %v12190 = vrot.slane %v9797, %v12189
    %v12191 = vsel %vm5752, %v12190, %v12186
    %v12192 = vlaneseq
    %v12193 = vshrl.u32 %v12192, 7
    %v12194 = vsub.s32 %v5754, %v12193
    %v12195 = vrot.slane %v9798, %v12194
    %v12196 = vsel %vm5759, %v12195, %v12191
    %v12197 = vlaneseq
    %v12198 = vshrl.u32 %v12197, 7
    %v12199 = vsub.s32 %v5761, %v12198
    %v12200 = vrot.slane %v9799, %v12199
    %v12201 = vsel %vm5766, %v12200, %v12196
    %v12202 = vlaneseq
    %v12203 = vshrl.u32 %v12202, 7
    %v12204 = vsub.s32 %v5658, %v12203
    %v12205 = vrot.slane %v9800, %v12204
    %v12206 = vlaneseq
    %v12207 = vshrl.u32 %v12206, 7
    %v12208 = vsub.s32 %v5663, %v12207
    %v12209 = vrot.slane %v9801, %v12208
    %v12210 = vsel %vm5668, %v12209, %v12205
    %v12211 = vlaneseq
    %v12212 = vshrl.u32 %v12211, 7
    %v12213 = vsub.s32 %v5670, %v12212
    %v12214 = vrot.slane %v9802, %v12213
    %v12215 = vsel %vm5675, %v12214, %v12210
    %v12216 = vlaneseq
    %v12217 = vshrl.u32 %v12216, 7
    %v12218 = vsub.s32 %v5677, %v12217
    %v12219 = vrot.slane %v9803, %v12218
    %v12220 = vsel %vm5682, %v12219, %v12215
    %v12221 = vlaneseq
    %v12222 = vshrl.u32 %v12221, 7
    %v12223 = vsub.s32 %v5684, %v12222
    %v12224 = vrot.slane %v9804, %v12223
    %v12225 = vsel %vm5689, %v12224, %v12220
    %v12226 = vlaneseq
    %v12227 = vshrl.u32 %v12226, 7
    %v12228 = vsub.s32 %v5691, %v12227
    %v12229 = vrot.slane %v9805, %v12228
    %v12230 = vsel %vm5696, %v12229, %v12225
    %v12231 = vlaneseq
    %v12232 = vshrl.u32 %v12231, 7
    %v12233 = vsub.s32 %v5698, %v12232
    %v12234 = vrot.slane %v9806, %v12233
    %v12235 = vsel %vm5703, %v12234, %v12230
    %v12236 = vlaneseq
    %v12237 = vshrl.u32 %v12236, 7
    %v12238 = vsub.s32 %v5705, %v12237
    %v12239 = vrot.slane %v9807, %v12238
    %v12240 = vsel %vm5710, %v12239, %v12235
    %v12241 = vlaneseq
    %v12242 = vshrl.u32 %v12241, 7
    %v12243 = vsub.s32 %v5712, %v12242
    %v12244 = vrot.slane %v9808, %v12243
    %v12245 = vsel %vm5717, %v12244, %v12240
    %v12246 = vlaneseq
    %v12247 = vshrl.u32 %v12246, 7
    %v12248 = vsub.s32 %v5719, %v12247
    %v12249 = vrot.slane %v9809, %v12248
    %v12250 = vsel %vm5724, %v12249, %v12245
    %v12251 = vlaneseq
    %v12252 = vshrl.u32 %v12251, 7
    %v12253 = vsub.s32 %v5726, %v12252
    %v12254 = vrot.slane %v9810, %v12253
    %v12255 = vsel %vm5731, %v12254, %v12250
    %v12256 = vlaneseq
    %v12257 = vshrl.u32 %v12256, 7
    %v12258 = vsub.s32 %v5733, %v12257
    %v12259 = vrot.slane %v9811, %v12258
    %v12260 = vsel %vm5738, %v12259, %v12255
    %v12261 = vlaneseq
    %v12262 = vshrl.u32 %v12261, 7
    %v12263 = vsub.s32 %v5740, %v12262
    %v12264 = vrot.slane %v9812, %v12263
    %v12265 = vsel %vm5745, %v12264, %v12260
    %v12266 = vlaneseq
    %v12267 = vshrl.u32 %v12266, 7
    %v12268 = vsub.s32 %v5747, %v12267
    %v12269 = vrot.slane %v9813, %v12268
    %v12270 = vsel %vm5752, %v12269, %v12265
    %v12271 = vlaneseq
    %v12272 = vshrl.u32 %v12271, 7
    %v12273 = vsub.s32 %v5754, %v12272
    %v12274 = vrot.slane %v9814, %v12273
    %v12275 = vsel %vm5759, %v12274, %v12270
    %v12276 = vlaneseq
    %v12277 = vshrl.u32 %v12276, 7
    %v12278 = vsub.s32 %v5761, %v12277
    %v12279 = vrot.slane %v9815, %v12278
    %v12280 = vsel %vm5766, %v12279, %v12275
    %v12281 = vlaneseq
    %v12282 = vshrl.u32 %v12281, 7
    %v12283 = vsub.s32 %v5658, %v12282
    %v12284 = vrot.slane %v9816, %v12283
    %v12285 = vlaneseq
    %v12286 = vshrl.u32 %v12285, 7
    %v12287 = vsub.s32 %v5663, %v12286
    %v12288 = vrot.slane %v9817, %v12287
    %v12289 = vsel %vm5668, %v12288, %v12284
    %v12290 = vlaneseq
    %v12291 = vshrl.u32 %v12290, 7
    %v12292 = vsub.s32 %v5670, %v12291
    %v12293 = vrot.slane %v9818, %v12292
    %v12294 = vsel %vm5675, %v12293, %v12289
    %v12295 = vlaneseq
    %v12296 = vshrl.u32 %v12295, 7
    %v12297 = vsub.s32 %v5677, %v12296
    %v12298 = vrot.slane %v9819, %v12297
    %v12299 = vsel %vm5682, %v12298, %v12294
    %v12300 = vlaneseq
    %v12301 = vshrl.u32 %v12300, 7
    %v12302 = vsub.s32 %v5684, %v12301
    %v12303 = vrot.slane %v9820, %v12302
    %v12304 = vsel %vm5689, %v12303, %v12299
    %v12305 = vlaneseq
    %v12306 = vshrl.u32 %v12305, 7
    %v12307 = vsub.s32 %v5691, %v12306
    %v12308 = vrot.slane %v9821, %v12307
    %v12309 = vsel %vm5696, %v12308, %v12304
    %v12310 = vlaneseq
    %v12311 = vshrl.u32 %v12310, 7
    %v12312 = vsub.s32 %v5698, %v12311
    %v12313 = vrot.slane %v9822, %v12312
    %v12314 = vsel %vm5703, %v12313, %v12309
    %v12315 = vlaneseq
    %v12316 = vshrl.u32 %v12315, 7
    %v12317 = vsub.s32 %v5705, %v12316
    %v12318 = vrot.slane %v9823, %v12317
    %v12319 = vsel %vm5710, %v12318, %v12314
    %v12320 = vlaneseq
    %v12321 = vshrl.u32 %v12320, 7
    %v12322 = vsub.s32 %v5712, %v12321
    %v12323 = vrot.slane %v9824, %v12322
    %v12324 = vsel %vm5717, %v12323, %v12319
    %v12325 = vlaneseq
    %v12326 = vshrl.u32 %v12325, 7
    %v12327 = vsub.s32 %v5719, %v12326
    %v12328 = vrot.slane %v9825, %v12327
    %v12329 = vsel %vm5724, %v12328, %v12324
    %v12330 = vlaneseq
    %v12331 = vshrl.u32 %v12330, 7
    %v12332 = vsub.s32 %v5726, %v12331
    %v12333 = vrot.slane %v9826, %v12332
    %v12334 = vsel %vm5731, %v12333, %v12329
    %v12335 = vlaneseq
    %v12336 = vshrl.u32 %v12335, 7
    %v12337 = vsub.s32 %v5733, %v12336
    %v12338 = vrot.slane %v9827, %v12337
    %v12339 = vsel %vm5738, %v12338, %v12334
    %v12340 = vlaneseq
    %v12341 = vshrl.u32 %v12340, 7
    %v12342 = vsub.s32 %v5740, %v12341
    %v12343 = vrot.slane %v9828, %v12342
    %v12344 = vsel %vm5745, %v12343, %v12339
    %v12345 = vlaneseq
    %v12346 = vshrl.u32 %v12345, 7
    %v12347 = vsub.s32 %v5747, %v12346
    %v12348 = vrot.slane %v9829, %v12347
    %v12349 = vsel %vm5752, %v12348, %v12344
    %v12350 = vlaneseq
    %v12351 = vshrl.u32 %v12350, 7
    %v12352 = vsub.s32 %v5754, %v12351
    %v12353 = vrot.slane %v9830, %v12352
    %v12354 = vsel %vm5759, %v12353, %v12349
    %v12355 = vlaneseq
    %v12356 = vshrl.u32 %v12355, 7
    %v12357 = vsub.s32 %v5761, %v12356
    %v12358 = vrot.slane %v9831, %v12357
    %v12359 = vsel %vm5766, %v12358, %v12354
    %v12360 = vsel %vm8217, %v10226, %v9910
    %v12361 = vsel %vm8219, %v10542, %v12360
    %v12362 = vsel %vm8221, %v10858, %v12361
    %v12363 = vsel %vm8223, %v11174, %v12362
    %v12364 = vsel %vm8225, %v11490, %v12363
    %v12365 = vsel %vm8227, %v11806, %v12364
    %v12366 = vsel %vm8229, %v12122, %v12365
    %v12367 = vsel %vm8217, %v10305, %v9989
    %v12368 = vsel %vm8219, %v10621, %v12367
    %v12369 = vsel %vm8221, %v10937, %v12368
    %v12370 = vsel %vm8223, %v11253, %v12369
    %v12371 = vsel %vm8225, %v11569, %v12370
    %v12372 = vsel %vm8227, %v11885, %v12371
    %v12373 = vsel %vm8229, %v12201, %v12372
    %v12374 = vsel %vm8217, %v10384, %v10068
    %v12375 = vsel %vm8219, %v10700, %v12374
    %v12376 = vsel %vm8221, %v11016, %v12375
    %v12377 = vsel %vm8223, %v11332, %v12376
    %v12378 = vsel %vm8225, %v11648, %v12377
    %v12379 = vsel %vm8227, %v11964, %v12378
    %v12380 = vsel %vm8229, %v12280, %v12379
    %v12381 = vsel %vm8217, %v10463, %v10147
    %v12382 = vsel %vm8219, %v10779, %v12381
    %v12383 = vsel %vm8221, %v11095, %v12382
    %v12384 = vsel %vm8223, %v11411, %v12383
    %v12385 = vsel %vm8225, %v11727, %v12384
    %v12386 = vsel %vm8227, %v12043, %v12385
    %v12387 = vsel %vm8229, %v12359, %v12386
    %v12388 = vpack.c.b16 %v12366, %v12366
    %v12389 = vpack.c.b16 %v12373, %v12373
    %v12390 = vpack.c.b16 %v12380, %v12380
    %v12391 = vpack.c.b16 %v12387, %v12387
    %v12524 = vunpack.c.l.b16 %v4377
    %v12525 = vunpack.c.h.b16 %v4377
    %v12526 = vunpack.c.l.b16 %v4378
    %v12527 = vunpack.c.h.b16 %v4378
    %v12528 = vunpack.c.l.b16 %v4379
    %v12529 = vunpack.c.h.b16 %v4379
    %v12530 = vunpack.c.l.b16 %v4380
    %v12531 = vunpack.c.h.b16 %v4380
    %v12532 = vunpack.c.l.b16 %v4381
    %v12533 = vunpack.c.h.b16 %v4381
    %v12534 = vunpack.c.l.b16 %v4382
    %v12535 = vunpack.c.h.b16 %v4382
    %v12536 = vunpack.c.l.b16 %v4383
    %v12537 = vunpack.c.h.b16 %v4383
    %v12538 = vunpack.c.l.b16 %v4384
    %v12539 = vunpack.c.h.b16 %v4384
    %v12540 = vunpack.c.l.b16 %v4385
    %v12541 = vunpack.c.h.b16 %v4385
    %v12542 = vunpack.c.l.b16 %v4386
    %v12543 = vunpack.c.h.b16 %v4386
    %v12544 = vunpack.c.l.b16 %v4387
    %v12545 = vunpack.c.h.b16 %v4387
    %v12546 = vunpack.c.l.b16 %v4388
    %v12547 = vunpack.c.h.b16 %v4388
    %v12548 = vunpack.c.l.b16 %v4389
    %v12549 = vunpack.c.h.b16 %v4389
    %v12550 = vunpack.c.l.b16 %v4390
    %v12551 = vunpack.c.h.b16 %v4390
    %v12552 = vunpack.c.l.b16 %v4391
    %v12553 = vunpack.c.h.b16 %v4391
    %v12554 = vunpack.c.l.b16 %v4392
    %v12555 = vunpack.c.h.b16 %v4392
    %v12556 = vunpack.c.l.b16 %v4393
    %v12557 = vunpack.c.h.b16 %v4393
    %v12558 = vunpack.c.l.b16 %v4394
    %v12559 = vunpack.c.h.b16 %v4394
    %v12560 = vunpack.c.l.b16 %v4395
    %v12561 = vunpack.c.h.b16 %v4395
    %v12562 = vunpack.c.l.b16 %v4396
    %v12563 = vunpack.c.h.b16 %v4396
    %v12564 = vunpack.c.l.b16 %v4397
    %v12565 = vunpack.c.h.b16 %v4397
    %v12566 = vunpack.c.l.b16 %v4398
    %v12567 = vunpack.c.h.b16 %v4398
    %v12568 = vunpack.c.l.b16 %v4399
    %v12569 = vunpack.c.h.b16 %v4399
    %v12570 = vunpack.c.l.b16 %v4400
    %v12571 = vunpack.c.h.b16 %v4400
    %v12572 = vunpack.c.l.b16 %v4401
    %v12573 = vunpack.c.h.b16 %v4401
    %v12574 = vunpack.c.l.b16 %v4402
    %v12575 = vunpack.c.h.b16 %v4402
    %v12576 = vunpack.c.l.b16 %v4403
    %v12577 = vunpack.c.h.b16 %v4403
    %v12578 = vunpack.c.l.b16 %v4404
    %v12579 = vunpack.c.h.b16 %v4404
    %v12580 = vunpack.c.l.b16 %v4405
    %v12581 = vunpack.c.h.b16 %v4405
    %v12582 = vunpack.c.l.b16 %v4406
    %v12583 = vunpack.c.h.b16 %v4406
    %v12584 = vunpack.c.l.b16 %v4407
    %v12585 = vunpack.c.h.b16 %v4407
    %v12586 = vunpack.c.l.b16 %v4408
    %v12587 = vunpack.c.h.b16 %v4408
    %v12588 = vunpack.c.l.b16 %v4409
    %v12589 = vunpack.c.h.b16 %v4409
    %v12590 = vunpack.c.l.b16 %v4410
    %v12591 = vunpack.c.h.b16 %v4410
    %v12592 = vunpack.c.l.b16 %v4411
    %v12593 = vunpack.c.h.b16 %v4411
    %v12594 = vunpack.c.l.b16 %v4412
    %v12595 = vunpack.c.h.b16 %v4412
    %v12596 = vunpack.c.l.b16 %v4413
    %v12597 = vunpack.c.h.b16 %v4413
    %v12598 = vunpack.c.l.b16 %v4414
    %v12599 = vunpack.c.h.b16 %v4414
    %v12600 = vunpack.c.l.b16 %v4415
    %v12601 = vunpack.c.h.b16 %v4415
    %v12602 = vunpack.c.l.b16 %v4416
    %v12603 = vunpack.c.h.b16 %v4416
    %v12604 = vunpack.c.l.b16 %v4417
    %v12605 = vunpack.c.h.b16 %v4417
    %v12606 = vunpack.c.l.b16 %v4418
    %v12607 = vunpack.c.h.b16 %v4418
    %v12608 = vunpack.c.l.b16 %v4419
    %v12609 = vunpack.c.h.b16 %v4419
    %v12610 = vunpack.c.l.b16 %v4420
    %v12611 = vunpack.c.h.b16 %v4420
    %v12612 = vunpack.c.l.b16 %v4421
    %v12613 = vunpack.c.h.b16 %v4421
    %v12614 = vunpack.c.l.b16 %v4422
    %v12615 = vunpack.c.h.b16 %v4422
    %v12616 = vunpack.c.l.b16 %v4423
    %v12617 = vunpack.c.h.b16 %v4423
    %v12618 = vunpack.c.l.b16 %v4424
    %v12619 = vunpack.c.h.b16 %v4424
    %v12620 = vunpack.c.l.b16 %v4425
    %v12621 = vunpack.c.h.b16 %v4425
    %v12622 = vunpack.c.l.b16 %v4426
    %v12623 = vunpack.c.h.b16 %v4426
    %v12624 = vunpack.c.l.b16 %v4427
    %v12625 = vunpack.c.h.b16 %v4427
    %v12626 = vunpack.c.l.b16 %v4428
    %v12627 = vunpack.c.h.b16 %v4428
    %v12628 = vunpack.c.l.b16 %v4429
    %v12629 = vunpack.c.h.b16 %v4429
    %v12630 = vunpack.c.l.b16 %v4430
    %v12631 = vunpack.c.h.b16 %v4430
    %v12632 = vunpack.c.l.b16 %v4431
    %v12633 = vunpack.c.h.b16 %v4431
    %v12634 = vunpack.c.l.b16 %v4432
    %v12635 = vunpack.c.h.b16 %v4432
    %v12636 = vunpack.c.l.b16 %v4433
    %v12637 = vunpack.c.h.b16 %v4433
    %v12638 = vunpack.c.l.b16 %v4434
    %v12639 = vunpack.c.h.b16 %v4434
    %v12640 = vunpack.c.l.b16 %v4435
    %v12641 = vunpack.c.h.b16 %v4435
    %v12642 = vunpack.c.l.b16 %v4436
    %v12643 = vunpack.c.h.b16 %v4436
    %v12644 = vunpack.c.l.b16 %v4437
    %v12645 = vunpack.c.h.b16 %v4437
    %v12646 = vunpack.c.l.b16 %v4438
    %v12647 = vunpack.c.h.b16 %v4438
    %v12648 = vunpack.c.l.b16 %v4439
    %v12649 = vunpack.c.h.b16 %v4439
    %v12650 = vunpack.c.l.b16 %v4440
    %v12651 = vunpack.c.h.b16 %v4440
    %v12652 = vunpack.c.l.b16 %v4441
    %v12653 = vunpack.c.h.b16 %v4441
    %v12654 = vunpack.c.l.b16 %v4442
    %v12655 = vunpack.c.h.b16 %v4442
    %v12656 = vunpack.c.l.b16 %v4443
    %v12657 = vunpack.c.h.b16 %v4443
    %v12658 = vunpack.c.l.b16 %v4444
    %v12659 = vunpack.c.h.b16 %v4444
    %v12660 = vunpack.c.l.b16 %v4445
    %v12661 = vunpack.c.h.b16 %v4445
    %v12662 = vunpack.c.l.b16 %v4446
    %v12663 = vunpack.c.h.b16 %v4446
    %v12664 = vunpack.c.l.b16 %v4447
    %v12665 = vunpack.c.h.b16 %v4447
    %v12666 = vunpack.c.l.b16 %v4448
    %v12667 = vunpack.c.h.b16 %v4448
    %v12668 = vunpack.c.l.b16 %v4449
    %v12669 = vunpack.c.h.b16 %v4449
    %v12670 = vunpack.c.l.b16 %v4450
    %v12671 = vunpack.c.h.b16 %v4450
    %v12672 = vunpack.c.l.b16 %v4451
    %v12673 = vunpack.c.h.b16 %v4451
    %v12674 = vunpack.c.l.b16 %v4452
    %v12675 = vunpack.c.h.b16 %v4452
    %v12676 = vunpack.c.l.b16 %v4453
    %v12677 = vunpack.c.h.b16 %v4453
    %v12678 = vunpack.c.l.b16 %v4454
    %v12679 = vunpack.c.h.b16 %v4454
    %v12680 = vunpack.c.l.b16 %v4455
    %v12681 = vunpack.c.h.b16 %v4455
    %v12682 = vunpack.c.l.b16 %v4456
    %v12683 = vunpack.c.h.b16 %v4456
    %v12684 = vunpack.c.l.b16 %v4457
    %v12685 = vunpack.c.h.b16 %v4457
    %v12686 = vunpack.c.l.b16 %v4458
    %v12687 = vunpack.c.h.b16 %v4458
    %v12688 = vunpack.c.l.b16 %v4459
    %v12689 = vunpack.c.h.b16 %v4459
    %v12690 = vunpack.c.l.b16 %v4460
    %v12691 = vunpack.c.h.b16 %v4460
    %v12692 = vunpack.c.l.b16 %v4461
    %v12693 = vunpack.c.h.b16 %v4461
    %v12694 = vunpack.c.l.b16 %v4462
    %v12695 = vunpack.c.h.b16 %v4462
    %v12696 = vunpack.c.l.b16 %v4463
    %v12697 = vunpack.c.h.b16 %v4463
    %v12698 = vunpack.c.l.b16 %v4464
    %v12699 = vunpack.c.h.b16 %v4464
    %v12700 = vunpack.c.l.b16 %v4465
    %v12701 = vunpack.c.h.b16 %v4465
    %v12702 = vunpack.c.l.b16 %v4466
    %v12703 = vunpack.c.h.b16 %v4466
    %v12704 = vunpack.c.l.b16 %v4467
    %v12705 = vunpack.c.h.b16 %v4467
    %v12706 = vunpack.c.l.b16 %v4468
    %v12707 = vunpack.c.h.b16 %v4468
    %v12708 = vunpack.c.l.b16 %v4469
    %v12709 = vunpack.c.h.b16 %v4469
    %v12710 = vunpack.c.l.b16 %v4470
    %v12711 = vunpack.c.h.b16 %v4470
    %v12712 = vunpack.c.l.b16 %v4471
    %v12713 = vunpack.c.h.b16 %v4471
    %v12714 = vunpack.c.l.b16 %v4472
    %v12715 = vunpack.c.h.b16 %v4472
    %v12716 = vunpack.c.l.b16 %v4473
    %v12717 = vunpack.c.h.b16 %v4473
    %v12718 = vunpack.c.l.b16 %v4474
    %v12719 = vunpack.c.h.b16 %v4474
    %v12720 = vunpack.c.l.b16 %v4475
    %v12721 = vunpack.c.h.b16 %v4475
    %v12722 = vunpack.c.l.b16 %v4476
    %v12723 = vunpack.c.h.b16 %v4476
    %v12724 = vunpack.c.l.b16 %v4477
    %v12725 = vunpack.c.h.b16 %v4477
    %v12726 = vunpack.c.l.b16 %v4478
    %v12727 = vunpack.c.h.b16 %v4478
    %v12728 = vunpack.c.l.b16 %v4479
    %v12729 = vunpack.c.h.b16 %v4479
    %v12730 = vunpack.c.l.b16 %v4480
    %v12731 = vunpack.c.h.b16 %v4480
    %v12732 = vunpack.c.l.b16 %v4481
    %v12733 = vunpack.c.h.b16 %v4481
    %v12734 = vunpack.c.l.b16 %v4482
    %v12735 = vunpack.c.h.b16 %v4482
    %v12736 = vunpack.c.l.b16 %v4483
    %v12737 = vunpack.c.h.b16 %v4483
    %v12738 = vunpack.c.l.b16 %v4484
    %v12739 = vunpack.c.h.b16 %v4484
    %v12740 = vunpack.c.l.b16 %v4485
    %v12741 = vunpack.c.h.b16 %v4485
    %v12742 = vunpack.c.l.b16 %v4486
    %v12743 = vunpack.c.h.b16 %v4486
    %v12744 = vunpack.c.l.b16 %v4487
    %v12745 = vunpack.c.h.b16 %v4487
    %v12746 = vunpack.c.l.b16 %v4488
    %v12747 = vunpack.c.h.b16 %v4488
    %v12748 = vunpack.c.l.b16 %v4489
    %v12749 = vunpack.c.h.b16 %v4489
    %v12750 = vunpack.c.l.b16 %v4490
    %v12751 = vunpack.c.h.b16 %v4490
    %v12752 = vunpack.c.l.b16 %v4491
    %v12753 = vunpack.c.h.b16 %v4491
    %v12754 = vunpack.c.l.b16 %v4492
    %v12755 = vunpack.c.h.b16 %v4492
    %v12756 = vunpack.c.l.b16 %v4493
    %v12757 = vunpack.c.h.b16 %v4493
    %v12758 = vunpack.c.l.b16 %v4494
    %v12759 = vunpack.c.h.b16 %v4494
    %v12760 = vunpack.c.l.b16 %v4495
    %v12761 = vunpack.c.h.b16 %v4495
    %v12762 = vunpack.c.l.b16 %v4496
    %v12763 = vunpack.c.h.b16 %v4496
    %v12764 = vunpack.c.l.b16 %v4497
    %v12765 = vunpack.c.h.b16 %v4497
    %v12766 = vunpack.c.l.b16 %v4498
    %v12767 = vunpack.c.h.b16 %v4498
    %v12768 = vunpack.c.l.b16 %v4499
    %v12769 = vunpack.c.h.b16 %v4499
    %v12770 = vunpack.c.l.b16 %v4500
    %v12771 = vunpack.c.h.b16 %v4500
    %v12772 = vunpack.c.l.b16 %v4501
    %v12773 = vunpack.c.h.b16 %v4501
    %v12774 = vunpack.c.l.b16 %v4502
    %v12775 = vunpack.c.h.b16 %v4502
    %v12776 = vunpack.c.l.b16 %v4503
    %v12777 = vunpack.c.h.b16 %v4503
    %v12778 = vunpack.c.l.b16 %v4504
    %v12779 = vunpack.c.h.b16 %v4504
    %v12780 = vpack.c.b16 %v12528, %v12524
    %v12781 = vpack.c.b16 %v12529, %v12525
    %v12782 = vpack.c.b16 %v12530, %v12526
    %v12783 = vpack.c.b16 %v12531, %v12527
    %v12784 = vpack.c.b16 %v12536, %v12532
    %v12785 = vpack.c.b16 %v12537, %v12533
    %v12786 = vpack.c.b16 %v12538, %v12534
    %v12787 = vpack.c.b16 %v12539, %v12535
    %v12788 = vpack.c.b16 %v12544, %v12540
    %v12789 = vpack.c.b16 %v12545, %v12541
    %v12790 = vpack.c.b16 %v12546, %v12542
    %v12791 = vpack.c.b16 %v12547, %v12543
    %v12792 = vpack.c.b16 %v12552, %v12548
    %v12793 = vpack.c.b16 %v12553, %v12549
    %v12794 = vpack.c.b16 %v12554, %v12550
    %v12795 = vpack.c.b16 %v12555, %v12551
    %v12796 = vpack.c.b16 %v12560, %v12556
    %v12797 = vpack.c.b16 %v12561, %v12557
    %v12798 = vpack.c.b16 %v12562, %v12558
    %v12799 = vpack.c.b16 %v12563, %v12559
    %v12800 = vpack.c.b16 %v12568, %v12564
    %v12801 = vpack.c.b16 %v12569, %v12565
    %v12802 = vpack.c.b16 %v12570, %v12566
    %v12803 = vpack.c.b16 %v12571, %v12567
    %v12804 = vpack.c.b16 %v12576, %v12572
    %v12805 = vpack.c.b16 %v12577, %v12573
    %v12806 = vpack.c.b16 %v12578, %v12574
    %v12807 = vpack.c.b16 %v12579, %v12575
    %v12808 = vpack.c.b16 %v12584, %v12580
    %v12809 = vpack.c.b16 %v12585, %v12581
    %v12810 = vpack.c.b16 %v12586, %v12582
    %v12811 = vpack.c.b16 %v12587, %v12583
    %v12812 = vpack.c.b16 %v12592, %v12588
    %v12813 = vpack.c.b16 %v12593, %v12589
    %v12814 = vpack.c.b16 %v12594, %v12590
    %v12815 = vpack.c.b16 %v12595, %v12591
    %v12816 = vpack.c.b16 %v12600, %v12596
    %v12817 = vpack.c.b16 %v12601, %v12597
    %v12818 = vpack.c.b16 %v12602, %v12598
    %v12819 = vpack.c.b16 %v12603, %v12599
    %v12820 = vpack.c.b16 %v12608, %v12604
    %v12821 = vpack.c.b16 %v12609, %v12605
    %v12822 = vpack.c.b16 %v12610, %v12606
    %v12823 = vpack.c.b16 %v12611, %v12607
    %v12824 = vpack.c.b16 %v12616, %v12612
    %v12825 = vpack.c.b16 %v12617, %v12613
    %v12826 = vpack.c.b16 %v12618, %v12614
    %v12827 = vpack.c.b16 %v12619, %v12615
    %v12828 = vpack.c.b16 %v12624, %v12620
    %v12829 = vpack.c.b16 %v12625, %v12621
    %v12830 = vpack.c.b16 %v12626, %v12622
    %v12831 = vpack.c.b16 %v12627, %v12623
    %v12832 = vpack.c.b16 %v12632, %v12628
    %v12833 = vpack.c.b16 %v12633, %v12629
    %v12834 = vpack.c.b16 %v12634, %v12630
    %v12835 = vpack.c.b16 %v12635, %v12631
    %v12836 = vpack.c.b16 %v12640, %v12636
    %v12837 = vpack.c.b16 %v12641, %v12637
    %v12838 = vpack.c.b16 %v12642, %v12638
    %v12839 = vpack.c.b16 %v12643, %v12639
    %v12840 = vpack.c.b16 %v12648, %v12644
    %v12841 = vpack.c.b16 %v12649, %v12645
    %v12842 = vpack.c.b16 %v12650, %v12646
    %v12843 = vpack.c.b16 %v12651, %v12647
    %v12844 = vpack.c.b16 %v12656, %v12652
    %v12845 = vpack.c.b16 %v12657, %v12653
    %v12846 = vpack.c.b16 %v12658, %v12654
    %v12847 = vpack.c.b16 %v12659, %v12655
    %v12848 = vpack.c.b16 %v12664, %v12660
    %v12849 = vpack.c.b16 %v12665, %v12661
    %v12850 = vpack.c.b16 %v12666, %v12662
    %v12851 = vpack.c.b16 %v12667, %v12663
    %v12852 = vpack.c.b16 %v12672, %v12668
    %v12853 = vpack.c.b16 %v12673, %v12669
    %v12854 = vpack.c.b16 %v12674, %v12670
    %v12855 = vpack.c.b16 %v12675, %v12671
    %v12856 = vpack.c.b16 %v12680, %v12676
    %v12857 = vpack.c.b16 %v12681, %v12677
    %v12858 = vpack.c.b16 %v12682, %v12678
    %v12859 = vpack.c.b16 %v12683, %v12679
    %v12860 = vpack.c.b16 %v12688, %v12684
    %v12861 = vpack.c.b16 %v12689, %v12685
    %v12862 = vpack.c.b16 %v12690, %v12686
    %v12863 = vpack.c.b16 %v12691, %v12687
    %v12864 = vpack.c.b16 %v12696, %v12692
    %v12865 = vpack.c.b16 %v12697, %v12693
    %v12866 = vpack.c.b16 %v12698, %v12694
    %v12867 = vpack.c.b16 %v12699, %v12695
    %v12868 = vpack.c.b16 %v12704, %v12700
    %v12869 = vpack.c.b16 %v12705, %v12701
    %v12870 = vpack.c.b16 %v12706, %v12702
    %v12871 = vpack.c.b16 %v12707, %v12703
    %v12872 = vpack.c.b16 %v12712, %v12708
    %v12873 = vpack.c.b16 %v12713, %v12709
    %v12874 = vpack.c.b16 %v12714, %v12710
    %v12875 = vpack.c.b16 %v12715, %v12711
    %v12876 = vpack.c.b16 %v12720, %v12716
    %v12877 = vpack.c.b16 %v12721, %v12717
    %v12878 = vpack.c.b16 %v12722, %v12718
    %v12879 = vpack.c.b16 %v12723, %v12719
    %v12880 = vpack.c.b16 %v12728, %v12724
    %v12881 = vpack.c.b16 %v12729, %v12725
    %v12882 = vpack.c.b16 %v12730, %v12726
    %v12883 = vpack.c.b16 %v12731, %v12727
    %v12884 = vpack.c.b16 %v12736, %v12732
    %v12885 = vpack.c.b16 %v12737, %v12733
    %v12886 = vpack.c.b16 %v12738, %v12734
    %v12887 = vpack.c.b16 %v12739, %v12735
    %v12888 = vpack.c.b16 %v12744, %v12740
    %v12889 = vpack.c.b16 %v12745, %v12741
    %v12890 = vpack.c.b16 %v12746, %v12742
    %v12891 = vpack.c.b16 %v12747, %v12743
    %v12892 = vpack.c.b16 %v12752, %v12748
    %v12893 = vpack.c.b16 %v12753, %v12749
    %v12894 = vpack.c.b16 %v12754, %v12750
    %v12895 = vpack.c.b16 %v12755, %v12751
    %v12896 = vpack.c.b16 %v12760, %v12756
    %v12897 = vpack.c.b16 %v12761, %v12757
    %v12898 = vpack.c.b16 %v12762, %v12758
    %v12899 = vpack.c.b16 %v12763, %v12759
    %v12900 = vpack.c.b16 %v12768, %v12764
    %v12901 = vpack.c.b16 %v12769, %v12765
    %v12902 = vpack.c.b16 %v12770, %v12766
    %v12903 = vpack.c.b16 %v12771, %v12767
    %v12904 = vpack.c.b16 %v12776, %v12772
    %v12905 = vpack.c.b16 %v12777, %v12773
    %v12906 = vpack.c.b16 %v12778, %v12774
    %v12907 = vpack.c.b16 %v12779, %v12775
    %13036 = vmatprep.subr.bf16.mxu0 %v12809
    %13037 = vmatpush1.bf16.msra.mxu0 %v12808
    %13038 = vmatprep.subr.bf16.mxu0 %v12805
    %13039 = vmatpush1.bf16.msra.mxu0 %v12804
    %13040 = vmatprep.subr.bf16.mxu0 %v12801
    %13041 = vmatpush1.bf16.msra.mxu0 %v12800
    %13042 = vmatprep.subr.bf16.mxu0 %v12797
    %13043 = vmatpush1.bf16.msra.mxu0 %v12796
    %13044 = vmatprep.subr.bf16.mxu0 %v12793
    %13045 = vmatpush1.bf16.msra.mxu0 %v12792
    %13046 = vmatprep.subr.bf16.mxu0 %v12789
    %13047 = vmatpush1.bf16.msra.mxu0 %v12788
    %13048 = vmatprep.subr.bf16.mxu0 %v12785
    %13049 = vmatpush1.bf16.msra.mxu0 %v12784
    %13050 = vmatprep.subr.bf16.mxu0 %v12781
    %13051 = vmatpush1.bf16.msra.mxu0 %v12780
    %13052 = vmatprep.subr.bf16.mxu0 %v12841
    %13053 = vmatpush2.bf16.msra.mxu0 %v12840
    %13054 = vmatprep.subr.bf16.mxu0 %v12837
    %13055 = vmatpush2.bf16.msra.mxu0 %v12836
    %13056 = vmatprep.subr.bf16.mxu0 %v12833
    %13057 = vmatpush2.bf16.msra.mxu0 %v12832
    %13058 = vmatprep.subr.bf16.mxu0 %v12829
    %13059 = vmatpush2.bf16.msra.mxu0 %v12828
    %13060 = vmatprep.subr.bf16.mxu0 %v12825
    %13061 = vmatpush2.bf16.msra.mxu0 %v12824
    %13062 = vmatprep.subr.bf16.mxu0 %v12821
    %13063 = vmatpush2.bf16.msra.mxu0 %v12820
    %13064 = vmatprep.subr.bf16.mxu0 %v12817
    %13065 = vmatpush2.bf16.msra.mxu0 %v12816
    %13066 = vmatprep.subr.bf16.mxu0 %v12813
    %13067 = vmatpush2.bf16.msra.mxu0 %v12812
    %13068 = vmatprep.mubr.bf16.mxu0 %v12389
    %13069 = vmatmul.mubr.bf16.gmra.mxu0 %v12388
    %v13070 = vpop.f32.mrf.mxu0
    %v13071 = vadd.f32 %v8976, %v13070
    %v13072 = vpop.f32.mrf.mxu0
    %v13073 = vadd.f32 %v8978, %v13072
    %v13074 = vpop.f32.mrf.mxu0
    %v13075 = vpop.f32.mrf.mxu0
    %13076 = vdwg.mxu0
    %13077 = vmatprep.subr.bf16.mxu0 %v12873
    %13078 = vmatpush1.bf16.msra.mxu0 %v12872
    %13079 = vmatprep.subr.bf16.mxu0 %v12869
    %13080 = vmatpush1.bf16.msra.mxu0 %v12868
    %13081 = vmatprep.subr.bf16.mxu0 %v12865
    %13082 = vmatpush1.bf16.msra.mxu0 %v12864
    %13083 = vmatprep.subr.bf16.mxu0 %v12861
    %13084 = vmatpush1.bf16.msra.mxu0 %v12860
    %13085 = vmatprep.subr.bf16.mxu0 %v12857
    %13086 = vmatpush1.bf16.msra.mxu0 %v12856
    %13087 = vmatprep.subr.bf16.mxu0 %v12853
    %13088 = vmatpush1.bf16.msra.mxu0 %v12852
    %13089 = vmatprep.subr.bf16.mxu0 %v12849
    %13090 = vmatpush1.bf16.msra.mxu0 %v12848
    %13091 = vmatprep.subr.bf16.mxu0 %v12845
    %13092 = vmatpush1.bf16.msra.mxu0 %v12844
    %13093 = vmatprep.subr.bf16.mxu0 %v12905
    %13094 = vmatpush2.bf16.msra.mxu0 %v12904
    %13095 = vmatprep.subr.bf16.mxu0 %v12901
    %13096 = vmatpush2.bf16.msra.mxu0 %v12900
    %13097 = vmatprep.subr.bf16.mxu0 %v12897
    %13098 = vmatpush2.bf16.msra.mxu0 %v12896
    %13099 = vmatprep.subr.bf16.mxu0 %v12893
    %13100 = vmatpush2.bf16.msra.mxu0 %v12892
    %13101 = vmatprep.subr.bf16.mxu0 %v12889
    %13102 = vmatpush2.bf16.msra.mxu0 %v12888
    %13103 = vmatprep.subr.bf16.mxu0 %v12885
    %13104 = vmatpush2.bf16.msra.mxu0 %v12884
    %13105 = vmatprep.subr.bf16.mxu0 %v12881
    %13106 = vmatpush2.bf16.msra.mxu0 %v12880
    %13107 = vmatprep.subr.bf16.mxu0 %v12877
    %13108 = vmatpush2.bf16.msra.mxu0 %v12876
    %13109 = vmatprep.mubr.bf16.mxu0 %v12391
    %13110 = vmatmul.mubr.bf16.gmra.mxu0 %v12390
    %v13111 = vpop.f32.mrf.mxu0
    %v13112 = vadd.f32 %v13071, %v13111
    %v13113 = vpop.f32.mrf.mxu0
    %v13114 = vadd.f32 %v13073, %v13113
    %v13115 = vpop.f32.mrf.mxu0
    %v13116 = vpop.f32.mrf.mxu0
    %13117 = vdwg.mxu0
    %13118 = vmatprep.subr.bf16.mxu0 %v12811
    %13119 = vmatpush1.bf16.msra.mxu0 %v12810
    %13120 = vmatprep.subr.bf16.mxu0 %v12807
    %13121 = vmatpush1.bf16.msra.mxu0 %v12806
    %13122 = vmatprep.subr.bf16.mxu0 %v12803
    %13123 = vmatpush1.bf16.msra.mxu0 %v12802
    %13124 = vmatprep.subr.bf16.mxu0 %v12799
    %13125 = vmatpush1.bf16.msra.mxu0 %v12798
    %13126 = vmatprep.subr.bf16.mxu0 %v12795
    %13127 = vmatpush1.bf16.msra.mxu0 %v12794
    %13128 = vmatprep.subr.bf16.mxu0 %v12791
    %13129 = vmatpush1.bf16.msra.mxu0 %v12790
    %13130 = vmatprep.subr.bf16.mxu0 %v12787
    %13131 = vmatpush1.bf16.msra.mxu0 %v12786
    %13132 = vmatprep.subr.bf16.mxu0 %v12783
    %13133 = vmatpush1.bf16.msra.mxu0 %v12782
    %13134 = vmatprep.subr.bf16.mxu0 %v12843
    %13135 = vmatpush2.bf16.msra.mxu0 %v12842
    %13136 = vmatprep.subr.bf16.mxu0 %v12839
    %13137 = vmatpush2.bf16.msra.mxu0 %v12838
    %13138 = vmatprep.subr.bf16.mxu0 %v12835
    %13139 = vmatpush2.bf16.msra.mxu0 %v12834
    %13140 = vmatprep.subr.bf16.mxu0 %v12831
    %13141 = vmatpush2.bf16.msra.mxu0 %v12830
    %13142 = vmatprep.subr.bf16.mxu0 %v12827
    %13143 = vmatpush2.bf16.msra.mxu0 %v12826
    %13144 = vmatprep.subr.bf16.mxu0 %v12823
    %13145 = vmatpush2.bf16.msra.mxu0 %v12822
    %13146 = vmatprep.subr.bf16.mxu0 %v12819
    %13147 = vmatpush2.bf16.msra.mxu0 %v12818
    %13148 = vmatprep.subr.bf16.mxu0 %v12815
    %13149 = vmatpush2.bf16.msra.mxu0 %v12814
    %13150 = vmatprep.mubr.bf16.mxu0 %v12389
    %13151 = vmatmul.mubr.bf16.gmra.mxu0 %v12388
    %v13152 = vpop.f32.mrf.mxu0
    %v13153 = vadd.f32 %v9058, %v13152
    %v13154 = vpop.f32.mrf.mxu0
    %v13155 = vadd.f32 %v9060, %v13154
    %v13156 = vpop.f32.mrf.mxu0
    %v13157 = vpop.f32.mrf.mxu0
    %13158 = vdwg.mxu0
    %13159 = vmatprep.subr.bf16.mxu0 %v12875
    %13160 = vmatpush1.bf16.msra.mxu0 %v12874
    %13161 = vmatprep.subr.bf16.mxu0 %v12871
    %13162 = vmatpush1.bf16.msra.mxu0 %v12870
    %13163 = vmatprep.subr.bf16.mxu0 %v12867
    %13164 = vmatpush1.bf16.msra.mxu0 %v12866
    %13165 = vmatprep.subr.bf16.mxu0 %v12863
    %13166 = vmatpush1.bf16.msra.mxu0 %v12862
    %13167 = vmatprep.subr.bf16.mxu0 %v12859
    %13168 = vmatpush1.bf16.msra.mxu0 %v12858
    %13169 = vmatprep.subr.bf16.mxu0 %v12855
    %13170 = vmatpush1.bf16.msra.mxu0 %v12854
    %13171 = vmatprep.subr.bf16.mxu0 %v12851
    %13172 = vmatpush1.bf16.msra.mxu0 %v12850
    %13173 = vmatprep.subr.bf16.mxu0 %v12847
    %13174 = vmatpush1.bf16.msra.mxu0 %v12846
    %13175 = vmatprep.subr.bf16.mxu0 %v12907
    %13176 = vmatpush2.bf16.msra.mxu0 %v12906
    %13177 = vmatprep.subr.bf16.mxu0 %v12903
    %13178 = vmatpush2.bf16.msra.mxu0 %v12902
    %13179 = vmatprep.subr.bf16.mxu0 %v12899
    %13180 = vmatpush2.bf16.msra.mxu0 %v12898
    %13181 = vmatprep.subr.bf16.mxu0 %v12895
    %13182 = vmatpush2.bf16.msra.mxu0 %v12894
    %13183 = vmatprep.subr.bf16.mxu0 %v12891
    %13184 = vmatpush2.bf16.msra.mxu0 %v12890
    %13185 = vmatprep.subr.bf16.mxu0 %v12887
    %13186 = vmatpush2.bf16.msra.mxu0 %v12886
    %13187 = vmatprep.subr.bf16.mxu0 %v12883
    %13188 = vmatpush2.bf16.msra.mxu0 %v12882
    %13189 = vmatprep.subr.bf16.mxu0 %v12879
    %13190 = vmatpush2.bf16.msra.mxu0 %v12878
    %13191 = vmatprep.mubr.bf16.mxu0 %v12391
    %13192 = vmatmul.mubr.bf16.gmra.mxu0 %v12390
    %v13193 = vpop.f32.mrf.mxu0
    %v13194 = vadd.f32 %v13153, %v13193
    %v13195 = vpop.f32.mrf.mxu0
    %v13196 = vadd.f32 %v13155, %v13195
    %v13197 = vpop.f32.mrf.mxu0
    %v13198 = vpop.f32.mrf.mxu0
    %13199 = vdwg.mxu0
    %v13200 = vld [vmem:[%s3] sm:$0xf]
    %v13202 = vlaneseq
    %v13203 = vshrl.u32 %v13202, 7
    %v13204 = vsub.s32 0, %v13203
    %v13205 = vrot.slane %v13200, %v13204
    %v13206 = vlaneseq
    %v13207 = vshrl.u32 %v13206, 7
    %v13208 = vsub.s32 1, %v13207
    %v13209 = vrot.slane %v13200, %v13208
    %v13210 = vlaneseq
    %v13211 = vshrl.u32 %v13210, 7
    %v13212 = vsub.s32 2, %v13211
    %v13213 = vrot.slane %v13200, %v13212
    %v13214 = vlaneseq
    %v13215 = vshrl.u32 %v13214, 7
    %v13216 = vsub.s32 3, %v13215
    %v13217 = vrot.slane %v13200, %v13216
    %v13222 = vadd.f32 %v13112, %v13205
    %v13223 = vadd.f32 %v13114, %v13209
    %v13224 = vadd.f32 %v13194, %v13213
    %v13225 = vadd.f32 %v13196, %v13217
    %v13226 = vmax.f32 %v13222, 0.0
    %v13227 = vmax.f32 %v13223, 0.0
    %v13228 = vmax.f32 %v13224, 0.0
    %v13229 = vmax.f32 %v13225, 0.0
    %v13230 = vpack.c.bf16 %v13226, %v13226
    %v13231 = vpack.c.bf16 %v13227, %v13227
    %v13232 = vpack.c.bf16 %v13228, %v13228
    %v13233 = vpack.c.bf16 %v13229, %v13229
    %v13234 = vld [vmem:[%s4] sm:$0xff]
    %v13235 = vld [vmem:[%s4 + $0x8] sm:$0xff]
    %v13236 = vld [vmem:[%s4 + $0x10] sm:$0xff]
    %v13237 = vld [vmem:[%s4 + $0x18] sm:$0xff]
    %v13238 = vld [vmem:[%s4 + $0x20] sm:$0xff]
    %v13239 = vld [vmem:[%s4 + $0x28] sm:$0xff]
    %v13240 = vld [vmem:[%s4 + $0x30] sm:$0xff]
    %v13241 = vld [vmem:[%s4 + $0x38] sm:$0xff]
    %v13242 = vld [vmem:[%s4 + $0x40] sm:$0xff]
    %v13243 = vld [vmem:[%s4 + $0x48] sm:$0xff]
    %v13244 = vld [vmem:[%s4 + $0x50] sm:$0xff]
    %v13245 = vld [vmem:[%s4 + $0x58] sm:$0xff]
    %v13246 = vld [vmem:[%s4 + $0x60] sm:$0xff]
    %v13247 = vld [vmem:[%s4 + $0x68] sm:$0xff]
    %v13248 = vld [vmem:[%s4 + $0x70] sm:$0xff]
    %v13249 = vld [vmem:[%s4 + $0x78] sm:$0xff]
    %v13250 = vld [vmem:[%s4 + $0x80] sm:$0xff]
    %v13251 = vld [vmem:[%s4 + $0x88] sm:$0xff]
    %v13252 = vld [vmem:[%s4 + $0x90] sm:$0xff]
    %v13253 = vld [vmem:[%s4 + $0x98] sm:$0xff]
    %v13254 = vld [vmem:[%s4 + $0xa0] sm:$0xff]
    %v13255 = vld [vmem:[%s4 + $0xa8] sm:$0xff]
    %v13256 = vld [vmem:[%s4 + $0xb0] sm:$0xff]
    %v13257 = vld [vmem:[%s4 + $0xb8] sm:$0xff]
    %v13258 = vld [vmem:[%s4 + $0xc0] sm:$0xff]
    %v13259 = vld [vmem:[%s4 + $0xc8] sm:$0xff]
    %v13260 = vld [vmem:[%s4 + $0xd0] sm:$0xff]
    %v13261 = vld [vmem:[%s4 + $0xd8] sm:$0xff]
    %v13262 = vld [vmem:[%s4 + $0xe0] sm:$0xff]
    %v13263 = vld [vmem:[%s4 + $0xe8] sm:$0xff]
    %v13264 = vld [vmem:[%s4 + $0xf0] sm:$0xff]
    %v13265 = vld [vmem:[%s4 + $0xf8] sm:$0xff]
    %v13266 = vld [vmem:[%s4 + $0x100] sm:$0xff]
    %v13267 = vld [vmem:[%s4 + $0x108] sm:$0xff]
    %v13268 = vld [vmem:[%s4 + $0x110] sm:$0xff]
    %v13269 = vld [vmem:[%s4 + $0x118] sm:$0xff]
    %v13270 = vld [vmem:[%s4 + $0x120] sm:$0xff]
    %v13271 = vld [vmem:[%s4 + $0x128] sm:$0xff]
    %v13272 = vld [vmem:[%s4 + $0x130] sm:$0xff]
    %v13273 = vld [vmem:[%s4 + $0x138] sm:$0xff]
    %v13274 = vld [vmem:[%s4 + $0x140] sm:$0xff]
    %v13275 = vld [vmem:[%s4 + $0x148] sm:$0xff]
    %v13276 = vld [vmem:[%s4 + $0x150] sm:$0xff]
    %v13277 = vld [vmem:[%s4 + $0x158] sm:$0xff]
    %v13278 = vld [vmem:[%s4 + $0x160] sm:$0xff]
    %v13279 = vld [vmem:[%s4 + $0x168] sm:$0xff]
    %v13280 = vld [vmem:[%s4 + $0x170] sm:$0xff]
    %v13281 = vld [vmem:[%s4 + $0x178] sm:$0xff]
    %v13282 = vld [vmem:[%s4 + $0x180] sm:$0xff]
    %v13283 = vld [vmem:[%s4 + $0x188] sm:$0xff]
    %v13284 = vld [vmem:[%s4 + $0x190] sm:$0xff]
    %v13285 = vld [vmem:[%s4 + $0x198] sm:$0xff]
    %v13286 = vld [vmem:[%s4 + $0x1a0] sm:$0xff]
    %v13287 = vld [vmem:[%s4 + $0x1a8] sm:$0xff]
    %v13288 = vld [vmem:[%s4 + $0x1b0] sm:$0xff]
    %v13289 = vld [vmem:[%s4 + $0x1b8] sm:$0xff]
    %v13290 = vld [vmem:[%s4 + $0x1c0] sm:$0xff]
    %v13291 = vld [vmem:[%s4 + $0x1c8] sm:$0xff]
    %v13292 = vld [vmem:[%s4 + $0x1d0] sm:$0xff]
    %v13293 = vld [vmem:[%s4 + $0x1d8] sm:$0xff]
    %v13294 = vld [vmem:[%s4 + $0x1e0] sm:$0xff]
    %v13295 = vld [vmem:[%s4 + $0x1e8] sm:$0xff]
    %v13296 = vld [vmem:[%s4 + $0x1f0] sm:$0xff]
    %v13297 = vld [vmem:[%s4 + $0x1f8] sm:$0xff]
    %v13298 = vld [vmem:[%s5] sm:$0x3]
    %v13300 = vlaneseq
    %v13301 = vshrl.u32 %v13300, 7
    %v13302 = vsub.s32 0, %v13301
    %v13303 = vrot.slane %v13298, %v13302
    %v13304 = vlaneseq
    %v13305 = vshrl.u32 %v13304, 7
    %v13306 = vsub.s32 1, %v13305
    %v13307 = vrot.slane %v13298, %v13306
    %v13374 = vunpack.c.l.b16 %v13234
    %v13375 = vunpack.c.h.b16 %v13234
    %v13376 = vunpack.c.l.b16 %v13235
    %v13377 = vunpack.c.h.b16 %v13235
    %v13378 = vunpack.c.l.b16 %v13236
    %v13379 = vunpack.c.h.b16 %v13236
    %v13380 = vunpack.c.l.b16 %v13237
    %v13381 = vunpack.c.h.b16 %v13237
    %v13382 = vunpack.c.l.b16 %v13238
    %v13383 = vunpack.c.h.b16 %v13238
    %v13384 = vunpack.c.l.b16 %v13239
    %v13385 = vunpack.c.h.b16 %v13239
    %v13386 = vunpack.c.l.b16 %v13240
    %v13387 = vunpack.c.h.b16 %v13240
    %v13388 = vunpack.c.l.b16 %v13241
    %v13389 = vunpack.c.h.b16 %v13241
    %v13390 = vunpack.c.l.b16 %v13242
    %v13391 = vunpack.c.h.b16 %v13242
    %v13392 = vunpack.c.l.b16 %v13243
    %v13393 = vunpack.c.h.b16 %v13243
    %v13394 = vunpack.c.l.b16 %v13244
    %v13395 = vunpack.c.h.b16 %v13244
    %v13396 = vunpack.c.l.b16 %v13245
    %v13397 = vunpack.c.h.b16 %v13245
    %v13398 = vunpack.c.l.b16 %v13246
    %v13399 = vunpack.c.h.b16 %v13246
    %v13400 = vunpack.c.l.b16 %v13247
    %v13401 = vunpack.c.h.b16 %v13247
    %v13402 = vunpack.c.l.b16 %v13248
    %v13403 = vunpack.c.h.b16 %v13248
    %v13404 = vunpack.c.l.b16 %v13249
    %v13405 = vunpack.c.h.b16 %v13249
    %v13406 = vunpack.c.l.b16 %v13250
    %v13407 = vunpack.c.h.b16 %v13250
    %v13408 = vunpack.c.l.b16 %v13251
    %v13409 = vunpack.c.h.b16 %v13251
    %v13410 = vunpack.c.l.b16 %v13252
    %v13411 = vunpack.c.h.b16 %v13252
    %v13412 = vunpack.c.l.b16 %v13253
    %v13413 = vunpack.c.h.b16 %v13253
    %v13414 = vunpack.c.l.b16 %v13254
    %v13415 = vunpack.c.h.b16 %v13254
    %v13416 = vunpack.c.l.b16 %v13255
    %v13417 = vunpack.c.h.b16 %v13255
    %v13418 = vunpack.c.l.b16 %v13256
    %v13419 = vunpack.c.h.b16 %v13256
    %v13420 = vunpack.c.l.b16 %v13257
    %v13421 = vunpack.c.h.b16 %v13257
    %v13422 = vunpack.c.l.b16 %v13258
    %v13423 = vunpack.c.h.b16 %v13258
    %v13424 = vunpack.c.l.b16 %v13259
    %v13425 = vunpack.c.h.b16 %v13259
    %v13426 = vunpack.c.l.b16 %v13260
    %v13427 = vunpack.c.h.b16 %v13260
    %v13428 = vunpack.c.l.b16 %v13261
    %v13429 = vunpack.c.h.b16 %v13261
    %v13430 = vunpack.c.l.b16 %v13262
    %v13431 = vunpack.c.h.b16 %v13262
    %v13432 = vunpack.c.l.b16 %v13263
    %v13433 = vunpack.c.h.b16 %v13263
    %v13434 = vunpack.c.l.b16 %v13264
    %v13435 = vunpack.c.h.b16 %v13264
    %v13436 = vunpack.c.l.b16 %v13265
    %v13437 = vunpack.c.h.b16 %v13265
    %v13438 = vunpack.c.l.b16 %v13266
    %v13439 = vunpack.c.h.b16 %v13266
    %v13440 = vunpack.c.l.b16 %v13267
    %v13441 = vunpack.c.h.b16 %v13267
    %v13442 = vunpack.c.l.b16 %v13268
    %v13443 = vunpack.c.h.b16 %v13268
    %v13444 = vunpack.c.l.b16 %v13269
    %v13445 = vunpack.c.h.b16 %v13269
    %v13446 = vunpack.c.l.b16 %v13270
    %v13447 = vunpack.c.h.b16 %v13270
    %v13448 = vunpack.c.l.b16 %v13271
    %v13449 = vunpack.c.h.b16 %v13271
    %v13450 = vunpack.c.l.b16 %v13272
    %v13451 = vunpack.c.h.b16 %v13272
    %v13452 = vunpack.c.l.b16 %v13273
    %v13453 = vunpack.c.h.b16 %v13273
    %v13454 = vunpack.c.l.b16 %v13274
    %v13455 = vunpack.c.h.b16 %v13274
    %v13456 = vunpack.c.l.b16 %v13275
    %v13457 = vunpack.c.h.b16 %v13275
    %v13458 = vunpack.c.l.b16 %v13276
    %v13459 = vunpack.c.h.b16 %v13276
    %v13460 = vunpack.c.l.b16 %v13277
    %v13461 = vunpack.c.h.b16 %v13277
    %v13462 = vunpack.c.l.b16 %v13278
    %v13463 = vunpack.c.h.b16 %v13278
    %v13464 = vunpack.c.l.b16 %v13279
    %v13465 = vunpack.c.h.b16 %v13279
    %v13466 = vunpack.c.l.b16 %v13280
    %v13467 = vunpack.c.h.b16 %v13280
    %v13468 = vunpack.c.l.b16 %v13281
    %v13469 = vunpack.c.h.b16 %v13281
    %v13470 = vunpack.c.l.b16 %v13282
    %v13471 = vunpack.c.h.b16 %v13282
    %v13472 = vunpack.c.l.b16 %v13283
    %v13473 = vunpack.c.h.b16 %v13283
    %v13474 = vunpack.c.l.b16 %v13284
    %v13475 = vunpack.c.h.b16 %v13284
    %v13476 = vunpack.c.l.b16 %v13285
    %v13477 = vunpack.c.h.b16 %v13285
    %v13478 = vunpack.c.l.b16 %v13286
    %v13479 = vunpack.c.h.b16 %v13286
    %v13480 = vunpack.c.l.b16 %v13287
    %v13481 = vunpack.c.h.b16 %v13287
    %v13482 = vunpack.c.l.b16 %v13288
    %v13483 = vunpack.c.h.b16 %v13288
    %v13484 = vunpack.c.l.b16 %v13289
    %v13485 = vunpack.c.h.b16 %v13289
    %v13486 = vunpack.c.l.b16 %v13290
    %v13487 = vunpack.c.h.b16 %v13290
    %v13488 = vunpack.c.l.b16 %v13291
    %v13489 = vunpack.c.h.b16 %v13291
    %v13490 = vunpack.c.l.b16 %v13292
    %v13491 = vunpack.c.h.b16 %v13292
    %v13492 = vunpack.c.l.b16 %v13293
    %v13493 = vunpack.c.h.b16 %v13293
    %v13494 = vunpack.c.l.b16 %v13294
    %v13495 = vunpack.c.h.b16 %v13294
    %v13496 = vunpack.c.l.b16 %v13295
    %v13497 = vunpack.c.h.b16 %v13295
    %v13498 = vunpack.c.l.b16 %v13296
    %v13499 = vunpack.c.h.b16 %v13296
    %v13500 = vunpack.c.l.b16 %v13297
    %v13501 = vunpack.c.h.b16 %v13297
    %v13502 = vpack.c.b16 %v13376, %v13374
    %v13503 = vpack.c.b16 %v13377, %v13375
    %v13504 = vpack.c.b16 %v13380, %v13378
    %v13505 = vpack.c.b16 %v13381, %v13379
    %v13506 = vpack.c.b16 %v13384, %v13382
    %v13507 = vpack.c.b16 %v13385, %v13383
    %v13508 = vpack.c.b16 %v13388, %v13386
    %v13509 = vpack.c.b16 %v13389, %v13387
    %v13510 = vpack.c.b16 %v13392, %v13390
    %v13511 = vpack.c.b16 %v13393, %v13391
    %v13512 = vpack.c.b16 %v13396, %v13394
    %v13513 = vpack.c.b16 %v13397, %v13395
    %v13514 = vpack.c.b16 %v13400, %v13398
    %v13515 = vpack.c.b16 %v13401, %v13399
    %v13516 = vpack.c.b16 %v13404, %v13402
    %v13517 = vpack.c.b16 %v13405, %v13403
    %v13518 = vpack.c.b16 %v13408, %v13406
    %v13519 = vpack.c.b16 %v13409, %v13407
    %v13520 = vpack.c.b16 %v13412, %v13410
    %v13521 = vpack.c.b16 %v13413, %v13411
    %v13522 = vpack.c.b16 %v13416, %v13414
    %v13523 = vpack.c.b16 %v13417, %v13415
    %v13524 = vpack.c.b16 %v13420, %v13418
    %v13525 = vpack.c.b16 %v13421, %v13419
    %v13526 = vpack.c.b16 %v13424, %v13422
    %v13527 = vpack.c.b16 %v13425, %v13423
    %v13528 = vpack.c.b16 %v13428, %v13426
    %v13529 = vpack.c.b16 %v13429, %v13427
    %v13530 = vpack.c.b16 %v13432, %v13430
    %v13531 = vpack.c.b16 %v13433, %v13431
    %v13532 = vpack.c.b16 %v13436, %v13434
    %v13533 = vpack.c.b16 %v13437, %v13435
    %v13534 = vpack.c.b16 %v13440, %v13438
    %v13535 = vpack.c.b16 %v13441, %v13439
    %v13536 = vpack.c.b16 %v13444, %v13442
    %v13537 = vpack.c.b16 %v13445, %v13443
    %v13538 = vpack.c.b16 %v13448, %v13446
    %v13539 = vpack.c.b16 %v13449, %v13447
    %v13540 = vpack.c.b16 %v13452, %v13450
    %v13541 = vpack.c.b16 %v13453, %v13451
    %v13542 = vpack.c.b16 %v13456, %v13454
    %v13543 = vpack.c.b16 %v13457, %v13455
    %v13544 = vpack.c.b16 %v13460, %v13458
    %v13545 = vpack.c.b16 %v13461, %v13459
    %v13546 = vpack.c.b16 %v13464, %v13462
    %v13547 = vpack.c.b16 %v13465, %v13463
    %v13548 = vpack.c.b16 %v13468, %v13466
    %v13549 = vpack.c.b16 %v13469, %v13467
    %v13550 = vpack.c.b16 %v13472, %v13470
    %v13551 = vpack.c.b16 %v13473, %v13471
    %v13552 = vpack.c.b16 %v13476, %v13474
    %v13553 = vpack.c.b16 %v13477, %v13475
    %v13554 = vpack.c.b16 %v13480, %v13478
    %v13555 = vpack.c.b16 %v13481, %v13479
    %v13556 = vpack.c.b16 %v13484, %v13482
    %v13557 = vpack.c.b16 %v13485, %v13483
    %v13558 = vpack.c.b16 %v13488, %v13486
    %v13559 = vpack.c.b16 %v13489, %v13487
    %v13560 = vpack.c.b16 %v13492, %v13490
    %v13561 = vpack.c.b16 %v13493, %v13491
    %v13562 = vpack.c.b16 %v13496, %v13494
    %v13563 = vpack.c.b16 %v13497, %v13495
    %v13564 = vpack.c.b16 %v13500, %v13498
    %v13565 = vpack.c.b16 %v13501, %v13499
    %13630 = vmatprep.subr.bf16.mxu0 %v13517
    %13631 = vmatpush1.bf16.msra.mxu0 %v13516
    %13632 = vmatprep.subr.bf16.mxu0 %v13515
    %13633 = vmatpush1.bf16.msra.mxu0 %v13514
    %13634 = vmatprep.subr.bf16.mxu0 %v13513
    %13635 = vmatpush1.bf16.msra.mxu0 %v13512
    %13636 = vmatprep.subr.bf16.mxu0 %v13511
    %13637 = vmatpush1.bf16.msra.mxu0 %v13510
    %13638 = vmatprep.subr.bf16.mxu0 %v13509
    %13639 = vmatpush1.bf16.msra.mxu0 %v13508
    %13640 = vmatprep.subr.bf16.mxu0 %v13507
    %13641 = vmatpush1.bf16.msra.mxu0 %v13506
    %13642 = vmatprep.subr.bf16.mxu0 %v13505
    %13643 = vmatpush1.bf16.msra.mxu0 %v13504
    %13644 = vmatprep.subr.bf16.mxu0 %v13503
    %13645 = vmatpush1.bf16.msra.mxu0 %v13502
    %13646 = vmatprep.subr.bf16.mxu0 %v13533
    %13647 = vmatpush2.bf16.msra.mxu0 %v13532
    %13648 = vmatprep.subr.bf16.mxu0 %v13531
    %13649 = vmatpush2.bf16.msra.mxu0 %v13530
    %13650 = vmatprep.subr.bf16.mxu0 %v13529
    %13651 = vmatpush2.bf16.msra.mxu0 %v13528
    %13652 = vmatprep.subr.bf16.mxu0 %v13527
    %13653 = vmatpush2.bf16.msra.mxu0 %v13526
    %13654 = vmatprep.subr.bf16.mxu0 %v13525
    %13655 = vmatpush2.bf16.msra.mxu0 %v13524
    %13656 = vmatprep.subr.bf16.mxu0 %v13523
    %13657 = vmatpush2.bf16.msra.mxu0 %v13522
    %13658 = vmatprep.subr.bf16.mxu0 %v13521
    %13659 = vmatpush2.bf16.msra.mxu0 %v13520
    %13660 = vmatprep.subr.bf16.mxu0 %v13519
    %13661 = vmatpush2.bf16.msra.mxu0 %v13518
    %13662 = vmatprep.mubr.bf16.mxu0 %v13231
    %13663 = vmatmul.mubr.bf16.gmra.mxu0 %v13230
    %v13664 = vpop.f32.mrf.mxu0
    %v13665 = vadd.f32 %v13303, %v13664
    %v13666 = vpop.f32.mrf.mxu0
    %v13667 = vadd.f32 %v13307, %v13666
    %v13668 = vpop.f32.mrf.mxu0
    %v13669 = vpop.f32.mrf.mxu0
    %13670 = vdwg.mxu0
    %13671 = vmatprep.subr.bf16.mxu0 %v13549
    %13672 = vmatpush1.bf16.msra.mxu0 %v13548
    %13673 = vmatprep.subr.bf16.mxu0 %v13547
    %13674 = vmatpush1.bf16.msra.mxu0 %v13546
    %13675 = vmatprep.subr.bf16.mxu0 %v13545
    %13676 = vmatpush1.bf16.msra.mxu0 %v13544
    %13677 = vmatprep.subr.bf16.mxu0 %v13543
    %13678 = vmatpush1.bf16.msra.mxu0 %v13542
    %13679 = vmatprep.subr.bf16.mxu0 %v13541
    %13680 = vmatpush1.bf16.msra.mxu0 %v13540
    %13681 = vmatprep.subr.bf16.mxu0 %v13539
    %13682 = vmatpush1.bf16.msra.mxu0 %v13538
    %13683 = vmatprep.subr.bf16.mxu0 %v13537
    %13684 = vmatpush1.bf16.msra.mxu0 %v13536
    %13685 = vmatprep.subr.bf16.mxu0 %v13535
    %13686 = vmatpush1.bf16.msra.mxu0 %v13534
    %13687 = vmatprep.subr.bf16.mxu0 %v13565
    %13688 = vmatpush2.bf16.msra.mxu0 %v13564
    %13689 = vmatprep.subr.bf16.mxu0 %v13563
    %13690 = vmatpush2.bf16.msra.mxu0 %v13562
    %13691 = vmatprep.subr.bf16.mxu0 %v13561
    %13692 = vmatpush2.bf16.msra.mxu0 %v13560
    %13693 = vmatprep.subr.bf16.mxu0 %v13559
    %13694 = vmatpush2.bf16.msra.mxu0 %v13558
    %13695 = vmatprep.subr.bf16.mxu0 %v13557
    %13696 = vmatpush2.bf16.msra.mxu0 %v13556
    %13697 = vmatprep.subr.bf16.mxu0 %v13555
    %13698 = vmatpush2.bf16.msra.mxu0 %v13554
    %13699 = vmatprep.subr.bf16.mxu0 %v13553
    %13700 = vmatpush2.bf16.msra.mxu0 %v13552
    %13701 = vmatprep.subr.bf16.mxu0 %v13551
    %13702 = vmatpush2.bf16.msra.mxu0 %v13550
    %13703 = vmatprep.mubr.bf16.mxu0 %v13233
    %13704 = vmatmul.mubr.bf16.gmra.mxu0 %v13232
    %v13705 = vpop.f32.mrf.mxu0
    %v13706 = vadd.f32 %v13665, %v13705
    %v13707 = vpop.f32.mrf.mxu0
    %v13708 = vadd.f32 %v13667, %v13707
    %v13709 = vpop.f32.mrf.mxu0
    %v13710 = vpop.f32.mrf.mxu0
    %13711 = vdwg.mxu0
    %13712 = vst [vmem:[#allocation2] sm:$0xff] %v13706
    %13713 = vst [vmem:[#allocation2 + $0x8] sm:$0xff] %v13708
    // Predicated region
    $region26: #{tpu_custom_call.1} parent=1 // pred_check
      _
    $region27: #{tpu_custom_call.1} parent=1 // pred_check_branch
      %13715 = sbr.rel (0) target = $region29
    $region28: #{tpu_custom_call.1} parent=1 // pred_region
      %s13717 = ssub.s32 256, 256
      %13718 = vsyncadd [#allocation3], %s13717
      %s13720 = sshll.u32 [#allocation2], 4
      %s13721 = int_to_ptr.vmem [resolvable:$true] %s13720
      %13723 = dma.vmem_to_hbm [thread:$0]  %s13721, 256, %s6, [#allocation3]
    $region29: #{tpu_custom_call.1} parent=1 // pred_fallthru
      _
    // Predicated region
    $region30: #{tpu_custom_call.1} parent=1 // pred_check
      _
    $region31: #{tpu_custom_call.1} parent=1 // pred_check_branch
      %13725 = sbr.rel (0) target = $region33
    $region32: #{tpu_custom_call.1} parent=1 // pred_region
      %13726 = dma.done [#allocation3], 256
    $region33: #{tpu_custom_call.1} parent=1 // pred_fallthru
      _
    %13727 = vsyncpa [#allocation3], 1

</llo_original>
